<compile_context>
chip_gen: v7x
topology: tpu7x:2x2x1
jax: 0.10.0
libtpu: 0.0.40
codegen_flags: <defaults>
</compile_context>

<pallas_src>
import functools
import math

import numpy as np
import jax
import jax.numpy as jnp
from jax.experimental import pallas as pl
from jax.experimental.pallas import tpu as pltpu


H = W = 9                  # input_crop_size = 4  ->  image_size = 2*4 + 1 = 9
S = H * W                  # 81 real spatial positions per image
S_PAD = 88                 # per-image rows padded to a sublane multiple (11 * 8)
C_IN, C1, C2, C3 = 4, 16, 32, 64
N_OUT = 7                  # [mean(3), softplus(std)(3), sigmoid(weight)(1)]
EPS = 1e-5
ROW_PAD = 16               # halo rows above/below the shift buffer (>= max|tap offset|=10, 8-aligned)

_TAPS = tuple((dy, dx) for dy in (-1, 0, 1) for dx in (-1, 0, 1))
_TAP_OFFS = tuple(dy * W + dx for (dy, dx) in _TAPS)

_VMEM = pl.BlockSpec(memory_space=pltpu.MemorySpace.VMEM)


# ---------------------------------------------------------------------------
# Host-precomputed constant masks / selectors (static functions of the batch size)
# ---------------------------------------------------------------------------

@functools.lru_cache(maxsize=None)
def _tap_masks_np(n):
    """(n*S_PAD, 9) 0/1: mask[r, t] = 1 iff row r is a real pixel and tap t stays
    inside the 9x9 image (zero-padding border of the 3x3 conv)."""
    m = np.zeros((n * S_PAD, 9), np.float32)
    for i in range(n):
        for y in range(H):
            for x in range(W):
                r = i * S_PAD + y * W + x
                for t, (dy, dx) in enumerate(_TAPS):
                    if 0 <= y + dy < H and 0 <= x + dx < W:
                        m[r, t] = 1.0
    return m


@functools.lru_cache(maxsize=None)
def _image_selector_np(n):
    """(n, n*S_PAD) 0/1: selects each image's 81 real rows for the head reduction."""
    s = np.zeros((n, n * S_PAD), np.float32)
    for i in range(n):
        s[i, i * S_PAD:i * S_PAD + S] = 1.0
    return s


@functools.lru_cache(maxsize=None)
def _head_group_selector_np():
    """(7*64, 7) 0/1 block selector: sums each head's 64-channel lane block."""
    g = np.zeros((N_OUT * C3, N_OUT), np.float32)
    for j in range(N_OUT):
        g[j * C3:(j + 1) * C3, j] = 1.0
    return g


# ---------------------------------------------------------------------------
# The single fused Pallas kernel
# ---------------------------------------------------------------------------

def _fused_kernel(x_ref, msk_ref, w1_ref, p1_ref, w2_ref, p2_ref, w3_ref, p3_ref,
                  whd_ref, g_ref, sel_ref, hb_ref, o_ref, apad_ref, work_ref,
                  *, n_batch, m_valid):
    # x_ref:    (MP, C_IN) f32   activation rows (image, y, x) x channel, MP = n*S_PAD
    # msk_ref:  (MP, 9)    f32   per-row tap border masks (col 4 == valid-row mask)
    # wK_ref:   (9*Cin, Cout) bf16 packed im2col conv weights
    # pK_ref:   (3, Cout)  f32   stacked [bias; gamma; beta]
    # whd_ref:  (S_PAD, 7*64) f32 per-image head weights (shared by all images)
    # g_ref:    (7*64, 7)  bf16  0/1 head-group selector
    # sel_ref:  (N, MP)    f32   0/1 per-image row selector
    # hb_ref:   (1, 7)     f32   head biases
    # o_ref:    (N, 7)     f32   fused head output
    # apad_ref: (MP+2*ROW_PAD, 64) f32 scratch: halo-padded activations (tap shifts)
    # work_ref: (MP, 7*64) f32 scratch: im2col / head workspace
    mp = x_ref.shape[0]
    pad = ROW_PAD
    masks = msk_ref[...]                         # (MP, 9) - loaded once, reused by all layers
    rv = masks[:, 4:5]                           # valid-row mask (center tap)
    inv_m = 1.0 / float(m_valid)

    # Zero the halo rows once; each layer only rewrites rows [pad, pad+mp).
    apad_ref[0:pad, :] = jnp.zeros((pad, apad_ref.shape[1]), jnp.float32)
    apad_ref[pad + mp:, :] = jnp.zeros(
        (apad_ref.shape[0] - pad - mp, apad_ref.shape[1]), jnp.float32)

    def conv_relu_bn(a, w_ref, p_ref):
        cin = a.shape[1]
        # Stage the layer input into the halo buffer (aligned store at offset 16).
        apad_ref[pad:pad + mp, 0:cin] = a
        # in-kernel im2col: each tap is a cheap shifted slice load * border mask,
        # written into its lane block of the workspace.
        for t, off in enumerate(_TAP_OFFS):
            shifted = apad_ref[pad + off:pad + off + mp, 0:cin]
            work_ref[:, t * cin:(t + 1) * cin] = shifted * masks[:, t:t + 1]
        im = work_ref[:, 0:9 * cin].astype(jnp.bfloat16)     # single cast per layer
        y = jnp.dot(im, w_ref[...], preferred_element_type=jnp.float32)
        y = jnp.maximum(y + p_ref[0:1, :], 0.0)              # bias + ReLU
        # BatchNorm2d, training-mode batch stats over the m_valid real rows only
        # (one masked pass: mean + E[y^2]).
        yv = y * rv
        mean = jnp.sum(yv, axis=0, keepdims=True) * inv_m
        ex2 = jnp.sum(yv * yv, axis=0, keepdims=True) * inv_m
        var = jnp.maximum(ex2 - mean * mean, 0.0)
        scale = p_ref[1:2, :] * jax.lax.rsqrt(var + EPS)     # gamma * rsqrt(var+eps)
        shift = p_ref[2:3, :] - mean * scale                 # beta - mean*scale
        return y * scale + shift

    a1 = conv_relu_bn(x_ref[...], w1_ref, p1_ref)            # (MP, 16)
    a2 = conv_relu_bn(a1, w2_ref, p2_ref)                    # (MP, 32)
    a3 = conv_relu_bn(a2, w3_ref, p3_ref)                    # (MP, 64)

    # --- fused FC heads: z[i, j] = sum_{s,c} a3[i*88+s, c] * W[j, c*81+s] + b[j]
    whdv = whd_ref[...]                                      # (S_PAD, 448), reused per image
    for i in range(n_batch):
        a3i = a3[i * S_PAD:(i + 1) * S_PAD, :]               # (88, 64) aligned slice
        for j in range(N_OUT):
            work_ref[i * S_PAD:(i + 1) * S_PAD, j * C3:(j + 1) * C3] = (
                a3i * whdv[:, j * C3:(j + 1) * C3])
    e = work_ref[...].astype(jnp.bfloat16)                   # (MP, 448)
    d = jnp.dot(e, g_ref[...], preferred_element_type=jnp.float32)      # (MP, 7) per-head row dots
    z = jnp.dot(sel_ref[...], d, preferred_element_type=jnp.float32) + hb_ref[...]   # (N, 7)

    softplus = jnp.maximum(z, 0.0) + jnp.log(1.0 + jnp.exp(-jnp.abs(z)))  # stable
    sigmoid = 1.0 / (1.0 + jnp.exp(-z))
    ocol = jax.lax.broadcasted_iota(jnp.int32, z.shape, 1)
    o_ref[...] = jnp.where(ocol < 3, z, jnp.where(ocol < 6, softplus, sigmoid))


# ---------------------------------------------------------------------------
# Wrapper
# ---------------------------------------------------------------------------

def _pack_conv(w_oihw):
    """(Cout, Cin, 3, 3) torch layout -> (9*Cin, Cout) bf16, row = tap*Cin + cin."""
    cout, cin = w_oihw.shape[0], w_oihw.shape[1]
    return jnp.transpose(w_oihw, (2, 3, 1, 0)).reshape(9 * cin, cout).astype(jnp.bfloat16)


def small_cnn_forward(x_nchw, params):
    n, c, h, w = x_nchw.shape
    assert (c, h, w) == (C_IN, H, W), (c, h, w)
    mp = n * S_PAD

    # NCHW -> row-major (image, y, x) x channel, each image padded to 88 rows.
    x_rows = jnp.transpose(x_nchw, (0, 2, 3, 1)).reshape(n, S, c)
    x_rows = jnp.pad(x_rows, ((0, 0), (0, S_PAD - S), (0, 0))).reshape(mp, c)

    masks = jnp.asarray(_tap_masks_np(n))                    # (MP, 9)   f32
    sel = jnp.asarray(_image_selector_np(n))                 # (N, MP)   f32
    gsel = jnp.asarray(_head_group_selector_np()).astype(jnp.bfloat16)   # (448, 7)

    # Conv weights packed for the im2col matmul; BN params stacked [bias;gamma;beta].
    w1 = _pack_conv(params["conv1_w"])
    w2 = _pack_conv(params["conv2_w"])
    w3 = _pack_conv(params["conv3_w"])
    p1 = jnp.stack([params["conv1_b"], params["bn1_gamma"], params["bn1_beta"]], axis=0)
    p2 = jnp.stack([params["conv2_b"], params["bn2_gamma"], params["bn2_beta"]], axis=0)
    p3 = jnp.stack([params["conv3_b"], params["bn3_gamma"], params["bn3_beta"]], axis=0)

    # Head weights once (NOT batch-tiled): whd[s, j*64 + c] = W[j, c*81 + s], pad rows 0.
    w_head = jnp.concatenate(
        [params["fc_mean_w"], params["fc_std_w"], params["fc_weight_w"]], axis=0)   # (7, 5184)
    whd = jnp.transpose(w_head.reshape(N_OUT, C3, S), (2, 0, 1)).reshape(S, N_OUT * C3)
    whd = jnp.pad(whd, ((0, S_PAD - S), (0, 0)))                                    # (88, 448)
    hb = jnp.concatenate(
        [params["fc_mean_b"], params["fc_std_b"], params["fc_weight_b"]])[None, :]  # (1, 7)

    scratch_bytes = (mp + 2 * ROW_PAD) * C3 * 4 + mp * N_OUT * C3 * 4
    vmem_limit = int(min(112 * 2 ** 20, max(32 * 2 ** 20, 6 * scratch_bytes)))

    kernel = functools.partial(_fused_kernel, n_batch=n, m_valid=n * S)
    return pl.pallas_call(
        kernel,
        out_shape=jax.ShapeDtypeStruct((n, N_OUT), jnp.float32),
        in_specs=[_VMEM] * 12,
        out_specs=_VMEM,
        scratch_shapes=[
            pltpu.VMEM((mp + 2 * ROW_PAD, C3), jnp.float32),     # halo-padded activations
            pltpu.VMEM((mp, N_OUT * C3), jnp.float32),           # im2col / head workspace
        ],
        compiler_params=pltpu.CompilerParams(vmem_limit_bytes=vmem_limit),
    )(x_rows, masks, w1, p1, w2, p2, w3, p3, whd, gsel, sel, hb)


# ---------------------------------------------------------------------------
# Parameter initialization (PyTorch-like uniform(-1/sqrt(fan_in), 1/sqrt(fan_in)))
# ---------------------------------------------------------------------------

def _uniform(key, shape, bound):
    return jax.random.uniform(key, shape, jnp.float32, -bound, bound)


def init_params(key, input_channels=C_IN):
    ks = jax.random.split(key, 12)
    p = {}
    cin = input_channels
    ki = 0
    for li, cout in enumerate((C1, C2, C3), start=1):
        bound = 1.0 / math.sqrt(cin * 9)
        p[f"conv{li}_w"] = _uniform(ks[ki], (cout, cin, 3, 3), bound); ki += 1
        p[f"conv{li}_b"] = _uniform(ks[ki], (cout,), bound); ki += 1
        p[f"bn{li}_gamma"] = jnp.ones((cout,), jnp.float32)
        p[f"bn{li}_beta"] = jnp.zeros((cout,), jnp.float32)
        cin = cout
    feat = C3 * S
    bound = 1.0 / math.sqrt(feat)
    p["fc_mean_w"] = _uniform(ks[ki], (3, feat), bound); ki += 1
    p["fc_mean_b"] = _uniform(ks[ki], (3,), bound); ki += 1
    p["fc_std_w"] = _uniform(ks[ki], (3, feat), bound); ki += 1
    p["fc_std_b"] = _uniform(ks[ki], (3,), bound); ki += 1
    p["fc_weight_w"] = _uniform(ks[ki], (1, feat), bound); ki += 1
    p["fc_weight_b"] = _uniform(ks[ki], (1,), bound); ki += 1
    return p


# ---------------------------------------------------------------------------
# Pure-JAX reference (correctness sanity check)
# ---------------------------------------------------------------------------

def reference_forward(x, params):
    h = x
    for li in (1, 2, 3):
        w = params[f"conv{li}_w"]                 # (Cout, Cin, 3, 3)
        b = params[f"conv{li}_b"]
        gamma, beta = params[f"bn{li}_gamma"], params[f"bn{li}_beta"]
        y = jax.lax.conv_general_dilated(
            h, w, window_strides=(1, 1), padding="SAME",
            dimension_numbers=("NCHW", "OIHW", "NCHW"))
        y = jnp.maximum(y + b[None, :, None, None], 0.0)
        mean = jnp.mean(y, axis=(0, 2, 3), keepdims=True)
        var = jnp.mean((y - mean) ** 2, axis=(0, 2, 3), keepdims=True)
        h = ((y - mean) * jax.lax.rsqrt(var + EPS) * gamma[None, :, None, None]
             + beta[None, :, None, None])
    n = h.shape[0]
    feat = h.reshape(n, -1)                       # NCHW flatten: f = c*81 + s
    zm = feat @ params["fc_mean_w"].T + params["fc_mean_b"][None, :]
    zs = feat @ params["fc_std_w"].T + params["fc_std_b"][None, :]
    zw = feat @ params["fc_weight_w"].T + params["fc_weight_b"][None, :]
    sp = jnp.maximum(zs, 0.0) + jnp.log1p(jnp.exp(-jnp.abs(zs)))
    return jnp.concatenate([zm, sp, jax.nn.sigmoid(zw)], axis=1)


# ---------------------------------------------------------------------------
# Main
# ---------------------------------------------------------------------------

if __name__ == "__main__":
    key = jax.random.PRNGKey(0)
    k_param, k_input = jax.random.split(key)

    batch = 2
    x = jax.random.normal(k_input, (batch, C_IN, H, W), jnp.float32)
    params = init_params(k_param)

    fwd = jax.jit(small_cnn_forward)
    out = jax.block_until_ready(fwd(x, params))

    assert out.shape == (batch, N_OUT), out.shape
    assert bool(jnp.all(jnp.isfinite(out)))
    # columns 3..5 are softplus outputs (>0), column 6 is a sigmoid output (0..1)
    assert bool(jnp.all(out[:, 3:6] > 0.0))
    assert bool(jnp.all((out[:, 6] > 0.0) & (out[:, 6] < 1.0)))

    # sanity check against the pure-JAX reference (tolerance covers bf16 MXU inputs)
    ref = reference_forward(x, params)
    max_err = float(jnp.max(jnp.abs(out - ref)))
    assert bool(jnp.allclose(out, ref, atol=1e-1, rtol=1e-1)), max_err

    print("KERNEL_OK")
</pallas_src>

<mosaic_0001>
module attributes {stable_mosaic.version = 11 : i64} {
  func.func @_fused_kernel(%arg0: memref<176x4xf32, #tpu.memory_space<vmem>>, %arg1: memref<176x9xf32, #tpu.memory_space<vmem>>, %arg2: memref<36x16xbf16, #tpu.memory_space<vmem>>, %arg3: memref<3x16xf32, #tpu.memory_space<vmem>>, %arg4: memref<144x32xbf16, #tpu.memory_space<vmem>>, %arg5: memref<3x32xf32, #tpu.memory_space<vmem>>, %arg6: memref<288x64xbf16, #tpu.memory_space<vmem>>, %arg7: memref<3x64xf32, #tpu.memory_space<vmem>>, %arg8: memref<88x448xf32, #tpu.memory_space<vmem>>, %arg9: memref<448x7xbf16, #tpu.memory_space<vmem>>, %arg10: memref<2x176xf32, #tpu.memory_space<vmem>>, %arg11: memref<1x7xf32, #tpu.memory_space<vmem>>, %arg12: memref<2x7xf32, #tpu.memory_space<vmem>>, %arg13: memref<208x64xf32, #tpu.memory_space<vmem>>, %arg14: memref<176x448xf32, #tpu.memory_space<vmem>>) attributes {dimension_semantics = [], scalar_prefetch = 0 : i64, scratch_operands = 2 : i64, tpu.core_type = #tpu.core_type<tc>} {
    %c0 = arith.constant 0 : index
    %c0_0 = arith.constant 0 : index
    %0 = vector.load %arg1[%c0, %c0_0] : memref<176x9xf32, #tpu.memory_space<vmem>>, vector<176x9xf32>
    %1 = vector.extract_strided_slice %0 {offsets = [0, 4], sizes = [176, 1], strides = [1, 1]} : vector<176x9xf32> to vector<176x1xf32>
    %cst = arith.constant 0.000000e+00 : f32
    %2 = vector.broadcast %cst : f32 to vector<16x64xf32>
    %c0_1 = arith.constant 0 : index
    %c0_2 = arith.constant 0 : index
    %3 = vector.load %arg13[%c0_1, %c0_2] : memref<208x64xf32, #tpu.memory_space<vmem>>, vector<16x64xf32>
    tpu.vector_store %arg13[%c0_1, %c0_2], %2 {strides = array<i32>} : memref<208x64xf32, #tpu.memory_space<vmem>>, vector<16x64xf32>,
    %cst_3 = arith.constant 0.000000e+00 : f32
    %4 = vector.broadcast %cst_3 : f32 to vector<16x64xf32>
    %c192 = arith.constant 192 : index
    %c0_4 = arith.constant 0 : index
    %5 = vector.load %arg13[%c192, %c0_4] : memref<208x64xf32, #tpu.memory_space<vmem>>, vector<16x64xf32>
    tpu.vector_store %arg13[%c192, %c0_4], %4 {strides = array<i32>} : memref<208x64xf32, #tpu.memory_space<vmem>>, vector<16x64xf32>,
    %c0_5 = arith.constant 0 : index
    %c0_6 = arith.constant 0 : index
    %6 = vector.load %arg0[%c0_5, %c0_6] : memref<176x4xf32, #tpu.memory_space<vmem>>, vector<176x4xf32>
    %c16 = arith.constant 16 : index
    %c0_7 = arith.constant 0 : index
    %7 = vector.load %arg13[%c16, %c0_7] : memref<208x64xf32, #tpu.memory_space<vmem>>, vector<176x4xf32>
    tpu.vector_store %arg13[%c16, %c0_7], %6 {strides = array<i32>} : memref<208x64xf32, #tpu.memory_space<vmem>>, vector<176x4xf32>,
    %c6 = arith.constant 6 : index
    %c0_8 = arith.constant 0 : index
    %8 = vector.load %arg13[%c6, %c0_8] : memref<208x64xf32, #tpu.memory_space<vmem>>, vector<176x4xf32>
    %9 = vector.extract_strided_slice %0 {offsets = [0, 0], sizes = [176, 1], strides = [1, 1]} : vector<176x9xf32> to vector<176x1xf32>
    %10 = vector.broadcast %9 : vector<176x1xf32> to vector<176x4xf32>
    %11 = arith.mulf %8, %10 : vector<176x4xf32>
    %c0_9 = arith.constant 0 : index
    %c0_10 = arith.constant 0 : index
    %12 = vector.load %arg14[%c0_9, %c0_10] : memref<176x448xf32, #tpu.memory_space<vmem>>, vector<176x4xf32>
    tpu.vector_store %arg14[%c0_9, %c0_10], %11 {strides = array<i32>} : memref<176x448xf32, #tpu.memory_space<vmem>>, vector<176x4xf32>,
    %c7 = arith.constant 7 : index
    %c0_11 = arith.constant 0 : index
    %13 = vector.load %arg13[%c7, %c0_11] : memref<208x64xf32, #tpu.memory_space<vmem>>, vector<176x4xf32>
    %14 = vector.extract_strided_slice %0 {offsets = [0, 1], sizes = [176, 1], strides = [1, 1]} : vector<176x9xf32> to vector<176x1xf32>
    %15 = vector.broadcast %14 : vector<176x1xf32> to vector<176x4xf32>
    %16 = arith.mulf %13, %15 : vector<176x4xf32>
    %c0_12 = arith.constant 0 : index
    %c4 = arith.constant 4 : index
    %17 = vector.load %arg14[%c0_12, %c4] : memref<176x448xf32, #tpu.memory_space<vmem>>, vector<176x4xf32>
    tpu.vector_store %arg14[%c0_12, %c4], %16 {strides = array<i32>} : memref<176x448xf32, #tpu.memory_space<vmem>>, vector<176x4xf32>,
    %c8 = arith.constant 8 : index
    %c0_13 = arith.constant 0 : index
    %18 = vector.load %arg13[%c8, %c0_13] : memref<208x64xf32, #tpu.memory_space<vmem>>, vector<176x4xf32>
    %19 = vector.extract_strided_slice %0 {offsets = [0, 2], sizes = [176, 1], strides = [1, 1]} : vector<176x9xf32> to vector<176x1xf32>
    %20 = vector.broadcast %19 : vector<176x1xf32> to vector<176x4xf32>
    %21 = arith.mulf %18, %20 : vector<176x4xf32>
    %c0_14 = arith.constant 0 : index
    %c8_15 = arith.constant 8 : index
    %22 = vector.load %arg14[%c0_14, %c8_15] : memref<176x448xf32, #tpu.memory_space<vmem>>, vector<176x4xf32>
    tpu.vector_store %arg14[%c0_14, %c8_15], %21 {strides = array<i32>} : memref<176x448xf32, #tpu.memory_space<vmem>>, vector<176x4xf32>,
    %c15 = arith.constant 15 : index
    %c0_16 = arith.constant 0 : index
    %23 = vector.load %arg13[%c15, %c0_16] : memref<208x64xf32, #tpu.memory_space<vmem>>, vector<176x4xf32>
    %24 = vector.extract_strided_slice %0 {offsets = [0, 3], sizes = [176, 1], strides = [1, 1]} : vector<176x9xf32> to vector<176x1xf32>
    %25 = vector.broadcast %24 : vector<176x1xf32> to vector<176x4xf32>
    %26 = arith.mulf %23, %25 : vector<176x4xf32>
    %c0_17 = arith.constant 0 : index
    %c12 = arith.constant 12 : index
    %27 = vector.load %arg14[%c0_17, %c12] : memref<176x448xf32, #tpu.memory_space<vmem>>, vector<176x4xf32>
    tpu.vector_store %arg14[%c0_17, %c12], %26 {strides = array<i32>} : memref<176x448xf32, #tpu.memory_space<vmem>>, vector<176x4xf32>,
    %c16_18 = arith.constant 16 : index
    %c0_19 = arith.constant 0 : index
    %28 = vector.load %arg13[%c16_18, %c0_19] : memref<208x64xf32, #tpu.memory_space<vmem>>, vector<176x4xf32>
    %29 = vector.extract_strided_slice %0 {offsets = [0, 4], sizes = [176, 1], strides = [1, 1]} : vector<176x9xf32> to vector<176x1xf32>
    %30 = vector.broadcast %29 : vector<176x1xf32> to vector<176x4xf32>
    %31 = arith.mulf %28, %30 : vector<176x4xf32>
    %c0_20 = arith.constant 0 : index
    %c16_21 = arith.constant 16 : index
    %32 = vector.load %arg14[%c0_20, %c16_21] : memref<176x448xf32, #tpu.memory_space<vmem>>, vector<176x4xf32>
    tpu.vector_store %arg14[%c0_20, %c16_21], %31 {strides = array<i32>} : memref<176x448xf32, #tpu.memory_space<vmem>>, vector<176x4xf32>,
    %c17 = arith.constant 17 : index
    %c0_22 = arith.constant 0 : index
    %33 = vector.load %arg13[%c17, %c0_22] : memref<208x64xf32, #tpu.memory_space<vmem>>, vector<176x4xf32>
    %34 = vector.extract_strided_slice %0 {offsets = [0, 5], sizes = [176, 1], strides = [1, 1]} : vector<176x9xf32> to vector<176x1xf32>
    %35 = vector.broadcast %34 : vector<176x1xf32> to vector<176x4xf32>
    %36 = arith.mulf %33, %35 : vector<176x4xf32>
    %c0_23 = arith.constant 0 : index
    %c20 = arith.constant 20 : index
    %37 = vector.load %arg14[%c0_23, %c20] : memref<176x448xf32, #tpu.memory_space<vmem>>, vector<176x4xf32>
    tpu.vector_store %arg14[%c0_23, %c20], %36 {strides = array<i32>} : memref<176x448xf32, #tpu.memory_space<vmem>>, vector<176x4xf32>,
    %c24 = arith.constant 24 : index
    %c0_24 = arith.constant 0 : index
    %38 = vector.load %arg13[%c24, %c0_24] : memref<208x64xf32, #tpu.memory_space<vmem>>, vector<176x4xf32>
    %39 = vector.extract_strided_slice %0 {offsets = [0, 6], sizes = [176, 1], strides = [1, 1]} : vector<176x9xf32> to vector<176x1xf32>
    %40 = vector.broadcast %39 : vector<176x1xf32> to vector<176x4xf32>
    %41 = arith.mulf %38, %40 : vector<176x4xf32>
    %c0_25 = arith.constant 0 : index
    %c24_26 = arith.constant 24 : index
    %42 = vector.load %arg14[%c0_25, %c24_26] : memref<176x448xf32, #tpu.memory_space<vmem>>, vector<176x4xf32>
    tpu.vector_store %arg14[%c0_25, %c24_26], %41 {strides = array<i32>} : memref<176x448xf32, #tpu.memory_space<vmem>>, vector<176x4xf32>,
    %c25 = arith.constant 25 : index
    %c0_27 = arith.constant 0 : index
    %43 = vector.load %arg13[%c25, %c0_27] : memref<208x64xf32, #tpu.memory_space<vmem>>, vector<176x4xf32>
    %44 = vector.extract_strided_slice %0 {offsets = [0, 7], sizes = [176, 1], strides = [1, 1]} : vector<176x9xf32> to vector<176x1xf32>
    %45 = vector.broadcast %44 : vector<176x1xf32> to vector<176x4xf32>
    %46 = arith.mulf %43, %45 : vector<176x4xf32>
    %c0_28 = arith.constant 0 : index
    %c28 = arith.constant 28 : index
    %47 = vector.load %arg14[%c0_28, %c28] : memref<176x448xf32, #tpu.memory_space<vmem>>, vector<176x4xf32>
    tpu.vector_store %arg14[%c0_28, %c28], %46 {strides = array<i32>} : memref<176x448xf32, #tpu.memory_space<vmem>>, vector<176x4xf32>,
    %c26 = arith.constant 26 : index
    %c0_29 = arith.constant 0 : index
    %48 = vector.load %arg13[%c26, %c0_29] : memref<208x64xf32, #tpu.memory_space<vmem>>, vector<176x4xf32>
    %49 = vector.extract_strided_slice %0 {offsets = [0, 8], sizes = [176, 1], strides = [1, 1]} : vector<176x9xf32> to vector<176x1xf32>
    %50 = vector.broadcast %49 : vector<176x1xf32> to vector<176x4xf32>
    %51 = arith.mulf %48, %50 : vector<176x4xf32>
    %c0_30 = arith.constant 0 : index
    %c32 = arith.constant 32 : index
    %52 = vector.load %arg14[%c0_30, %c32] : memref<176x448xf32, #tpu.memory_space<vmem>>, vector<176x4xf32>
    tpu.vector_store %arg14[%c0_30, %c32], %51 {strides = array<i32>} : memref<176x448xf32, #tpu.memory_space<vmem>>, vector<176x4xf32>,
    %c0_31 = arith.constant 0 : index
    %c0_32 = arith.constant 0 : index
    %53 = vector.load %arg14[%c0_31, %c0_32] : memref<176x448xf32, #tpu.memory_space<vmem>>, vector<176x36xf32>
    %54 = arith.truncf %53 : vector<176x36xf32> to vector<176x36xbf16>
    %c0_33 = arith.constant 0 : index
    %c0_34 = arith.constant 0 : index
    %55 = vector.load %arg2[%c0_33, %c0_34] : memref<36x16xbf16, #tpu.memory_space<vmem>>, vector<36x16xbf16>
    %cst_35 = arith.constant dense<0.000000e+00> : vector<176x16xf32>
    %56 = tpu.matmul %54, %55, %cst_35 {dimension_numbers = #tpu.dot_dimension_numbers<[1], [0], [0], [1], [0, 0, 1, 1], [], []>} : vector<176x36xbf16>, vector<36x16xbf16>, vector<176x16xf32> -> vector<176x16xf32>
    %c0_36 = arith.constant 0 : index
    %c0_37 = arith.constant 0 : index
    %57 = vector.load %arg3[%c0_36, %c0_37] : memref<3x16xf32, #tpu.memory_space<vmem>>, vector<1x16xf32>
    %58 = vector.broadcast %57 : vector<1x16xf32> to vector<176x16xf32>
    %59 = arith.addf %56, %58 : vector<176x16xf32>
    %cst_38 = arith.constant 0.000000e+00 : f32
    %60 = vector.broadcast %cst_38 : f32 to vector<176x16xf32>
    %61 = arith.maximumf %59, %60 : vector<176x16xf32>
    %62 = vector.broadcast %1 : vector<176x1xf32> to vector<176x16xf32>
    %63 = arith.mulf %61, %62 : vector<176x16xf32>
    %cst_39 = arith.constant dense<0.000000e+00> : vector<16xf32>
    %64 = vector.multi_reduction <add>, %63, %cst_39 [0] : vector<176x16xf32> to vector<16xf32>
    %65 = vector.shape_cast %64 : vector<16xf32> to vector<1x16xf32>
    %cst_40 = arith.constant 0.00617283955 : f32
    %66 = vector.broadcast %cst_40 : f32 to vector<1x16xf32>
    %67 = arith.mulf %65, %66 : vector<1x16xf32>
    %68 = arith.mulf %63, %63 : vector<176x16xf32>
    %cst_41 = arith.constant dense<0.000000e+00> : vector<16xf32>
    %69 = vector.multi_reduction <add>, %68, %cst_41 [0] : vector<176x16xf32> to vector<16xf32>
    %70 = vector.shape_cast %69 : vector<16xf32> to vector<1x16xf32>
    %cst_42 = arith.constant 0.00617283955 : f32
    %71 = vector.broadcast %cst_42 : f32 to vector<1x16xf32>
    %72 = arith.mulf %70, %71 : vector<1x16xf32>
    %73 = arith.mulf %67, %67 : vector<1x16xf32>
    %74 = arith.subf %72, %73 : vector<1x16xf32>
    %cst_43 = arith.constant 0.000000e+00 : f32
    %75 = vector.broadcast %cst_43 : f32 to vector<1x16xf32>
    %76 = arith.maximumf %74, %75 : vector<1x16xf32>
    %c1 = arith.constant 1 : index
    %c0_44 = arith.constant 0 : index
    %77 = vector.load %arg3[%c1, %c0_44] : memref<3x16xf32, #tpu.memory_space<vmem>>, vector<1x16xf32>
    %cst_45 = arith.constant 9.99999974E-6 : f32
    %78 = vector.broadcast %cst_45 : f32 to vector<1x16xf32>
    %79 = arith.addf %76, %78 : vector<1x16xf32>
    %80 = math.rsqrt %79 : vector<1x16xf32>
    %81 = arith.mulf %77, %80 : vector<1x16xf32>
    %c2 = arith.constant 2 : index
    %c0_46 = arith.constant 0 : index
    %82 = vector.load %arg3[%c2, %c0_46] : memref<3x16xf32, #tpu.memory_space<vmem>>, vector<1x16xf32>
    %83 = arith.mulf %67, %81 : vector<1x16xf32>
    %84 = arith.subf %82, %83 : vector<1x16xf32>
    %85 = vector.broadcast %81 : vector<1x16xf32> to vector<176x16xf32>
    %86 = arith.mulf %61, %85 : vector<176x16xf32>
    %87 = vector.broadcast %84 : vector<1x16xf32> to vector<176x16xf32>
    %88 = arith.addf %86, %87 : vector<176x16xf32>
    %c16_47 = arith.constant 16 : index
    %c0_48 = arith.constant 0 : index
    %89 = vector.load %arg13[%c16_47, %c0_48] : memref<208x64xf32, #tpu.memory_space<vmem>>, vector<176x16xf32>
    tpu.vector_store %arg13[%c16_47, %c0_48], %88 {strides = array<i32>} : memref<208x64xf32, #tpu.memory_space<vmem>>, vector<176x16xf32>,
    %c6_49 = arith.constant 6 : index
    %c0_50 = arith.constant 0 : index
    %90 = vector.load %arg13[%c6_49, %c0_50] : memref<208x64xf32, #tpu.memory_space<vmem>>, vector<176x16xf32>
    %91 = vector.extract_strided_slice %0 {offsets = [0, 0], sizes = [176, 1], strides = [1, 1]} : vector<176x9xf32> to vector<176x1xf32>
    %92 = vector.broadcast %91 : vector<176x1xf32> to vector<176x16xf32>
    %93 = arith.mulf %90, %92 : vector<176x16xf32>
    %c0_51 = arith.constant 0 : index
    %c0_52 = arith.constant 0 : index
    %94 = vector.load %arg14[%c0_51, %c0_52] : memref<176x448xf32, #tpu.memory_space<vmem>>, vector<176x16xf32>
    tpu.vector_store %arg14[%c0_51, %c0_52], %93 {strides = array<i32>} : memref<176x448xf32, #tpu.memory_space<vmem>>, vector<176x16xf32>,
    %c7_53 = arith.constant 7 : index
    %c0_54 = arith.constant 0 : index
    %95 = vector.load %arg13[%c7_53, %c0_54] : memref<208x64xf32, #tpu.memory_space<vmem>>, vector<176x16xf32>
    %96 = vector.extract_strided_slice %0 {offsets = [0, 1], sizes = [176, 1], strides = [1, 1]} : vector<176x9xf32> to vector<176x1xf32>
    %97 = vector.broadcast %96 : vector<176x1xf32> to vector<176x16xf32>
    %98 = arith.mulf %95, %97 : vector<176x16xf32>
    %c0_55 = arith.constant 0 : index
    %c16_56 = arith.constant 16 : index
    %99 = vector.load %arg14[%c0_55, %c16_56] : memref<176x448xf32, #tpu.memory_space<vmem>>, vector<176x16xf32>
    tpu.vector_store %arg14[%c0_55, %c16_56], %98 {strides = array<i32>} : memref<176x448xf32, #tpu.memory_space<vmem>>, vector<176x16xf32>,
    %c8_57 = arith.constant 8 : index
    %c0_58 = arith.constant 0 : index
    %100 = vector.load %arg13[%c8_57, %c0_58] : memref<208x64xf32, #tpu.memory_space<vmem>>, vector<176x16xf32>
    %101 = vector.extract_strided_slice %0 {offsets = [0, 2], sizes = [176, 1], strides = [1, 1]} : vector<176x9xf32> to vector<176x1xf32>
    %102 = vector.broadcast %101 : vector<176x1xf32> to vector<176x16xf32>
    %103 = arith.mulf %100, %102 : vector<176x16xf32>
    %c0_59 = arith.constant 0 : index
    %c32_60 = arith.constant 32 : index
    %104 = vector.load %arg14[%c0_59, %c32_60] : memref<176x448xf32, #tpu.memory_space<vmem>>, vector<176x16xf32>
    tpu.vector_store %arg14[%c0_59, %c32_60], %103 {strides = array<i32>} : memref<176x448xf32, #tpu.memory_space<vmem>>, vector<176x16xf32>,
    %c15_61 = arith.constant 15 : index
    %c0_62 = arith.constant 0 : index
    %105 = vector.load %arg13[%c15_61, %c0_62] : memref<208x64xf32, #tpu.memory_space<vmem>>, vector<176x16xf32>
    %106 = vector.extract_strided_slice %0 {offsets = [0, 3], sizes = [176, 1], strides = [1, 1]} : vector<176x9xf32> to vector<176x1xf32>
    %107 = vector.broadcast %106 : vector<176x1xf32> to vector<176x16xf32>
    %108 = arith.mulf %105, %107 : vector<176x16xf32>
    %c0_63 = arith.constant 0 : index
    %c48 = arith.constant 48 : index
    %109 = vector.load %arg14[%c0_63, %c48] : memref<176x448xf32, #tpu.memory_space<vmem>>, vector<176x16xf32>
    tpu.vector_store %arg14[%c0_63, %c48], %108 {strides = array<i32>} : memref<176x448xf32, #tpu.memory_space<vmem>>, vector<176x16xf32>,
    %c16_64 = arith.constant 16 : index
    %c0_65 = arith.constant 0 : index
    %110 = vector.load %arg13[%c16_64, %c0_65] : memref<208x64xf32, #tpu.memory_space<vmem>>, vector<176x16xf32>
    %111 = vector.extract_strided_slice %0 {offsets = [0, 4], sizes = [176, 1], strides = [1, 1]} : vector<176x9xf32> to vector<176x1xf32>
    %112 = vector.broadcast %111 : vector<176x1xf32> to vector<176x16xf32>
    %113 = arith.mulf %110, %112 : vector<176x16xf32>
    %c0_66 = arith.constant 0 : index
    %c64 = arith.constant 64 : index
    %114 = vector.load %arg14[%c0_66, %c64] : memref<176x448xf32, #tpu.memory_space<vmem>>, vector<176x16xf32>
    tpu.vector_store %arg14[%c0_66, %c64], %113 {strides = array<i32>} : memref<176x448xf32, #tpu.memory_space<vmem>>, vector<176x16xf32>,
    %c17_67 = arith.constant 17 : index
    %c0_68 = arith.constant 0 : index
    %115 = vector.load %arg13[%c17_67, %c0_68] : memref<208x64xf32, #tpu.memory_space<vmem>>, vector<176x16xf32>
    %116 = vector.extract_strided_slice %0 {offsets = [0, 5], sizes = [176, 1], strides = [1, 1]} : vector<176x9xf32> to vector<176x1xf32>
    %117 = vector.broadcast %116 : vector<176x1xf32> to vector<176x16xf32>
    %118 = arith.mulf %115, %117 : vector<176x16xf32>
    %c0_69 = arith.constant 0 : index
    %c80 = arith.constant 80 : index
    %119 = vector.load %arg14[%c0_69, %c80] : memref<176x448xf32, #tpu.memory_space<vmem>>, vector<176x16xf32>
    tpu.vector_store %arg14[%c0_69, %c80], %118 {strides = array<i32>} : memref<176x448xf32, #tpu.memory_space<vmem>>, vector<176x16xf32>,
    %c24_70 = arith.constant 24 : index
    %c0_71 = arith.constant 0 : index
    %120 = vector.load %arg13[%c24_70, %c0_71] : memref<208x64xf32, #tpu.memory_space<vmem>>, vector<176x16xf32>
    %121 = vector.extract_strided_slice %0 {offsets = [0, 6], sizes = [176, 1], strides = [1, 1]} : vector<176x9xf32> to vector<176x1xf32>
    %122 = vector.broadcast %121 : vector<176x1xf32> to vector<176x16xf32>
    %123 = arith.mulf %120, %122 : vector<176x16xf32>
    %c0_72 = arith.constant 0 : index
    %c96 = arith.constant 96 : index
    %124 = vector.load %arg14[%c0_72, %c96] : memref<176x448xf32, #tpu.memory_space<vmem>>, vector<176x16xf32>
    tpu.vector_store %arg14[%c0_72, %c96], %123 {strides = array<i32>} : memref<176x448xf32, #tpu.memory_space<vmem>>, vector<176x16xf32>,
    %c25_73 = arith.constant 25 : index
    %c0_74 = arith.constant 0 : index
    %125 = vector.load %arg13[%c25_73, %c0_74] : memref<208x64xf32, #tpu.memory_space<vmem>>, vector<176x16xf32>
    %126 = vector.extract_strided_slice %0 {offsets = [0, 7], sizes = [176, 1], strides = [1, 1]} : vector<176x9xf32> to vector<176x1xf32>
    %127 = vector.broadcast %126 : vector<176x1xf32> to vector<176x16xf32>
    %128 = arith.mulf %125, %127 : vector<176x16xf32>
    %c0_75 = arith.constant 0 : index
    %c112 = arith.constant 112 : index
    %129 = vector.load %arg14[%c0_75, %c112] : memref<176x448xf32, #tpu.memory_space<vmem>>, vector<176x16xf32>
    tpu.vector_store %arg14[%c0_75, %c112], %128 {strides = array<i32>} : memref<176x448xf32, #tpu.memory_space<vmem>>, vector<176x16xf32>,
    %c26_76 = arith.constant 26 : index
    %c0_77 = arith.constant 0 : index
    %130 = vector.load %arg13[%c26_76, %c0_77] : memref<208x64xf32, #tpu.memory_space<vmem>>, vector<176x16xf32>
    %131 = vector.extract_strided_slice %0 {offsets = [0, 8], sizes = [176, 1], strides = [1, 1]} : vector<176x9xf32> to vector<176x1xf32>
    %132 = vector.broadcast %131 : vector<176x1xf32> to vector<176x16xf32>
    %133 = arith.mulf %130, %132 : vector<176x16xf32>
    %c0_78 = arith.constant 0 : index
    %c128 = arith.constant 128 : index
    %134 = vector.load %arg14[%c0_78, %c128] : memref<176x448xf32, #tpu.memory_space<vmem>>, vector<176x16xf32>
    tpu.vector_store %arg14[%c0_78, %c128], %133 {strides = array<i32>} : memref<176x448xf32, #tpu.memory_space<vmem>>, vector<176x16xf32>,
    %c0_79 = arith.constant 0 : index
    %c0_80 = arith.constant 0 : index
    %135 = vector.load %arg14[%c0_79, %c0_80] : memref<176x448xf32, #tpu.memory_space<vmem>>, vector<176x144xf32>
    %136 = arith.truncf %135 : vector<176x144xf32> to vector<176x144xbf16>
    %c0_81 = arith.constant 0 : index
    %c0_82 = arith.constant 0 : index
    %137 = vector.load %arg4[%c0_81, %c0_82] : memref<144x32xbf16, #tpu.memory_space<vmem>>, vector<144x32xbf16>
    %cst_83 = arith.constant dense<0.000000e+00> : vector<176x32xf32>
    %138 = tpu.matmul %136, %137, %cst_83 {dimension_numbers = #tpu.dot_dimension_numbers<[1], [0], [0], [1], [0, 0, 1, 1], [], []>} : vector<176x144xbf16>, vector<144x32xbf16>, vector<176x32xf32> -> vector<176x32xf32>
    %c0_84 = arith.constant 0 : index
    %c0_85 = arith.constant 0 : index
    %139 = vector.load %arg5[%c0_84, %c0_85] : memref<3x32xf32, #tpu.memory_space<vmem>>, vector<1x32xf32>
    %140 = vector.broadcast %139 : vector<1x32xf32> to vector<176x32xf32>
    %141 = arith.addf %138, %140 : vector<176x32xf32>
    %cst_86 = arith.constant 0.000000e+00 : f32
    %142 = vector.broadcast %cst_86 : f32 to vector<176x32xf32>
    %143 = arith.maximumf %141, %142 : vector<176x32xf32>
    %144 = vector.broadcast %1 : vector<176x1xf32> to vector<176x32xf32>
    %145 = arith.mulf %143, %144 : vector<176x32xf32>
    %cst_87 = arith.constant dense<0.000000e+00> : vector<32xf32>
    %146 = vector.multi_reduction <add>, %145, %cst_87 [0] : vector<176x32xf32> to vector<32xf32>
    %147 = vector.shape_cast %146 : vector<32xf32> to vector<1x32xf32>
    %cst_88 = arith.constant 0.00617283955 : f32
    %148 = vector.broadcast %cst_88 : f32 to vector<1x32xf32>
    %149 = arith.mulf %147, %148 : vector<1x32xf32>
    %150 = arith.mulf %145, %145 : vector<176x32xf32>
    %cst_89 = arith.constant dense<0.000000e+00> : vector<32xf32>
    %151 = vector.multi_reduction <add>, %150, %cst_89 [0] : vector<176x32xf32> to vector<32xf32>
    %152 = vector.shape_cast %151 : vector<32xf32> to vector<1x32xf32>
    %cst_90 = arith.constant 0.00617283955 : f32
    %153 = vector.broadcast %cst_90 : f32 to vector<1x32xf32>
    %154 = arith.mulf %152, %153 : vector<1x32xf32>
    %155 = arith.mulf %149, %149 : vector<1x32xf32>
    %156 = arith.subf %154, %155 : vector<1x32xf32>
    %cst_91 = arith.constant 0.000000e+00 : f32
    %157 = vector.broadcast %cst_91 : f32 to vector<1x32xf32>
    %158 = arith.maximumf %156, %157 : vector<1x32xf32>
    %c1_92 = arith.constant 1 : index
    %c0_93 = arith.constant 0 : index
    %159 = vector.load %arg5[%c1_92, %c0_93] : memref<3x32xf32, #tpu.memory_space<vmem>>, vector<1x32xf32>
    %cst_94 = arith.constant 9.99999974E-6 : f32
    %160 = vector.broadcast %cst_94 : f32 to vector<1x32xf32>
    %161 = arith.addf %158, %160 : vector<1x32xf32>
    %162 = math.rsqrt %161 : vector<1x32xf32>
    %163 = arith.mulf %159, %162 : vector<1x32xf32>
    %c2_95 = arith.constant 2 : index
    %c0_96 = arith.constant 0 : index
    %164 = vector.load %arg5[%c2_95, %c0_96] : memref<3x32xf32, #tpu.memory_space<vmem>>, vector<1x32xf32>
    %165 = arith.mulf %149, %163 : vector<1x32xf32>
    %166 = arith.subf %164, %165 : vector<1x32xf32>
    %167 = vector.broadcast %163 : vector<1x32xf32> to vector<176x32xf32>
    %168 = arith.mulf %143, %167 : vector<176x32xf32>
    %169 = vector.broadcast %166 : vector<1x32xf32> to vector<176x32xf32>
    %170 = arith.addf %168, %169 : vector<176x32xf32>
    %c16_97 = arith.constant 16 : index
    %c0_98 = arith.constant 0 : index
    %171 = vector.load %arg13[%c16_97, %c0_98] : memref<208x64xf32, #tpu.memory_space<vmem>>, vector<176x32xf32>
    tpu.vector_store %arg13[%c16_97, %c0_98], %170 {strides = array<i32>} : memref<208x64xf32, #tpu.memory_space<vmem>>, vector<176x32xf32>,
    %c6_99 = arith.constant 6 : index
    %c0_100 = arith.constant 0 : index
    %172 = vector.load %arg13[%c6_99, %c0_100] : memref<208x64xf32, #tpu.memory_space<vmem>>, vector<176x32xf32>
    %173 = vector.extract_strided_slice %0 {offsets = [0, 0], sizes = [176, 1], strides = [1, 1]} : vector<176x9xf32> to vector<176x1xf32>
    %174 = vector.broadcast %173 : vector<176x1xf32> to vector<176x32xf32>
    %175 = arith.mulf %172, %174 : vector<176x32xf32>
    %c0_101 = arith.constant 0 : index
    %c0_102 = arith.constant 0 : index
    %176 = vector.load %arg14[%c0_101, %c0_102] : memref<176x448xf32, #tpu.memory_space<vmem>>, vector<176x32xf32>
    tpu.vector_store %arg14[%c0_101, %c0_102], %175 {strides = array<i32>} : memref<176x448xf32, #tpu.memory_space<vmem>>, vector<176x32xf32>,
    %c7_103 = arith.constant 7 : index
    %c0_104 = arith.constant 0 : index
    %177 = vector.load %arg13[%c7_103, %c0_104] : memref<208x64xf32, #tpu.memory_space<vmem>>, vector<176x32xf32>
    %178 = vector.extract_strided_slice %0 {offsets = [0, 1], sizes = [176, 1], strides = [1, 1]} : vector<176x9xf32> to vector<176x1xf32>
    %179 = vector.broadcast %178 : vector<176x1xf32> to vector<176x32xf32>
    %180 = arith.mulf %177, %179 : vector<176x32xf32>
    %c0_105 = arith.constant 0 : index
    %c32_106 = arith.constant 32 : index
    %181 = vector.load %arg14[%c0_105, %c32_106] : memref<176x448xf32, #tpu.memory_space<vmem>>, vector<176x32xf32>
    tpu.vector_store %arg14[%c0_105, %c32_106], %180 {strides = array<i32>} : memref<176x448xf32, #tpu.memory_space<vmem>>, vector<176x32xf32>,
    %c8_107 = arith.constant 8 : index
    %c0_108 = arith.constant 0 : index
    %182 = vector.load %arg13[%c8_107, %c0_108] : memref<208x64xf32, #tpu.memory_space<vmem>>, vector<176x32xf32>
    %183 = vector.extract_strided_slice %0 {offsets = [0, 2], sizes = [176, 1], strides = [1, 1]} : vector<176x9xf32> to vector<176x1xf32>
    %184 = vector.broadcast %183 : vector<176x1xf32> to vector<176x32xf32>
    %185 = arith.mulf %182, %184 : vector<176x32xf32>
    %c0_109 = arith.constant 0 : index
    %c64_110 = arith.constant 64 : index
    %186 = vector.load %arg14[%c0_109, %c64_110] : memref<176x448xf32, #tpu.memory_space<vmem>>, vector<176x32xf32>
    tpu.vector_store %arg14[%c0_109, %c64_110], %185 {strides = array<i32>} : memref<176x448xf32, #tpu.memory_space<vmem>>, vector<176x32xf32>,
    %c15_111 = arith.constant 15 : index
    %c0_112 = arith.constant 0 : index
    %187 = vector.load %arg13[%c15_111, %c0_112] : memref<208x64xf32, #tpu.memory_space<vmem>>, vector<176x32xf32>
    %188 = vector.extract_strided_slice %0 {offsets = [0, 3], sizes = [176, 1], strides = [1, 1]} : vector<176x9xf32> to vector<176x1xf32>
    %189 = vector.broadcast %188 : vector<176x1xf32> to vector<176x32xf32>
    %190 = arith.mulf %187, %189 : vector<176x32xf32>
    %c0_113 = arith.constant 0 : index
    %c96_114 = arith.constant 96 : index
    %191 = vector.load %arg14[%c0_113, %c96_114] : memref<176x448xf32, #tpu.memory_space<vmem>>, vector<176x32xf32>
    tpu.vector_store %arg14[%c0_113, %c96_114], %190 {strides = array<i32>} : memref<176x448xf32, #tpu.memory_space<vmem>>, vector<176x32xf32>,
    %c16_115 = arith.constant 16 : index
    %c0_116 = arith.constant 0 : index
    %192 = vector.load %arg13[%c16_115, %c0_116] : memref<208x64xf32, #tpu.memory_space<vmem>>, vector<176x32xf32>
    %193 = vector.extract_strided_slice %0 {offsets = [0, 4], sizes = [176, 1], strides = [1, 1]} : vector<176x9xf32> to vector<176x1xf32>
    %194 = vector.broadcast %193 : vector<176x1xf32> to vector<176x32xf32>
    %195 = arith.mulf %192, %194 : vector<176x32xf32>
    %c0_117 = arith.constant 0 : index
    %c128_118 = arith.constant 128 : index
    %196 = vector.load %arg14[%c0_117, %c128_118] : memref<176x448xf32, #tpu.memory_space<vmem>>, vector<176x32xf32>
    tpu.vector_store %arg14[%c0_117, %c128_118], %195 {strides = array<i32>} : memref<176x448xf32, #tpu.memory_space<vmem>>, vector<176x32xf32>,
    %c17_119 = arith.constant 17 : index
    %c0_120 = arith.constant 0 : index
    %197 = vector.load %arg13[%c17_119, %c0_120] : memref<208x64xf32, #tpu.memory_space<vmem>>, vector<176x32xf32>
    %198 = vector.extract_strided_slice %0 {offsets = [0, 5], sizes = [176, 1], strides = [1, 1]} : vector<176x9xf32> to vector<176x1xf32>
    %199 = vector.broadcast %198 : vector<176x1xf32> to vector<176x32xf32>
    %200 = arith.mulf %197, %199 : vector<176x32xf32>
    %c0_121 = arith.constant 0 : index
    %c160 = arith.constant 160 : index
    %201 = vector.load %arg14[%c0_121, %c160] : memref<176x448xf32, #tpu.memory_space<vmem>>, vector<176x32xf32>
    tpu.vector_store %arg14[%c0_121, %c160], %200 {strides = array<i32>} : memref<176x448xf32, #tpu.memory_space<vmem>>, vector<176x32xf32>,
    %c24_122 = arith.constant 24 : index
    %c0_123 = arith.constant 0 : index
    %202 = vector.load %arg13[%c24_122, %c0_123] : memref<208x64xf32, #tpu.memory_space<vmem>>, vector<176x32xf32>
    %203 = vector.extract_strided_slice %0 {offsets = [0, 6], sizes = [176, 1], strides = [1, 1]} : vector<176x9xf32> to vector<176x1xf32>
    %204 = vector.broadcast %203 : vector<176x1xf32> to vector<176x32xf32>
    %205 = arith.mulf %202, %204 : vector<176x32xf32>
    %c0_124 = arith.constant 0 : index
    %c192_125 = arith.constant 192 : index
    %206 = vector.load %arg14[%c0_124, %c192_125] : memref<176x448xf32, #tpu.memory_space<vmem>>, vector<176x32xf32>
    tpu.vector_store %arg14[%c0_124, %c192_125], %205 {strides = array<i32>} : memref<176x448xf32, #tpu.memory_space<vmem>>, vector<176x32xf32>,
    %c25_126 = arith.constant 25 : index
    %c0_127 = arith.constant 0 : index
    %207 = vector.load %arg13[%c25_126, %c0_127] : memref<208x64xf32, #tpu.memory_space<vmem>>, vector<176x32xf32>
    %208 = vector.extract_strided_slice %0 {offsets = [0, 7], sizes = [176, 1], strides = [1, 1]} : vector<176x9xf32> to vector<176x1xf32>
    %209 = vector.broadcast %208 : vector<176x1xf32> to vector<176x32xf32>
    %210 = arith.mulf %207, %209 : vector<176x32xf32>
    %c0_128 = arith.constant 0 : index
    %c224 = arith.constant 224 : index
    %211 = vector.load %arg14[%c0_128, %c224] : memref<176x448xf32, #tpu.memory_space<vmem>>, vector<176x32xf32>
    tpu.vector_store %arg14[%c0_128, %c224], %210 {strides = array<i32>} : memref<176x448xf32, #tpu.memory_space<vmem>>, vector<176x32xf32>,
    %c26_129 = arith.constant 26 : index
    %c0_130 = arith.constant 0 : index
    %212 = vector.load %arg13[%c26_129, %c0_130] : memref<208x64xf32, #tpu.memory_space<vmem>>, vector<176x32xf32>
    %213 = vector.extract_strided_slice %0 {offsets = [0, 8], sizes = [176, 1], strides = [1, 1]} : vector<176x9xf32> to vector<176x1xf32>
    %214 = vector.broadcast %213 : vector<176x1xf32> to vector<176x32xf32>
    %215 = arith.mulf %212, %214 : vector<176x32xf32>
    %c0_131 = arith.constant 0 : index
    %c256 = arith.constant 256 : index
    %216 = vector.load %arg14[%c0_131, %c256] : memref<176x448xf32, #tpu.memory_space<vmem>>, vector<176x32xf32>
    tpu.vector_store %arg14[%c0_131, %c256], %215 {strides = array<i32>} : memref<176x448xf32, #tpu.memory_space<vmem>>, vector<176x32xf32>,
    %c0_132 = arith.constant 0 : index
    %c0_133 = arith.constant 0 : index
    %217 = vector.load %arg14[%c0_132, %c0_133] : memref<176x448xf32, #tpu.memory_space<vmem>>, vector<176x288xf32>
    %218 = arith.truncf %217 : vector<176x288xf32> to vector<176x288xbf16>
    %c0_134 = arith.constant 0 : index
    %c0_135 = arith.constant 0 : index
    %219 = vector.load %arg6[%c0_134, %c0_135] : memref<288x64xbf16, #tpu.memory_space<vmem>>, vector<288x64xbf16>
    %cst_136 = arith.constant dense<0.000000e+00> : vector<176x64xf32>
    %220 = tpu.matmul %218, %219, %cst_136 {dimension_numbers = #tpu.dot_dimension_numbers<[1], [0], [0], [1], [0, 0, 1, 1], [], []>} : vector<176x288xbf16>, vector<288x64xbf16>, vector<176x64xf32> -> vector<176x64xf32>
    %c0_137 = arith.constant 0 : index
    %c0_138 = arith.constant 0 : index
    %221 = vector.load %arg7[%c0_137, %c0_138] : memref<3x64xf32, #tpu.memory_space<vmem>>, vector<1x64xf32>
    %222 = vector.broadcast %221 : vector<1x64xf32> to vector<176x64xf32>
    %223 = arith.addf %220, %222 : vector<176x64xf32>
    %cst_139 = arith.constant 0.000000e+00 : f32
    %224 = vector.broadcast %cst_139 : f32 to vector<176x64xf32>
    %225 = arith.maximumf %223, %224 : vector<176x64xf32>
    %226 = vector.broadcast %1 : vector<176x1xf32> to vector<176x64xf32>
    %227 = arith.mulf %225, %226 : vector<176x64xf32>
    %cst_140 = arith.constant dense<0.000000e+00> : vector<64xf32>
    %228 = vector.multi_reduction <add>, %227, %cst_140 [0] : vector<176x64xf32> to vector<64xf32>
    %229 = vector.shape_cast %228 : vector<64xf32> to vector<1x64xf32>
    %cst_141 = arith.constant 0.00617283955 : f32
    %230 = vector.broadcast %cst_141 : f32 to vector<1x64xf32>
    %231 = arith.mulf %229, %230 : vector<1x64xf32>
    %232 = arith.mulf %227, %227 : vector<176x64xf32>
    %cst_142 = arith.constant dense<0.000000e+00> : vector<64xf32>
    %233 = vector.multi_reduction <add>, %232, %cst_142 [0] : vector<176x64xf32> to vector<64xf32>
    %234 = vector.shape_cast %233 : vector<64xf32> to vector<1x64xf32>
    %cst_143 = arith.constant 0.00617283955 : f32
    %235 = vector.broadcast %cst_143 : f32 to vector<1x64xf32>
    %236 = arith.mulf %234, %235 : vector<1x64xf32>
    %237 = arith.mulf %231, %231 : vector<1x64xf32>
    %238 = arith.subf %236, %237 : vector<1x64xf32>
    %cst_144 = arith.constant 0.000000e+00 : f32
    %239 = vector.broadcast %cst_144 : f32 to vector<1x64xf32>
    %240 = arith.maximumf %238, %239 : vector<1x64xf32>
    %c1_145 = arith.constant 1 : index
    %c0_146 = arith.constant 0 : index
    %241 = vector.load %arg7[%c1_145, %c0_146] : memref<3x64xf32, #tpu.memory_space<vmem>>, vector<1x64xf32>
    %cst_147 = arith.constant 9.99999974E-6 : f32
    %242 = vector.broadcast %cst_147 : f32 to vector<1x64xf32>
    %243 = arith.addf %240, %242 : vector<1x64xf32>
    %244 = math.rsqrt %243 : vector<1x64xf32>
    %245 = arith.mulf %241, %244 : vector<1x64xf32>
    %c2_148 = arith.constant 2 : index
    %c0_149 = arith.constant 0 : index
    %246 = vector.load %arg7[%c2_148, %c0_149] : memref<3x64xf32, #tpu.memory_space<vmem>>, vector<1x64xf32>
    %247 = arith.mulf %231, %245 : vector<1x64xf32>
    %248 = arith.subf %246, %247 : vector<1x64xf32>
    %249 = vector.broadcast %245 : vector<1x64xf32> to vector<176x64xf32>
    %250 = arith.mulf %225, %249 : vector<176x64xf32>
    %251 = vector.broadcast %248 : vector<1x64xf32> to vector<176x64xf32>
    %252 = arith.addf %250, %251 : vector<176x64xf32>
    %c0_150 = arith.constant 0 : index
    %c0_151 = arith.constant 0 : index
    %253 = vector.load %arg8[%c0_150, %c0_151] : memref<88x448xf32, #tpu.memory_space<vmem>>, vector<88x448xf32>
    %254 = vector.extract_strided_slice %252 {offsets = [0, 0], sizes = [88, 64], strides = [1, 1]} : vector<176x64xf32> to vector<88x64xf32>
    %255 = vector.extract_strided_slice %253 {offsets = [0, 0], sizes = [88, 64], strides = [1, 1]} : vector<88x448xf32> to vector<88x64xf32>
    %256 = arith.mulf %254, %255 : vector<88x64xf32>
    %c0_152 = arith.constant 0 : index
    %c0_153 = arith.constant 0 : index
    %257 = vector.load %arg14[%c0_152, %c0_153] : memref<176x448xf32, #tpu.memory_space<vmem>>, vector<88x64xf32>
    tpu.vector_store %arg14[%c0_152, %c0_153], %256 {strides = array<i32>} : memref<176x448xf32, #tpu.memory_space<vmem>>, vector<88x64xf32>,
    %258 = vector.extract_strided_slice %253 {offsets = [0, 64], sizes = [88, 64], strides = [1, 1]} : vector<88x448xf32> to vector<88x64xf32>
    %259 = arith.mulf %254, %258 : vector<88x64xf32>
    %c0_154 = arith.constant 0 : index
    %c64_155 = arith.constant 64 : index
    %260 = vector.load %arg14[%c0_154, %c64_155] : memref<176x448xf32, #tpu.memory_space<vmem>>, vector<88x64xf32>
    tpu.vector_store %arg14[%c0_154, %c64_155], %259 {strides = array<i32>} : memref<176x448xf32, #tpu.memory_space<vmem>>, vector<88x64xf32>,
    %261 = vector.extract_strided_slice %253 {offsets = [0, 128], sizes = [88, 64], strides = [1, 1]} : vector<88x448xf32> to vector<88x64xf32>
    %262 = arith.mulf %254, %261 : vector<88x64xf32>
    %c0_156 = arith.constant 0 : index
    %c128_157 = arith.constant 128 : index
    %263 = vector.load %arg14[%c0_156, %c128_157] : memref<176x448xf32, #tpu.memory_space<vmem>>, vector<88x64xf32>
    tpu.vector_store %arg14[%c0_156, %c128_157], %262 {strides = array<i32>} : memref<176x448xf32, #tpu.memory_space<vmem>>, vector<88x64xf32>,
    %264 = vector.extract_strided_slice %253 {offsets = [0, 192], sizes = [88, 64], strides = [1, 1]} : vector<88x448xf32> to vector<88x64xf32>
    %265 = arith.mulf %254, %264 : vector<88x64xf32>
    %c0_158 = arith.constant 0 : index
    %c192_159 = arith.constant 192 : index
    %266 = vector.load %arg14[%c0_158, %c192_159] : memref<176x448xf32, #tpu.memory_space<vmem>>, vector<88x64xf32>
    tpu.vector_store %arg14[%c0_158, %c192_159], %265 {strides = array<i32>} : memref<176x448xf32, #tpu.memory_space<vmem>>, vector<88x64xf32>,
    %267 = vector.extract_strided_slice %253 {offsets = [0, 256], sizes = [88, 64], strides = [1, 1]} : vector<88x448xf32> to vector<88x64xf32>
    %268 = arith.mulf %254, %267 : vector<88x64xf32>
    %c0_160 = arith.constant 0 : index
    %c256_161 = arith.constant 256 : index
    %269 = vector.load %arg14[%c0_160, %c256_161] : memref<176x448xf32, #tpu.memory_space<vmem>>, vector<88x64xf32>
    tpu.vector_store %arg14[%c0_160, %c256_161], %268 {strides = array<i32>} : memref<176x448xf32, #tpu.memory_space<vmem>>, vector<88x64xf32>,
    %270 = vector.extract_strided_slice %253 {offsets = [0, 320], sizes = [88, 64], strides = [1, 1]} : vector<88x448xf32> to vector<88x64xf32>
    %271 = arith.mulf %254, %270 : vector<88x64xf32>
    %c0_162 = arith.constant 0 : index
    %c320 = arith.constant 320 : index
    %272 = vector.load %arg14[%c0_162, %c320] : memref<176x448xf32, #tpu.memory_space<vmem>>, vector<88x64xf32>
    tpu.vector_store %arg14[%c0_162, %c320], %271 {strides = array<i32>} : memref<176x448xf32, #tpu.memory_space<vmem>>, vector<88x64xf32>,
    %273 = vector.extract_strided_slice %253 {offsets = [0, 384], sizes = [88, 64], strides = [1, 1]} : vector<88x448xf32> to vector<88x64xf32>
    %274 = arith.mulf %254, %273 : vector<88x64xf32>
    %c0_163 = arith.constant 0 : index
    %c384 = arith.constant 384 : index
    %275 = vector.load %arg14[%c0_163, %c384] : memref<176x448xf32, #tpu.memory_space<vmem>>, vector<88x64xf32>
    tpu.vector_store %arg14[%c0_163, %c384], %274 {strides = array<i32>} : memref<176x448xf32, #tpu.memory_space<vmem>>, vector<88x64xf32>,
    %276 = vector.extract_strided_slice %252 {offsets = [88, 0], sizes = [88, 64], strides = [1, 1]} : vector<176x64xf32> to vector<88x64xf32>
    %277 = vector.extract_strided_slice %253 {offsets = [0, 0], sizes = [88, 64], strides = [1, 1]} : vector<88x448xf32> to vector<88x64xf32>
    %278 = arith.mulf %276, %277 : vector<88x64xf32>
    %c88 = arith.constant 88 : index
    %c0_164 = arith.constant 0 : index
    %279 = vector.load %arg14[%c88, %c0_164] : memref<176x448xf32, #tpu.memory_space<vmem>>, vector<88x64xf32>
    tpu.vector_store %arg14[%c88, %c0_164], %278 {strides = array<i32>} : memref<176x448xf32, #tpu.memory_space<vmem>>, vector<88x64xf32>,
    %280 = vector.extract_strided_slice %253 {offsets = [0, 64], sizes = [88, 64], strides = [1, 1]} : vector<88x448xf32> to vector<88x64xf32>
    %281 = arith.mulf %276, %280 : vector<88x64xf32>
    %c88_165 = arith.constant 88 : index
    %c64_166 = arith.constant 64 : index
    %282 = vector.load %arg14[%c88_165, %c64_166] : memref<176x448xf32, #tpu.memory_space<vmem>>, vector<88x64xf32>
    tpu.vector_store %arg14[%c88_165, %c64_166], %281 {strides = array<i32>} : memref<176x448xf32, #tpu.memory_space<vmem>>, vector<88x64xf32>,
    %283 = vector.extract_strided_slice %253 {offsets = [0, 128], sizes = [88, 64], strides = [1, 1]} : vector<88x448xf32> to vector<88x64xf32>
    %284 = arith.mulf %276, %283 : vector<88x64xf32>
    %c88_167 = arith.constant 88 : index
    %c128_168 = arith.constant 128 : index
    %285 = vector.load %arg14[%c88_167, %c128_168] : memref<176x448xf32, #tpu.memory_space<vmem>>, vector<88x64xf32>
    tpu.vector_store %arg14[%c88_167, %c128_168], %284 {strides = array<i32>} : memref<176x448xf32, #tpu.memory_space<vmem>>, vector<88x64xf32>,
    %286 = vector.extract_strided_slice %253 {offsets = [0, 192], sizes = [88, 64], strides = [1, 1]} : vector<88x448xf32> to vector<88x64xf32>
    %287 = arith.mulf %276, %286 : vector<88x64xf32>
    %c88_169 = arith.constant 88 : index
    %c192_170 = arith.constant 192 : index
    %288 = vector.load %arg14[%c88_169, %c192_170] : memref<176x448xf32, #tpu.memory_space<vmem>>, vector<88x64xf32>
    tpu.vector_store %arg14[%c88_169, %c192_170], %287 {strides = array<i32>} : memref<176x448xf32, #tpu.memory_space<vmem>>, vector<88x64xf32>,
    %289 = vector.extract_strided_slice %253 {offsets = [0, 256], sizes = [88, 64], strides = [1, 1]} : vector<88x448xf32> to vector<88x64xf32>
    %290 = arith.mulf %276, %289 : vector<88x64xf32>
    %c88_171 = arith.constant 88 : index
    %c256_172 = arith.constant 256 : index
    %291 = vector.load %arg14[%c88_171, %c256_172] : memref<176x448xf32, #tpu.memory_space<vmem>>, vector<88x64xf32>
    tpu.vector_store %arg14[%c88_171, %c256_172], %290 {strides = array<i32>} : memref<176x448xf32, #tpu.memory_space<vmem>>, vector<88x64xf32>,
    %292 = vector.extract_strided_slice %253 {offsets = [0, 320], sizes = [88, 64], strides = [1, 1]} : vector<88x448xf32> to vector<88x64xf32>
    %293 = arith.mulf %276, %292 : vector<88x64xf32>
    %c88_173 = arith.constant 88 : index
    %c320_174 = arith.constant 320 : index
    %294 = vector.load %arg14[%c88_173, %c320_174] : memref<176x448xf32, #tpu.memory_space<vmem>>, vector<88x64xf32>
    tpu.vector_store %arg14[%c88_173, %c320_174], %293 {strides = array<i32>} : memref<176x448xf32, #tpu.memory_space<vmem>>, vector<88x64xf32>,
    %295 = vector.extract_strided_slice %253 {offsets = [0, 384], sizes = [88, 64], strides = [1, 1]} : vector<88x448xf32> to vector<88x64xf32>
    %296 = arith.mulf %276, %295 : vector<88x64xf32>
    %c88_175 = arith.constant 88 : index
    %c384_176 = arith.constant 384 : index
    %297 = vector.load %arg14[%c88_175, %c384_176] : memref<176x448xf32, #tpu.memory_space<vmem>>, vector<88x64xf32>
    tpu.vector_store %arg14[%c88_175, %c384_176], %296 {strides = array<i32>} : memref<176x448xf32, #tpu.memory_space<vmem>>, vector<88x64xf32>,
    %c0_177 = arith.constant 0 : index
    %c0_178 = arith.constant 0 : index
    %298 = vector.load %arg14[%c0_177, %c0_178] : memref<176x448xf32, #tpu.memory_space<vmem>>, vector<176x448xf32>
    %299 = arith.truncf %298 : vector<176x448xf32> to vector<176x448xbf16>
    %c0_179 = arith.constant 0 : index
    %c0_180 = arith.constant 0 : index
    %300 = vector.load %arg9[%c0_179, %c0_180] : memref<448x7xbf16, #tpu.memory_space<vmem>>, vector<448x7xbf16>
    %cst_181 = arith.constant dense<0.000000e+00> : vector<176x7xf32>
    %301 = tpu.matmul %299, %300, %cst_181 {dimension_numbers = #tpu.dot_dimension_numbers<[1], [0], [0], [1], [0, 0, 1, 1], [], []>} : vector<176x448xbf16>, vector<448x7xbf16>, vector<176x7xf32> -> vector<176x7xf32>
    %c0_182 = arith.constant 0 : index
    %c0_183 = arith.constant 0 : index
    %302 = vector.load %arg10[%c0_182, %c0_183] : memref<2x176xf32, #tpu.memory_space<vmem>>, vector<2x176xf32>
    %cst_184 = arith.constant dense<0.000000e+00> : vector<2x7xf32>
    %303 = tpu.matmul %302, %301, %cst_184 {dimension_numbers = #tpu.dot_dimension_numbers<[1], [0], [0], [1], [0, 0, 1, 1], [], []>} : vector<2x176xf32>, vector<176x7xf32>, vector<2x7xf32> -> vector<2x7xf32>
    %c0_185 = arith.constant 0 : index
    %c0_186 = arith.constant 0 : index
    %304 = vector.load %arg11[%c0_185, %c0_186] : memref<1x7xf32, #tpu.memory_space<vmem>>, vector<1x7xf32>
    %305 = vector.broadcast %304 : vector<1x7xf32> to vector<2x7xf32>
    %306 = arith.addf %303, %305 : vector<2x7xf32>
    %cst_187 = arith.constant 0.000000e+00 : f32
    %307 = vector.broadcast %cst_187 : f32 to vector<2x7xf32>
    %308 = arith.maximumf %306, %307 : vector<2x7xf32>
    %309 = math.absf %306 : vector<2x7xf32>
    %cst_188 = arith.constant 0.000000e+00 : f32
    %310 = vector.broadcast %cst_188 : f32 to vector<2x7xf32>
    %311 = arith.subf %310, %309 : vector<2x7xf32>
    %312 = math.exp %311 : vector<2x7xf32>
    %cst_189 = arith.constant 1.000000e+00 : f32
    %313 = vector.broadcast %cst_189 : f32 to vector<2x7xf32>
    %314 = arith.addf %313, %312 : vector<2x7xf32>
    %315 = math.log %314 : vector<2x7xf32>
    %316 = arith.addf %308, %315 : vector<2x7xf32>
    %cst_190 = arith.constant 0.000000e+00 : f32
    %317 = vector.broadcast %cst_190 : f32 to vector<2x7xf32>
    %318 = arith.subf %317, %306 : vector<2x7xf32>
    %319 = math.exp %318 : vector<2x7xf32>
    %cst_191 = arith.constant 1.000000e+00 : f32
    %320 = vector.broadcast %cst_191 : f32 to vector<2x7xf32>
    %321 = arith.addf %320, %319 : vector<2x7xf32>
    %cst_192 = arith.constant 1.000000e+00 : f32
    %322 = vector.broadcast %cst_192 : f32 to vector<2x7xf32>
    %323 = arith.divf %322, %321 : vector<2x7xf32>
    %324 = tpu.iota {dimensions = array<i32: 1>} : vector<2x7xi32>
    %c3_i32 = arith.constant 3 : i32
    %325 = vector.broadcast %c3_i32 : i32 to vector<2x7xi32>
    %326 = arith.cmpi slt, %324, %325 : vector<2x7xi32>
    %c6_i32 = arith.constant 6 : i32
    %327 = vector.broadcast %c6_i32 : i32 to vector<2x7xi32>
    %328 = arith.cmpi slt, %324, %327 : vector<2x7xi32>
    %329 = arith.select %328, %316, %323 : vector<2x7xi1>, vector<2x7xf32>
    %330 = arith.select %326, %306, %329 : vector<2x7xi1>, vector<2x7xf32>
    %c0_193 = arith.constant 0 : index
    %c0_194 = arith.constant 0 : index
    %331 = vector.load %arg12[%c0_193, %c0_194] : memref<2x7xf32, #tpu.memory_space<vmem>>, vector<2x7xf32>
    tpu.vector_store %arg12[%c0_193, %c0_194], %330 {strides = array<i32>} : memref<2x7xf32, #tpu.memory_space<vmem>>, vector<2x7xf32>,
    return
  }
}

</mosaic_0001>

<llo_original>
// kernel: small_cnn_forward.1
$region0: #{small_cnn_forward.1}
  #allocation0 [shape = 'u32[]', space=smem, size = 0x4, offset = 0x4, fixed_abs, tag = 'smem constant byte address 0x4 - core index']
  #allocation1 [shape = 'u32[144,128]{1,0:T(1,128)}', space=vmem, size = 0x12000, scoped, tag = 'internal scratch']
  #allocation2 [shape = 'f32[208,64]{1,0:T(8,128)}', space=vmem, size = 0x1a000, scoped, tag = 'scratch operand']
  #allocation3 [shape = 'f32[176,448]{1,0:T(8,128)}', space=vmem, size = 0x58000, scoped, tag = 'scratch operand']
  %s0 = inlined_call_operand.vmem [shape: f32[176,4], index: 0, kind: input, shape index: {}]
  %s1 = inlined_call_operand.vmem [shape: f32[176,9], index: 1, kind: input, shape index: {}]
  %s2 = inlined_call_operand.vmem [shape: bf16[36,16], index: 2, kind: input, shape index: {}]
  %s3 = inlined_call_operand.vmem [shape: f32[3,16], index: 3, kind: input, shape index: {}]
  %s4 = inlined_call_operand.vmem [shape: bf16[144,32], index: 4, kind: input, shape index: {}]
  %s5 = inlined_call_operand.vmem [shape: f32[3,32], index: 5, kind: input, shape index: {}]
  %s6 = inlined_call_operand.vmem [shape: bf16[288,64], index: 6, kind: input, shape index: {}]
  %s7 = inlined_call_operand.vmem [shape: f32[3,64], index: 7, kind: input, shape index: {}]
  %s8 = inlined_call_operand.vmem [shape: f32[88,448], index: 8, kind: input, shape index: {}]
  %s9 = inlined_call_operand.vmem [shape: bf16[448,7], index: 9, kind: input, shape index: {}]
  %s10 = inlined_call_operand.vmem [shape: f32[2,176], index: 10, kind: input, shape index: {}]
  %s11 = inlined_call_operand.vmem [shape: f32[1,7], index: 11, kind: input, shape index: {}]
  %s12 = inlined_call_operand.hbm [shape: f32[2,7], index: 12, kind: output, shape index: {}]
  %s13 = sld [smem:[#allocation0]]
  $region58: #{small_cnn_forward.1} parent=0
    _
  %s15 = ssub.s32 1, %s13
  %s16 = scalar_select 0, %s15, %s13
  $region1: #{small_cnn_forward.1} parent=0
    #allocation4 [shape = 'u8[1024]{0}', space=vmem, size = 0x400, scoped, tag = 'output window, operand 0, single buffered']
    #allocation5 [shape = 's32[1]{0}', space=sflag, size = 0x4, scoped, tag = 'scoped memory for small_cnn_forward.1']
    %17 = vsyncpa [#allocation5], 0
    // Predicated region
    $region2: #{small_cnn_forward.1} parent=1 // pred_check
      _
    $region3: #{small_cnn_forward.1} parent=1 // pred_check_branch
      %19 = sbr.rel (0) target = $region5
    $region4: #{small_cnn_forward.1} parent=1 // pred_region
      _
    $region5: #{small_cnn_forward.1} parent=1 // pred_fallthru
      _
    // Predicated region
    $region6: #{small_cnn_forward.1} parent=1 // pred_check
      _
    $region7: #{small_cnn_forward.1} parent=1 // pred_check_branch
      %21 = sbr.rel (0) target = $region9
    $region8: #{small_cnn_forward.1} parent=1 // pred_region
      _
    $region9: #{small_cnn_forward.1} parent=1 // pred_fallthru
      _
    // Predicated region
    $region10: #{small_cnn_forward.1} parent=1 // pred_check
      _
    $region11: #{small_cnn_forward.1} parent=1 // pred_check_branch
      %23 = sbr.rel (0) target = $region13
    $region12: #{small_cnn_forward.1} parent=1 // pred_region
      _
    $region13: #{small_cnn_forward.1} parent=1 // pred_fallthru
      _
    // Predicated region
    $region14: #{small_cnn_forward.1} parent=1 // pred_check
      _
    $region15: #{small_cnn_forward.1} parent=1 // pred_check_branch
      %25 = sbr.rel (0) target = $region17
    $region16: #{small_cnn_forward.1} parent=1 // pred_region
      _
    $region17: #{small_cnn_forward.1} parent=1 // pred_fallthru
      _
    // Predicated region
    $region18: #{small_cnn_forward.1} parent=1 // pred_check
      _
    $region19: #{small_cnn_forward.1} parent=1 // pred_check_branch
      %27 = sbr.rel (0) target = $region21
    $region20: #{small_cnn_forward.1} parent=1 // pred_region
      _
    $region21: #{small_cnn_forward.1} parent=1 // pred_fallthru
      _
    // Predicated region
    $region22: #{small_cnn_forward.1} parent=1 // pred_check
      _
    $region23: #{small_cnn_forward.1} parent=1 // pred_check_branch
      %29 = sbr.rel (0) target = $region25
    $region24: #{small_cnn_forward.1} parent=1 // pred_region
      _
    $region25: #{small_cnn_forward.1} parent=1 // pred_fallthru
      _
    // Predicated region
    $region26: #{small_cnn_forward.1} parent=1 // pred_check
      _
    $region27: #{small_cnn_forward.1} parent=1 // pred_check_branch
      %31 = sbr.rel (0) target = $region29
    $region28: #{small_cnn_forward.1} parent=1 // pred_region
      _
    $region29: #{small_cnn_forward.1} parent=1 // pred_fallthru
      _
    // Predicated region
    $region30: #{small_cnn_forward.1} parent=1 // pred_check
      _
    $region31: #{small_cnn_forward.1} parent=1 // pred_check_branch
      %33 = sbr.rel (0) target = $region33
    $region32: #{small_cnn_forward.1} parent=1 // pred_region
      _
    $region33: #{small_cnn_forward.1} parent=1 // pred_fallthru
      _
    // Predicated region
    $region34: #{small_cnn_forward.1} parent=1 // pred_check
      _
    $region35: #{small_cnn_forward.1} parent=1 // pred_check_branch
      %35 = sbr.rel (0) target = $region37
    $region36: #{small_cnn_forward.1} parent=1 // pred_region
      _
    $region37: #{small_cnn_forward.1} parent=1 // pred_fallthru
      _
    // Predicated region
    $region38: #{small_cnn_forward.1} parent=1 // pred_check
      _
    $region39: #{small_cnn_forward.1} parent=1 // pred_check_branch
      %37 = sbr.rel (0) target = $region41
    $region40: #{small_cnn_forward.1} parent=1 // pred_region
      _
    $region41: #{small_cnn_forward.1} parent=1 // pred_fallthru
      _
    // Predicated region
    $region42: #{small_cnn_forward.1} parent=1 // pred_check
      _
    $region43: #{small_cnn_forward.1} parent=1 // pred_check_branch
      %39 = sbr.rel (0) target = $region45
    $region44: #{small_cnn_forward.1} parent=1 // pred_region
      _
    $region45: #{small_cnn_forward.1} parent=1 // pred_fallthru
      _
    // Predicated region
    $region46: #{small_cnn_forward.1} parent=1 // pred_check
      _
    $region47: #{small_cnn_forward.1} parent=1 // pred_check_branch
      %41 = sbr.rel (0) target = $region49
    $region48: #{small_cnn_forward.1} parent=1 // pred_region
      _
    $region49: #{small_cnn_forward.1} parent=1 // pred_fallthru
      _
    %v43 = vld [vmem:[%s1] sm:$0xff]
    %v44 = vld [vmem:[%s1 + $0x8] sm:$0xff]
    %v45 = vld [vmem:[%s1 + $0x10] sm:$0xff]
    %v46 = vld [vmem:[%s1 + $0x18] sm:$0xff]
    %v47 = vld [vmem:[%s1 + $0x20] sm:$0xff]
    %v48 = vld [vmem:[%s1 + $0x28] sm:$0xff]
    %v49 = vld [vmem:[%s1 + $0x30] sm:$0xff]
    %v50 = vld [vmem:[%s1 + $0x38] sm:$0xff]
    %v51 = vld [vmem:[%s1 + $0x40] sm:$0xff]
    %v52 = vld [vmem:[%s1 + $0x48] sm:$0xff]
    %v53 = vld [vmem:[%s1 + $0x50] sm:$0xff]
    %v54 = vld [vmem:[%s1 + $0x58] sm:$0xff]
    %v55 = vld [vmem:[%s1 + $0x60] sm:$0xff]
    %v56 = vld [vmem:[%s1 + $0x68] sm:$0xff]
    %v57 = vld [vmem:[%s1 + $0x70] sm:$0xff]
    %v58 = vld [vmem:[%s1 + $0x78] sm:$0xff]
    %v59 = vld [vmem:[%s1 + $0x80] sm:$0xff]
    %v60 = vld [vmem:[%s1 + $0x88] sm:$0xff]
    %v61 = vld [vmem:[%s1 + $0x90] sm:$0xff]
    %v62 = vld [vmem:[%s1 + $0x98] sm:$0xff]
    %v63 = vld [vmem:[%s1 + $0xa0] sm:$0xff]
    %v64 = vld [vmem:[%s1 + $0xa8] sm:$0xff]
    %vm65 = vcmask 523264
    %66 = vst.msk [vmem:[#allocation2] sm:$0xff] %vm65, 0.0
    %67 = vst.msk [vmem:[#allocation2 + $0x8] sm:$0xff] %vm65, 0.0
    %68 = vst.msk [vmem:[#allocation2 + $0xc0] sm:$0xff] %vm65, 0.0
    %69 = vst.msk [vmem:[#allocation2 + $0xc8] sm:$0xff] %vm65, 0.0
    %v70 = vld [vmem:[%s0] sm:$0xff]
    %v71 = vld [vmem:[%s0 + $0x8] sm:$0xff]
    %v72 = vld [vmem:[%s0 + $0x10] sm:$0xff]
    %v73 = vld [vmem:[%s0 + $0x18] sm:$0xff]
    %v74 = vld [vmem:[%s0 + $0x20] sm:$0xff]
    %v75 = vld [vmem:[%s0 + $0x28] sm:$0xff]
    %v76 = vld [vmem:[%s0 + $0x30] sm:$0xff]
    %v77 = vld [vmem:[%s0 + $0x38] sm:$0xff]
    %v78 = vld [vmem:[%s0 + $0x40] sm:$0xff]
    %v79 = vld [vmem:[%s0 + $0x48] sm:$0xff]
    %v80 = vld [vmem:[%s0 + $0x50] sm:$0xff]
    %v81 = vld [vmem:[%s0 + $0x58] sm:$0xff]
    %v82 = vld [vmem:[%s0 + $0x60] sm:$0xff]
    %v83 = vld [vmem:[%s0 + $0x68] sm:$0xff]
    %v84 = vld [vmem:[%s0 + $0x70] sm:$0xff]
    %v85 = vld [vmem:[%s0 + $0x78] sm:$0xff]
    %v86 = vld [vmem:[%s0 + $0x80] sm:$0xff]
    %v87 = vld [vmem:[%s0 + $0x88] sm:$0xff]
    %v88 = vld [vmem:[%s0 + $0x90] sm:$0xff]
    %v89 = vld [vmem:[%s0 + $0x98] sm:$0xff]
    %v90 = vld [vmem:[%s0 + $0xa0] sm:$0xff]
    %v91 = vld [vmem:[%s0 + $0xa8] sm:$0xff]
    %vm92 = vcmask 31744
    %93 = vst.msk [vmem:[#allocation2 + $0x10] sm:$0xff] %vm92, %v70
    %94 = vst.msk [vmem:[#allocation2 + $0x18] sm:$0xff] %vm92, %v71
    %95 = vst.msk [vmem:[#allocation2 + $0x20] sm:$0xff] %vm92, %v72
    %96 = vst.msk [vmem:[#allocation2 + $0x28] sm:$0xff] %vm92, %v73
    %97 = vst.msk [vmem:[#allocation2 + $0x30] sm:$0xff] %vm92, %v74
    %98 = vst.msk [vmem:[#allocation2 + $0x38] sm:$0xff] %vm92, %v75
    %99 = vst.msk [vmem:[#allocation2 + $0x40] sm:$0xff] %vm92, %v76
    %100 = vst.msk [vmem:[#allocation2 + $0x48] sm:$0xff] %vm92, %v77
    %101 = vst.msk [vmem:[#allocation2 + $0x50] sm:$0xff] %vm92, %v78
    %102 = vst.msk [vmem:[#allocation2 + $0x58] sm:$0xff] %vm92, %v79
    %103 = vst.msk [vmem:[#allocation2 + $0x60] sm:$0xff] %vm92, %v80
    %104 = vst.msk [vmem:[#allocation2 + $0x68] sm:$0xff] %vm92, %v81
    %105 = vst.msk [vmem:[#allocation2 + $0x70] sm:$0xff] %vm92, %v82
    %106 = vst.msk [vmem:[#allocation2 + $0x78] sm:$0xff] %vm92, %v83
    %107 = vst.msk [vmem:[#allocation2 + $0x80] sm:$0xff] %vm92, %v84
    %108 = vst.msk [vmem:[#allocation2 + $0x88] sm:$0xff] %vm92, %v85
    %109 = vst.msk [vmem:[#allocation2 + $0x90] sm:$0xff] %vm92, %v86
    %110 = vst.msk [vmem:[#allocation2 + $0x98] sm:$0xff] %vm92, %v87
    %111 = vst.msk [vmem:[#allocation2 + $0xa0] sm:$0xff] %vm92, %v88
    %112 = vst.msk [vmem:[#allocation2 + $0xa8] sm:$0xff] %vm92, %v89
    %113 = vst.msk [vmem:[#allocation2 + $0xb0] sm:$0xff] %vm92, %v90
    %114 = vst.msk [vmem:[#allocation2 + $0xb8] sm:$0xff] %vm92, %v91
    %v115 = vld [vmem:[#allocation2 + $0x6] sm:$0xff]
    %v116 = vld [vmem:[#allocation2 + $0xe] sm:$0xff]
    %v117 = vld [vmem:[#allocation2 + $0x16] sm:$0xff]
    %v118 = vld [vmem:[#allocation2 + $0x1e] sm:$0xff]
    %v119 = vld [vmem:[#allocation2 + $0x26] sm:$0xff]
    %v120 = vld [vmem:[#allocation2 + $0x2e] sm:$0xff]
    %v121 = vld [vmem:[#allocation2 + $0x36] sm:$0xff]
    %v122 = vld [vmem:[#allocation2 + $0x3e] sm:$0xff]
    %v123 = vld [vmem:[#allocation2 + $0x46] sm:$0xff]
    %v124 = vld [vmem:[#allocation2 + $0x4e] sm:$0xff]
    %v125 = vld [vmem:[#allocation2 + $0x56] sm:$0xff]
    %v126 = vld [vmem:[#allocation2 + $0x5e] sm:$0xff]
    %v127 = vld [vmem:[#allocation2 + $0x66] sm:$0xff]
    %v128 = vld [vmem:[#allocation2 + $0x6e] sm:$0xff]
    %v129 = vld [vmem:[#allocation2 + $0x76] sm:$0xff]
    %v130 = vld [vmem:[#allocation2 + $0x7e] sm:$0xff]
    %v131 = vld [vmem:[#allocation2 + $0x86] sm:$0xff]
    %v132 = vld [vmem:[#allocation2 + $0x8e] sm:$0xff]
    %v133 = vld [vmem:[#allocation2 + $0x96] sm:$0xff]
    %v134 = vld [vmem:[#allocation2 + $0x9e] sm:$0xff]
    %v135 = vld [vmem:[#allocation2 + $0xa6] sm:$0xff]
    %v136 = vld [vmem:[#allocation2 + $0xae] sm:$0xff]
    %138 = vset.pattern.permute.xlu0 0
    %139 = vperm.xlu0 %138, %v43
    %v140 = vpop.permute.xlu0 %139
    %143 = vset.pattern.permute.xlu0 0
    %144 = vperm.xlu0 %143, %v44
    %v145 = vpop.permute.xlu0 %144
    %148 = vset.pattern.permute.xlu0 0
    %149 = vperm.xlu0 %148, %v45
    %v150 = vpop.permute.xlu0 %149
    %153 = vset.pattern.permute.xlu0 0
    %154 = vperm.xlu0 %153, %v46
    %v155 = vpop.permute.xlu0 %154
    %158 = vset.pattern.permute.xlu0 0
    %159 = vperm.xlu0 %158, %v47
    %v160 = vpop.permute.xlu0 %159
    %163 = vset.pattern.permute.xlu0 0
    %164 = vperm.xlu0 %163, %v48
    %v165 = vpop.permute.xlu0 %164
    %168 = vset.pattern.permute.xlu0 0
    %169 = vperm.xlu0 %168, %v49
    %v170 = vpop.permute.xlu0 %169
    %173 = vset.pattern.permute.xlu0 0
    %174 = vperm.xlu0 %173, %v50
    %v175 = vpop.permute.xlu0 %174
    %178 = vset.pattern.permute.xlu0 0
    %179 = vperm.xlu0 %178, %v51
    %v180 = vpop.permute.xlu0 %179
    %183 = vset.pattern.permute.xlu0 0
    %184 = vperm.xlu0 %183, %v52
    %v185 = vpop.permute.xlu0 %184
    %188 = vset.pattern.permute.xlu0 0
    %189 = vperm.xlu0 %188, %v53
    %v190 = vpop.permute.xlu0 %189
    %193 = vset.pattern.permute.xlu0 0
    %194 = vperm.xlu0 %193, %v54
    %v195 = vpop.permute.xlu0 %194
    %198 = vset.pattern.permute.xlu0 0
    %199 = vperm.xlu0 %198, %v55
    %v200 = vpop.permute.xlu0 %199
    %203 = vset.pattern.permute.xlu0 0
    %204 = vperm.xlu0 %203, %v56
    %v205 = vpop.permute.xlu0 %204
    %208 = vset.pattern.permute.xlu0 0
    %209 = vperm.xlu0 %208, %v57
    %v210 = vpop.permute.xlu0 %209
    %213 = vset.pattern.permute.xlu0 0
    %214 = vperm.xlu0 %213, %v58
    %v215 = vpop.permute.xlu0 %214
    %218 = vset.pattern.permute.xlu0 0
    %219 = vperm.xlu0 %218, %v59
    %v220 = vpop.permute.xlu0 %219
    %223 = vset.pattern.permute.xlu0 0
    %224 = vperm.xlu0 %223, %v60
    %v225 = vpop.permute.xlu0 %224
    %228 = vset.pattern.permute.xlu0 0
    %229 = vperm.xlu0 %228, %v61
    %v230 = vpop.permute.xlu0 %229
    %233 = vset.pattern.permute.xlu0 0
    %234 = vperm.xlu0 %233, %v62
    %v235 = vpop.permute.xlu0 %234
    %238 = vset.pattern.permute.xlu0 0
    %239 = vperm.xlu0 %238, %v63
    %v240 = vpop.permute.xlu0 %239
    %243 = vset.pattern.permute.xlu0 0
    %244 = vperm.xlu0 %243, %v64
    %v245 = vpop.permute.xlu0 %244
    %v247 = vmul.f32 %v115, %v140
    %v248 = vmul.f32 %v116, %v145
    %v249 = vmul.f32 %v117, %v150
    %v250 = vmul.f32 %v118, %v155
    %v251 = vmul.f32 %v119, %v160
    %v252 = vmul.f32 %v120, %v165
    %v253 = vmul.f32 %v121, %v170
    %v254 = vmul.f32 %v122, %v175
    %v255 = vmul.f32 %v123, %v180
    %v256 = vmul.f32 %v124, %v185
    %v257 = vmul.f32 %v125, %v190
    %v258 = vmul.f32 %v126, %v195
    %v259 = vmul.f32 %v127, %v200
    %v260 = vmul.f32 %v128, %v205
    %v261 = vmul.f32 %v129, %v210
    %v262 = vmul.f32 %v130, %v215
    %v263 = vmul.f32 %v131, %v220
    %v264 = vmul.f32 %v132, %v225
    %v265 = vmul.f32 %v133, %v230
    %v266 = vmul.f32 %v134, %v235
    %v267 = vmul.f32 %v135, %v240
    %v268 = vmul.f32 %v136, %v245
    %269 = vst.msk [vmem:[#allocation3] sm:$0xff] %vm92, %v247
    %270 = vst.msk [vmem:[#allocation3 + $0x20] sm:$0xff] %vm92, %v248
    %271 = vst.msk [vmem:[#allocation3 + $0x40] sm:$0xff] %vm92, %v249
    %272 = vst.msk [vmem:[#allocation3 + $0x60] sm:$0xff] %vm92, %v250
    %273 = vst.msk [vmem:[#allocation3 + $0x80] sm:$0xff] %vm92, %v251
    %274 = vst.msk [vmem:[#allocation3 + $0xa0] sm:$0xff] %vm92, %v252
    %275 = vst.msk [vmem:[#allocation3 + $0xc0] sm:$0xff] %vm92, %v253
    %276 = vst.msk [vmem:[#allocation3 + $0xe0] sm:$0xff] %vm92, %v254
    %277 = vst.msk [vmem:[#allocation3 + $0x100] sm:$0xff] %vm92, %v255
    %278 = vst.msk [vmem:[#allocation3 + $0x120] sm:$0xff] %vm92, %v256
    %279 = vst.msk [vmem:[#allocation3 + $0x140] sm:$0xff] %vm92, %v257
    %280 = vst.msk [vmem:[#allocation3 + $0x160] sm:$0xff] %vm92, %v258
    %281 = vst.msk [vmem:[#allocation3 + $0x180] sm:$0xff] %vm92, %v259
    %282 = vst.msk [vmem:[#allocation3 + $0x1a0] sm:$0xff] %vm92, %v260
    %283 = vst.msk [vmem:[#allocation3 + $0x1c0] sm:$0xff] %vm92, %v261
    %284 = vst.msk [vmem:[#allocation3 + $0x1e0] sm:$0xff] %vm92, %v262
    %285 = vst.msk [vmem:[#allocation3 + $0x200] sm:$0xff] %vm92, %v263
    %286 = vst.msk [vmem:[#allocation3 + $0x220] sm:$0xff] %vm92, %v264
    %287 = vst.msk [vmem:[#allocation3 + $0x240] sm:$0xff] %vm92, %v265
    %288 = vst.msk [vmem:[#allocation3 + $0x260] sm:$0xff] %vm92, %v266
    %289 = vst.msk [vmem:[#allocation3 + $0x280] sm:$0xff] %vm92, %v267
    %290 = vst.msk [vmem:[#allocation3 + $0x2a0] sm:$0xff] %vm92, %v268
    %v291 = vld [vmem:[#allocation2 + $0x7] sm:$0xff]
    %v292 = vld [vmem:[#allocation2 + $0xf] sm:$0xff]
    %v293 = vld [vmem:[#allocation2 + $0x17] sm:$0xff]
    %v294 = vld [vmem:[#allocation2 + $0x1f] sm:$0xff]
    %v295 = vld [vmem:[#allocation2 + $0x27] sm:$0xff]
    %v296 = vld [vmem:[#allocation2 + $0x2f] sm:$0xff]
    %v297 = vld [vmem:[#allocation2 + $0x37] sm:$0xff]
    %v298 = vld [vmem:[#allocation2 + $0x3f] sm:$0xff]
    %v299 = vld [vmem:[#allocation2 + $0x47] sm:$0xff]
    %v300 = vld [vmem:[#allocation2 + $0x4f] sm:$0xff]
    %v301 = vld [vmem:[#allocation2 + $0x57] sm:$0xff]
    %v302 = vld [vmem:[#allocation2 + $0x5f] sm:$0xff]
    %v303 = vld [vmem:[#allocation2 + $0x67] sm:$0xff]
    %v304 = vld [vmem:[#allocation2 + $0x6f] sm:$0xff]
    %v305 = vld [vmem:[#allocation2 + $0x77] sm:$0xff]
    %v306 = vld [vmem:[#allocation2 + $0x7f] sm:$0xff]
    %v307 = vld [vmem:[#allocation2 + $0x87] sm:$0xff]
    %v308 = vld [vmem:[#allocation2 + $0x8f] sm:$0xff]
    %v309 = vld [vmem:[#allocation2 + $0x97] sm:$0xff]
    %v310 = vld [vmem:[#allocation2 + $0x9f] sm:$0xff]
    %v311 = vld [vmem:[#allocation2 + $0xa7] sm:$0xff]
    %v312 = vld [vmem:[#allocation2 + $0xaf] sm:$0xff]
    %313 = vset.pattern.permute.xlu0 1
    %314 = vperm.xlu0 %313, %v43
    %v315 = vpop.permute.xlu0 %314
    %317 = vset.pattern.permute.xlu0 1
    %318 = vperm.xlu0 %317, %v44
    %v319 = vpop.permute.xlu0 %318
    %321 = vset.pattern.permute.xlu0 1
    %322 = vperm.xlu0 %321, %v45
    %v323 = vpop.permute.xlu0 %322
    %325 = vset.pattern.permute.xlu0 1
    %326 = vperm.xlu0 %325, %v46
    %v327 = vpop.permute.xlu0 %326
    %329 = vset.pattern.permute.xlu0 1
    %330 = vperm.xlu0 %329, %v47
    %v331 = vpop.permute.xlu0 %330
    %333 = vset.pattern.permute.xlu0 1
    %334 = vperm.xlu0 %333, %v48
    %v335 = vpop.permute.xlu0 %334
    %337 = vset.pattern.permute.xlu0 1
    %338 = vperm.xlu0 %337, %v49
    %v339 = vpop.permute.xlu0 %338
    %341 = vset.pattern.permute.xlu0 1
    %342 = vperm.xlu0 %341, %v50
    %v343 = vpop.permute.xlu0 %342
    %345 = vset.pattern.permute.xlu0 1
    %346 = vperm.xlu0 %345, %v51
    %v347 = vpop.permute.xlu0 %346
    %349 = vset.pattern.permute.xlu0 1
    %350 = vperm.xlu0 %349, %v52
    %v351 = vpop.permute.xlu0 %350
    %353 = vset.pattern.permute.xlu0 1
    %354 = vperm.xlu0 %353, %v53
    %v355 = vpop.permute.xlu0 %354
    %357 = vset.pattern.permute.xlu0 1
    %358 = vperm.xlu0 %357, %v54
    %v359 = vpop.permute.xlu0 %358
    %361 = vset.pattern.permute.xlu0 1
    %362 = vperm.xlu0 %361, %v55
    %v363 = vpop.permute.xlu0 %362
    %365 = vset.pattern.permute.xlu0 1
    %366 = vperm.xlu0 %365, %v56
    %v367 = vpop.permute.xlu0 %366
    %369 = vset.pattern.permute.xlu0 1
    %370 = vperm.xlu0 %369, %v57
    %v371 = vpop.permute.xlu0 %370
    %373 = vset.pattern.permute.xlu0 1
    %374 = vperm.xlu0 %373, %v58
    %v375 = vpop.permute.xlu0 %374
    %377 = vset.pattern.permute.xlu0 1
    %378 = vperm.xlu0 %377, %v59
    %v379 = vpop.permute.xlu0 %378
    %381 = vset.pattern.permute.xlu0 1
    %382 = vperm.xlu0 %381, %v60
    %v383 = vpop.permute.xlu0 %382
    %385 = vset.pattern.permute.xlu0 1
    %386 = vperm.xlu0 %385, %v61
    %v387 = vpop.permute.xlu0 %386
    %389 = vset.pattern.permute.xlu0 1
    %390 = vperm.xlu0 %389, %v62
    %v391 = vpop.permute.xlu0 %390
    %393 = vset.pattern.permute.xlu0 1
    %394 = vperm.xlu0 %393, %v63
    %v395 = vpop.permute.xlu0 %394
    %397 = vset.pattern.permute.xlu0 1
    %398 = vperm.xlu0 %397, %v64
    %v399 = vpop.permute.xlu0 %398
    %v401 = vmul.f32 %v291, %v315
    %v402 = vmul.f32 %v292, %v319
    %v403 = vmul.f32 %v293, %v323
    %v404 = vmul.f32 %v294, %v327
    %v405 = vmul.f32 %v295, %v331
    %v406 = vmul.f32 %v296, %v335
    %v407 = vmul.f32 %v297, %v339
    %v408 = vmul.f32 %v298, %v343
    %v409 = vmul.f32 %v299, %v347
    %v410 = vmul.f32 %v300, %v351
    %v411 = vmul.f32 %v301, %v355
    %v412 = vmul.f32 %v302, %v359
    %v413 = vmul.f32 %v303, %v363
    %v414 = vmul.f32 %v304, %v367
    %v415 = vmul.f32 %v305, %v371
    %v416 = vmul.f32 %v306, %v375
    %v417 = vmul.f32 %v307, %v379
    %v418 = vmul.f32 %v308, %v383
    %v419 = vmul.f32 %v309, %v387
    %v420 = vmul.f32 %v310, %v391
    %v421 = vmul.f32 %v311, %v395
    %v422 = vmul.f32 %v312, %v399
    %445 = vrot.lane.b32.xlu0 %v401, 4
    %v446 = vpop.permute.xlu0 %445
    %447 = vrot.lane.b32.xlu0 %v402, 4
    %v448 = vpop.permute.xlu0 %447
    %449 = vrot.lane.b32.xlu0 %v403, 4
    %v450 = vpop.permute.xlu0 %449
    %451 = vrot.lane.b32.xlu0 %v404, 4
    %v452 = vpop.permute.xlu0 %451
    %453 = vrot.lane.b32.xlu0 %v405, 4
    %v454 = vpop.permute.xlu0 %453
    %455 = vrot.lane.b32.xlu0 %v406, 4
    %v456 = vpop.permute.xlu0 %455
    %457 = vrot.lane.b32.xlu0 %v407, 4
    %v458 = vpop.permute.xlu0 %457
    %459 = vrot.lane.b32.xlu0 %v408, 4
    %v460 = vpop.permute.xlu0 %459
    %461 = vrot.lane.b32.xlu0 %v409, 4
    %v462 = vpop.permute.xlu0 %461
    %463 = vrot.lane.b32.xlu0 %v410, 4
    %v464 = vpop.permute.xlu0 %463
    %465 = vrot.lane.b32.xlu0 %v411, 4
    %v466 = vpop.permute.xlu0 %465
    %467 = vrot.lane.b32.xlu0 %v412, 4
    %v468 = vpop.permute.xlu0 %467
    %469 = vrot.lane.b32.xlu0 %v413, 4
    %v470 = vpop.permute.xlu0 %469
    %471 = vrot.lane.b32.xlu0 %v414, 4
    %v472 = vpop.permute.xlu0 %471
    %473 = vrot.lane.b32.xlu0 %v415, 4
    %v474 = vpop.permute.xlu0 %473
    %475 = vrot.lane.b32.xlu0 %v416, 4
    %v476 = vpop.permute.xlu0 %475
    %477 = vrot.lane.b32.xlu0 %v417, 4
    %v478 = vpop.permute.xlu0 %477
    %479 = vrot.lane.b32.xlu0 %v418, 4
    %v480 = vpop.permute.xlu0 %479
    %481 = vrot.lane.b32.xlu0 %v419, 4
    %v482 = vpop.permute.xlu0 %481
    %483 = vrot.lane.b32.xlu0 %v420, 4
    %v484 = vpop.permute.xlu0 %483
    %485 = vrot.lane.b32.xlu0 %v421, 4
    %v486 = vpop.permute.xlu0 %485
    %487 = vrot.lane.b32.xlu0 %v422, 4
    %v488 = vpop.permute.xlu0 %487
    %vm511 = vcmask 64544
    %512 = vst.msk [vmem:[#allocation3] sm:$0xff] %vm511, %v446
    %513 = vst.msk [vmem:[#allocation3 + $0x20] sm:$0xff] %vm511, %v448
    %514 = vst.msk [vmem:[#allocation3 + $0x40] sm:$0xff] %vm511, %v450
    %515 = vst.msk [vmem:[#allocation3 + $0x60] sm:$0xff] %vm511, %v452
    %516 = vst.msk [vmem:[#allocation3 + $0x80] sm:$0xff] %vm511, %v454
    %517 = vst.msk [vmem:[#allocation3 + $0xa0] sm:$0xff] %vm511, %v456
    %518 = vst.msk [vmem:[#allocation3 + $0xc0] sm:$0xff] %vm511, %v458
    %519 = vst.msk [vmem:[#allocation3 + $0xe0] sm:$0xff] %vm511, %v460
    %520 = vst.msk [vmem:[#allocation3 + $0x100] sm:$0xff] %vm511, %v462
    %521 = vst.msk [vmem:[#allocation3 + $0x120] sm:$0xff] %vm511, %v464
    %522 = vst.msk [vmem:[#allocation3 + $0x140] sm:$0xff] %vm511, %v466
    %523 = vst.msk [vmem:[#allocation3 + $0x160] sm:$0xff] %vm511, %v468
    %524 = vst.msk [vmem:[#allocation3 + $0x180] sm:$0xff] %vm511, %v470
    %525 = vst.msk [vmem:[#allocation3 + $0x1a0] sm:$0xff] %vm511, %v472
    %526 = vst.msk [vmem:[#allocation3 + $0x1c0] sm:$0xff] %vm511, %v474
    %527 = vst.msk [vmem:[#allocation3 + $0x1e0] sm:$0xff] %vm511, %v476
    %528 = vst.msk [vmem:[#allocation3 + $0x200] sm:$0xff] %vm511, %v478
    %529 = vst.msk [vmem:[#allocation3 + $0x220] sm:$0xff] %vm511, %v480
    %530 = vst.msk [vmem:[#allocation3 + $0x240] sm:$0xff] %vm511, %v482
    %531 = vst.msk [vmem:[#allocation3 + $0x260] sm:$0xff] %vm511, %v484
    %532 = vst.msk [vmem:[#allocation3 + $0x280] sm:$0xff] %vm511, %v486
    %533 = vst.msk [vmem:[#allocation3 + $0x2a0] sm:$0xff] %vm511, %v488
    %v534 = vld [vmem:[#allocation2 + $0x8] sm:$0xff]
    %v535 = vld [vmem:[#allocation2 + $0x10] sm:$0xff]
    %v536 = vld [vmem:[#allocation2 + $0x18] sm:$0xff]
    %v537 = vld [vmem:[#allocation2 + $0x20] sm:$0xff]
    %v538 = vld [vmem:[#allocation2 + $0x28] sm:$0xff]
    %v539 = vld [vmem:[#allocation2 + $0x30] sm:$0xff]
    %v540 = vld [vmem:[#allocation2 + $0x38] sm:$0xff]
    %v541 = vld [vmem:[#allocation2 + $0x40] sm:$0xff]
    %v542 = vld [vmem:[#allocation2 + $0x48] sm:$0xff]
    %v543 = vld [vmem:[#allocation2 + $0x50] sm:$0xff]
    %v544 = vld [vmem:[#allocation2 + $0x58] sm:$0xff]
    %v545 = vld [vmem:[#allocation2 + $0x60] sm:$0xff]
    %v546 = vld [vmem:[#allocation2 + $0x68] sm:$0xff]
    %v547 = vld [vmem:[#allocation2 + $0x70] sm:$0xff]
    %v548 = vld [vmem:[#allocation2 + $0x78] sm:$0xff]
    %v549 = vld [vmem:[#allocation2 + $0x80] sm:$0xff]
    %v550 = vld [vmem:[#allocation2 + $0x88] sm:$0xff]
    %v551 = vld [vmem:[#allocation2 + $0x90] sm:$0xff]
    %v552 = vld [vmem:[#allocation2 + $0x98] sm:$0xff]
    %v553 = vld [vmem:[#allocation2 + $0xa0] sm:$0xff]
    %v554 = vld [vmem:[#allocation2 + $0xa8] sm:$0xff]
    %v555 = vld [vmem:[#allocation2 + $0xb0] sm:$0xff]
    %556 = vset.pattern.permute.xlu0 2
    %557 = vperm.xlu0 %556, %v43
    %v558 = vpop.permute.xlu0 %557
    %560 = vset.pattern.permute.xlu0 2
    %561 = vperm.xlu0 %560, %v44
    %v562 = vpop.permute.xlu0 %561
    %564 = vset.pattern.permute.xlu0 2
    %565 = vperm.xlu0 %564, %v45
    %v566 = vpop.permute.xlu0 %565
    %568 = vset.pattern.permute.xlu0 2
    %569 = vperm.xlu0 %568, %v46
    %v570 = vpop.permute.xlu0 %569
    %572 = vset.pattern.permute.xlu0 2
    %573 = vperm.xlu0 %572, %v47
    %v574 = vpop.permute.xlu0 %573
    %576 = vset.pattern.permute.xlu0 2
    %577 = vperm.xlu0 %576, %v48
    %v578 = vpop.permute.xlu0 %577
    %580 = vset.pattern.permute.xlu0 2
    %581 = vperm.xlu0 %580, %v49
    %v582 = vpop.permute.xlu0 %581
    %584 = vset.pattern.permute.xlu0 2
    %585 = vperm.xlu0 %584, %v50
    %v586 = vpop.permute.xlu0 %585
    %588 = vset.pattern.permute.xlu0 2
    %589 = vperm.xlu0 %588, %v51
    %v590 = vpop.permute.xlu0 %589
    %592 = vset.pattern.permute.xlu0 2
    %593 = vperm.xlu0 %592, %v52
    %v594 = vpop.permute.xlu0 %593
    %596 = vset.pattern.permute.xlu0 2
    %597 = vperm.xlu0 %596, %v53
    %v598 = vpop.permute.xlu0 %597
    %600 = vset.pattern.permute.xlu0 2
    %601 = vperm.xlu0 %600, %v54
    %v602 = vpop.permute.xlu0 %601
    %604 = vset.pattern.permute.xlu0 2
    %605 = vperm.xlu0 %604, %v55
    %v606 = vpop.permute.xlu0 %605
    %608 = vset.pattern.permute.xlu0 2
    %609 = vperm.xlu0 %608, %v56
    %v610 = vpop.permute.xlu0 %609
    %612 = vset.pattern.permute.xlu0 2
    %613 = vperm.xlu0 %612, %v57
    %v614 = vpop.permute.xlu0 %613
    %616 = vset.pattern.permute.xlu0 2
    %617 = vperm.xlu0 %616, %v58
    %v618 = vpop.permute.xlu0 %617
    %620 = vset.pattern.permute.xlu0 2
    %621 = vperm.xlu0 %620, %v59
    %v622 = vpop.permute.xlu0 %621
    %624 = vset.pattern.permute.xlu0 2
    %625 = vperm.xlu0 %624, %v60
    %v626 = vpop.permute.xlu0 %625
    %628 = vset.pattern.permute.xlu0 2
    %629 = vperm.xlu0 %628, %v61
    %v630 = vpop.permute.xlu0 %629
    %632 = vset.pattern.permute.xlu0 2
    %633 = vperm.xlu0 %632, %v62
    %v634 = vpop.permute.xlu0 %633
    %636 = vset.pattern.permute.xlu0 2
    %637 = vperm.xlu0 %636, %v63
    %v638 = vpop.permute.xlu0 %637
    %640 = vset.pattern.permute.xlu0 2
    %641 = vperm.xlu0 %640, %v64
    %v642 = vpop.permute.xlu0 %641
    %v644 = vmul.f32 %v534, %v558
    %v645 = vmul.f32 %v535, %v562
    %v646 = vmul.f32 %v536, %v566
    %v647 = vmul.f32 %v537, %v570
    %v648 = vmul.f32 %v538, %v574
    %v649 = vmul.f32 %v539, %v578
    %v650 = vmul.f32 %v540, %v582
    %v651 = vmul.f32 %v541, %v586
    %v652 = vmul.f32 %v542, %v590
    %v653 = vmul.f32 %v543, %v594
    %v654 = vmul.f32 %v544, %v598
    %v655 = vmul.f32 %v545, %v602
    %v656 = vmul.f32 %v546, %v606
    %v657 = vmul.f32 %v547, %v610
    %v658 = vmul.f32 %v548, %v614
    %v659 = vmul.f32 %v549, %v618
    %v660 = vmul.f32 %v550, %v622
    %v661 = vmul.f32 %v551, %v626
    %v662 = vmul.f32 %v552, %v630
    %v663 = vmul.f32 %v553, %v634
    %v664 = vmul.f32 %v554, %v638
    %v665 = vmul.f32 %v555, %v642
    %688 = vrot.lane.b32.xlu0 %v644, 8
    %v689 = vpop.permute.xlu0 %688
    %690 = vrot.lane.b32.xlu0 %v645, 8
    %v691 = vpop.permute.xlu0 %690
    %692 = vrot.lane.b32.xlu0 %v646, 8
    %v693 = vpop.permute.xlu0 %692
    %694 = vrot.lane.b32.xlu0 %v647, 8
    %v695 = vpop.permute.xlu0 %694
    %696 = vrot.lane.b32.xlu0 %v648, 8
    %v697 = vpop.permute.xlu0 %696
    %698 = vrot.lane.b32.xlu0 %v649, 8
    %v699 = vpop.permute.xlu0 %698
    %700 = vrot.lane.b32.xlu0 %v650, 8
    %v701 = vpop.permute.xlu0 %700
    %702 = vrot.lane.b32.xlu0 %v651, 8
    %v703 = vpop.permute.xlu0 %702
    %704 = vrot.lane.b32.xlu0 %v652, 8
    %v705 = vpop.permute.xlu0 %704
    %706 = vrot.lane.b32.xlu0 %v653, 8
    %v707 = vpop.permute.xlu0 %706
    %708 = vrot.lane.b32.xlu0 %v654, 8
    %v709 = vpop.permute.xlu0 %708
    %710 = vrot.lane.b32.xlu0 %v655, 8
    %v711 = vpop.permute.xlu0 %710
    %712 = vrot.lane.b32.xlu0 %v656, 8
    %v713 = vpop.permute.xlu0 %712
    %714 = vrot.lane.b32.xlu0 %v657, 8
    %v715 = vpop.permute.xlu0 %714
    %716 = vrot.lane.b32.xlu0 %v658, 8
    %v717 = vpop.permute.xlu0 %716
    %718 = vrot.lane.b32.xlu0 %v659, 8
    %v719 = vpop.permute.xlu0 %718
    %720 = vrot.lane.b32.xlu0 %v660, 8
    %v721 = vpop.permute.xlu0 %720
    %722 = vrot.lane.b32.xlu0 %v661, 8
    %v723 = vpop.permute.xlu0 %722
    %724 = vrot.lane.b32.xlu0 %v662, 8
    %v725 = vpop.permute.xlu0 %724
    %726 = vrot.lane.b32.xlu0 %v663, 8
    %v727 = vpop.permute.xlu0 %726
    %728 = vrot.lane.b32.xlu0 %v664, 8
    %v729 = vpop.permute.xlu0 %728
    %730 = vrot.lane.b32.xlu0 %v665, 8
    %v731 = vpop.permute.xlu0 %730
    %vm754 = vcmask 97344
    %755 = vst.msk [vmem:[#allocation3] sm:$0xff] %vm754, %v689
    %756 = vst.msk [vmem:[#allocation3 + $0x20] sm:$0xff] %vm754, %v691
    %757 = vst.msk [vmem:[#allocation3 + $0x40] sm:$0xff] %vm754, %v693
    %758 = vst.msk [vmem:[#allocation3 + $0x60] sm:$0xff] %vm754, %v695
    %759 = vst.msk [vmem:[#allocation3 + $0x80] sm:$0xff] %vm754, %v697
    %760 = vst.msk [vmem:[#allocation3 + $0xa0] sm:$0xff] %vm754, %v699
    %761 = vst.msk [vmem:[#allocation3 + $0xc0] sm:$0xff] %vm754, %v701
    %762 = vst.msk [vmem:[#allocation3 + $0xe0] sm:$0xff] %vm754, %v703
    %763 = vst.msk [vmem:[#allocation3 + $0x100] sm:$0xff] %vm754, %v705
    %764 = vst.msk [vmem:[#allocation3 + $0x120] sm:$0xff] %vm754, %v707
    %765 = vst.msk [vmem:[#allocation3 + $0x140] sm:$0xff] %vm754, %v709
    %766 = vst.msk [vmem:[#allocation3 + $0x160] sm:$0xff] %vm754, %v711
    %767 = vst.msk [vmem:[#allocation3 + $0x180] sm:$0xff] %vm754, %v713
    %768 = vst.msk [vmem:[#allocation3 + $0x1a0] sm:$0xff] %vm754, %v715
    %769 = vst.msk [vmem:[#allocation3 + $0x1c0] sm:$0xff] %vm754, %v717
    %770 = vst.msk [vmem:[#allocation3 + $0x1e0] sm:$0xff] %vm754, %v719
    %771 = vst.msk [vmem:[#allocation3 + $0x200] sm:$0xff] %vm754, %v721
    %772 = vst.msk [vmem:[#allocation3 + $0x220] sm:$0xff] %vm754, %v723
    %773 = vst.msk [vmem:[#allocation3 + $0x240] sm:$0xff] %vm754, %v725
    %774 = vst.msk [vmem:[#allocation3 + $0x260] sm:$0xff] %vm754, %v727
    %775 = vst.msk [vmem:[#allocation3 + $0x280] sm:$0xff] %vm754, %v729
    %776 = vst.msk [vmem:[#allocation3 + $0x2a0] sm:$0xff] %vm754, %v731
    %v777 = vld [vmem:[#allocation2 + $0xf] sm:$0xff]
    %v778 = vld [vmem:[#allocation2 + $0x17] sm:$0xff]
    %v779 = vld [vmem:[#allocation2 + $0x1f] sm:$0xff]
    %v780 = vld [vmem:[#allocation2 + $0x27] sm:$0xff]
    %v781 = vld [vmem:[#allocation2 + $0x2f] sm:$0xff]
    %v782 = vld [vmem:[#allocation2 + $0x37] sm:$0xff]
    %v783 = vld [vmem:[#allocation2 + $0x3f] sm:$0xff]
    %v784 = vld [vmem:[#allocation2 + $0x47] sm:$0xff]
    %v785 = vld [vmem:[#allocation2 + $0x4f] sm:$0xff]
    %v786 = vld [vmem:[#allocation2 + $0x57] sm:$0xff]
    %v787 = vld [vmem:[#allocation2 + $0x5f] sm:$0xff]
    %v788 = vld [vmem:[#allocation2 + $0x67] sm:$0xff]
    %v789 = vld [vmem:[#allocation2 + $0x6f] sm:$0xff]
    %v790 = vld [vmem:[#allocation2 + $0x77] sm:$0xff]
    %v791 = vld [vmem:[#allocation2 + $0x7f] sm:$0xff]
    %v792 = vld [vmem:[#allocation2 + $0x87] sm:$0xff]
    %v793 = vld [vmem:[#allocation2 + $0x8f] sm:$0xff]
    %v794 = vld [vmem:[#allocation2 + $0x97] sm:$0xff]
    %v795 = vld [vmem:[#allocation2 + $0x9f] sm:$0xff]
    %v796 = vld [vmem:[#allocation2 + $0xa7] sm:$0xff]
    %v797 = vld [vmem:[#allocation2 + $0xaf] sm:$0xff]
    %v798 = vld [vmem:[#allocation2 + $0xb7] sm:$0xff]
    %799 = vset.pattern.permute.xlu0 3
    %800 = vperm.xlu0 %799, %v43
    %v801 = vpop.permute.xlu0 %800
    %803 = vset.pattern.permute.xlu0 3
    %804 = vperm.xlu0 %803, %v44
    %v805 = vpop.permute.xlu0 %804
    %807 = vset.pattern.permute.xlu0 3
    %808 = vperm.xlu0 %807, %v45
    %v809 = vpop.permute.xlu0 %808
    %811 = vset.pattern.permute.xlu0 3
    %812 = vperm.xlu0 %811, %v46
    %v813 = vpop.permute.xlu0 %812
    %815 = vset.pattern.permute.xlu0 3
    %816 = vperm.xlu0 %815, %v47
    %v817 = vpop.permute.xlu0 %816
    %819 = vset.pattern.permute.xlu0 3
    %820 = vperm.xlu0 %819, %v48
    %v821 = vpop.permute.xlu0 %820
    %823 = vset.pattern.permute.xlu0 3
    %824 = vperm.xlu0 %823, %v49
    %v825 = vpop.permute.xlu0 %824
    %827 = vset.pattern.permute.xlu0 3
    %828 = vperm.xlu0 %827, %v50
    %v829 = vpop.permute.xlu0 %828
    %831 = vset.pattern.permute.xlu0 3
    %832 = vperm.xlu0 %831, %v51
    %v833 = vpop.permute.xlu0 %832
    %835 = vset.pattern.permute.xlu0 3
    %836 = vperm.xlu0 %835, %v52
    %v837 = vpop.permute.xlu0 %836
    %839 = vset.pattern.permute.xlu0 3
    %840 = vperm.xlu0 %839, %v53
    %v841 = vpop.permute.xlu0 %840
    %843 = vset.pattern.permute.xlu0 3
    %844 = vperm.xlu0 %843, %v54
    %v845 = vpop.permute.xlu0 %844
    %847 = vset.pattern.permute.xlu0 3
    %848 = vperm.xlu0 %847, %v55
    %v849 = vpop.permute.xlu0 %848
    %851 = vset.pattern.permute.xlu0 3
    %852 = vperm.xlu0 %851, %v56
    %v853 = vpop.permute.xlu0 %852
    %855 = vset.pattern.permute.xlu0 3
    %856 = vperm.xlu0 %855, %v57
    %v857 = vpop.permute.xlu0 %856
    %859 = vset.pattern.permute.xlu0 3
    %860 = vperm.xlu0 %859, %v58
    %v861 = vpop.permute.xlu0 %860
    %863 = vset.pattern.permute.xlu0 3
    %864 = vperm.xlu0 %863, %v59
    %v865 = vpop.permute.xlu0 %864
    %867 = vset.pattern.permute.xlu0 3
    %868 = vperm.xlu0 %867, %v60
    %v869 = vpop.permute.xlu0 %868
    %871 = vset.pattern.permute.xlu0 3
    %872 = vperm.xlu0 %871, %v61
    %v873 = vpop.permute.xlu0 %872
    %875 = vset.pattern.permute.xlu0 3
    %876 = vperm.xlu0 %875, %v62
    %v877 = vpop.permute.xlu0 %876
    %879 = vset.pattern.permute.xlu0 3
    %880 = vperm.xlu0 %879, %v63
    %v881 = vpop.permute.xlu0 %880
    %883 = vset.pattern.permute.xlu0 3
    %884 = vperm.xlu0 %883, %v64
    %v885 = vpop.permute.xlu0 %884
    %v887 = vmul.f32 %v777, %v801
    %v888 = vmul.f32 %v778, %v805
    %v889 = vmul.f32 %v779, %v809
    %v890 = vmul.f32 %v780, %v813
    %v891 = vmul.f32 %v781, %v817
    %v892 = vmul.f32 %v782, %v821
    %v893 = vmul.f32 %v783, %v825
    %v894 = vmul.f32 %v784, %v829
    %v895 = vmul.f32 %v785, %v833
    %v896 = vmul.f32 %v786, %v837
    %v897 = vmul.f32 %v787, %v841
    %v898 = vmul.f32 %v788, %v845
    %v899 = vmul.f32 %v789, %v849
    %v900 = vmul.f32 %v790, %v853
    %v901 = vmul.f32 %v791, %v857
    %v902 = vmul.f32 %v792, %v861
    %v903 = vmul.f32 %v793, %v865
    %v904 = vmul.f32 %v794, %v869
    %v905 = vmul.f32 %v795, %v873
    %v906 = vmul.f32 %v796, %v877
    %v907 = vmul.f32 %v797, %v881
    %v908 = vmul.f32 %v798, %v885
    %931 = vrot.lane.b32.xlu0 %v887, 12
    %v932 = vpop.permute.xlu0 %931
    %933 = vrot.lane.b32.xlu0 %v888, 12
    %v934 = vpop.permute.xlu0 %933
    %935 = vrot.lane.b32.xlu0 %v889, 12
    %v936 = vpop.permute.xlu0 %935
    %937 = vrot.lane.b32.xlu0 %v890, 12
    %v938 = vpop.permute.xlu0 %937
    %939 = vrot.lane.b32.xlu0 %v891, 12
    %v940 = vpop.permute.xlu0 %939
    %941 = vrot.lane.b32.xlu0 %v892, 12
    %v942 = vpop.permute.xlu0 %941
    %943 = vrot.lane.b32.xlu0 %v893, 12
    %v944 = vpop.permute.xlu0 %943
    %945 = vrot.lane.b32.xlu0 %v894, 12
    %v946 = vpop.permute.xlu0 %945
    %947 = vrot.lane.b32.xlu0 %v895, 12
    %v948 = vpop.permute.xlu0 %947
    %949 = vrot.lane.b32.xlu0 %v896, 12
    %v950 = vpop.permute.xlu0 %949
    %951 = vrot.lane.b32.xlu0 %v897, 12
    %v952 = vpop.permute.xlu0 %951
    %953 = vrot.lane.b32.xlu0 %v898, 12
    %v954 = vpop.permute.xlu0 %953
    %955 = vrot.lane.b32.xlu0 %v899, 12
    %v956 = vpop.permute.xlu0 %955
    %957 = vrot.lane.b32.xlu0 %v900, 12
    %v958 = vpop.permute.xlu0 %957
    %959 = vrot.lane.b32.xlu0 %v901, 12
    %v960 = vpop.permute.xlu0 %959
    %961 = vrot.lane.b32.xlu0 %v902, 12
    %v962 = vpop.permute.xlu0 %961
    %963 = vrot.lane.b32.xlu0 %v903, 12
    %v964 = vpop.permute.xlu0 %963
    %965 = vrot.lane.b32.xlu0 %v904, 12
    %v966 = vpop.permute.xlu0 %965
    %967 = vrot.lane.b32.xlu0 %v905, 12
    %v968 = vpop.permute.xlu0 %967
    %969 = vrot.lane.b32.xlu0 %v906, 12
    %v970 = vpop.permute.xlu0 %969
    %971 = vrot.lane.b32.xlu0 %v907, 12
    %v972 = vpop.permute.xlu0 %971
    %973 = vrot.lane.b32.xlu0 %v908, 12
    %v974 = vpop.permute.xlu0 %973
    %vm997 = vcmask 130144
    %998 = vst.msk [vmem:[#allocation3] sm:$0xff] %vm997, %v932
    %999 = vst.msk [vmem:[#allocation3 + $0x20] sm:$0xff] %vm997, %v934
    %1000 = vst.msk [vmem:[#allocation3 + $0x40] sm:$0xff] %vm997, %v936
    %1001 = vst.msk [vmem:[#allocation3 + $0x60] sm:$0xff] %vm997, %v938
    %1002 = vst.msk [vmem:[#allocation3 + $0x80] sm:$0xff] %vm997, %v940
    %1003 = vst.msk [vmem:[#allocation3 + $0xa0] sm:$0xff] %vm997, %v942
    %1004 = vst.msk [vmem:[#allocation3 + $0xc0] sm:$0xff] %vm997, %v944
    %1005 = vst.msk [vmem:[#allocation3 + $0xe0] sm:$0xff] %vm997, %v946
    %1006 = vst.msk [vmem:[#allocation3 + $0x100] sm:$0xff] %vm997, %v948
    %1007 = vst.msk [vmem:[#allocation3 + $0x120] sm:$0xff] %vm997, %v950
    %1008 = vst.msk [vmem:[#allocation3 + $0x140] sm:$0xff] %vm997, %v952
    %1009 = vst.msk [vmem:[#allocation3 + $0x160] sm:$0xff] %vm997, %v954
    %1010 = vst.msk [vmem:[#allocation3 + $0x180] sm:$0xff] %vm997, %v956
    %1011 = vst.msk [vmem:[#allocation3 + $0x1a0] sm:$0xff] %vm997, %v958
    %1012 = vst.msk [vmem:[#allocation3 + $0x1c0] sm:$0xff] %vm997, %v960
    %1013 = vst.msk [vmem:[#allocation3 + $0x1e0] sm:$0xff] %vm997, %v962
    %1014 = vst.msk [vmem:[#allocation3 + $0x200] sm:$0xff] %vm997, %v964
    %1015 = vst.msk [vmem:[#allocation3 + $0x220] sm:$0xff] %vm997, %v966
    %1016 = vst.msk [vmem:[#allocation3 + $0x240] sm:$0xff] %vm997, %v968
    %1017 = vst.msk [vmem:[#allocation3 + $0x260] sm:$0xff] %vm997, %v970
    %1018 = vst.msk [vmem:[#allocation3 + $0x280] sm:$0xff] %vm997, %v972
    %1019 = vst.msk [vmem:[#allocation3 + $0x2a0] sm:$0xff] %vm997, %v974
    %v1020 = vld [vmem:[#allocation2 + $0x10] sm:$0xff]
    %v1021 = vld [vmem:[#allocation2 + $0x18] sm:$0xff]
    %v1022 = vld [vmem:[#allocation2 + $0x20] sm:$0xff]
    %v1023 = vld [vmem:[#allocation2 + $0x28] sm:$0xff]
    %v1024 = vld [vmem:[#allocation2 + $0x30] sm:$0xff]
    %v1025 = vld [vmem:[#allocation2 + $0x38] sm:$0xff]
    %v1026 = vld [vmem:[#allocation2 + $0x40] sm:$0xff]
    %v1027 = vld [vmem:[#allocation2 + $0x48] sm:$0xff]
    %v1028 = vld [vmem:[#allocation2 + $0x50] sm:$0xff]
    %v1029 = vld [vmem:[#allocation2 + $0x58] sm:$0xff]
    %v1030 = vld [vmem:[#allocation2 + $0x60] sm:$0xff]
    %v1031 = vld [vmem:[#allocation2 + $0x68] sm:$0xff]
    %v1032 = vld [vmem:[#allocation2 + $0x70] sm:$0xff]
    %v1033 = vld [vmem:[#allocation2 + $0x78] sm:$0xff]
    %v1034 = vld [vmem:[#allocation2 + $0x80] sm:$0xff]
    %v1035 = vld [vmem:[#allocation2 + $0x88] sm:$0xff]
    %v1036 = vld [vmem:[#allocation2 + $0x90] sm:$0xff]
    %v1037 = vld [vmem:[#allocation2 + $0x98] sm:$0xff]
    %v1038 = vld [vmem:[#allocation2 + $0xa0] sm:$0xff]
    %v1039 = vld [vmem:[#allocation2 + $0xa8] sm:$0xff]
    %v1040 = vld [vmem:[#allocation2 + $0xb0] sm:$0xff]
    %v1041 = vld [vmem:[#allocation2 + $0xb8] sm:$0xff]
    %1042 = vset.pattern.permute.xlu0 4
    %1043 = vperm.xlu0 %1042, %v43
    %v1044 = vpop.permute.xlu0 %1043
    %1046 = vset.pattern.permute.xlu0 4
    %1047 = vperm.xlu0 %1046, %v44
    %v1048 = vpop.permute.xlu0 %1047
    %1050 = vset.pattern.permute.xlu0 4
    %1051 = vperm.xlu0 %1050, %v45
    %v1052 = vpop.permute.xlu0 %1051
    %1054 = vset.pattern.permute.xlu0 4
    %1055 = vperm.xlu0 %1054, %v46
    %v1056 = vpop.permute.xlu0 %1055
    %1058 = vset.pattern.permute.xlu0 4
    %1059 = vperm.xlu0 %1058, %v47
    %v1060 = vpop.permute.xlu0 %1059
    %1062 = vset.pattern.permute.xlu0 4
    %1063 = vperm.xlu0 %1062, %v48
    %v1064 = vpop.permute.xlu0 %1063
    %1066 = vset.pattern.permute.xlu0 4
    %1067 = vperm.xlu0 %1066, %v49
    %v1068 = vpop.permute.xlu0 %1067
    %1070 = vset.pattern.permute.xlu0 4
    %1071 = vperm.xlu0 %1070, %v50
    %v1072 = vpop.permute.xlu0 %1071
    %1074 = vset.pattern.permute.xlu0 4
    %1075 = vperm.xlu0 %1074, %v51
    %v1076 = vpop.permute.xlu0 %1075
    %1078 = vset.pattern.permute.xlu0 4
    %1079 = vperm.xlu0 %1078, %v52
    %v1080 = vpop.permute.xlu0 %1079
    %1082 = vset.pattern.permute.xlu0 4
    %1083 = vperm.xlu0 %1082, %v53
    %v1084 = vpop.permute.xlu0 %1083
    %1086 = vset.pattern.permute.xlu0 4
    %1087 = vperm.xlu0 %1086, %v54
    %v1088 = vpop.permute.xlu0 %1087
    %1090 = vset.pattern.permute.xlu0 4
    %1091 = vperm.xlu0 %1090, %v55
    %v1092 = vpop.permute.xlu0 %1091
    %1094 = vset.pattern.permute.xlu0 4
    %1095 = vperm.xlu0 %1094, %v56
    %v1096 = vpop.permute.xlu0 %1095
    %1098 = vset.pattern.permute.xlu0 4
    %1099 = vperm.xlu0 %1098, %v57
    %v1100 = vpop.permute.xlu0 %1099
    %1102 = vset.pattern.permute.xlu0 4
    %1103 = vperm.xlu0 %1102, %v58
    %v1104 = vpop.permute.xlu0 %1103
    %1106 = vset.pattern.permute.xlu0 4
    %1107 = vperm.xlu0 %1106, %v59
    %v1108 = vpop.permute.xlu0 %1107
    %1110 = vset.pattern.permute.xlu0 4
    %1111 = vperm.xlu0 %1110, %v60
    %v1112 = vpop.permute.xlu0 %1111
    %1114 = vset.pattern.permute.xlu0 4
    %1115 = vperm.xlu0 %1114, %v61
    %v1116 = vpop.permute.xlu0 %1115
    %1118 = vset.pattern.permute.xlu0 4
    %1119 = vperm.xlu0 %1118, %v62
    %v1120 = vpop.permute.xlu0 %1119
    %1122 = vset.pattern.permute.xlu0 4
    %1123 = vperm.xlu0 %1122, %v63
    %v1124 = vpop.permute.xlu0 %1123
    %1126 = vset.pattern.permute.xlu0 4
    %1127 = vperm.xlu0 %1126, %v64
    %v1128 = vpop.permute.xlu0 %1127
    %v1130 = vmul.f32 %v1020, %v1044
    %v1131 = vmul.f32 %v1021, %v1048
    %v1132 = vmul.f32 %v1022, %v1052
    %v1133 = vmul.f32 %v1023, %v1056
    %v1134 = vmul.f32 %v1024, %v1060
    %v1135 = vmul.f32 %v1025, %v1064
    %v1136 = vmul.f32 %v1026, %v1068
    %v1137 = vmul.f32 %v1027, %v1072
    %v1138 = vmul.f32 %v1028, %v1076
    %v1139 = vmul.f32 %v1029, %v1080
    %v1140 = vmul.f32 %v1030, %v1084
    %v1141 = vmul.f32 %v1031, %v1088
    %v1142 = vmul.f32 %v1032, %v1092
    %v1143 = vmul.f32 %v1033, %v1096
    %v1144 = vmul.f32 %v1034, %v1100
    %v1145 = vmul.f32 %v1035, %v1104
    %v1146 = vmul.f32 %v1036, %v1108
    %v1147 = vmul.f32 %v1037, %v1112
    %v1148 = vmul.f32 %v1038, %v1116
    %v1149 = vmul.f32 %v1039, %v1120
    %v1150 = vmul.f32 %v1040, %v1124
    %v1151 = vmul.f32 %v1041, %v1128
    %1174 = vrot.lane.b32.xlu0 %v1130, 16
    %v1175 = vpop.permute.xlu0 %1174
    %1176 = vrot.lane.b32.xlu0 %v1131, 16
    %v1177 = vpop.permute.xlu0 %1176
    %1178 = vrot.lane.b32.xlu0 %v1132, 16
    %v1179 = vpop.permute.xlu0 %1178
    %1180 = vrot.lane.b32.xlu0 %v1133, 16
    %v1181 = vpop.permute.xlu0 %1180
    %1182 = vrot.lane.b32.xlu0 %v1134, 16
    %v1183 = vpop.permute.xlu0 %1182
    %1184 = vrot.lane.b32.xlu0 %v1135, 16
    %v1185 = vpop.permute.xlu0 %1184
    %1186 = vrot.lane.b32.xlu0 %v1136, 16
    %v1187 = vpop.permute.xlu0 %1186
    %1188 = vrot.lane.b32.xlu0 %v1137, 16
    %v1189 = vpop.permute.xlu0 %1188
    %1190 = vrot.lane.b32.xlu0 %v1138, 16
    %v1191 = vpop.permute.xlu0 %1190
    %1192 = vrot.lane.b32.xlu0 %v1139, 16
    %v1193 = vpop.permute.xlu0 %1192
    %1194 = vrot.lane.b32.xlu0 %v1140, 16
    %v1195 = vpop.permute.xlu0 %1194
    %1196 = vrot.lane.b32.xlu0 %v1141, 16
    %v1197 = vpop.permute.xlu0 %1196
    %1198 = vrot.lane.b32.xlu0 %v1142, 16
    %v1199 = vpop.permute.xlu0 %1198
    %1200 = vrot.lane.b32.xlu0 %v1143, 16
    %v1201 = vpop.permute.xlu0 %1200
    %1202 = vrot.lane.b32.xlu0 %v1144, 16
    %v1203 = vpop.permute.xlu0 %1202
    %1204 = vrot.lane.b32.xlu0 %v1145, 16
    %v1205 = vpop.permute.xlu0 %1204
    %1206 = vrot.lane.b32.xlu0 %v1146, 16
    %v1207 = vpop.permute.xlu0 %1206
    %1208 = vrot.lane.b32.xlu0 %v1147, 16
    %v1209 = vpop.permute.xlu0 %1208
    %1210 = vrot.lane.b32.xlu0 %v1148, 16
    %v1211 = vpop.permute.xlu0 %1210
    %1212 = vrot.lane.b32.xlu0 %v1149, 16
    %v1213 = vpop.permute.xlu0 %1212
    %1214 = vrot.lane.b32.xlu0 %v1150, 16
    %v1215 = vpop.permute.xlu0 %1214
    %1216 = vrot.lane.b32.xlu0 %v1151, 16
    %v1217 = vpop.permute.xlu0 %1216
    %vm1240 = vcmask 162944
    %1241 = vst.msk [vmem:[#allocation3] sm:$0xff] %vm1240, %v1175
    %1242 = vst.msk [vmem:[#allocation3 + $0x20] sm:$0xff] %vm1240, %v1177
    %1243 = vst.msk [vmem:[#allocation3 + $0x40] sm:$0xff] %vm1240, %v1179
    %1244 = vst.msk [vmem:[#allocation3 + $0x60] sm:$0xff] %vm1240, %v1181
    %1245 = vst.msk [vmem:[#allocation3 + $0x80] sm:$0xff] %vm1240, %v1183
    %1246 = vst.msk [vmem:[#allocation3 + $0xa0] sm:$0xff] %vm1240, %v1185
    %1247 = vst.msk [vmem:[#allocation3 + $0xc0] sm:$0xff] %vm1240, %v1187
    %1248 = vst.msk [vmem:[#allocation3 + $0xe0] sm:$0xff] %vm1240, %v1189
    %1249 = vst.msk [vmem:[#allocation3 + $0x100] sm:$0xff] %vm1240, %v1191
    %1250 = vst.msk [vmem:[#allocation3 + $0x120] sm:$0xff] %vm1240, %v1193
    %1251 = vst.msk [vmem:[#allocation3 + $0x140] sm:$0xff] %vm1240, %v1195
    %1252 = vst.msk [vmem:[#allocation3 + $0x160] sm:$0xff] %vm1240, %v1197
    %1253 = vst.msk [vmem:[#allocation3 + $0x180] sm:$0xff] %vm1240, %v1199
    %1254 = vst.msk [vmem:[#allocation3 + $0x1a0] sm:$0xff] %vm1240, %v1201
    %1255 = vst.msk [vmem:[#allocation3 + $0x1c0] sm:$0xff] %vm1240, %v1203
    %1256 = vst.msk [vmem:[#allocation3 + $0x1e0] sm:$0xff] %vm1240, %v1205
    %1257 = vst.msk [vmem:[#allocation3 + $0x200] sm:$0xff] %vm1240, %v1207
    %1258 = vst.msk [vmem:[#allocation3 + $0x220] sm:$0xff] %vm1240, %v1209
    %1259 = vst.msk [vmem:[#allocation3 + $0x240] sm:$0xff] %vm1240, %v1211
    %1260 = vst.msk [vmem:[#allocation3 + $0x260] sm:$0xff] %vm1240, %v1213
    %1261 = vst.msk [vmem:[#allocation3 + $0x280] sm:$0xff] %vm1240, %v1215
    %1262 = vst.msk [vmem:[#allocation3 + $0x2a0] sm:$0xff] %vm1240, %v1217
    %v1263 = vld [vmem:[#allocation2 + $0x11] sm:$0xff]
    %v1264 = vld [vmem:[#allocation2 + $0x19] sm:$0xff]
    %v1265 = vld [vmem:[#allocation2 + $0x21] sm:$0xff]
    %v1266 = vld [vmem:[#allocation2 + $0x29] sm:$0xff]
    %v1267 = vld [vmem:[#allocation2 + $0x31] sm:$0xff]
    %v1268 = vld [vmem:[#allocation2 + $0x39] sm:$0xff]
    %v1269 = vld [vmem:[#allocation2 + $0x41] sm:$0xff]
    %v1270 = vld [vmem:[#allocation2 + $0x49] sm:$0xff]
    %v1271 = vld [vmem:[#allocation2 + $0x51] sm:$0xff]
    %v1272 = vld [vmem:[#allocation2 + $0x59] sm:$0xff]
    %v1273 = vld [vmem:[#allocation2 + $0x61] sm:$0xff]
    %v1274 = vld [vmem:[#allocation2 + $0x69] sm:$0xff]
    %v1275 = vld [vmem:[#allocation2 + $0x71] sm:$0xff]
    %v1276 = vld [vmem:[#allocation2 + $0x79] sm:$0xff]
    %v1277 = vld [vmem:[#allocation2 + $0x81] sm:$0xff]
    %v1278 = vld [vmem:[#allocation2 + $0x89] sm:$0xff]
    %v1279 = vld [vmem:[#allocation2 + $0x91] sm:$0xff]
    %v1280 = vld [vmem:[#allocation2 + $0x99] sm:$0xff]
    %v1281 = vld [vmem:[#allocation2 + $0xa1] sm:$0xff]
    %v1282 = vld [vmem:[#allocation2 + $0xa9] sm:$0xff]
    %v1283 = vld [vmem:[#allocation2 + $0xb1] sm:$0xff]
    %v1284 = vld [vmem:[#allocation2 + $0xb9] sm:$0xff]
    %1285 = vset.pattern.permute.xlu0 5
    %1286 = vperm.xlu0 %1285, %v43
    %v1287 = vpop.permute.xlu0 %1286
    %1289 = vset.pattern.permute.xlu0 5
    %1290 = vperm.xlu0 %1289, %v44
    %v1291 = vpop.permute.xlu0 %1290
    %1293 = vset.pattern.permute.xlu0 5
    %1294 = vperm.xlu0 %1293, %v45
    %v1295 = vpop.permute.xlu0 %1294
    %1297 = vset.pattern.permute.xlu0 5
    %1298 = vperm.xlu0 %1297, %v46
    %v1299 = vpop.permute.xlu0 %1298
    %1301 = vset.pattern.permute.xlu0 5
    %1302 = vperm.xlu0 %1301, %v47
    %v1303 = vpop.permute.xlu0 %1302
    %1305 = vset.pattern.permute.xlu0 5
    %1306 = vperm.xlu0 %1305, %v48
    %v1307 = vpop.permute.xlu0 %1306
    %1309 = vset.pattern.permute.xlu0 5
    %1310 = vperm.xlu0 %1309, %v49
    %v1311 = vpop.permute.xlu0 %1310
    %1313 = vset.pattern.permute.xlu0 5
    %1314 = vperm.xlu0 %1313, %v50
    %v1315 = vpop.permute.xlu0 %1314
    %1317 = vset.pattern.permute.xlu0 5
    %1318 = vperm.xlu0 %1317, %v51
    %v1319 = vpop.permute.xlu0 %1318
    %1321 = vset.pattern.permute.xlu0 5
    %1322 = vperm.xlu0 %1321, %v52
    %v1323 = vpop.permute.xlu0 %1322
    %1325 = vset.pattern.permute.xlu0 5
    %1326 = vperm.xlu0 %1325, %v53
    %v1327 = vpop.permute.xlu0 %1326
    %1329 = vset.pattern.permute.xlu0 5
    %1330 = vperm.xlu0 %1329, %v54
    %v1331 = vpop.permute.xlu0 %1330
    %1333 = vset.pattern.permute.xlu0 5
    %1334 = vperm.xlu0 %1333, %v55
    %v1335 = vpop.permute.xlu0 %1334
    %1337 = vset.pattern.permute.xlu0 5
    %1338 = vperm.xlu0 %1337, %v56
    %v1339 = vpop.permute.xlu0 %1338
    %1341 = vset.pattern.permute.xlu0 5
    %1342 = vperm.xlu0 %1341, %v57
    %v1343 = vpop.permute.xlu0 %1342
    %1345 = vset.pattern.permute.xlu0 5
    %1346 = vperm.xlu0 %1345, %v58
    %v1347 = vpop.permute.xlu0 %1346
    %1349 = vset.pattern.permute.xlu0 5
    %1350 = vperm.xlu0 %1349, %v59
    %v1351 = vpop.permute.xlu0 %1350
    %1353 = vset.pattern.permute.xlu0 5
    %1354 = vperm.xlu0 %1353, %v60
    %v1355 = vpop.permute.xlu0 %1354
    %1357 = vset.pattern.permute.xlu0 5
    %1358 = vperm.xlu0 %1357, %v61
    %v1359 = vpop.permute.xlu0 %1358
    %1361 = vset.pattern.permute.xlu0 5
    %1362 = vperm.xlu0 %1361, %v62
    %v1363 = vpop.permute.xlu0 %1362
    %1365 = vset.pattern.permute.xlu0 5
    %1366 = vperm.xlu0 %1365, %v63
    %v1367 = vpop.permute.xlu0 %1366
    %1369 = vset.pattern.permute.xlu0 5
    %1370 = vperm.xlu0 %1369, %v64
    %v1371 = vpop.permute.xlu0 %1370
    %v1373 = vmul.f32 %v1263, %v1287
    %v1374 = vmul.f32 %v1264, %v1291
    %v1375 = vmul.f32 %v1265, %v1295
    %v1376 = vmul.f32 %v1266, %v1299
    %v1377 = vmul.f32 %v1267, %v1303
    %v1378 = vmul.f32 %v1268, %v1307
    %v1379 = vmul.f32 %v1269, %v1311
    %v1380 = vmul.f32 %v1270, %v1315
    %v1381 = vmul.f32 %v1271, %v1319
    %v1382 = vmul.f32 %v1272, %v1323
    %v1383 = vmul.f32 %v1273, %v1327
    %v1384 = vmul.f32 %v1274, %v1331
    %v1385 = vmul.f32 %v1275, %v1335
    %v1386 = vmul.f32 %v1276, %v1339
    %v1387 = vmul.f32 %v1277, %v1343
    %v1388 = vmul.f32 %v1278, %v1347
    %v1389 = vmul.f32 %v1279, %v1351
    %v1390 = vmul.f32 %v1280, %v1355
    %v1391 = vmul.f32 %v1281, %v1359
    %v1392 = vmul.f32 %v1282, %v1363
    %v1393 = vmul.f32 %v1283, %v1367
    %v1394 = vmul.f32 %v1284, %v1371
    %1417 = vrot.lane.b32.xlu0 %v1373, 20
    %v1418 = vpop.permute.xlu0 %1417
    %1419 = vrot.lane.b32.xlu0 %v1374, 20
    %v1420 = vpop.permute.xlu0 %1419
    %1421 = vrot.lane.b32.xlu0 %v1375, 20
    %v1422 = vpop.permute.xlu0 %1421
    %1423 = vrot.lane.b32.xlu0 %v1376, 20
    %v1424 = vpop.permute.xlu0 %1423
    %1425 = vrot.lane.b32.xlu0 %v1377, 20
    %v1426 = vpop.permute.xlu0 %1425
    %1427 = vrot.lane.b32.xlu0 %v1378, 20
    %v1428 = vpop.permute.xlu0 %1427
    %1429 = vrot.lane.b32.xlu0 %v1379, 20
    %v1430 = vpop.permute.xlu0 %1429
    %1431 = vrot.lane.b32.xlu0 %v1380, 20
    %v1432 = vpop.permute.xlu0 %1431
    %1433 = vrot.lane.b32.xlu0 %v1381, 20
    %v1434 = vpop.permute.xlu0 %1433
    %1435 = vrot.lane.b32.xlu0 %v1382, 20
    %v1436 = vpop.permute.xlu0 %1435
    %1437 = vrot.lane.b32.xlu0 %v1383, 20
    %v1438 = vpop.permute.xlu0 %1437
    %1439 = vrot.lane.b32.xlu0 %v1384, 20
    %v1440 = vpop.permute.xlu0 %1439
    %1441 = vrot.lane.b32.xlu0 %v1385, 20
    %v1442 = vpop.permute.xlu0 %1441
    %1443 = vrot.lane.b32.xlu0 %v1386, 20
    %v1444 = vpop.permute.xlu0 %1443
    %1445 = vrot.lane.b32.xlu0 %v1387, 20
    %v1446 = vpop.permute.xlu0 %1445
    %1447 = vrot.lane.b32.xlu0 %v1388, 20
    %v1448 = vpop.permute.xlu0 %1447
    %1449 = vrot.lane.b32.xlu0 %v1389, 20
    %v1450 = vpop.permute.xlu0 %1449
    %1451 = vrot.lane.b32.xlu0 %v1390, 20
    %v1452 = vpop.permute.xlu0 %1451
    %1453 = vrot.lane.b32.xlu0 %v1391, 20
    %v1454 = vpop.permute.xlu0 %1453
    %1455 = vrot.lane.b32.xlu0 %v1392, 20
    %v1456 = vpop.permute.xlu0 %1455
    %1457 = vrot.lane.b32.xlu0 %v1393, 20
    %v1458 = vpop.permute.xlu0 %1457
    %1459 = vrot.lane.b32.xlu0 %v1394, 20
    %v1460 = vpop.permute.xlu0 %1459
    %vm1483 = vcmask 195744
    %1484 = vst.msk [vmem:[#allocation3] sm:$0xff] %vm1483, %v1418
    %1485 = vst.msk [vmem:[#allocation3 + $0x20] sm:$0xff] %vm1483, %v1420
    %1486 = vst.msk [vmem:[#allocation3 + $0x40] sm:$0xff] %vm1483, %v1422
    %1487 = vst.msk [vmem:[#allocation3 + $0x60] sm:$0xff] %vm1483, %v1424
    %1488 = vst.msk [vmem:[#allocation3 + $0x80] sm:$0xff] %vm1483, %v1426
    %1489 = vst.msk [vmem:[#allocation3 + $0xa0] sm:$0xff] %vm1483, %v1428
    %1490 = vst.msk [vmem:[#allocation3 + $0xc0] sm:$0xff] %vm1483, %v1430
    %1491 = vst.msk [vmem:[#allocation3 + $0xe0] sm:$0xff] %vm1483, %v1432
    %1492 = vst.msk [vmem:[#allocation3 + $0x100] sm:$0xff] %vm1483, %v1434
    %1493 = vst.msk [vmem:[#allocation3 + $0x120] sm:$0xff] %vm1483, %v1436
    %1494 = vst.msk [vmem:[#allocation3 + $0x140] sm:$0xff] %vm1483, %v1438
    %1495 = vst.msk [vmem:[#allocation3 + $0x160] sm:$0xff] %vm1483, %v1440
    %1496 = vst.msk [vmem:[#allocation3 + $0x180] sm:$0xff] %vm1483, %v1442
    %1497 = vst.msk [vmem:[#allocation3 + $0x1a0] sm:$0xff] %vm1483, %v1444
    %1498 = vst.msk [vmem:[#allocation3 + $0x1c0] sm:$0xff] %vm1483, %v1446
    %1499 = vst.msk [vmem:[#allocation3 + $0x1e0] sm:$0xff] %vm1483, %v1448
    %1500 = vst.msk [vmem:[#allocation3 + $0x200] sm:$0xff] %vm1483, %v1450
    %1501 = vst.msk [vmem:[#allocation3 + $0x220] sm:$0xff] %vm1483, %v1452
    %1502 = vst.msk [vmem:[#allocation3 + $0x240] sm:$0xff] %vm1483, %v1454
    %1503 = vst.msk [vmem:[#allocation3 + $0x260] sm:$0xff] %vm1483, %v1456
    %1504 = vst.msk [vmem:[#allocation3 + $0x280] sm:$0xff] %vm1483, %v1458
    %1505 = vst.msk [vmem:[#allocation3 + $0x2a0] sm:$0xff] %vm1483, %v1460
    %v1506 = vld [vmem:[#allocation2 + $0x18] sm:$0xff]
    %v1507 = vld [vmem:[#allocation2 + $0x20] sm:$0xff]
    %v1508 = vld [vmem:[#allocation2 + $0x28] sm:$0xff]
    %v1509 = vld [vmem:[#allocation2 + $0x30] sm:$0xff]
    %v1510 = vld [vmem:[#allocation2 + $0x38] sm:$0xff]
    %v1511 = vld [vmem:[#allocation2 + $0x40] sm:$0xff]
    %v1512 = vld [vmem:[#allocation2 + $0x48] sm:$0xff]
    %v1513 = vld [vmem:[#allocation2 + $0x50] sm:$0xff]
    %v1514 = vld [vmem:[#allocation2 + $0x58] sm:$0xff]
    %v1515 = vld [vmem:[#allocation2 + $0x60] sm:$0xff]
    %v1516 = vld [vmem:[#allocation2 + $0x68] sm:$0xff]
    %v1517 = vld [vmem:[#allocation2 + $0x70] sm:$0xff]
    %v1518 = vld [vmem:[#allocation2 + $0x78] sm:$0xff]
    %v1519 = vld [vmem:[#allocation2 + $0x80] sm:$0xff]
    %v1520 = vld [vmem:[#allocation2 + $0x88] sm:$0xff]
    %v1521 = vld [vmem:[#allocation2 + $0x90] sm:$0xff]
    %v1522 = vld [vmem:[#allocation2 + $0x98] sm:$0xff]
    %v1523 = vld [vmem:[#allocation2 + $0xa0] sm:$0xff]
    %v1524 = vld [vmem:[#allocation2 + $0xa8] sm:$0xff]
    %v1525 = vld [vmem:[#allocation2 + $0xb0] sm:$0xff]
    %v1526 = vld [vmem:[#allocation2 + $0xb8] sm:$0xff]
    %v1527 = vld [vmem:[#allocation2 + $0xc0] sm:$0xff]
    %1528 = vset.pattern.permute.xlu0 6
    %1529 = vperm.xlu0 %1528, %v43
    %v1530 = vpop.permute.xlu0 %1529
    %1532 = vset.pattern.permute.xlu0 6
    %1533 = vperm.xlu0 %1532, %v44
    %v1534 = vpop.permute.xlu0 %1533
    %1536 = vset.pattern.permute.xlu0 6
    %1537 = vperm.xlu0 %1536, %v45
    %v1538 = vpop.permute.xlu0 %1537
    %1540 = vset.pattern.permute.xlu0 6
    %1541 = vperm.xlu0 %1540, %v46
    %v1542 = vpop.permute.xlu0 %1541
    %1544 = vset.pattern.permute.xlu0 6
    %1545 = vperm.xlu0 %1544, %v47
    %v1546 = vpop.permute.xlu0 %1545
    %1548 = vset.pattern.permute.xlu0 6
    %1549 = vperm.xlu0 %1548, %v48
    %v1550 = vpop.permute.xlu0 %1549
    %1552 = vset.pattern.permute.xlu0 6
    %1553 = vperm.xlu0 %1552, %v49
    %v1554 = vpop.permute.xlu0 %1553
    %1556 = vset.pattern.permute.xlu0 6
    %1557 = vperm.xlu0 %1556, %v50
    %v1558 = vpop.permute.xlu0 %1557
    %1560 = vset.pattern.permute.xlu0 6
    %1561 = vperm.xlu0 %1560, %v51
    %v1562 = vpop.permute.xlu0 %1561
    %1564 = vset.pattern.permute.xlu0 6
    %1565 = vperm.xlu0 %1564, %v52
    %v1566 = vpop.permute.xlu0 %1565
    %1568 = vset.pattern.permute.xlu0 6
    %1569 = vperm.xlu0 %1568, %v53
    %v1570 = vpop.permute.xlu0 %1569
    %1572 = vset.pattern.permute.xlu0 6
    %1573 = vperm.xlu0 %1572, %v54
    %v1574 = vpop.permute.xlu0 %1573
    %1576 = vset.pattern.permute.xlu0 6
    %1577 = vperm.xlu0 %1576, %v55
    %v1578 = vpop.permute.xlu0 %1577
    %1580 = vset.pattern.permute.xlu0 6
    %1581 = vperm.xlu0 %1580, %v56
    %v1582 = vpop.permute.xlu0 %1581
    %1584 = vset.pattern.permute.xlu0 6
    %1585 = vperm.xlu0 %1584, %v57
    %v1586 = vpop.permute.xlu0 %1585
    %1588 = vset.pattern.permute.xlu0 6
    %1589 = vperm.xlu0 %1588, %v58
    %v1590 = vpop.permute.xlu0 %1589
    %1592 = vset.pattern.permute.xlu0 6
    %1593 = vperm.xlu0 %1592, %v59
    %v1594 = vpop.permute.xlu0 %1593
    %1596 = vset.pattern.permute.xlu0 6
    %1597 = vperm.xlu0 %1596, %v60
    %v1598 = vpop.permute.xlu0 %1597
    %1600 = vset.pattern.permute.xlu0 6
    %1601 = vperm.xlu0 %1600, %v61
    %v1602 = vpop.permute.xlu0 %1601
    %1604 = vset.pattern.permute.xlu0 6
    %1605 = vperm.xlu0 %1604, %v62
    %v1606 = vpop.permute.xlu0 %1605
    %1608 = vset.pattern.permute.xlu0 6
    %1609 = vperm.xlu0 %1608, %v63
    %v1610 = vpop.permute.xlu0 %1609
    %1612 = vset.pattern.permute.xlu0 6
    %1613 = vperm.xlu0 %1612, %v64
    %v1614 = vpop.permute.xlu0 %1613
    %v1616 = vmul.f32 %v1506, %v1530
    %v1617 = vmul.f32 %v1507, %v1534
    %v1618 = vmul.f32 %v1508, %v1538
    %v1619 = vmul.f32 %v1509, %v1542
    %v1620 = vmul.f32 %v1510, %v1546
    %v1621 = vmul.f32 %v1511, %v1550
    %v1622 = vmul.f32 %v1512, %v1554
    %v1623 = vmul.f32 %v1513, %v1558
    %v1624 = vmul.f32 %v1514, %v1562
    %v1625 = vmul.f32 %v1515, %v1566
    %v1626 = vmul.f32 %v1516, %v1570
    %v1627 = vmul.f32 %v1517, %v1574
    %v1628 = vmul.f32 %v1518, %v1578
    %v1629 = vmul.f32 %v1519, %v1582
    %v1630 = vmul.f32 %v1520, %v1586
    %v1631 = vmul.f32 %v1521, %v1590
    %v1632 = vmul.f32 %v1522, %v1594
    %v1633 = vmul.f32 %v1523, %v1598
    %v1634 = vmul.f32 %v1524, %v1602
    %v1635 = vmul.f32 %v1525, %v1606
    %v1636 = vmul.f32 %v1526, %v1610
    %v1637 = vmul.f32 %v1527, %v1614
    %1660 = vrot.lane.b32.xlu0 %v1616, 24
    %v1661 = vpop.permute.xlu0 %1660
    %1662 = vrot.lane.b32.xlu0 %v1617, 24
    %v1663 = vpop.permute.xlu0 %1662
    %1664 = vrot.lane.b32.xlu0 %v1618, 24
    %v1665 = vpop.permute.xlu0 %1664
    %1666 = vrot.lane.b32.xlu0 %v1619, 24
    %v1667 = vpop.permute.xlu0 %1666
    %1668 = vrot.lane.b32.xlu0 %v1620, 24
    %v1669 = vpop.permute.xlu0 %1668
    %1670 = vrot.lane.b32.xlu0 %v1621, 24
    %v1671 = vpop.permute.xlu0 %1670
    %1672 = vrot.lane.b32.xlu0 %v1622, 24
    %v1673 = vpop.permute.xlu0 %1672
    %1674 = vrot.lane.b32.xlu0 %v1623, 24
    %v1675 = vpop.permute.xlu0 %1674
    %1676 = vrot.lane.b32.xlu0 %v1624, 24
    %v1677 = vpop.permute.xlu0 %1676
    %1678 = vrot.lane.b32.xlu0 %v1625, 24
    %v1679 = vpop.permute.xlu0 %1678
    %1680 = vrot.lane.b32.xlu0 %v1626, 24
    %v1681 = vpop.permute.xlu0 %1680
    %1682 = vrot.lane.b32.xlu0 %v1627, 24
    %v1683 = vpop.permute.xlu0 %1682
    %1684 = vrot.lane.b32.xlu0 %v1628, 24
    %v1685 = vpop.permute.xlu0 %1684
    %1686 = vrot.lane.b32.xlu0 %v1629, 24
    %v1687 = vpop.permute.xlu0 %1686
    %1688 = vrot.lane.b32.xlu0 %v1630, 24
    %v1689 = vpop.permute.xlu0 %1688
    %1690 = vrot.lane.b32.xlu0 %v1631, 24
    %v1691 = vpop.permute.xlu0 %1690
    %1692 = vrot.lane.b32.xlu0 %v1632, 24
    %v1693 = vpop.permute.xlu0 %1692
    %1694 = vrot.lane.b32.xlu0 %v1633, 24
    %v1695 = vpop.permute.xlu0 %1694
    %1696 = vrot.lane.b32.xlu0 %v1634, 24
    %v1697 = vpop.permute.xlu0 %1696
    %1698 = vrot.lane.b32.xlu0 %v1635, 24
    %v1699 = vpop.permute.xlu0 %1698
    %1700 = vrot.lane.b32.xlu0 %v1636, 24
    %v1701 = vpop.permute.xlu0 %1700
    %1702 = vrot.lane.b32.xlu0 %v1637, 24
    %v1703 = vpop.permute.xlu0 %1702
    %vm1726 = vcmask 228544
    %1727 = vst.msk [vmem:[#allocation3] sm:$0xff] %vm1726, %v1661
    %1728 = vst.msk [vmem:[#allocation3 + $0x20] sm:$0xff] %vm1726, %v1663
    %1729 = vst.msk [vmem:[#allocation3 + $0x40] sm:$0xff] %vm1726, %v1665
    %1730 = vst.msk [vmem:[#allocation3 + $0x60] sm:$0xff] %vm1726, %v1667
    %1731 = vst.msk [vmem:[#allocation3 + $0x80] sm:$0xff] %vm1726, %v1669
    %1732 = vst.msk [vmem:[#allocation3 + $0xa0] sm:$0xff] %vm1726, %v1671
    %1733 = vst.msk [vmem:[#allocation3 + $0xc0] sm:$0xff] %vm1726, %v1673
    %1734 = vst.msk [vmem:[#allocation3 + $0xe0] sm:$0xff] %vm1726, %v1675
    %1735 = vst.msk [vmem:[#allocation3 + $0x100] sm:$0xff] %vm1726, %v1677
    %1736 = vst.msk [vmem:[#allocation3 + $0x120] sm:$0xff] %vm1726, %v1679
    %1737 = vst.msk [vmem:[#allocation3 + $0x140] sm:$0xff] %vm1726, %v1681
    %1738 = vst.msk [vmem:[#allocation3 + $0x160] sm:$0xff] %vm1726, %v1683
    %1739 = vst.msk [vmem:[#allocation3 + $0x180] sm:$0xff] %vm1726, %v1685
    %1740 = vst.msk [vmem:[#allocation3 + $0x1a0] sm:$0xff] %vm1726, %v1687
    %1741 = vst.msk [vmem:[#allocation3 + $0x1c0] sm:$0xff] %vm1726, %v1689
    %1742 = vst.msk [vmem:[#allocation3 + $0x1e0] sm:$0xff] %vm1726, %v1691
    %1743 = vst.msk [vmem:[#allocation3 + $0x200] sm:$0xff] %vm1726, %v1693
    %1744 = vst.msk [vmem:[#allocation3 + $0x220] sm:$0xff] %vm1726, %v1695
    %1745 = vst.msk [vmem:[#allocation3 + $0x240] sm:$0xff] %vm1726, %v1697
    %1746 = vst.msk [vmem:[#allocation3 + $0x260] sm:$0xff] %vm1726, %v1699
    %1747 = vst.msk [vmem:[#allocation3 + $0x280] sm:$0xff] %vm1726, %v1701
    %1748 = vst.msk [vmem:[#allocation3 + $0x2a0] sm:$0xff] %vm1726, %v1703
    %v1749 = vld [vmem:[#allocation2 + $0x19] sm:$0xff]
    %v1750 = vld [vmem:[#allocation2 + $0x21] sm:$0xff]
    %v1751 = vld [vmem:[#allocation2 + $0x29] sm:$0xff]
    %v1752 = vld [vmem:[#allocation2 + $0x31] sm:$0xff]
    %v1753 = vld [vmem:[#allocation2 + $0x39] sm:$0xff]
    %v1754 = vld [vmem:[#allocation2 + $0x41] sm:$0xff]
    %v1755 = vld [vmem:[#allocation2 + $0x49] sm:$0xff]
    %v1756 = vld [vmem:[#allocation2 + $0x51] sm:$0xff]
    %v1757 = vld [vmem:[#allocation2 + $0x59] sm:$0xff]
    %v1758 = vld [vmem:[#allocation2 + $0x61] sm:$0xff]
    %v1759 = vld [vmem:[#allocation2 + $0x69] sm:$0xff]
    %v1760 = vld [vmem:[#allocation2 + $0x71] sm:$0xff]
    %v1761 = vld [vmem:[#allocation2 + $0x79] sm:$0xff]
    %v1762 = vld [vmem:[#allocation2 + $0x81] sm:$0xff]
    %v1763 = vld [vmem:[#allocation2 + $0x89] sm:$0xff]
    %v1764 = vld [vmem:[#allocation2 + $0x91] sm:$0xff]
    %v1765 = vld [vmem:[#allocation2 + $0x99] sm:$0xff]
    %v1766 = vld [vmem:[#allocation2 + $0xa1] sm:$0xff]
    %v1767 = vld [vmem:[#allocation2 + $0xa9] sm:$0xff]
    %v1768 = vld [vmem:[#allocation2 + $0xb1] sm:$0xff]
    %v1769 = vld [vmem:[#allocation2 + $0xb9] sm:$0xff]
    %v1770 = vld [vmem:[#allocation2 + $0xc1] sm:$0xff]
    %1771 = vset.pattern.permute.xlu0 7
    %1772 = vperm.xlu0 %1771, %v43
    %v1773 = vpop.permute.xlu0 %1772
    %1775 = vset.pattern.permute.xlu0 7
    %1776 = vperm.xlu0 %1775, %v44
    %v1777 = vpop.permute.xlu0 %1776
    %1779 = vset.pattern.permute.xlu0 7
    %1780 = vperm.xlu0 %1779, %v45
    %v1781 = vpop.permute.xlu0 %1780
    %1783 = vset.pattern.permute.xlu0 7
    %1784 = vperm.xlu0 %1783, %v46
    %v1785 = vpop.permute.xlu0 %1784
    %1787 = vset.pattern.permute.xlu0 7
    %1788 = vperm.xlu0 %1787, %v47
    %v1789 = vpop.permute.xlu0 %1788
    %1791 = vset.pattern.permute.xlu0 7
    %1792 = vperm.xlu0 %1791, %v48
    %v1793 = vpop.permute.xlu0 %1792
    %1795 = vset.pattern.permute.xlu0 7
    %1796 = vperm.xlu0 %1795, %v49
    %v1797 = vpop.permute.xlu0 %1796
    %1799 = vset.pattern.permute.xlu0 7
    %1800 = vperm.xlu0 %1799, %v50
    %v1801 = vpop.permute.xlu0 %1800
    %1803 = vset.pattern.permute.xlu0 7
    %1804 = vperm.xlu0 %1803, %v51
    %v1805 = vpop.permute.xlu0 %1804
    %1807 = vset.pattern.permute.xlu0 7
    %1808 = vperm.xlu0 %1807, %v52
    %v1809 = vpop.permute.xlu0 %1808
    %1811 = vset.pattern.permute.xlu0 7
    %1812 = vperm.xlu0 %1811, %v53
    %v1813 = vpop.permute.xlu0 %1812
    %1815 = vset.pattern.permute.xlu0 7
    %1816 = vperm.xlu0 %1815, %v54
    %v1817 = vpop.permute.xlu0 %1816
    %1819 = vset.pattern.permute.xlu0 7
    %1820 = vperm.xlu0 %1819, %v55
    %v1821 = vpop.permute.xlu0 %1820
    %1823 = vset.pattern.permute.xlu0 7
    %1824 = vperm.xlu0 %1823, %v56
    %v1825 = vpop.permute.xlu0 %1824
    %1827 = vset.pattern.permute.xlu0 7
    %1828 = vperm.xlu0 %1827, %v57
    %v1829 = vpop.permute.xlu0 %1828
    %1831 = vset.pattern.permute.xlu0 7
    %1832 = vperm.xlu0 %1831, %v58
    %v1833 = vpop.permute.xlu0 %1832
    %1835 = vset.pattern.permute.xlu0 7
    %1836 = vperm.xlu0 %1835, %v59
    %v1837 = vpop.permute.xlu0 %1836
    %1839 = vset.pattern.permute.xlu0 7
    %1840 = vperm.xlu0 %1839, %v60
    %v1841 = vpop.permute.xlu0 %1840
    %1843 = vset.pattern.permute.xlu0 7
    %1844 = vperm.xlu0 %1843, %v61
    %v1845 = vpop.permute.xlu0 %1844
    %1847 = vset.pattern.permute.xlu0 7
    %1848 = vperm.xlu0 %1847, %v62
    %v1849 = vpop.permute.xlu0 %1848
    %1851 = vset.pattern.permute.xlu0 7
    %1852 = vperm.xlu0 %1851, %v63
    %v1853 = vpop.permute.xlu0 %1852
    %1855 = vset.pattern.permute.xlu0 7
    %1856 = vperm.xlu0 %1855, %v64
    %v1857 = vpop.permute.xlu0 %1856
    %v1859 = vmul.f32 %v1749, %v1773
    %v1860 = vmul.f32 %v1750, %v1777
    %v1861 = vmul.f32 %v1751, %v1781
    %v1862 = vmul.f32 %v1752, %v1785
    %v1863 = vmul.f32 %v1753, %v1789
    %v1864 = vmul.f32 %v1754, %v1793
    %v1865 = vmul.f32 %v1755, %v1797
    %v1866 = vmul.f32 %v1756, %v1801
    %v1867 = vmul.f32 %v1757, %v1805
    %v1868 = vmul.f32 %v1758, %v1809
    %v1869 = vmul.f32 %v1759, %v1813
    %v1870 = vmul.f32 %v1760, %v1817
    %v1871 = vmul.f32 %v1761, %v1821
    %v1872 = vmul.f32 %v1762, %v1825
    %v1873 = vmul.f32 %v1763, %v1829
    %v1874 = vmul.f32 %v1764, %v1833
    %v1875 = vmul.f32 %v1765, %v1837
    %v1876 = vmul.f32 %v1766, %v1841
    %v1877 = vmul.f32 %v1767, %v1845
    %v1878 = vmul.f32 %v1768, %v1849
    %v1879 = vmul.f32 %v1769, %v1853
    %v1880 = vmul.f32 %v1770, %v1857
    %1903 = vrot.lane.b32.xlu0 %v1859, 28
    %v1904 = vpop.permute.xlu0 %1903
    %1905 = vrot.lane.b32.xlu0 %v1860, 28
    %v1906 = vpop.permute.xlu0 %1905
    %1907 = vrot.lane.b32.xlu0 %v1861, 28
    %v1908 = vpop.permute.xlu0 %1907
    %1909 = vrot.lane.b32.xlu0 %v1862, 28
    %v1910 = vpop.permute.xlu0 %1909
    %1911 = vrot.lane.b32.xlu0 %v1863, 28
    %v1912 = vpop.permute.xlu0 %1911
    %1913 = vrot.lane.b32.xlu0 %v1864, 28
    %v1914 = vpop.permute.xlu0 %1913
    %1915 = vrot.lane.b32.xlu0 %v1865, 28
    %v1916 = vpop.permute.xlu0 %1915
    %1917 = vrot.lane.b32.xlu0 %v1866, 28
    %v1918 = vpop.permute.xlu0 %1917
    %1919 = vrot.lane.b32.xlu0 %v1867, 28
    %v1920 = vpop.permute.xlu0 %1919
    %1921 = vrot.lane.b32.xlu0 %v1868, 28
    %v1922 = vpop.permute.xlu0 %1921
    %1923 = vrot.lane.b32.xlu0 %v1869, 28
    %v1924 = vpop.permute.xlu0 %1923
    %1925 = vrot.lane.b32.xlu0 %v1870, 28
    %v1926 = vpop.permute.xlu0 %1925
    %1927 = vrot.lane.b32.xlu0 %v1871, 28
    %v1928 = vpop.permute.xlu0 %1927
    %1929 = vrot.lane.b32.xlu0 %v1872, 28
    %v1930 = vpop.permute.xlu0 %1929
    %1931 = vrot.lane.b32.xlu0 %v1873, 28
    %v1932 = vpop.permute.xlu0 %1931
    %1933 = vrot.lane.b32.xlu0 %v1874, 28
    %v1934 = vpop.permute.xlu0 %1933
    %1935 = vrot.lane.b32.xlu0 %v1875, 28
    %v1936 = vpop.permute.xlu0 %1935
    %1937 = vrot.lane.b32.xlu0 %v1876, 28
    %v1938 = vpop.permute.xlu0 %1937
    %1939 = vrot.lane.b32.xlu0 %v1877, 28
    %v1940 = vpop.permute.xlu0 %1939
    %1941 = vrot.lane.b32.xlu0 %v1878, 28
    %v1942 = vpop.permute.xlu0 %1941
    %1943 = vrot.lane.b32.xlu0 %v1879, 28
    %v1944 = vpop.permute.xlu0 %1943
    %1945 = vrot.lane.b32.xlu0 %v1880, 28
    %v1946 = vpop.permute.xlu0 %1945
    %vm1969 = vcmask 261344
    %1970 = vst.msk [vmem:[#allocation3] sm:$0xff] %vm1969, %v1904
    %1971 = vst.msk [vmem:[#allocation3 + $0x20] sm:$0xff] %vm1969, %v1906
    %1972 = vst.msk [vmem:[#allocation3 + $0x40] sm:$0xff] %vm1969, %v1908
    %1973 = vst.msk [vmem:[#allocation3 + $0x60] sm:$0xff] %vm1969, %v1910
    %1974 = vst.msk [vmem:[#allocation3 + $0x80] sm:$0xff] %vm1969, %v1912
    %1975 = vst.msk [vmem:[#allocation3 + $0xa0] sm:$0xff] %vm1969, %v1914
    %1976 = vst.msk [vmem:[#allocation3 + $0xc0] sm:$0xff] %vm1969, %v1916
    %1977 = vst.msk [vmem:[#allocation3 + $0xe0] sm:$0xff] %vm1969, %v1918
    %1978 = vst.msk [vmem:[#allocation3 + $0x100] sm:$0xff] %vm1969, %v1920
    %1979 = vst.msk [vmem:[#allocation3 + $0x120] sm:$0xff] %vm1969, %v1922
    %1980 = vst.msk [vmem:[#allocation3 + $0x140] sm:$0xff] %vm1969, %v1924
    %1981 = vst.msk [vmem:[#allocation3 + $0x160] sm:$0xff] %vm1969, %v1926
    %1982 = vst.msk [vmem:[#allocation3 + $0x180] sm:$0xff] %vm1969, %v1928
    %1983 = vst.msk [vmem:[#allocation3 + $0x1a0] sm:$0xff] %vm1969, %v1930
    %1984 = vst.msk [vmem:[#allocation3 + $0x1c0] sm:$0xff] %vm1969, %v1932
    %1985 = vst.msk [vmem:[#allocation3 + $0x1e0] sm:$0xff] %vm1969, %v1934
    %1986 = vst.msk [vmem:[#allocation3 + $0x200] sm:$0xff] %vm1969, %v1936
    %1987 = vst.msk [vmem:[#allocation3 + $0x220] sm:$0xff] %vm1969, %v1938
    %1988 = vst.msk [vmem:[#allocation3 + $0x240] sm:$0xff] %vm1969, %v1940
    %1989 = vst.msk [vmem:[#allocation3 + $0x260] sm:$0xff] %vm1969, %v1942
    %1990 = vst.msk [vmem:[#allocation3 + $0x280] sm:$0xff] %vm1969, %v1944
    %1991 = vst.msk [vmem:[#allocation3 + $0x2a0] sm:$0xff] %vm1969, %v1946
    %v1992 = vld [vmem:[#allocation2 + $0x1a] sm:$0xff]
    %v1993 = vld [vmem:[#allocation2 + $0x22] sm:$0xff]
    %v1994 = vld [vmem:[#allocation2 + $0x2a] sm:$0xff]
    %v1995 = vld [vmem:[#allocation2 + $0x32] sm:$0xff]
    %v1996 = vld [vmem:[#allocation2 + $0x3a] sm:$0xff]
    %v1997 = vld [vmem:[#allocation2 + $0x42] sm:$0xff]
    %v1998 = vld [vmem:[#allocation2 + $0x4a] sm:$0xff]
    %v1999 = vld [vmem:[#allocation2 + $0x52] sm:$0xff]
    %v2000 = vld [vmem:[#allocation2 + $0x5a] sm:$0xff]
    %v2001 = vld [vmem:[#allocation2 + $0x62] sm:$0xff]
    %v2002 = vld [vmem:[#allocation2 + $0x6a] sm:$0xff]
    %v2003 = vld [vmem:[#allocation2 + $0x72] sm:$0xff]
    %v2004 = vld [vmem:[#allocation2 + $0x7a] sm:$0xff]
    %v2005 = vld [vmem:[#allocation2 + $0x82] sm:$0xff]
    %v2006 = vld [vmem:[#allocation2 + $0x8a] sm:$0xff]
    %v2007 = vld [vmem:[#allocation2 + $0x92] sm:$0xff]
    %v2008 = vld [vmem:[#allocation2 + $0x9a] sm:$0xff]
    %v2009 = vld [vmem:[#allocation2 + $0xa2] sm:$0xff]
    %v2010 = vld [vmem:[#allocation2 + $0xaa] sm:$0xff]
    %v2011 = vld [vmem:[#allocation2 + $0xb2] sm:$0xff]
    %v2012 = vld [vmem:[#allocation2 + $0xba] sm:$0xff]
    %v2013 = vld [vmem:[#allocation2 + $0xc2] sm:$0xff]
    %2014 = vset.pattern.permute.xlu0 8
    %2015 = vperm.xlu0 %2014, %v43
    %v2016 = vpop.permute.xlu0 %2015
    %2018 = vset.pattern.permute.xlu0 8
    %2019 = vperm.xlu0 %2018, %v44
    %v2020 = vpop.permute.xlu0 %2019
    %2022 = vset.pattern.permute.xlu0 8
    %2023 = vperm.xlu0 %2022, %v45
    %v2024 = vpop.permute.xlu0 %2023
    %2026 = vset.pattern.permute.xlu0 8
    %2027 = vperm.xlu0 %2026, %v46
    %v2028 = vpop.permute.xlu0 %2027
    %2030 = vset.pattern.permute.xlu0 8
    %2031 = vperm.xlu0 %2030, %v47
    %v2032 = vpop.permute.xlu0 %2031
    %2034 = vset.pattern.permute.xlu0 8
    %2035 = vperm.xlu0 %2034, %v48
    %v2036 = vpop.permute.xlu0 %2035
    %2038 = vset.pattern.permute.xlu0 8
    %2039 = vperm.xlu0 %2038, %v49
    %v2040 = vpop.permute.xlu0 %2039
    %2042 = vset.pattern.permute.xlu0 8
    %2043 = vperm.xlu0 %2042, %v50
    %v2044 = vpop.permute.xlu0 %2043
    %2046 = vset.pattern.permute.xlu0 8
    %2047 = vperm.xlu0 %2046, %v51
    %v2048 = vpop.permute.xlu0 %2047
    %2050 = vset.pattern.permute.xlu0 8
    %2051 = vperm.xlu0 %2050, %v52
    %v2052 = vpop.permute.xlu0 %2051
    %2054 = vset.pattern.permute.xlu0 8
    %2055 = vperm.xlu0 %2054, %v53
    %v2056 = vpop.permute.xlu0 %2055
    %2058 = vset.pattern.permute.xlu0 8
    %2059 = vperm.xlu0 %2058, %v54
    %v2060 = vpop.permute.xlu0 %2059
    %2062 = vset.pattern.permute.xlu0 8
    %2063 = vperm.xlu0 %2062, %v55
    %v2064 = vpop.permute.xlu0 %2063
    %2066 = vset.pattern.permute.xlu0 8
    %2067 = vperm.xlu0 %2066, %v56
    %v2068 = vpop.permute.xlu0 %2067
    %2070 = vset.pattern.permute.xlu0 8
    %2071 = vperm.xlu0 %2070, %v57
    %v2072 = vpop.permute.xlu0 %2071
    %2074 = vset.pattern.permute.xlu0 8
    %2075 = vperm.xlu0 %2074, %v58
    %v2076 = vpop.permute.xlu0 %2075
    %2078 = vset.pattern.permute.xlu0 8
    %2079 = vperm.xlu0 %2078, %v59
    %v2080 = vpop.permute.xlu0 %2079
    %2082 = vset.pattern.permute.xlu0 8
    %2083 = vperm.xlu0 %2082, %v60
    %v2084 = vpop.permute.xlu0 %2083
    %2086 = vset.pattern.permute.xlu0 8
    %2087 = vperm.xlu0 %2086, %v61
    %v2088 = vpop.permute.xlu0 %2087
    %2090 = vset.pattern.permute.xlu0 8
    %2091 = vperm.xlu0 %2090, %v62
    %v2092 = vpop.permute.xlu0 %2091
    %2094 = vset.pattern.permute.xlu0 8
    %2095 = vperm.xlu0 %2094, %v63
    %v2096 = vpop.permute.xlu0 %2095
    %2098 = vset.pattern.permute.xlu0 8
    %2099 = vperm.xlu0 %2098, %v64
    %v2100 = vpop.permute.xlu0 %2099
    %v2102 = vmul.f32 %v1992, %v2016
    %v2103 = vmul.f32 %v1993, %v2020
    %v2104 = vmul.f32 %v1994, %v2024
    %v2105 = vmul.f32 %v1995, %v2028
    %v2106 = vmul.f32 %v1996, %v2032
    %v2107 = vmul.f32 %v1997, %v2036
    %v2108 = vmul.f32 %v1998, %v2040
    %v2109 = vmul.f32 %v1999, %v2044
    %v2110 = vmul.f32 %v2000, %v2048
    %v2111 = vmul.f32 %v2001, %v2052
    %v2112 = vmul.f32 %v2002, %v2056
    %v2113 = vmul.f32 %v2003, %v2060
    %v2114 = vmul.f32 %v2004, %v2064
    %v2115 = vmul.f32 %v2005, %v2068
    %v2116 = vmul.f32 %v2006, %v2072
    %v2117 = vmul.f32 %v2007, %v2076
    %v2118 = vmul.f32 %v2008, %v2080
    %v2119 = vmul.f32 %v2009, %v2084
    %v2120 = vmul.f32 %v2010, %v2088
    %v2121 = vmul.f32 %v2011, %v2092
    %v2122 = vmul.f32 %v2012, %v2096
    %v2123 = vmul.f32 %v2013, %v2100
    %2146 = vrot.lane.b32.xlu0 %v2102, 32
    %v2147 = vpop.permute.xlu0 %2146
    %2148 = vrot.lane.b32.xlu0 %v2103, 32
    %v2149 = vpop.permute.xlu0 %2148
    %2150 = vrot.lane.b32.xlu0 %v2104, 32
    %v2151 = vpop.permute.xlu0 %2150
    %2152 = vrot.lane.b32.xlu0 %v2105, 32
    %v2153 = vpop.permute.xlu0 %2152
    %2154 = vrot.lane.b32.xlu0 %v2106, 32
    %v2155 = vpop.permute.xlu0 %2154
    %2156 = vrot.lane.b32.xlu0 %v2107, 32
    %v2157 = vpop.permute.xlu0 %2156
    %2158 = vrot.lane.b32.xlu0 %v2108, 32
    %v2159 = vpop.permute.xlu0 %2158
    %2160 = vrot.lane.b32.xlu0 %v2109, 32
    %v2161 = vpop.permute.xlu0 %2160
    %2162 = vrot.lane.b32.xlu0 %v2110, 32
    %v2163 = vpop.permute.xlu0 %2162
    %2164 = vrot.lane.b32.xlu0 %v2111, 32
    %v2165 = vpop.permute.xlu0 %2164
    %2166 = vrot.lane.b32.xlu0 %v2112, 32
    %v2167 = vpop.permute.xlu0 %2166
    %2168 = vrot.lane.b32.xlu0 %v2113, 32
    %v2169 = vpop.permute.xlu0 %2168
    %2170 = vrot.lane.b32.xlu0 %v2114, 32
    %v2171 = vpop.permute.xlu0 %2170
    %2172 = vrot.lane.b32.xlu0 %v2115, 32
    %v2173 = vpop.permute.xlu0 %2172
    %2174 = vrot.lane.b32.xlu0 %v2116, 32
    %v2175 = vpop.permute.xlu0 %2174
    %2176 = vrot.lane.b32.xlu0 %v2117, 32
    %v2177 = vpop.permute.xlu0 %2176
    %2178 = vrot.lane.b32.xlu0 %v2118, 32
    %v2179 = vpop.permute.xlu0 %2178
    %2180 = vrot.lane.b32.xlu0 %v2119, 32
    %v2181 = vpop.permute.xlu0 %2180
    %2182 = vrot.lane.b32.xlu0 %v2120, 32
    %v2183 = vpop.permute.xlu0 %2182
    %2184 = vrot.lane.b32.xlu0 %v2121, 32
    %v2185 = vpop.permute.xlu0 %2184
    %2186 = vrot.lane.b32.xlu0 %v2122, 32
    %v2187 = vpop.permute.xlu0 %2186
    %2188 = vrot.lane.b32.xlu0 %v2123, 32
    %v2189 = vpop.permute.xlu0 %2188
    %vm2212 = vcmask 294144
    %2213 = vst.msk [vmem:[#allocation3] sm:$0xff] %vm2212, %v2147
    %2214 = vst.msk [vmem:[#allocation3 + $0x20] sm:$0xff] %vm2212, %v2149
    %2215 = vst.msk [vmem:[#allocation3 + $0x40] sm:$0xff] %vm2212, %v2151
    %2216 = vst.msk [vmem:[#allocation3 + $0x60] sm:$0xff] %vm2212, %v2153
    %2217 = vst.msk [vmem:[#allocation3 + $0x80] sm:$0xff] %vm2212, %v2155
    %2218 = vst.msk [vmem:[#allocation3 + $0xa0] sm:$0xff] %vm2212, %v2157
    %2219 = vst.msk [vmem:[#allocation3 + $0xc0] sm:$0xff] %vm2212, %v2159
    %2220 = vst.msk [vmem:[#allocation3 + $0xe0] sm:$0xff] %vm2212, %v2161
    %2221 = vst.msk [vmem:[#allocation3 + $0x100] sm:$0xff] %vm2212, %v2163
    %2222 = vst.msk [vmem:[#allocation3 + $0x120] sm:$0xff] %vm2212, %v2165
    %2223 = vst.msk [vmem:[#allocation3 + $0x140] sm:$0xff] %vm2212, %v2167
    %2224 = vst.msk [vmem:[#allocation3 + $0x160] sm:$0xff] %vm2212, %v2169
    %2225 = vst.msk [vmem:[#allocation3 + $0x180] sm:$0xff] %vm2212, %v2171
    %2226 = vst.msk [vmem:[#allocation3 + $0x1a0] sm:$0xff] %vm2212, %v2173
    %2227 = vst.msk [vmem:[#allocation3 + $0x1c0] sm:$0xff] %vm2212, %v2175
    %2228 = vst.msk [vmem:[#allocation3 + $0x1e0] sm:$0xff] %vm2212, %v2177
    %2229 = vst.msk [vmem:[#allocation3 + $0x200] sm:$0xff] %vm2212, %v2179
    %2230 = vst.msk [vmem:[#allocation3 + $0x220] sm:$0xff] %vm2212, %v2181
    %2231 = vst.msk [vmem:[#allocation3 + $0x240] sm:$0xff] %vm2212, %v2183
    %2232 = vst.msk [vmem:[#allocation3 + $0x260] sm:$0xff] %vm2212, %v2185
    %2233 = vst.msk [vmem:[#allocation3 + $0x280] sm:$0xff] %vm2212, %v2187
    %2234 = vst.msk [vmem:[#allocation3 + $0x2a0] sm:$0xff] %vm2212, %v2189
    %v2235 = vld [vmem:[#allocation3] sm:$0xff]
    %v2236 = vld [vmem:[#allocation3 + $0x20] sm:$0xff]
    %v2237 = vld [vmem:[#allocation3 + $0x40] sm:$0xff]
    %v2238 = vld [vmem:[#allocation3 + $0x60] sm:$0xff]
    %v2239 = vld [vmem:[#allocation3 + $0x80] sm:$0xff]
    %v2240 = vld [vmem:[#allocation3 + $0xa0] sm:$0xff]
    %v2241 = vld [vmem:[#allocation3 + $0xc0] sm:$0xff]
    %v2242 = vld [vmem:[#allocation3 + $0xe0] sm:$0xff]
    %v2243 = vld [vmem:[#allocation3 + $0x100] sm:$0xff]
    %v2244 = vld [vmem:[#allocation3 + $0x120] sm:$0xff]
    %v2245 = vld [vmem:[#allocation3 + $0x140] sm:$0xff]
    %v2246 = vld [vmem:[#allocation3 + $0x160] sm:$0xff]
    %v2247 = vld [vmem:[#allocation3 + $0x180] sm:$0xff]
    %v2248 = vld [vmem:[#allocation3 + $0x1a0] sm:$0xff]
    %v2249 = vld [vmem:[#allocation3 + $0x1c0] sm:$0xff]
    %v2250 = vld [vmem:[#allocation3 + $0x1e0] sm:$0xff]
    %v2251 = vld [vmem:[#allocation3 + $0x200] sm:$0xff]
    %v2252 = vld [vmem:[#allocation3 + $0x220] sm:$0xff]
    %v2253 = vld [vmem:[#allocation3 + $0x240] sm:$0xff]
    %v2254 = vld [vmem:[#allocation3 + $0x260] sm:$0xff]
    %v2255 = vld [vmem:[#allocation3 + $0x280] sm:$0xff]
    %v2256 = vld [vmem:[#allocation3 + $0x2a0] sm:$0xff]
    %v2257 = vpack.c.bf16 %v2236, %v2235
    %v2258 = vpack.c.bf16 %v2238, %v2237
    %v2259 = vpack.c.bf16 %v2240, %v2239
    %v2260 = vpack.c.bf16 %v2242, %v2241
    %v2261 = vpack.c.bf16 %v2244, %v2243
    %v2262 = vpack.c.bf16 %v2246, %v2245
    %v2263 = vpack.c.bf16 %v2248, %v2247
    %v2264 = vpack.c.bf16 %v2250, %v2249
    %v2265 = vpack.c.bf16 %v2252, %v2251
    %v2266 = vpack.c.bf16 %v2254, %v2253
    %v2267 = vpack.c.bf16 %v2256, %v2255
    %v2268 = vld [vmem:[%s2] sm:$0xf]
    %v2269 = vld [vmem:[%s2 + $0x4] sm:$0xf]
    %v2270 = vld [vmem:[%s2 + $0x8] sm:$0xf]
    %v2271 = vld [vmem:[%s2 + $0xc] sm:$0xf]
    %v2272 = vld [vmem:[%s2 + $0x10] sm:$0x3]
    %v2273 = vld [vmem:[%s3] sm:$0x1]
    %v2274 = vlaneseq
    %v2275 = vshrl.u32 %v2274, 7
    %v2276 = vsub.s32 0, %v2275
    %v2277 = vrot.slane %v2273, %v2276
    %v2283 = vunpack.c.l.b16 %v2268
    %v2284 = vunpack.c.l.b16 %v2269
    %v2285 = vunpack.c.l.b16 %v2270
    %v2286 = vunpack.c.l.b16 %v2271
    %v2287 = vunpack.c.l.b16 %v2272
    %v2288 = vpack.c.b16 %v2284, %v2283
    %v2289 = vpack.c.b16 %v2286, %v2285
    %v2290 = vpack.c.b16 %v2287, %v2287
    %vm2293 = vcmask 293888
    %v2295 = vsel %vm2293, %v2257, 0
    %v2298 = vsel %vm2293, %v2258, 0
    %v2301 = vsel %vm2293, %v2259, 0
    %v2304 = vsel %vm2293, %v2260, 0
    %v2307 = vsel %vm2293, %v2261, 0
    %v2310 = vsel %vm2293, %v2262, 0
    %v2313 = vsel %vm2293, %v2263, 0
    %v2316 = vsel %vm2293, %v2264, 0
    %v2319 = vsel %vm2293, %v2265, 0
    %v2322 = vsel %vm2293, %v2266, 0
    %v2325 = vsel %vm2293, %v2267, 0
    %vm2327 = vcmask 1041408
    %v2329 = vsel %vm2327, %v2290, 0
    %2331 = vmatprep.subr.bf16.mxu0 0
    %2332 = vmatpush1.bf16.msra.mxu0 %v2288
    %2333 = vmatprep.subr.bf16.mxu0 0
    %2334 = vmatpush1.bf16.msra.mxu0 %v2289
    %2335 = vmatprep.subr.bf16.mxu0 0
    %2336 = vmatpush1.bf16.msra.mxu0 %v2329
    %2337 = vmatprep.subr.bf16.mxu0 0
    %2338 = vmatpush1.bf16.msra.mxu0 0
    %2339 = vmatprep.subr.bf16.mxu0 0
    %2340 = vmatpush1.bf16.msra.mxu0 0
    %2341 = vmatprep.subr.bf16.mxu0 0
    %2342 = vmatpush1.bf16.msra.mxu0 0
    %2343 = vmatprep.subr.bf16.mxu0 0
    %2344 = vmatpush1.bf16.msra.mxu0 0
    %2345 = vmatprep.subr.bf16.mxu0 0
    %2346 = vmatpush1.bf16.msra.mxu0 0
    %2347 = vmatprep.subr.bf16.mxu0 0
    %2348 = vmatpush1.bf16.msra.mxu0 0
    %2349 = vmatprep.subr.bf16.mxu0 0
    %2350 = vmatpush1.bf16.msra.mxu0 0
    %2351 = vmatprep.subr.bf16.mxu0 0
    %2352 = vmatpush1.bf16.msra.mxu0 0
    %2353 = vmatprep.subr.bf16.mxu0 0
    %2354 = vmatpush1.bf16.msra.mxu0 0
    %2355 = vmatprep.subr.bf16.mxu0 0
    %2356 = vmatpush1.bf16.msra.mxu0 0
    %2357 = vmatprep.subr.bf16.mxu0 0
    %2358 = vmatpush1.bf16.msra.mxu0 0
    %2359 = vmatprep.subr.bf16.mxu0 0
    %2360 = vmatpush1.bf16.msra.mxu0 0
    %2361 = vmatprep.subr.bf16.mxu0 0
    %2362 = vmatpush1.bf16.msra.mxu0 0
    %2363 = vmatprep.mubr.bf16.mxu0 0
    %2364 = vmatmul.mubr.bf16.gmra.mrb[0].mxu0 %v2295
    %v2365 = vpop.f32.mrb[0].mxu0
    %v2366 = vadd.f32 %v2277, %v2365
    %v2367 = vpop.f32.mrb[0].mxu0
    %v2368 = vpop.f32.mrb[0].mxu0
    %v2369 = vadd.f32 %v2277, %v2368
    %v2370 = vpop.f32.mrb[0].mxu0
    %2371 = vmatprep.mubr.bf16.mxu0 0
    %2372 = vmatmul.mubr.bf16.gmra.mrb[0].mxu0 %v2298
    %v2373 = vpop.f32.mrb[0].mxu0
    %v2374 = vadd.f32 %v2277, %v2373
    %v2375 = vpop.f32.mrb[0].mxu0
    %v2376 = vpop.f32.mrb[0].mxu0
    %v2377 = vadd.f32 %v2277, %v2376
    %v2378 = vpop.f32.mrb[0].mxu0
    %2379 = vmatprep.mubr.bf16.mxu0 0
    %2380 = vmatmul.mubr.bf16.gmra.mrb[0].mxu0 %v2301
    %v2381 = vpop.f32.mrb[0].mxu0
    %v2382 = vadd.f32 %v2277, %v2381
    %v2383 = vpop.f32.mrb[0].mxu0
    %v2384 = vpop.f32.mrb[0].mxu0
    %v2385 = vadd.f32 %v2277, %v2384
    %v2386 = vpop.f32.mrb[0].mxu0
    %2387 = vmatprep.mubr.bf16.mxu0 0
    %2388 = vmatmul.mubr.bf16.gmra.mrb[0].mxu0 %v2304
    %v2389 = vpop.f32.mrb[0].mxu0
    %v2390 = vadd.f32 %v2277, %v2389
    %v2391 = vpop.f32.mrb[0].mxu0
    %v2392 = vpop.f32.mrb[0].mxu0
    %v2393 = vadd.f32 %v2277, %v2392
    %v2394 = vpop.f32.mrb[0].mxu0
    %2395 = vmatprep.mubr.bf16.mxu0 0
    %2396 = vmatmul.mubr.bf16.gmra.mrb[0].mxu0 %v2307
    %v2397 = vpop.f32.mrb[0].mxu0
    %v2398 = vadd.f32 %v2277, %v2397
    %v2399 = vpop.f32.mrb[0].mxu0
    %v2400 = vpop.f32.mrb[0].mxu0
    %v2401 = vadd.f32 %v2277, %v2400
    %v2402 = vpop.f32.mrb[0].mxu0
    %2403 = vmatprep.mubr.bf16.mxu0 0
    %2404 = vmatmul.mubr.bf16.gmra.mrb[0].mxu0 %v2310
    %v2405 = vpop.f32.mrb[0].mxu0
    %v2406 = vadd.f32 %v2277, %v2405
    %v2407 = vpop.f32.mrb[0].mxu0
    %v2408 = vpop.f32.mrb[0].mxu0
    %v2409 = vadd.f32 %v2277, %v2408
    %v2410 = vpop.f32.mrb[0].mxu0
    %2411 = vmatprep.mubr.bf16.mxu0 0
    %2412 = vmatmul.mubr.bf16.gmra.mrb[0].mxu0 %v2313
    %v2413 = vpop.f32.mrb[0].mxu0
    %v2414 = vadd.f32 %v2277, %v2413
    %v2415 = vpop.f32.mrb[0].mxu0
    %v2416 = vpop.f32.mrb[0].mxu0
    %v2417 = vadd.f32 %v2277, %v2416
    %v2418 = vpop.f32.mrb[0].mxu0
    %2419 = vmatprep.mubr.bf16.mxu0 0
    %2420 = vmatmul.mubr.bf16.gmra.mrb[0].mxu0 %v2316
    %v2421 = vpop.f32.mrb[0].mxu0
    %v2422 = vadd.f32 %v2277, %v2421
    %v2423 = vpop.f32.mrb[0].mxu0
    %v2424 = vpop.f32.mrb[0].mxu0
    %v2425 = vadd.f32 %v2277, %v2424
    %v2426 = vpop.f32.mrb[0].mxu0
    %2427 = vmatprep.mubr.bf16.mxu0 0
    %2428 = vmatmul.mubr.bf16.gmra.mrb[0].mxu0 %v2319
    %v2429 = vpop.f32.mrb[0].mxu0
    %v2430 = vadd.f32 %v2277, %v2429
    %v2431 = vpop.f32.mrb[0].mxu0
    %v2432 = vpop.f32.mrb[0].mxu0
    %v2433 = vadd.f32 %v2277, %v2432
    %v2434 = vpop.f32.mrb[0].mxu0
    %2435 = vmatprep.mubr.bf16.mxu0 0
    %2436 = vmatmul.mubr.bf16.gmra.mrb[0].mxu0 %v2322
    %v2437 = vpop.f32.mrb[0].mxu0
    %v2438 = vadd.f32 %v2277, %v2437
    %v2439 = vpop.f32.mrb[0].mxu0
    %v2440 = vpop.f32.mrb[0].mxu0
    %v2441 = vadd.f32 %v2277, %v2440
    %v2442 = vpop.f32.mrb[0].mxu0
    %2443 = vmatprep.mubr.bf16.mxu0 0
    %2444 = vmatmul.mubr.bf16.gmra.mrb[0].mxu0 %v2325
    %v2445 = vpop.f32.mrb[0].mxu0
    %v2446 = vadd.f32 %v2277, %v2445
    %v2447 = vpop.f32.mrb[0].mxu0
    %v2448 = vpop.f32.mrb[0].mxu0
    %v2449 = vadd.f32 %v2277, %v2448
    %v2450 = vpop.f32.mrb[0].mxu0
    %2451 = vdwg.mxu0
    %v2452 = vmax.f32 %v2366, 0.0
    %v2453 = vmax.f32 %v2369, 0.0
    %v2454 = vmax.f32 %v2374, 0.0
    %v2455 = vmax.f32 %v2377, 0.0
    %v2456 = vmax.f32 %v2382, 0.0
    %v2457 = vmax.f32 %v2385, 0.0
    %v2458 = vmax.f32 %v2390, 0.0
    %v2459 = vmax.f32 %v2393, 0.0
    %v2460 = vmax.f32 %v2398, 0.0
    %v2461 = vmax.f32 %v2401, 0.0
    %v2462 = vmax.f32 %v2406, 0.0
    %v2463 = vmax.f32 %v2409, 0.0
    %v2464 = vmax.f32 %v2414, 0.0
    %v2465 = vmax.f32 %v2417, 0.0
    %v2466 = vmax.f32 %v2422, 0.0
    %v2467 = vmax.f32 %v2425, 0.0
    %v2468 = vmax.f32 %v2430, 0.0
    %v2469 = vmax.f32 %v2433, 0.0
    %v2470 = vmax.f32 %v2438, 0.0
    %v2471 = vmax.f32 %v2441, 0.0
    %v2472 = vmax.f32 %v2446, 0.0
    %v2473 = vmax.f32 %v2449, 0.0
    %v2474 = vmul.f32 %v2452, %v1044
    %v2475 = vmul.f32 %v2453, %v1048
    %v2476 = vmul.f32 %v2454, %v1052
    %v2477 = vmul.f32 %v2455, %v1056
    %v2478 = vmul.f32 %v2456, %v1060
    %v2479 = vmul.f32 %v2457, %v1064
    %v2480 = vmul.f32 %v2458, %v1068
    %v2481 = vmul.f32 %v2459, %v1072
    %v2482 = vmul.f32 %v2460, %v1076
    %v2483 = vmul.f32 %v2461, %v1080
    %v2484 = vmul.f32 %v2462, %v1084
    %v2485 = vmul.f32 %v2463, %v1088
    %v2486 = vmul.f32 %v2464, %v1092
    %v2487 = vmul.f32 %v2465, %v1096
    %v2488 = vmul.f32 %v2466, %v1100
    %v2489 = vmul.f32 %v2467, %v1104
    %v2490 = vmul.f32 %v2468, %v1108
    %v2491 = vmul.f32 %v2469, %v1112
    %v2492 = vmul.f32 %v2470, %v1116
    %v2493 = vmul.f32 %v2471, %v1120
    %v2494 = vmul.f32 %v2472, %v1124
    %v2495 = vmul.f32 %v2473, %v1128
    %vm2496 = vcmask 130048
    %v2497 = vsel %vm2496, %v2474, 0.0
    %v2498 = vsel %vm2496, %v2475, 0.0
    %v2499 = vadd.f32 %v2497, %v2498
    %v2500 = vsel %vm2496, %v2476, 0.0
    %v2501 = vadd.f32 %v2499, %v2500
    %v2502 = vsel %vm2496, %v2477, 0.0
    %v2503 = vadd.f32 %v2501, %v2502
    %v2504 = vsel %vm2496, %v2478, 0.0
    %v2505 = vadd.f32 %v2503, %v2504
    %v2506 = vsel %vm2496, %v2479, 0.0
    %v2507 = vadd.f32 %v2505, %v2506
    %v2508 = vsel %vm2496, %v2480, 0.0
    %v2509 = vadd.f32 %v2507, %v2508
    %v2510 = vsel %vm2496, %v2481, 0.0
    %v2511 = vadd.f32 %v2509, %v2510
    %v2512 = vsel %vm2496, %v2482, 0.0
    %v2513 = vadd.f32 %v2511, %v2512
    %v2514 = vsel %vm2496, %v2483, 0.0
    %v2515 = vadd.f32 %v2513, %v2514
    %v2516 = vsel %vm2496, %v2484, 0.0
    %v2517 = vadd.f32 %v2515, %v2516
    %v2518 = vsel %vm2496, %v2485, 0.0
    %v2519 = vadd.f32 %v2517, %v2518
    %v2520 = vsel %vm2496, %v2486, 0.0
    %v2521 = vadd.f32 %v2519, %v2520
    %v2522 = vsel %vm2496, %v2487, 0.0
    %v2523 = vadd.f32 %v2521, %v2522
    %v2524 = vsel %vm2496, %v2488, 0.0
    %v2525 = vadd.f32 %v2523, %v2524
    %v2526 = vsel %vm2496, %v2489, 0.0
    %v2527 = vadd.f32 %v2525, %v2526
    %v2528 = vsel %vm2496, %v2490, 0.0
    %v2529 = vadd.f32 %v2527, %v2528
    %v2530 = vsel %vm2496, %v2491, 0.0
    %v2531 = vadd.f32 %v2529, %v2530
    %v2532 = vsel %vm2496, %v2492, 0.0
    %v2533 = vadd.f32 %v2531, %v2532
    %v2534 = vsel %vm2496, %v2493, 0.0
    %v2535 = vadd.f32 %v2533, %v2534
    %v2536 = vsel %vm2496, %v2494, 0.0
    %v2537 = vadd.f32 %v2535, %v2536
    %v2538 = vsel %vm2496, %v2495, 0.0
    %v2539 = vadd.f32 %v2537, %v2538
    %v2540 = vrot.slane %v2539, 4
    %v2541 = vadd.f32 %v2539, %v2540
    %v2542 = vrot.slane %v2541, 2
    %v2543 = vadd.f32 %v2541, %v2542
    %v2544 = vrot.slane %v2543, 1
    %v2545 = vadd.f32 %v2543, %v2544
    %v2546 = vmul.f32 %v2545, 0.0061728396
    %v2547 = vmul.f32 %v2474, %v2474
    %v2548 = vmul.f32 %v2475, %v2475
    %v2549 = vmul.f32 %v2476, %v2476
    %v2550 = vmul.f32 %v2477, %v2477
    %v2551 = vmul.f32 %v2478, %v2478
    %v2552 = vmul.f32 %v2479, %v2479
    %v2553 = vmul.f32 %v2480, %v2480
    %v2554 = vmul.f32 %v2481, %v2481
    %v2555 = vmul.f32 %v2482, %v2482
    %v2556 = vmul.f32 %v2483, %v2483
    %v2557 = vmul.f32 %v2484, %v2484
    %v2558 = vmul.f32 %v2485, %v2485
    %v2559 = vmul.f32 %v2486, %v2486
    %v2560 = vmul.f32 %v2487, %v2487
    %v2561 = vmul.f32 %v2488, %v2488
    %v2562 = vmul.f32 %v2489, %v2489
    %v2563 = vmul.f32 %v2490, %v2490
    %v2564 = vmul.f32 %v2491, %v2491
    %v2565 = vmul.f32 %v2492, %v2492
    %v2566 = vmul.f32 %v2493, %v2493
    %v2567 = vmul.f32 %v2494, %v2494
    %v2568 = vmul.f32 %v2495, %v2495
    %v2569 = vsel %vm2496, %v2547, 0.0
    %v2570 = vsel %vm2496, %v2548, 0.0
    %v2571 = vadd.f32 %v2569, %v2570
    %v2572 = vsel %vm2496, %v2549, 0.0
    %v2573 = vadd.f32 %v2571, %v2572
    %v2574 = vsel %vm2496, %v2550, 0.0
    %v2575 = vadd.f32 %v2573, %v2574
    %v2576 = vsel %vm2496, %v2551, 0.0
    %v2577 = vadd.f32 %v2575, %v2576
    %v2578 = vsel %vm2496, %v2552, 0.0
    %v2579 = vadd.f32 %v2577, %v2578
    %v2580 = vsel %vm2496, %v2553, 0.0
    %v2581 = vadd.f32 %v2579, %v2580
    %v2582 = vsel %vm2496, %v2554, 0.0
    %v2583 = vadd.f32 %v2581, %v2582
    %v2584 = vsel %vm2496, %v2555, 0.0
    %v2585 = vadd.f32 %v2583, %v2584
    %v2586 = vsel %vm2496, %v2556, 0.0
    %v2587 = vadd.f32 %v2585, %v2586
    %v2588 = vsel %vm2496, %v2557, 0.0
    %v2589 = vadd.f32 %v2587, %v2588
    %v2590 = vsel %vm2496, %v2558, 0.0
    %v2591 = vadd.f32 %v2589, %v2590
    %v2592 = vsel %vm2496, %v2559, 0.0
    %v2593 = vadd.f32 %v2591, %v2592
    %v2594 = vsel %vm2496, %v2560, 0.0
    %v2595 = vadd.f32 %v2593, %v2594
    %v2596 = vsel %vm2496, %v2561, 0.0
    %v2597 = vadd.f32 %v2595, %v2596
    %v2598 = vsel %vm2496, %v2562, 0.0
    %v2599 = vadd.f32 %v2597, %v2598
    %v2600 = vsel %vm2496, %v2563, 0.0
    %v2601 = vadd.f32 %v2599, %v2600
    %v2602 = vsel %vm2496, %v2564, 0.0
    %v2603 = vadd.f32 %v2601, %v2602
    %v2604 = vsel %vm2496, %v2565, 0.0
    %v2605 = vadd.f32 %v2603, %v2604
    %v2606 = vsel %vm2496, %v2566, 0.0
    %v2607 = vadd.f32 %v2605, %v2606
    %v2608 = vsel %vm2496, %v2567, 0.0
    %v2609 = vadd.f32 %v2607, %v2608
    %v2610 = vsel %vm2496, %v2568, 0.0
    %v2611 = vadd.f32 %v2609, %v2610
    %v2612 = vrot.slane %v2611, 4
    %v2613 = vadd.f32 %v2611, %v2612
    %v2614 = vrot.slane %v2613, 2
    %v2615 = vadd.f32 %v2613, %v2614
    %v2616 = vrot.slane %v2615, 1
    %v2617 = vadd.f32 %v2615, %v2616
    %v2618 = vmul.f32 %v2617, 0.0061728396
    %v2619 = vmul.f32 %v2546, %v2546
    %v2620 = vsub.f32 %v2618, %v2619
    %v2621 = vmax.f32 %v2620, 0.0
    %v2622 = vld [vmem:[%s3 + $0x1] sm:$0x1]
    %v2623 = vadd.f32 %v2621, 1e-05
    %v2624 = vrsqrt.pop %v2623
    %v2625 = vmul.f32 %v2622, %v2624
    %v2626 = vld [vmem:[%s3 + $0x2] sm:$0x1]
    %v2627 = vmul.f32 %v2546, %v2625
    %v2628 = vsub.f32 %v2626, %v2627
    %v2629 = vlaneseq
    %v2630 = vshrl.u32 %v2629, 7
    %v2631 = vsub.s32 0, %v2630
    %v2632 = vrot.slane %v2625, %v2631
    %v2633 = vmul.f32 %v2452, %v2632
    %v2634 = vmul.f32 %v2453, %v2632
    %v2635 = vmul.f32 %v2454, %v2632
    %v2636 = vmul.f32 %v2455, %v2632
    %v2637 = vmul.f32 %v2456, %v2632
    %v2638 = vmul.f32 %v2457, %v2632
    %v2639 = vmul.f32 %v2458, %v2632
    %v2640 = vmul.f32 %v2459, %v2632
    %v2641 = vmul.f32 %v2460, %v2632
    %v2642 = vmul.f32 %v2461, %v2632
    %v2643 = vmul.f32 %v2462, %v2632
    %v2644 = vmul.f32 %v2463, %v2632
    %v2645 = vmul.f32 %v2464, %v2632
    %v2646 = vmul.f32 %v2465, %v2632
    %v2647 = vmul.f32 %v2466, %v2632
    %v2648 = vmul.f32 %v2467, %v2632
    %v2649 = vmul.f32 %v2468, %v2632
    %v2650 = vmul.f32 %v2469, %v2632
    %v2651 = vmul.f32 %v2470, %v2632
    %v2652 = vmul.f32 %v2471, %v2632
    %v2653 = vmul.f32 %v2472, %v2632
    %v2654 = vmul.f32 %v2473, %v2632
    %v2655 = vlaneseq
    %v2656 = vshrl.u32 %v2655, 7
    %v2657 = vsub.s32 0, %v2656
    %v2658 = vrot.slane %v2628, %v2657
    %v2659 = vadd.f32 %v2633, %v2658
    %v2660 = vadd.f32 %v2634, %v2658
    %v2661 = vadd.f32 %v2635, %v2658
    %v2662 = vadd.f32 %v2636, %v2658
    %v2663 = vadd.f32 %v2637, %v2658
    %v2664 = vadd.f32 %v2638, %v2658
    %v2665 = vadd.f32 %v2639, %v2658
    %v2666 = vadd.f32 %v2640, %v2658
    %v2667 = vadd.f32 %v2641, %v2658
    %v2668 = vadd.f32 %v2642, %v2658
    %v2669 = vadd.f32 %v2643, %v2658
    %v2670 = vadd.f32 %v2644, %v2658
    %v2671 = vadd.f32 %v2645, %v2658
    %v2672 = vadd.f32 %v2646, %v2658
    %v2673 = vadd.f32 %v2647, %v2658
    %v2674 = vadd.f32 %v2648, %v2658
    %v2675 = vadd.f32 %v2649, %v2658
    %v2676 = vadd.f32 %v2650, %v2658
    %v2677 = vadd.f32 %v2651, %v2658
    %v2678 = vadd.f32 %v2652, %v2658
    %v2679 = vadd.f32 %v2653, %v2658
    %v2680 = vadd.f32 %v2654, %v2658
    %2681 = vst.msk [vmem:[#allocation2 + $0x10] sm:$0xff] %vm2496, %v2659
    %2682 = vst.msk [vmem:[#allocation2 + $0x18] sm:$0xff] %vm2496, %v2660
    %2683 = vst.msk [vmem:[#allocation2 + $0x20] sm:$0xff] %vm2496, %v2661
    %2684 = vst.msk [vmem:[#allocation2 + $0x28] sm:$0xff] %vm2496, %v2662
    %2685 = vst.msk [vmem:[#allocation2 + $0x30] sm:$0xff] %vm2496, %v2663
    %2686 = vst.msk [vmem:[#allocation2 + $0x38] sm:$0xff] %vm2496, %v2664
    %2687 = vst.msk [vmem:[#allocation2 + $0x40] sm:$0xff] %vm2496, %v2665
    %2688 = vst.msk [vmem:[#allocation2 + $0x48] sm:$0xff] %vm2496, %v2666
    %2689 = vst.msk [vmem:[#allocation2 + $0x50] sm:$0xff] %vm2496, %v2667
    %2690 = vst.msk [vmem:[#allocation2 + $0x58] sm:$0xff] %vm2496, %v2668
    %2691 = vst.msk [vmem:[#allocation2 + $0x60] sm:$0xff] %vm2496, %v2669
    %2692 = vst.msk [vmem:[#allocation2 + $0x68] sm:$0xff] %vm2496, %v2670
    %2693 = vst.msk [vmem:[#allocation2 + $0x70] sm:$0xff] %vm2496, %v2671
    %2694 = vst.msk [vmem:[#allocation2 + $0x78] sm:$0xff] %vm2496, %v2672
    %2695 = vst.msk [vmem:[#allocation2 + $0x80] sm:$0xff] %vm2496, %v2673
    %2696 = vst.msk [vmem:[#allocation2 + $0x88] sm:$0xff] %vm2496, %v2674
    %2697 = vst.msk [vmem:[#allocation2 + $0x90] sm:$0xff] %vm2496, %v2675
    %2698 = vst.msk [vmem:[#allocation2 + $0x98] sm:$0xff] %vm2496, %v2676
    %2699 = vst.msk [vmem:[#allocation2 + $0xa0] sm:$0xff] %vm2496, %v2677
    %2700 = vst.msk [vmem:[#allocation2 + $0xa8] sm:$0xff] %vm2496, %v2678
    %2701 = vst.msk [vmem:[#allocation2 + $0xb0] sm:$0xff] %vm2496, %v2679
    %2702 = vst.msk [vmem:[#allocation2 + $0xb8] sm:$0xff] %vm2496, %v2680
    %v2703 = vld [vmem:[#allocation2 + $0x6] sm:$0xff]
    %v2704 = vld [vmem:[#allocation2 + $0xe] sm:$0xff]
    %v2705 = vld [vmem:[#allocation2 + $0x16] sm:$0xff]
    %v2706 = vld [vmem:[#allocation2 + $0x1e] sm:$0xff]
    %v2707 = vld [vmem:[#allocation2 + $0x26] sm:$0xff]
    %v2708 = vld [vmem:[#allocation2 + $0x2e] sm:$0xff]
    %v2709 = vld [vmem:[#allocation2 + $0x36] sm:$0xff]
    %v2710 = vld [vmem:[#allocation2 + $0x3e] sm:$0xff]
    %v2711 = vld [vmem:[#allocation2 + $0x46] sm:$0xff]
    %v2712 = vld [vmem:[#allocation2 + $0x4e] sm:$0xff]
    %v2713 = vld [vmem:[#allocation2 + $0x56] sm:$0xff]
    %v2714 = vld [vmem:[#allocation2 + $0x5e] sm:$0xff]
    %v2715 = vld [vmem:[#allocation2 + $0x66] sm:$0xff]
    %v2716 = vld [vmem:[#allocation2 + $0x6e] sm:$0xff]
    %v2717 = vld [vmem:[#allocation2 + $0x76] sm:$0xff]
    %v2718 = vld [vmem:[#allocation2 + $0x7e] sm:$0xff]
    %v2719 = vld [vmem:[#allocation2 + $0x86] sm:$0xff]
    %v2720 = vld [vmem:[#allocation2 + $0x8e] sm:$0xff]
    %v2721 = vld [vmem:[#allocation2 + $0x96] sm:$0xff]
    %v2722 = vld [vmem:[#allocation2 + $0x9e] sm:$0xff]
    %v2723 = vld [vmem:[#allocation2 + $0xa6] sm:$0xff]
    %v2724 = vld [vmem:[#allocation2 + $0xae] sm:$0xff]
    %v2725 = vmul.f32 %v2703, %v140
    %v2726 = vmul.f32 %v2704, %v145
    %v2727 = vmul.f32 %v2705, %v150
    %v2728 = vmul.f32 %v2706, %v155
    %v2729 = vmul.f32 %v2707, %v160
    %v2730 = vmul.f32 %v2708, %v165
    %v2731 = vmul.f32 %v2709, %v170
    %v2732 = vmul.f32 %v2710, %v175
    %v2733 = vmul.f32 %v2711, %v180
    %v2734 = vmul.f32 %v2712, %v185
    %v2735 = vmul.f32 %v2713, %v190
    %v2736 = vmul.f32 %v2714, %v195
    %v2737 = vmul.f32 %v2715, %v200
    %v2738 = vmul.f32 %v2716, %v205
    %v2739 = vmul.f32 %v2717, %v210
    %v2740 = vmul.f32 %v2718, %v215
    %v2741 = vmul.f32 %v2719, %v220
    %v2742 = vmul.f32 %v2720, %v225
    %v2743 = vmul.f32 %v2721, %v230
    %v2744 = vmul.f32 %v2722, %v235
    %v2745 = vmul.f32 %v2723, %v240
    %v2746 = vmul.f32 %v2724, %v245
    %2747 = vst.msk [vmem:[#allocation3] sm:$0xff] %vm2496, %v2725
    %2748 = vst.msk [vmem:[#allocation3 + $0x20] sm:$0xff] %vm2496, %v2726
    %2749 = vst.msk [vmem:[#allocation3 + $0x40] sm:$0xff] %vm2496, %v2727
    %2750 = vst.msk [vmem:[#allocation3 + $0x60] sm:$0xff] %vm2496, %v2728
    %2751 = vst.msk [vmem:[#allocation3 + $0x80] sm:$0xff] %vm2496, %v2729
    %2752 = vst.msk [vmem:[#allocation3 + $0xa0] sm:$0xff] %vm2496, %v2730
    %2753 = vst.msk [vmem:[#allocation3 + $0xc0] sm:$0xff] %vm2496, %v2731
    %2754 = vst.msk [vmem:[#allocation3 + $0xe0] sm:$0xff] %vm2496, %v2732
    %2755 = vst.msk [vmem:[#allocation3 + $0x100] sm:$0xff] %vm2496, %v2733
    %2756 = vst.msk [vmem:[#allocation3 + $0x120] sm:$0xff] %vm2496, %v2734
    %2757 = vst.msk [vmem:[#allocation3 + $0x140] sm:$0xff] %vm2496, %v2735
    %2758 = vst.msk [vmem:[#allocation3 + $0x160] sm:$0xff] %vm2496, %v2736
    %2759 = vst.msk [vmem:[#allocation3 + $0x180] sm:$0xff] %vm2496, %v2737
    %2760 = vst.msk [vmem:[#allocation3 + $0x1a0] sm:$0xff] %vm2496, %v2738
    %2761 = vst.msk [vmem:[#allocation3 + $0x1c0] sm:$0xff] %vm2496, %v2739
    %2762 = vst.msk [vmem:[#allocation3 + $0x1e0] sm:$0xff] %vm2496, %v2740
    %2763 = vst.msk [vmem:[#allocation3 + $0x200] sm:$0xff] %vm2496, %v2741
    %2764 = vst.msk [vmem:[#allocation3 + $0x220] sm:$0xff] %vm2496, %v2742
    %2765 = vst.msk [vmem:[#allocation3 + $0x240] sm:$0xff] %vm2496, %v2743
    %2766 = vst.msk [vmem:[#allocation3 + $0x260] sm:$0xff] %vm2496, %v2744
    %2767 = vst.msk [vmem:[#allocation3 + $0x280] sm:$0xff] %vm2496, %v2745
    %2768 = vst.msk [vmem:[#allocation3 + $0x2a0] sm:$0xff] %vm2496, %v2746
    %v2769 = vld [vmem:[#allocation2 + $0x7] sm:$0xff]
    %v2770 = vld [vmem:[#allocation2 + $0xf] sm:$0xff]
    %v2771 = vld [vmem:[#allocation2 + $0x17] sm:$0xff]
    %v2772 = vld [vmem:[#allocation2 + $0x1f] sm:$0xff]
    %v2773 = vld [vmem:[#allocation2 + $0x27] sm:$0xff]
    %v2774 = vld [vmem:[#allocation2 + $0x2f] sm:$0xff]
    %v2775 = vld [vmem:[#allocation2 + $0x37] sm:$0xff]
    %v2776 = vld [vmem:[#allocation2 + $0x3f] sm:$0xff]
    %v2777 = vld [vmem:[#allocation2 + $0x47] sm:$0xff]
    %v2778 = vld [vmem:[#allocation2 + $0x4f] sm:$0xff]
    %v2779 = vld [vmem:[#allocation2 + $0x57] sm:$0xff]
    %v2780 = vld [vmem:[#allocation2 + $0x5f] sm:$0xff]
    %v2781 = vld [vmem:[#allocation2 + $0x67] sm:$0xff]
    %v2782 = vld [vmem:[#allocation2 + $0x6f] sm:$0xff]
    %v2783 = vld [vmem:[#allocation2 + $0x77] sm:$0xff]
    %v2784 = vld [vmem:[#allocation2 + $0x7f] sm:$0xff]
    %v2785 = vld [vmem:[#allocation2 + $0x87] sm:$0xff]
    %v2786 = vld [vmem:[#allocation2 + $0x8f] sm:$0xff]
    %v2787 = vld [vmem:[#allocation2 + $0x97] sm:$0xff]
    %v2788 = vld [vmem:[#allocation2 + $0x9f] sm:$0xff]
    %v2789 = vld [vmem:[#allocation2 + $0xa7] sm:$0xff]
    %v2790 = vld [vmem:[#allocation2 + $0xaf] sm:$0xff]
    %v2791 = vmul.f32 %v2769, %v315
    %v2792 = vmul.f32 %v2770, %v319
    %v2793 = vmul.f32 %v2771, %v323
    %v2794 = vmul.f32 %v2772, %v327
    %v2795 = vmul.f32 %v2773, %v331
    %v2796 = vmul.f32 %v2774, %v335
    %v2797 = vmul.f32 %v2775, %v339
    %v2798 = vmul.f32 %v2776, %v343
    %v2799 = vmul.f32 %v2777, %v347
    %v2800 = vmul.f32 %v2778, %v351
    %v2801 = vmul.f32 %v2779, %v355
    %v2802 = vmul.f32 %v2780, %v359
    %v2803 = vmul.f32 %v2781, %v363
    %v2804 = vmul.f32 %v2782, %v367
    %v2805 = vmul.f32 %v2783, %v371
    %v2806 = vmul.f32 %v2784, %v375
    %v2807 = vmul.f32 %v2785, %v379
    %v2808 = vmul.f32 %v2786, %v383
    %v2809 = vmul.f32 %v2787, %v387
    %v2810 = vmul.f32 %v2788, %v391
    %v2811 = vmul.f32 %v2789, %v395
    %v2812 = vmul.f32 %v2790, %v399
    %2835 = vrot.lane.b32.xlu0 %v2791, 16
    %v2836 = vpop.permute.xlu0 %2835
    %2837 = vrot.lane.b32.xlu0 %v2792, 16
    %v2838 = vpop.permute.xlu0 %2837
    %2839 = vrot.lane.b32.xlu0 %v2793, 16
    %v2840 = vpop.permute.xlu0 %2839
    %2841 = vrot.lane.b32.xlu0 %v2794, 16
    %v2842 = vpop.permute.xlu0 %2841
    %2843 = vrot.lane.b32.xlu0 %v2795, 16
    %v2844 = vpop.permute.xlu0 %2843
    %2845 = vrot.lane.b32.xlu0 %v2796, 16
    %v2846 = vpop.permute.xlu0 %2845
    %2847 = vrot.lane.b32.xlu0 %v2797, 16
    %v2848 = vpop.permute.xlu0 %2847
    %2849 = vrot.lane.b32.xlu0 %v2798, 16
    %v2850 = vpop.permute.xlu0 %2849
    %2851 = vrot.lane.b32.xlu0 %v2799, 16
    %v2852 = vpop.permute.xlu0 %2851
    %2853 = vrot.lane.b32.xlu0 %v2800, 16
    %v2854 = vpop.permute.xlu0 %2853
    %2855 = vrot.lane.b32.xlu0 %v2801, 16
    %v2856 = vpop.permute.xlu0 %2855
    %2857 = vrot.lane.b32.xlu0 %v2802, 16
    %v2858 = vpop.permute.xlu0 %2857
    %2859 = vrot.lane.b32.xlu0 %v2803, 16
    %v2860 = vpop.permute.xlu0 %2859
    %2861 = vrot.lane.b32.xlu0 %v2804, 16
    %v2862 = vpop.permute.xlu0 %2861
    %2863 = vrot.lane.b32.xlu0 %v2805, 16
    %v2864 = vpop.permute.xlu0 %2863
    %2865 = vrot.lane.b32.xlu0 %v2806, 16
    %v2866 = vpop.permute.xlu0 %2865
    %2867 = vrot.lane.b32.xlu0 %v2807, 16
    %v2868 = vpop.permute.xlu0 %2867
    %2869 = vrot.lane.b32.xlu0 %v2808, 16
    %v2870 = vpop.permute.xlu0 %2869
    %2871 = vrot.lane.b32.xlu0 %v2809, 16
    %v2872 = vpop.permute.xlu0 %2871
    %2873 = vrot.lane.b32.xlu0 %v2810, 16
    %v2874 = vpop.permute.xlu0 %2873
    %2875 = vrot.lane.b32.xlu0 %v2811, 16
    %v2876 = vpop.permute.xlu0 %2875
    %2877 = vrot.lane.b32.xlu0 %v2812, 16
    %v2878 = vpop.permute.xlu0 %2877
    %vm2901 = vcmask 261248
    %2902 = vst.msk [vmem:[#allocation3] sm:$0xff] %vm2901, %v2836
    %2903 = vst.msk [vmem:[#allocation3 + $0x20] sm:$0xff] %vm2901, %v2838
    %2904 = vst.msk [vmem:[#allocation3 + $0x40] sm:$0xff] %vm2901, %v2840
    %2905 = vst.msk [vmem:[#allocation3 + $0x60] sm:$0xff] %vm2901, %v2842
    %2906 = vst.msk [vmem:[#allocation3 + $0x80] sm:$0xff] %vm2901, %v2844
    %2907 = vst.msk [vmem:[#allocation3 + $0xa0] sm:$0xff] %vm2901, %v2846
    %2908 = vst.msk [vmem:[#allocation3 + $0xc0] sm:$0xff] %vm2901, %v2848
    %2909 = vst.msk [vmem:[#allocation3 + $0xe0] sm:$0xff] %vm2901, %v2850
    %2910 = vst.msk [vmem:[#allocation3 + $0x100] sm:$0xff] %vm2901, %v2852
    %2911 = vst.msk [vmem:[#allocation3 + $0x120] sm:$0xff] %vm2901, %v2854
    %2912 = vst.msk [vmem:[#allocation3 + $0x140] sm:$0xff] %vm2901, %v2856
    %2913 = vst.msk [vmem:[#allocation3 + $0x160] sm:$0xff] %vm2901, %v2858
    %2914 = vst.msk [vmem:[#allocation3 + $0x180] sm:$0xff] %vm2901, %v2860
    %2915 = vst.msk [vmem:[#allocation3 + $0x1a0] sm:$0xff] %vm2901, %v2862
    %2916 = vst.msk [vmem:[#allocation3 + $0x1c0] sm:$0xff] %vm2901, %v2864
    %2917 = vst.msk [vmem:[#allocation3 + $0x1e0] sm:$0xff] %vm2901, %v2866
    %2918 = vst.msk [vmem:[#allocation3 + $0x200] sm:$0xff] %vm2901, %v2868
    %2919 = vst.msk [vmem:[#allocation3 + $0x220] sm:$0xff] %vm2901, %v2870
    %2920 = vst.msk [vmem:[#allocation3 + $0x240] sm:$0xff] %vm2901, %v2872
    %2921 = vst.msk [vmem:[#allocation3 + $0x260] sm:$0xff] %vm2901, %v2874
    %2922 = vst.msk [vmem:[#allocation3 + $0x280] sm:$0xff] %vm2901, %v2876
    %2923 = vst.msk [vmem:[#allocation3 + $0x2a0] sm:$0xff] %vm2901, %v2878
    %v2924 = vld [vmem:[#allocation2 + $0x8] sm:$0xff]
    %v2925 = vld [vmem:[#allocation2 + $0x10] sm:$0xff]
    %v2926 = vld [vmem:[#allocation2 + $0x18] sm:$0xff]
    %v2927 = vld [vmem:[#allocation2 + $0x20] sm:$0xff]
    %v2928 = vld [vmem:[#allocation2 + $0x28] sm:$0xff]
    %v2929 = vld [vmem:[#allocation2 + $0x30] sm:$0xff]
    %v2930 = vld [vmem:[#allocation2 + $0x38] sm:$0xff]
    %v2931 = vld [vmem:[#allocation2 + $0x40] sm:$0xff]
    %v2932 = vld [vmem:[#allocation2 + $0x48] sm:$0xff]
    %v2933 = vld [vmem:[#allocation2 + $0x50] sm:$0xff]
    %v2934 = vld [vmem:[#allocation2 + $0x58] sm:$0xff]
    %v2935 = vld [vmem:[#allocation2 + $0x60] sm:$0xff]
    %v2936 = vld [vmem:[#allocation2 + $0x68] sm:$0xff]
    %v2937 = vld [vmem:[#allocation2 + $0x70] sm:$0xff]
    %v2938 = vld [vmem:[#allocation2 + $0x78] sm:$0xff]
    %v2939 = vld [vmem:[#allocation2 + $0x80] sm:$0xff]
    %v2940 = vld [vmem:[#allocation2 + $0x88] sm:$0xff]
    %v2941 = vld [vmem:[#allocation2 + $0x90] sm:$0xff]
    %v2942 = vld [vmem:[#allocation2 + $0x98] sm:$0xff]
    %v2943 = vld [vmem:[#allocation2 + $0xa0] sm:$0xff]
    %v2944 = vld [vmem:[#allocation2 + $0xa8] sm:$0xff]
    %v2945 = vld [vmem:[#allocation2 + $0xb0] sm:$0xff]
    %v2946 = vmul.f32 %v2924, %v558
    %v2947 = vmul.f32 %v2925, %v562
    %v2948 = vmul.f32 %v2926, %v566
    %v2949 = vmul.f32 %v2927, %v570
    %v2950 = vmul.f32 %v2928, %v574
    %v2951 = vmul.f32 %v2929, %v578
    %v2952 = vmul.f32 %v2930, %v582
    %v2953 = vmul.f32 %v2931, %v586
    %v2954 = vmul.f32 %v2932, %v590
    %v2955 = vmul.f32 %v2933, %v594
    %v2956 = vmul.f32 %v2934, %v598
    %v2957 = vmul.f32 %v2935, %v602
    %v2958 = vmul.f32 %v2936, %v606
    %v2959 = vmul.f32 %v2937, %v610
    %v2960 = vmul.f32 %v2938, %v614
    %v2961 = vmul.f32 %v2939, %v618
    %v2962 = vmul.f32 %v2940, %v622
    %v2963 = vmul.f32 %v2941, %v626
    %v2964 = vmul.f32 %v2942, %v630
    %v2965 = vmul.f32 %v2943, %v634
    %v2966 = vmul.f32 %v2944, %v638
    %v2967 = vmul.f32 %v2945, %v642
    %2990 = vrot.lane.b32.xlu0 %v2946, 32
    %v2991 = vpop.permute.xlu0 %2990
    %2992 = vrot.lane.b32.xlu0 %v2947, 32
    %v2993 = vpop.permute.xlu0 %2992
    %2994 = vrot.lane.b32.xlu0 %v2948, 32
    %v2995 = vpop.permute.xlu0 %2994
    %2996 = vrot.lane.b32.xlu0 %v2949, 32
    %v2997 = vpop.permute.xlu0 %2996
    %2998 = vrot.lane.b32.xlu0 %v2950, 32
    %v2999 = vpop.permute.xlu0 %2998
    %3000 = vrot.lane.b32.xlu0 %v2951, 32
    %v3001 = vpop.permute.xlu0 %3000
    %3002 = vrot.lane.b32.xlu0 %v2952, 32
    %v3003 = vpop.permute.xlu0 %3002
    %3004 = vrot.lane.b32.xlu0 %v2953, 32
    %v3005 = vpop.permute.xlu0 %3004
    %3006 = vrot.lane.b32.xlu0 %v2954, 32
    %v3007 = vpop.permute.xlu0 %3006
    %3008 = vrot.lane.b32.xlu0 %v2955, 32
    %v3009 = vpop.permute.xlu0 %3008
    %3010 = vrot.lane.b32.xlu0 %v2956, 32
    %v3011 = vpop.permute.xlu0 %3010
    %3012 = vrot.lane.b32.xlu0 %v2957, 32
    %v3013 = vpop.permute.xlu0 %3012
    %3014 = vrot.lane.b32.xlu0 %v2958, 32
    %v3015 = vpop.permute.xlu0 %3014
    %3016 = vrot.lane.b32.xlu0 %v2959, 32
    %v3017 = vpop.permute.xlu0 %3016
    %3018 = vrot.lane.b32.xlu0 %v2960, 32
    %v3019 = vpop.permute.xlu0 %3018
    %3020 = vrot.lane.b32.xlu0 %v2961, 32
    %v3021 = vpop.permute.xlu0 %3020
    %3022 = vrot.lane.b32.xlu0 %v2962, 32
    %v3023 = vpop.permute.xlu0 %3022
    %3024 = vrot.lane.b32.xlu0 %v2963, 32
    %v3025 = vpop.permute.xlu0 %3024
    %3026 = vrot.lane.b32.xlu0 %v2964, 32
    %v3027 = vpop.permute.xlu0 %3026
    %3028 = vrot.lane.b32.xlu0 %v2965, 32
    %v3029 = vpop.permute.xlu0 %3028
    %3030 = vrot.lane.b32.xlu0 %v2966, 32
    %v3031 = vpop.permute.xlu0 %3030
    %3032 = vrot.lane.b32.xlu0 %v2967, 32
    %v3033 = vpop.permute.xlu0 %3032
    %vm3056 = vcmask 392448
    %3057 = vst.msk [vmem:[#allocation3] sm:$0xff] %vm3056, %v2991
    %3058 = vst.msk [vmem:[#allocation3 + $0x20] sm:$0xff] %vm3056, %v2993
    %3059 = vst.msk [vmem:[#allocation3 + $0x40] sm:$0xff] %vm3056, %v2995
    %3060 = vst.msk [vmem:[#allocation3 + $0x60] sm:$0xff] %vm3056, %v2997
    %3061 = vst.msk [vmem:[#allocation3 + $0x80] sm:$0xff] %vm3056, %v2999
    %3062 = vst.msk [vmem:[#allocation3 + $0xa0] sm:$0xff] %vm3056, %v3001
    %3063 = vst.msk [vmem:[#allocation3 + $0xc0] sm:$0xff] %vm3056, %v3003
    %3064 = vst.msk [vmem:[#allocation3 + $0xe0] sm:$0xff] %vm3056, %v3005
    %3065 = vst.msk [vmem:[#allocation3 + $0x100] sm:$0xff] %vm3056, %v3007
    %3066 = vst.msk [vmem:[#allocation3 + $0x120] sm:$0xff] %vm3056, %v3009
    %3067 = vst.msk [vmem:[#allocation3 + $0x140] sm:$0xff] %vm3056, %v3011
    %3068 = vst.msk [vmem:[#allocation3 + $0x160] sm:$0xff] %vm3056, %v3013
    %3069 = vst.msk [vmem:[#allocation3 + $0x180] sm:$0xff] %vm3056, %v3015
    %3070 = vst.msk [vmem:[#allocation3 + $0x1a0] sm:$0xff] %vm3056, %v3017
    %3071 = vst.msk [vmem:[#allocation3 + $0x1c0] sm:$0xff] %vm3056, %v3019
    %3072 = vst.msk [vmem:[#allocation3 + $0x1e0] sm:$0xff] %vm3056, %v3021
    %3073 = vst.msk [vmem:[#allocation3 + $0x200] sm:$0xff] %vm3056, %v3023
    %3074 = vst.msk [vmem:[#allocation3 + $0x220] sm:$0xff] %vm3056, %v3025
    %3075 = vst.msk [vmem:[#allocation3 + $0x240] sm:$0xff] %vm3056, %v3027
    %3076 = vst.msk [vmem:[#allocation3 + $0x260] sm:$0xff] %vm3056, %v3029
    %3077 = vst.msk [vmem:[#allocation3 + $0x280] sm:$0xff] %vm3056, %v3031
    %3078 = vst.msk [vmem:[#allocation3 + $0x2a0] sm:$0xff] %vm3056, %v3033
    %v3079 = vld [vmem:[#allocation2 + $0xf] sm:$0xff]
    %v3080 = vld [vmem:[#allocation2 + $0x17] sm:$0xff]
    %v3081 = vld [vmem:[#allocation2 + $0x1f] sm:$0xff]
    %v3082 = vld [vmem:[#allocation2 + $0x27] sm:$0xff]
    %v3083 = vld [vmem:[#allocation2 + $0x2f] sm:$0xff]
    %v3084 = vld [vmem:[#allocation2 + $0x37] sm:$0xff]
    %v3085 = vld [vmem:[#allocation2 + $0x3f] sm:$0xff]
    %v3086 = vld [vmem:[#allocation2 + $0x47] sm:$0xff]
    %v3087 = vld [vmem:[#allocation2 + $0x4f] sm:$0xff]
    %v3088 = vld [vmem:[#allocation2 + $0x57] sm:$0xff]
    %v3089 = vld [vmem:[#allocation2 + $0x5f] sm:$0xff]
    %v3090 = vld [vmem:[#allocation2 + $0x67] sm:$0xff]
    %v3091 = vld [vmem:[#allocation2 + $0x6f] sm:$0xff]
    %v3092 = vld [vmem:[#allocation2 + $0x77] sm:$0xff]
    %v3093 = vld [vmem:[#allocation2 + $0x7f] sm:$0xff]
    %v3094 = vld [vmem:[#allocation2 + $0x87] sm:$0xff]
    %v3095 = vld [vmem:[#allocation2 + $0x8f] sm:$0xff]
    %v3096 = vld [vmem:[#allocation2 + $0x97] sm:$0xff]
    %v3097 = vld [vmem:[#allocation2 + $0x9f] sm:$0xff]
    %v3098 = vld [vmem:[#allocation2 + $0xa7] sm:$0xff]
    %v3099 = vld [vmem:[#allocation2 + $0xaf] sm:$0xff]
    %v3100 = vld [vmem:[#allocation2 + $0xb7] sm:$0xff]
    %v3101 = vmul.f32 %v3079, %v801
    %v3102 = vmul.f32 %v3080, %v805
    %v3103 = vmul.f32 %v3081, %v809
    %v3104 = vmul.f32 %v3082, %v813
    %v3105 = vmul.f32 %v3083, %v817
    %v3106 = vmul.f32 %v3084, %v821
    %v3107 = vmul.f32 %v3085, %v825
    %v3108 = vmul.f32 %v3086, %v829
    %v3109 = vmul.f32 %v3087, %v833
    %v3110 = vmul.f32 %v3088, %v837
    %v3111 = vmul.f32 %v3089, %v841
    %v3112 = vmul.f32 %v3090, %v845
    %v3113 = vmul.f32 %v3091, %v849
    %v3114 = vmul.f32 %v3092, %v853
    %v3115 = vmul.f32 %v3093, %v857
    %v3116 = vmul.f32 %v3094, %v861
    %v3117 = vmul.f32 %v3095, %v865
    %v3118 = vmul.f32 %v3096, %v869
    %v3119 = vmul.f32 %v3097, %v873
    %v3120 = vmul.f32 %v3098, %v877
    %v3121 = vmul.f32 %v3099, %v881
    %v3122 = vmul.f32 %v3100, %v885
    %3145 = vrot.lane.b32.xlu0 %v3101, 48
    %v3146 = vpop.permute.xlu0 %3145
    %3147 = vrot.lane.b32.xlu0 %v3102, 48
    %v3148 = vpop.permute.xlu0 %3147
    %3149 = vrot.lane.b32.xlu0 %v3103, 48
    %v3150 = vpop.permute.xlu0 %3149
    %3151 = vrot.lane.b32.xlu0 %v3104, 48
    %v3152 = vpop.permute.xlu0 %3151
    %3153 = vrot.lane.b32.xlu0 %v3105, 48
    %v3154 = vpop.permute.xlu0 %3153
    %3155 = vrot.lane.b32.xlu0 %v3106, 48
    %v3156 = vpop.permute.xlu0 %3155
    %3157 = vrot.lane.b32.xlu0 %v3107, 48
    %v3158 = vpop.permute.xlu0 %3157
    %3159 = vrot.lane.b32.xlu0 %v3108, 48
    %v3160 = vpop.permute.xlu0 %3159
    %3161 = vrot.lane.b32.xlu0 %v3109, 48
    %v3162 = vpop.permute.xlu0 %3161
    %3163 = vrot.lane.b32.xlu0 %v3110, 48
    %v3164 = vpop.permute.xlu0 %3163
    %3165 = vrot.lane.b32.xlu0 %v3111, 48
    %v3166 = vpop.permute.xlu0 %3165
    %3167 = vrot.lane.b32.xlu0 %v3112, 48
    %v3168 = vpop.permute.xlu0 %3167
    %3169 = vrot.lane.b32.xlu0 %v3113, 48
    %v3170 = vpop.permute.xlu0 %3169
    %3171 = vrot.lane.b32.xlu0 %v3114, 48
    %v3172 = vpop.permute.xlu0 %3171
    %3173 = vrot.lane.b32.xlu0 %v3115, 48
    %v3174 = vpop.permute.xlu0 %3173
    %3175 = vrot.lane.b32.xlu0 %v3116, 48
    %v3176 = vpop.permute.xlu0 %3175
    %3177 = vrot.lane.b32.xlu0 %v3117, 48
    %v3178 = vpop.permute.xlu0 %3177
    %3179 = vrot.lane.b32.xlu0 %v3118, 48
    %v3180 = vpop.permute.xlu0 %3179
    %3181 = vrot.lane.b32.xlu0 %v3119, 48
    %v3182 = vpop.permute.xlu0 %3181
    %3183 = vrot.lane.b32.xlu0 %v3120, 48
    %v3184 = vpop.permute.xlu0 %3183
    %3185 = vrot.lane.b32.xlu0 %v3121, 48
    %v3186 = vpop.permute.xlu0 %3185
    %3187 = vrot.lane.b32.xlu0 %v3122, 48
    %v3188 = vpop.permute.xlu0 %3187
    %vm3211 = vcmask 523648
    %3212 = vst.msk [vmem:[#allocation3] sm:$0xff] %vm3211, %v3146
    %3213 = vst.msk [vmem:[#allocation3 + $0x20] sm:$0xff] %vm3211, %v3148
    %3214 = vst.msk [vmem:[#allocation3 + $0x40] sm:$0xff] %vm3211, %v3150
    %3215 = vst.msk [vmem:[#allocation3 + $0x60] sm:$0xff] %vm3211, %v3152
    %3216 = vst.msk [vmem:[#allocation3 + $0x80] sm:$0xff] %vm3211, %v3154
    %3217 = vst.msk [vmem:[#allocation3 + $0xa0] sm:$0xff] %vm3211, %v3156
    %3218 = vst.msk [vmem:[#allocation3 + $0xc0] sm:$0xff] %vm3211, %v3158
    %3219 = vst.msk [vmem:[#allocation3 + $0xe0] sm:$0xff] %vm3211, %v3160
    %3220 = vst.msk [vmem:[#allocation3 + $0x100] sm:$0xff] %vm3211, %v3162
    %3221 = vst.msk [vmem:[#allocation3 + $0x120] sm:$0xff] %vm3211, %v3164
    %3222 = vst.msk [vmem:[#allocation3 + $0x140] sm:$0xff] %vm3211, %v3166
    %3223 = vst.msk [vmem:[#allocation3 + $0x160] sm:$0xff] %vm3211, %v3168
    %3224 = vst.msk [vmem:[#allocation3 + $0x180] sm:$0xff] %vm3211, %v3170
    %3225 = vst.msk [vmem:[#allocation3 + $0x1a0] sm:$0xff] %vm3211, %v3172
    %3226 = vst.msk [vmem:[#allocation3 + $0x1c0] sm:$0xff] %vm3211, %v3174
    %3227 = vst.msk [vmem:[#allocation3 + $0x1e0] sm:$0xff] %vm3211, %v3176
    %3228 = vst.msk [vmem:[#allocation3 + $0x200] sm:$0xff] %vm3211, %v3178
    %3229 = vst.msk [vmem:[#allocation3 + $0x220] sm:$0xff] %vm3211, %v3180
    %3230 = vst.msk [vmem:[#allocation3 + $0x240] sm:$0xff] %vm3211, %v3182
    %3231 = vst.msk [vmem:[#allocation3 + $0x260] sm:$0xff] %vm3211, %v3184
    %3232 = vst.msk [vmem:[#allocation3 + $0x280] sm:$0xff] %vm3211, %v3186
    %3233 = vst.msk [vmem:[#allocation3 + $0x2a0] sm:$0xff] %vm3211, %v3188
    %v3234 = vld [vmem:[#allocation2 + $0x10] sm:$0xff]
    %v3235 = vld [vmem:[#allocation2 + $0x18] sm:$0xff]
    %v3236 = vld [vmem:[#allocation2 + $0x20] sm:$0xff]
    %v3237 = vld [vmem:[#allocation2 + $0x28] sm:$0xff]
    %v3238 = vld [vmem:[#allocation2 + $0x30] sm:$0xff]
    %v3239 = vld [vmem:[#allocation2 + $0x38] sm:$0xff]
    %v3240 = vld [vmem:[#allocation2 + $0x40] sm:$0xff]
    %v3241 = vld [vmem:[#allocation2 + $0x48] sm:$0xff]
    %v3242 = vld [vmem:[#allocation2 + $0x50] sm:$0xff]
    %v3243 = vld [vmem:[#allocation2 + $0x58] sm:$0xff]
    %v3244 = vld [vmem:[#allocation2 + $0x60] sm:$0xff]
    %v3245 = vld [vmem:[#allocation2 + $0x68] sm:$0xff]
    %v3246 = vld [vmem:[#allocation2 + $0x70] sm:$0xff]
    %v3247 = vld [vmem:[#allocation2 + $0x78] sm:$0xff]
    %v3248 = vld [vmem:[#allocation2 + $0x80] sm:$0xff]
    %v3249 = vld [vmem:[#allocation2 + $0x88] sm:$0xff]
    %v3250 = vld [vmem:[#allocation2 + $0x90] sm:$0xff]
    %v3251 = vld [vmem:[#allocation2 + $0x98] sm:$0xff]
    %v3252 = vld [vmem:[#allocation2 + $0xa0] sm:$0xff]
    %v3253 = vld [vmem:[#allocation2 + $0xa8] sm:$0xff]
    %v3254 = vld [vmem:[#allocation2 + $0xb0] sm:$0xff]
    %v3255 = vld [vmem:[#allocation2 + $0xb8] sm:$0xff]
    %v3256 = vmul.f32 %v3234, %v1044
    %v3257 = vmul.f32 %v3235, %v1048
    %v3258 = vmul.f32 %v3236, %v1052
    %v3259 = vmul.f32 %v3237, %v1056
    %v3260 = vmul.f32 %v3238, %v1060
    %v3261 = vmul.f32 %v3239, %v1064
    %v3262 = vmul.f32 %v3240, %v1068
    %v3263 = vmul.f32 %v3241, %v1072
    %v3264 = vmul.f32 %v3242, %v1076
    %v3265 = vmul.f32 %v3243, %v1080
    %v3266 = vmul.f32 %v3244, %v1084
    %v3267 = vmul.f32 %v3245, %v1088
    %v3268 = vmul.f32 %v3246, %v1092
    %v3269 = vmul.f32 %v3247, %v1096
    %v3270 = vmul.f32 %v3248, %v1100
    %v3271 = vmul.f32 %v3249, %v1104
    %v3272 = vmul.f32 %v3250, %v1108
    %v3273 = vmul.f32 %v3251, %v1112
    %v3274 = vmul.f32 %v3252, %v1116
    %v3275 = vmul.f32 %v3253, %v1120
    %v3276 = vmul.f32 %v3254, %v1124
    %v3277 = vmul.f32 %v3255, %v1128
    %3300 = vrot.lane.b32.xlu0 %v3256, 64
    %v3301 = vpop.permute.xlu0 %3300
    %3302 = vrot.lane.b32.xlu0 %v3257, 64
    %v3303 = vpop.permute.xlu0 %3302
    %3304 = vrot.lane.b32.xlu0 %v3258, 64
    %v3305 = vpop.permute.xlu0 %3304
    %3306 = vrot.lane.b32.xlu0 %v3259, 64
    %v3307 = vpop.permute.xlu0 %3306
    %3308 = vrot.lane.b32.xlu0 %v3260, 64
    %v3309 = vpop.permute.xlu0 %3308
    %3310 = vrot.lane.b32.xlu0 %v3261, 64
    %v3311 = vpop.permute.xlu0 %3310
    %3312 = vrot.lane.b32.xlu0 %v3262, 64
    %v3313 = vpop.permute.xlu0 %3312
    %3314 = vrot.lane.b32.xlu0 %v3263, 64
    %v3315 = vpop.permute.xlu0 %3314
    %3316 = vrot.lane.b32.xlu0 %v3264, 64
    %v3317 = vpop.permute.xlu0 %3316
    %3318 = vrot.lane.b32.xlu0 %v3265, 64
    %v3319 = vpop.permute.xlu0 %3318
    %3320 = vrot.lane.b32.xlu0 %v3266, 64
    %v3321 = vpop.permute.xlu0 %3320
    %3322 = vrot.lane.b32.xlu0 %v3267, 64
    %v3323 = vpop.permute.xlu0 %3322
    %3324 = vrot.lane.b32.xlu0 %v3268, 64
    %v3325 = vpop.permute.xlu0 %3324
    %3326 = vrot.lane.b32.xlu0 %v3269, 64
    %v3327 = vpop.permute.xlu0 %3326
    %3328 = vrot.lane.b32.xlu0 %v3270, 64
    %v3329 = vpop.permute.xlu0 %3328
    %3330 = vrot.lane.b32.xlu0 %v3271, 64
    %v3331 = vpop.permute.xlu0 %3330
    %3332 = vrot.lane.b32.xlu0 %v3272, 64
    %v3333 = vpop.permute.xlu0 %3332
    %3334 = vrot.lane.b32.xlu0 %v3273, 64
    %v3335 = vpop.permute.xlu0 %3334
    %3336 = vrot.lane.b32.xlu0 %v3274, 64
    %v3337 = vpop.permute.xlu0 %3336
    %3338 = vrot.lane.b32.xlu0 %v3275, 64
    %v3339 = vpop.permute.xlu0 %3338
    %3340 = vrot.lane.b32.xlu0 %v3276, 64
    %v3341 = vpop.permute.xlu0 %3340
    %3342 = vrot.lane.b32.xlu0 %v3277, 64
    %v3343 = vpop.permute.xlu0 %3342
    %vm3366 = vcmask 654848
    %3367 = vst.msk [vmem:[#allocation3] sm:$0xff] %vm3366, %v3301
    %3368 = vst.msk [vmem:[#allocation3 + $0x20] sm:$0xff] %vm3366, %v3303
    %3369 = vst.msk [vmem:[#allocation3 + $0x40] sm:$0xff] %vm3366, %v3305
    %3370 = vst.msk [vmem:[#allocation3 + $0x60] sm:$0xff] %vm3366, %v3307
    %3371 = vst.msk [vmem:[#allocation3 + $0x80] sm:$0xff] %vm3366, %v3309
    %3372 = vst.msk [vmem:[#allocation3 + $0xa0] sm:$0xff] %vm3366, %v3311
    %3373 = vst.msk [vmem:[#allocation3 + $0xc0] sm:$0xff] %vm3366, %v3313
    %3374 = vst.msk [vmem:[#allocation3 + $0xe0] sm:$0xff] %vm3366, %v3315
    %3375 = vst.msk [vmem:[#allocation3 + $0x100] sm:$0xff] %vm3366, %v3317
    %3376 = vst.msk [vmem:[#allocation3 + $0x120] sm:$0xff] %vm3366, %v3319
    %3377 = vst.msk [vmem:[#allocation3 + $0x140] sm:$0xff] %vm3366, %v3321
    %3378 = vst.msk [vmem:[#allocation3 + $0x160] sm:$0xff] %vm3366, %v3323
    %3379 = vst.msk [vmem:[#allocation3 + $0x180] sm:$0xff] %vm3366, %v3325
    %3380 = vst.msk [vmem:[#allocation3 + $0x1a0] sm:$0xff] %vm3366, %v3327
    %3381 = vst.msk [vmem:[#allocation3 + $0x1c0] sm:$0xff] %vm3366, %v3329
    %3382 = vst.msk [vmem:[#allocation3 + $0x1e0] sm:$0xff] %vm3366, %v3331
    %3383 = vst.msk [vmem:[#allocation3 + $0x200] sm:$0xff] %vm3366, %v3333
    %3384 = vst.msk [vmem:[#allocation3 + $0x220] sm:$0xff] %vm3366, %v3335
    %3385 = vst.msk [vmem:[#allocation3 + $0x240] sm:$0xff] %vm3366, %v3337
    %3386 = vst.msk [vmem:[#allocation3 + $0x260] sm:$0xff] %vm3366, %v3339
    %3387 = vst.msk [vmem:[#allocation3 + $0x280] sm:$0xff] %vm3366, %v3341
    %3388 = vst.msk [vmem:[#allocation3 + $0x2a0] sm:$0xff] %vm3366, %v3343
    %v3389 = vld [vmem:[#allocation2 + $0x11] sm:$0xff]
    %v3390 = vld [vmem:[#allocation2 + $0x19] sm:$0xff]
    %v3391 = vld [vmem:[#allocation2 + $0x21] sm:$0xff]
    %v3392 = vld [vmem:[#allocation2 + $0x29] sm:$0xff]
    %v3393 = vld [vmem:[#allocation2 + $0x31] sm:$0xff]
    %v3394 = vld [vmem:[#allocation2 + $0x39] sm:$0xff]
    %v3395 = vld [vmem:[#allocation2 + $0x41] sm:$0xff]
    %v3396 = vld [vmem:[#allocation2 + $0x49] sm:$0xff]
    %v3397 = vld [vmem:[#allocation2 + $0x51] sm:$0xff]
    %v3398 = vld [vmem:[#allocation2 + $0x59] sm:$0xff]
    %v3399 = vld [vmem:[#allocation2 + $0x61] sm:$0xff]
    %v3400 = vld [vmem:[#allocation2 + $0x69] sm:$0xff]
    %v3401 = vld [vmem:[#allocation2 + $0x71] sm:$0xff]
    %v3402 = vld [vmem:[#allocation2 + $0x79] sm:$0xff]
    %v3403 = vld [vmem:[#allocation2 + $0x81] sm:$0xff]
    %v3404 = vld [vmem:[#allocation2 + $0x89] sm:$0xff]
    %v3405 = vld [vmem:[#allocation2 + $0x91] sm:$0xff]
    %v3406 = vld [vmem:[#allocation2 + $0x99] sm:$0xff]
    %v3407 = vld [vmem:[#allocation2 + $0xa1] sm:$0xff]
    %v3408 = vld [vmem:[#allocation2 + $0xa9] sm:$0xff]
    %v3409 = vld [vmem:[#allocation2 + $0xb1] sm:$0xff]
    %v3410 = vld [vmem:[#allocation2 + $0xb9] sm:$0xff]
    %v3411 = vmul.f32 %v3389, %v1287
    %v3412 = vmul.f32 %v3390, %v1291
    %v3413 = vmul.f32 %v3391, %v1295
    %v3414 = vmul.f32 %v3392, %v1299
    %v3415 = vmul.f32 %v3393, %v1303
    %v3416 = vmul.f32 %v3394, %v1307
    %v3417 = vmul.f32 %v3395, %v1311
    %v3418 = vmul.f32 %v3396, %v1315
    %v3419 = vmul.f32 %v3397, %v1319
    %v3420 = vmul.f32 %v3398, %v1323
    %v3421 = vmul.f32 %v3399, %v1327
    %v3422 = vmul.f32 %v3400, %v1331
    %v3423 = vmul.f32 %v3401, %v1335
    %v3424 = vmul.f32 %v3402, %v1339
    %v3425 = vmul.f32 %v3403, %v1343
    %v3426 = vmul.f32 %v3404, %v1347
    %v3427 = vmul.f32 %v3405, %v1351
    %v3428 = vmul.f32 %v3406, %v1355
    %v3429 = vmul.f32 %v3407, %v1359
    %v3430 = vmul.f32 %v3408, %v1363
    %v3431 = vmul.f32 %v3409, %v1367
    %v3432 = vmul.f32 %v3410, %v1371
    %3455 = vrot.lane.b32.xlu0 %v3411, 80
    %v3456 = vpop.permute.xlu0 %3455
    %3457 = vrot.lane.b32.xlu0 %v3412, 80
    %v3458 = vpop.permute.xlu0 %3457
    %3459 = vrot.lane.b32.xlu0 %v3413, 80
    %v3460 = vpop.permute.xlu0 %3459
    %3461 = vrot.lane.b32.xlu0 %v3414, 80
    %v3462 = vpop.permute.xlu0 %3461
    %3463 = vrot.lane.b32.xlu0 %v3415, 80
    %v3464 = vpop.permute.xlu0 %3463
    %3465 = vrot.lane.b32.xlu0 %v3416, 80
    %v3466 = vpop.permute.xlu0 %3465
    %3467 = vrot.lane.b32.xlu0 %v3417, 80
    %v3468 = vpop.permute.xlu0 %3467
    %3469 = vrot.lane.b32.xlu0 %v3418, 80
    %v3470 = vpop.permute.xlu0 %3469
    %3471 = vrot.lane.b32.xlu0 %v3419, 80
    %v3472 = vpop.permute.xlu0 %3471
    %3473 = vrot.lane.b32.xlu0 %v3420, 80
    %v3474 = vpop.permute.xlu0 %3473
    %3475 = vrot.lane.b32.xlu0 %v3421, 80
    %v3476 = vpop.permute.xlu0 %3475
    %3477 = vrot.lane.b32.xlu0 %v3422, 80
    %v3478 = vpop.permute.xlu0 %3477
    %3479 = vrot.lane.b32.xlu0 %v3423, 80
    %v3480 = vpop.permute.xlu0 %3479
    %3481 = vrot.lane.b32.xlu0 %v3424, 80
    %v3482 = vpop.permute.xlu0 %3481
    %3483 = vrot.lane.b32.xlu0 %v3425, 80
    %v3484 = vpop.permute.xlu0 %3483
    %3485 = vrot.lane.b32.xlu0 %v3426, 80
    %v3486 = vpop.permute.xlu0 %3485
    %3487 = vrot.lane.b32.xlu0 %v3427, 80
    %v3488 = vpop.permute.xlu0 %3487
    %3489 = vrot.lane.b32.xlu0 %v3428, 80
    %v3490 = vpop.permute.xlu0 %3489
    %3491 = vrot.lane.b32.xlu0 %v3429, 80
    %v3492 = vpop.permute.xlu0 %3491
    %3493 = vrot.lane.b32.xlu0 %v3430, 80
    %v3494 = vpop.permute.xlu0 %3493
    %3495 = vrot.lane.b32.xlu0 %v3431, 80
    %v3496 = vpop.permute.xlu0 %3495
    %3497 = vrot.lane.b32.xlu0 %v3432, 80
    %v3498 = vpop.permute.xlu0 %3497
    %vm3521 = vcmask 786048
    %3522 = vst.msk [vmem:[#allocation3] sm:$0xff] %vm3521, %v3456
    %3523 = vst.msk [vmem:[#allocation3 + $0x20] sm:$0xff] %vm3521, %v3458
    %3524 = vst.msk [vmem:[#allocation3 + $0x40] sm:$0xff] %vm3521, %v3460
    %3525 = vst.msk [vmem:[#allocation3 + $0x60] sm:$0xff] %vm3521, %v3462
    %3526 = vst.msk [vmem:[#allocation3 + $0x80] sm:$0xff] %vm3521, %v3464
    %3527 = vst.msk [vmem:[#allocation3 + $0xa0] sm:$0xff] %vm3521, %v3466
    %3528 = vst.msk [vmem:[#allocation3 + $0xc0] sm:$0xff] %vm3521, %v3468
    %3529 = vst.msk [vmem:[#allocation3 + $0xe0] sm:$0xff] %vm3521, %v3470
    %3530 = vst.msk [vmem:[#allocation3 + $0x100] sm:$0xff] %vm3521, %v3472
    %3531 = vst.msk [vmem:[#allocation3 + $0x120] sm:$0xff] %vm3521, %v3474
    %3532 = vst.msk [vmem:[#allocation3 + $0x140] sm:$0xff] %vm3521, %v3476
    %3533 = vst.msk [vmem:[#allocation3 + $0x160] sm:$0xff] %vm3521, %v3478
    %3534 = vst.msk [vmem:[#allocation3 + $0x180] sm:$0xff] %vm3521, %v3480
    %3535 = vst.msk [vmem:[#allocation3 + $0x1a0] sm:$0xff] %vm3521, %v3482
    %3536 = vst.msk [vmem:[#allocation3 + $0x1c0] sm:$0xff] %vm3521, %v3484
    %3537 = vst.msk [vmem:[#allocation3 + $0x1e0] sm:$0xff] %vm3521, %v3486
    %3538 = vst.msk [vmem:[#allocation3 + $0x200] sm:$0xff] %vm3521, %v3488
    %3539 = vst.msk [vmem:[#allocation3 + $0x220] sm:$0xff] %vm3521, %v3490
    %3540 = vst.msk [vmem:[#allocation3 + $0x240] sm:$0xff] %vm3521, %v3492
    %3541 = vst.msk [vmem:[#allocation3 + $0x260] sm:$0xff] %vm3521, %v3494
    %3542 = vst.msk [vmem:[#allocation3 + $0x280] sm:$0xff] %vm3521, %v3496
    %3543 = vst.msk [vmem:[#allocation3 + $0x2a0] sm:$0xff] %vm3521, %v3498
    %v3544 = vld [vmem:[#allocation2 + $0x18] sm:$0xff]
    %v3545 = vld [vmem:[#allocation2 + $0x20] sm:$0xff]
    %v3546 = vld [vmem:[#allocation2 + $0x28] sm:$0xff]
    %v3547 = vld [vmem:[#allocation2 + $0x30] sm:$0xff]
    %v3548 = vld [vmem:[#allocation2 + $0x38] sm:$0xff]
    %v3549 = vld [vmem:[#allocation2 + $0x40] sm:$0xff]
    %v3550 = vld [vmem:[#allocation2 + $0x48] sm:$0xff]
    %v3551 = vld [vmem:[#allocation2 + $0x50] sm:$0xff]
    %v3552 = vld [vmem:[#allocation2 + $0x58] sm:$0xff]
    %v3553 = vld [vmem:[#allocation2 + $0x60] sm:$0xff]
    %v3554 = vld [vmem:[#allocation2 + $0x68] sm:$0xff]
    %v3555 = vld [vmem:[#allocation2 + $0x70] sm:$0xff]
    %v3556 = vld [vmem:[#allocation2 + $0x78] sm:$0xff]
    %v3557 = vld [vmem:[#allocation2 + $0x80] sm:$0xff]
    %v3558 = vld [vmem:[#allocation2 + $0x88] sm:$0xff]
    %v3559 = vld [vmem:[#allocation2 + $0x90] sm:$0xff]
    %v3560 = vld [vmem:[#allocation2 + $0x98] sm:$0xff]
    %v3561 = vld [vmem:[#allocation2 + $0xa0] sm:$0xff]
    %v3562 = vld [vmem:[#allocation2 + $0xa8] sm:$0xff]
    %v3563 = vld [vmem:[#allocation2 + $0xb0] sm:$0xff]
    %v3564 = vld [vmem:[#allocation2 + $0xb8] sm:$0xff]
    %v3565 = vld [vmem:[#allocation2 + $0xc0] sm:$0xff]
    %v3566 = vmul.f32 %v3544, %v1530
    %v3567 = vmul.f32 %v3545, %v1534
    %v3568 = vmul.f32 %v3546, %v1538
    %v3569 = vmul.f32 %v3547, %v1542
    %v3570 = vmul.f32 %v3548, %v1546
    %v3571 = vmul.f32 %v3549, %v1550
    %v3572 = vmul.f32 %v3550, %v1554
    %v3573 = vmul.f32 %v3551, %v1558
    %v3574 = vmul.f32 %v3552, %v1562
    %v3575 = vmul.f32 %v3553, %v1566
    %v3576 = vmul.f32 %v3554, %v1570
    %v3577 = vmul.f32 %v3555, %v1574
    %v3578 = vmul.f32 %v3556, %v1578
    %v3579 = vmul.f32 %v3557, %v1582
    %v3580 = vmul.f32 %v3558, %v1586
    %v3581 = vmul.f32 %v3559, %v1590
    %v3582 = vmul.f32 %v3560, %v1594
    %v3583 = vmul.f32 %v3561, %v1598
    %v3584 = vmul.f32 %v3562, %v1602
    %v3585 = vmul.f32 %v3563, %v1606
    %v3586 = vmul.f32 %v3564, %v1610
    %v3587 = vmul.f32 %v3565, %v1614
    %3610 = vrot.lane.b32.xlu0 %v3566, 96
    %v3611 = vpop.permute.xlu0 %3610
    %3612 = vrot.lane.b32.xlu0 %v3567, 96
    %v3613 = vpop.permute.xlu0 %3612
    %3614 = vrot.lane.b32.xlu0 %v3568, 96
    %v3615 = vpop.permute.xlu0 %3614
    %3616 = vrot.lane.b32.xlu0 %v3569, 96
    %v3617 = vpop.permute.xlu0 %3616
    %3618 = vrot.lane.b32.xlu0 %v3570, 96
    %v3619 = vpop.permute.xlu0 %3618
    %3620 = vrot.lane.b32.xlu0 %v3571, 96
    %v3621 = vpop.permute.xlu0 %3620
    %3622 = vrot.lane.b32.xlu0 %v3572, 96
    %v3623 = vpop.permute.xlu0 %3622
    %3624 = vrot.lane.b32.xlu0 %v3573, 96
    %v3625 = vpop.permute.xlu0 %3624
    %3626 = vrot.lane.b32.xlu0 %v3574, 96
    %v3627 = vpop.permute.xlu0 %3626
    %3628 = vrot.lane.b32.xlu0 %v3575, 96
    %v3629 = vpop.permute.xlu0 %3628
    %3630 = vrot.lane.b32.xlu0 %v3576, 96
    %v3631 = vpop.permute.xlu0 %3630
    %3632 = vrot.lane.b32.xlu0 %v3577, 96
    %v3633 = vpop.permute.xlu0 %3632
    %3634 = vrot.lane.b32.xlu0 %v3578, 96
    %v3635 = vpop.permute.xlu0 %3634
    %3636 = vrot.lane.b32.xlu0 %v3579, 96
    %v3637 = vpop.permute.xlu0 %3636
    %3638 = vrot.lane.b32.xlu0 %v3580, 96
    %v3639 = vpop.permute.xlu0 %3638
    %3640 = vrot.lane.b32.xlu0 %v3581, 96
    %v3641 = vpop.permute.xlu0 %3640
    %3642 = vrot.lane.b32.xlu0 %v3582, 96
    %v3643 = vpop.permute.xlu0 %3642
    %3644 = vrot.lane.b32.xlu0 %v3583, 96
    %v3645 = vpop.permute.xlu0 %3644
    %3646 = vrot.lane.b32.xlu0 %v3584, 96
    %v3647 = vpop.permute.xlu0 %3646
    %3648 = vrot.lane.b32.xlu0 %v3585, 96
    %v3649 = vpop.permute.xlu0 %3648
    %3650 = vrot.lane.b32.xlu0 %v3586, 96
    %v3651 = vpop.permute.xlu0 %3650
    %3652 = vrot.lane.b32.xlu0 %v3587, 96
    %v3653 = vpop.permute.xlu0 %3652
    %vm3676 = vcmask 917248
    %3677 = vst.msk [vmem:[#allocation3] sm:$0xff] %vm3676, %v3611
    %3678 = vst.msk [vmem:[#allocation3 + $0x20] sm:$0xff] %vm3676, %v3613
    %3679 = vst.msk [vmem:[#allocation3 + $0x40] sm:$0xff] %vm3676, %v3615
    %3680 = vst.msk [vmem:[#allocation3 + $0x60] sm:$0xff] %vm3676, %v3617
    %3681 = vst.msk [vmem:[#allocation3 + $0x80] sm:$0xff] %vm3676, %v3619
    %3682 = vst.msk [vmem:[#allocation3 + $0xa0] sm:$0xff] %vm3676, %v3621
    %3683 = vst.msk [vmem:[#allocation3 + $0xc0] sm:$0xff] %vm3676, %v3623
    %3684 = vst.msk [vmem:[#allocation3 + $0xe0] sm:$0xff] %vm3676, %v3625
    %3685 = vst.msk [vmem:[#allocation3 + $0x100] sm:$0xff] %vm3676, %v3627
    %3686 = vst.msk [vmem:[#allocation3 + $0x120] sm:$0xff] %vm3676, %v3629
    %3687 = vst.msk [vmem:[#allocation3 + $0x140] sm:$0xff] %vm3676, %v3631
    %3688 = vst.msk [vmem:[#allocation3 + $0x160] sm:$0xff] %vm3676, %v3633
    %3689 = vst.msk [vmem:[#allocation3 + $0x180] sm:$0xff] %vm3676, %v3635
    %3690 = vst.msk [vmem:[#allocation3 + $0x1a0] sm:$0xff] %vm3676, %v3637
    %3691 = vst.msk [vmem:[#allocation3 + $0x1c0] sm:$0xff] %vm3676, %v3639
    %3692 = vst.msk [vmem:[#allocation3 + $0x1e0] sm:$0xff] %vm3676, %v3641
    %3693 = vst.msk [vmem:[#allocation3 + $0x200] sm:$0xff] %vm3676, %v3643
    %3694 = vst.msk [vmem:[#allocation3 + $0x220] sm:$0xff] %vm3676, %v3645
    %3695 = vst.msk [vmem:[#allocation3 + $0x240] sm:$0xff] %vm3676, %v3647
    %3696 = vst.msk [vmem:[#allocation3 + $0x260] sm:$0xff] %vm3676, %v3649
    %3697 = vst.msk [vmem:[#allocation3 + $0x280] sm:$0xff] %vm3676, %v3651
    %3698 = vst.msk [vmem:[#allocation3 + $0x2a0] sm:$0xff] %vm3676, %v3653
    %v3699 = vld [vmem:[#allocation2 + $0x19] sm:$0xff]
    %v3700 = vld [vmem:[#allocation2 + $0x21] sm:$0xff]
    %v3701 = vld [vmem:[#allocation2 + $0x29] sm:$0xff]
    %v3702 = vld [vmem:[#allocation2 + $0x31] sm:$0xff]
    %v3703 = vld [vmem:[#allocation2 + $0x39] sm:$0xff]
    %v3704 = vld [vmem:[#allocation2 + $0x41] sm:$0xff]
    %v3705 = vld [vmem:[#allocation2 + $0x49] sm:$0xff]
    %v3706 = vld [vmem:[#allocation2 + $0x51] sm:$0xff]
    %v3707 = vld [vmem:[#allocation2 + $0x59] sm:$0xff]
    %v3708 = vld [vmem:[#allocation2 + $0x61] sm:$0xff]
    %v3709 = vld [vmem:[#allocation2 + $0x69] sm:$0xff]
    %v3710 = vld [vmem:[#allocation2 + $0x71] sm:$0xff]
    %v3711 = vld [vmem:[#allocation2 + $0x79] sm:$0xff]
    %v3712 = vld [vmem:[#allocation2 + $0x81] sm:$0xff]
    %v3713 = vld [vmem:[#allocation2 + $0x89] sm:$0xff]
    %v3714 = vld [vmem:[#allocation2 + $0x91] sm:$0xff]
    %v3715 = vld [vmem:[#allocation2 + $0x99] sm:$0xff]
    %v3716 = vld [vmem:[#allocation2 + $0xa1] sm:$0xff]
    %v3717 = vld [vmem:[#allocation2 + $0xa9] sm:$0xff]
    %v3718 = vld [vmem:[#allocation2 + $0xb1] sm:$0xff]
    %v3719 = vld [vmem:[#allocation2 + $0xb9] sm:$0xff]
    %v3720 = vld [vmem:[#allocation2 + $0xc1] sm:$0xff]
    %v3721 = vmul.f32 %v3699, %v1773
    %v3722 = vmul.f32 %v3700, %v1777
    %v3723 = vmul.f32 %v3701, %v1781
    %v3724 = vmul.f32 %v3702, %v1785
    %v3725 = vmul.f32 %v3703, %v1789
    %v3726 = vmul.f32 %v3704, %v1793
    %v3727 = vmul.f32 %v3705, %v1797
    %v3728 = vmul.f32 %v3706, %v1801
    %v3729 = vmul.f32 %v3707, %v1805
    %v3730 = vmul.f32 %v3708, %v1809
    %v3731 = vmul.f32 %v3709, %v1813
    %v3732 = vmul.f32 %v3710, %v1817
    %v3733 = vmul.f32 %v3711, %v1821
    %v3734 = vmul.f32 %v3712, %v1825
    %v3735 = vmul.f32 %v3713, %v1829
    %v3736 = vmul.f32 %v3714, %v1833
    %v3737 = vmul.f32 %v3715, %v1837
    %v3738 = vmul.f32 %v3716, %v1841
    %v3739 = vmul.f32 %v3717, %v1845
    %v3740 = vmul.f32 %v3718, %v1849
    %v3741 = vmul.f32 %v3719, %v1853
    %v3742 = vmul.f32 %v3720, %v1857
    %3765 = vrot.lane.b32.xlu0 %v3721, 112
    %v3766 = vpop.permute.xlu0 %3765
    %3767 = vrot.lane.b32.xlu0 %v3722, 112
    %v3768 = vpop.permute.xlu0 %3767
    %3769 = vrot.lane.b32.xlu0 %v3723, 112
    %v3770 = vpop.permute.xlu0 %3769
    %3771 = vrot.lane.b32.xlu0 %v3724, 112
    %v3772 = vpop.permute.xlu0 %3771
    %3773 = vrot.lane.b32.xlu0 %v3725, 112
    %v3774 = vpop.permute.xlu0 %3773
    %3775 = vrot.lane.b32.xlu0 %v3726, 112
    %v3776 = vpop.permute.xlu0 %3775
    %3777 = vrot.lane.b32.xlu0 %v3727, 112
    %v3778 = vpop.permute.xlu0 %3777
    %3779 = vrot.lane.b32.xlu0 %v3728, 112
    %v3780 = vpop.permute.xlu0 %3779
    %3781 = vrot.lane.b32.xlu0 %v3729, 112
    %v3782 = vpop.permute.xlu0 %3781
    %3783 = vrot.lane.b32.xlu0 %v3730, 112
    %v3784 = vpop.permute.xlu0 %3783
    %3785 = vrot.lane.b32.xlu0 %v3731, 112
    %v3786 = vpop.permute.xlu0 %3785
    %3787 = vrot.lane.b32.xlu0 %v3732, 112
    %v3788 = vpop.permute.xlu0 %3787
    %3789 = vrot.lane.b32.xlu0 %v3733, 112
    %v3790 = vpop.permute.xlu0 %3789
    %3791 = vrot.lane.b32.xlu0 %v3734, 112
    %v3792 = vpop.permute.xlu0 %3791
    %3793 = vrot.lane.b32.xlu0 %v3735, 112
    %v3794 = vpop.permute.xlu0 %3793
    %3795 = vrot.lane.b32.xlu0 %v3736, 112
    %v3796 = vpop.permute.xlu0 %3795
    %3797 = vrot.lane.b32.xlu0 %v3737, 112
    %v3798 = vpop.permute.xlu0 %3797
    %3799 = vrot.lane.b32.xlu0 %v3738, 112
    %v3800 = vpop.permute.xlu0 %3799
    %3801 = vrot.lane.b32.xlu0 %v3739, 112
    %v3802 = vpop.permute.xlu0 %3801
    %3803 = vrot.lane.b32.xlu0 %v3740, 112
    %v3804 = vpop.permute.xlu0 %3803
    %3805 = vrot.lane.b32.xlu0 %v3741, 112
    %v3806 = vpop.permute.xlu0 %3805
    %3807 = vrot.lane.b32.xlu0 %v3742, 112
    %v3808 = vpop.permute.xlu0 %3807
    %vm3831 = vcmask 1048448
    %3832 = vst.msk [vmem:[#allocation3] sm:$0xff] %vm3831, %v3766
    %3833 = vst.msk [vmem:[#allocation3 + $0x20] sm:$0xff] %vm3831, %v3768
    %3834 = vst.msk [vmem:[#allocation3 + $0x40] sm:$0xff] %vm3831, %v3770
    %3835 = vst.msk [vmem:[#allocation3 + $0x60] sm:$0xff] %vm3831, %v3772
    %3836 = vst.msk [vmem:[#allocation3 + $0x80] sm:$0xff] %vm3831, %v3774
    %3837 = vst.msk [vmem:[#allocation3 + $0xa0] sm:$0xff] %vm3831, %v3776
    %3838 = vst.msk [vmem:[#allocation3 + $0xc0] sm:$0xff] %vm3831, %v3778
    %3839 = vst.msk [vmem:[#allocation3 + $0xe0] sm:$0xff] %vm3831, %v3780
    %3840 = vst.msk [vmem:[#allocation3 + $0x100] sm:$0xff] %vm3831, %v3782
    %3841 = vst.msk [vmem:[#allocation3 + $0x120] sm:$0xff] %vm3831, %v3784
    %3842 = vst.msk [vmem:[#allocation3 + $0x140] sm:$0xff] %vm3831, %v3786
    %3843 = vst.msk [vmem:[#allocation3 + $0x160] sm:$0xff] %vm3831, %v3788
    %3844 = vst.msk [vmem:[#allocation3 + $0x180] sm:$0xff] %vm3831, %v3790
    %3845 = vst.msk [vmem:[#allocation3 + $0x1a0] sm:$0xff] %vm3831, %v3792
    %3846 = vst.msk [vmem:[#allocation3 + $0x1c0] sm:$0xff] %vm3831, %v3794
    %3847 = vst.msk [vmem:[#allocation3 + $0x1e0] sm:$0xff] %vm3831, %v3796
    %3848 = vst.msk [vmem:[#allocation3 + $0x200] sm:$0xff] %vm3831, %v3798
    %3849 = vst.msk [vmem:[#allocation3 + $0x220] sm:$0xff] %vm3831, %v3800
    %3850 = vst.msk [vmem:[#allocation3 + $0x240] sm:$0xff] %vm3831, %v3802
    %3851 = vst.msk [vmem:[#allocation3 + $0x260] sm:$0xff] %vm3831, %v3804
    %3852 = vst.msk [vmem:[#allocation3 + $0x280] sm:$0xff] %vm3831, %v3806
    %3853 = vst.msk [vmem:[#allocation3 + $0x2a0] sm:$0xff] %vm3831, %v3808
    %v3854 = vld [vmem:[#allocation2 + $0x1a] sm:$0xff]
    %v3855 = vld [vmem:[#allocation2 + $0x22] sm:$0xff]
    %v3856 = vld [vmem:[#allocation2 + $0x2a] sm:$0xff]
    %v3857 = vld [vmem:[#allocation2 + $0x32] sm:$0xff]
    %v3858 = vld [vmem:[#allocation2 + $0x3a] sm:$0xff]
    %v3859 = vld [vmem:[#allocation2 + $0x42] sm:$0xff]
    %v3860 = vld [vmem:[#allocation2 + $0x4a] sm:$0xff]
    %v3861 = vld [vmem:[#allocation2 + $0x52] sm:$0xff]
    %v3862 = vld [vmem:[#allocation2 + $0x5a] sm:$0xff]
    %v3863 = vld [vmem:[#allocation2 + $0x62] sm:$0xff]
    %v3864 = vld [vmem:[#allocation2 + $0x6a] sm:$0xff]
    %v3865 = vld [vmem:[#allocation2 + $0x72] sm:$0xff]
    %v3866 = vld [vmem:[#allocation2 + $0x7a] sm:$0xff]
    %v3867 = vld [vmem:[#allocation2 + $0x82] sm:$0xff]
    %v3868 = vld [vmem:[#allocation2 + $0x8a] sm:$0xff]
    %v3869 = vld [vmem:[#allocation2 + $0x92] sm:$0xff]
    %v3870 = vld [vmem:[#allocation2 + $0x9a] sm:$0xff]
    %v3871 = vld [vmem:[#allocation2 + $0xa2] sm:$0xff]
    %v3872 = vld [vmem:[#allocation2 + $0xaa] sm:$0xff]
    %v3873 = vld [vmem:[#allocation2 + $0xb2] sm:$0xff]
    %v3874 = vld [vmem:[#allocation2 + $0xba] sm:$0xff]
    %v3875 = vld [vmem:[#allocation2 + $0xc2] sm:$0xff]
    %v3876 = vmul.f32 %v3854, %v2016
    %v3877 = vmul.f32 %v3855, %v2020
    %v3878 = vmul.f32 %v3856, %v2024
    %v3879 = vmul.f32 %v3857, %v2028
    %v3880 = vmul.f32 %v3858, %v2032
    %v3881 = vmul.f32 %v3859, %v2036
    %v3882 = vmul.f32 %v3860, %v2040
    %v3883 = vmul.f32 %v3861, %v2044
    %v3884 = vmul.f32 %v3862, %v2048
    %v3885 = vmul.f32 %v3863, %v2052
    %v3886 = vmul.f32 %v3864, %v2056
    %v3887 = vmul.f32 %v3865, %v2060
    %v3888 = vmul.f32 %v3866, %v2064
    %v3889 = vmul.f32 %v3867, %v2068
    %v3890 = vmul.f32 %v3868, %v2072
    %v3891 = vmul.f32 %v3869, %v2076
    %v3892 = vmul.f32 %v3870, %v2080
    %v3893 = vmul.f32 %v3871, %v2084
    %v3894 = vmul.f32 %v3872, %v2088
    %v3895 = vmul.f32 %v3873, %v2092
    %v3896 = vmul.f32 %v3874, %v2096
    %v3897 = vmul.f32 %v3875, %v2100
    %3898 = vst.msk [vmem:[#allocation3 + $0x8] sm:$0xff] %vm2496, %v3876
    %3899 = vst.msk [vmem:[#allocation3 + $0x28] sm:$0xff] %vm2496, %v3877
    %3900 = vst.msk [vmem:[#allocation3 + $0x48] sm:$0xff] %vm2496, %v3878
    %3901 = vst.msk [vmem:[#allocation3 + $0x68] sm:$0xff] %vm2496, %v3879
    %3902 = vst.msk [vmem:[#allocation3 + $0x88] sm:$0xff] %vm2496, %v3880
    %3903 = vst.msk [vmem:[#allocation3 + $0xa8] sm:$0xff] %vm2496, %v3881
    %3904 = vst.msk [vmem:[#allocation3 + $0xc8] sm:$0xff] %vm2496, %v3882
    %3905 = vst.msk [vmem:[#allocation3 + $0xe8] sm:$0xff] %vm2496, %v3883
    %3906 = vst.msk [vmem:[#allocation3 + $0x108] sm:$0xff] %vm2496, %v3884
    %3907 = vst.msk [vmem:[#allocation3 + $0x128] sm:$0xff] %vm2496, %v3885
    %3908 = vst.msk [vmem:[#allocation3 + $0x148] sm:$0xff] %vm2496, %v3886
    %3909 = vst.msk [vmem:[#allocation3 + $0x168] sm:$0xff] %vm2496, %v3887
    %3910 = vst.msk [vmem:[#allocation3 + $0x188] sm:$0xff] %vm2496, %v3888
    %3911 = vst.msk [vmem:[#allocation3 + $0x1a8] sm:$0xff] %vm2496, %v3889
    %3912 = vst.msk [vmem:[#allocation3 + $0x1c8] sm:$0xff] %vm2496, %v3890
    %3913 = vst.msk [vmem:[#allocation3 + $0x1e8] sm:$0xff] %vm2496, %v3891
    %3914 = vst.msk [vmem:[#allocation3 + $0x208] sm:$0xff] %vm2496, %v3892
    %3915 = vst.msk [vmem:[#allocation3 + $0x228] sm:$0xff] %vm2496, %v3893
    %3916 = vst.msk [vmem:[#allocation3 + $0x248] sm:$0xff] %vm2496, %v3894
    %3917 = vst.msk [vmem:[#allocation3 + $0x268] sm:$0xff] %vm2496, %v3895
    %3918 = vst.msk [vmem:[#allocation3 + $0x288] sm:$0xff] %vm2496, %v3896
    %3919 = vst.msk [vmem:[#allocation3 + $0x2a8] sm:$0xff] %vm2496, %v3897
    %v3920 = vld [vmem:[#allocation3] sm:$0xff]
    %v3921 = vld [vmem:[#allocation3 + $0x8] sm:$0xff]
    %v3922 = vld [vmem:[#allocation3 + $0x20] sm:$0xff]
    %v3923 = vld [vmem:[#allocation3 + $0x28] sm:$0xff]
    %v3924 = vld [vmem:[#allocation3 + $0x40] sm:$0xff]
    %v3925 = vld [vmem:[#allocation3 + $0x48] sm:$0xff]
    %v3926 = vld [vmem:[#allocation3 + $0x60] sm:$0xff]
    %v3927 = vld [vmem:[#allocation3 + $0x68] sm:$0xff]
    %v3928 = vld [vmem:[#allocation3 + $0x80] sm:$0xff]
    %v3929 = vld [vmem:[#allocation3 + $0x88] sm:$0xff]
    %v3930 = vld [vmem:[#allocation3 + $0xa0] sm:$0xff]
    %v3931 = vld [vmem:[#allocation3 + $0xa8] sm:$0xff]
    %v3932 = vld [vmem:[#allocation3 + $0xc0] sm:$0xff]
    %v3933 = vld [vmem:[#allocation3 + $0xc8] sm:$0xff]
    %v3934 = vld [vmem:[#allocation3 + $0xe0] sm:$0xff]
    %v3935 = vld [vmem:[#allocation3 + $0xe8] sm:$0xff]
    %v3936 = vld [vmem:[#allocation3 + $0x100] sm:$0xff]
    %v3937 = vld [vmem:[#allocation3 + $0x108] sm:$0xff]
    %v3938 = vld [vmem:[#allocation3 + $0x120] sm:$0xff]
    %v3939 = vld [vmem:[#allocation3 + $0x128] sm:$0xff]
    %v3940 = vld [vmem:[#allocation3 + $0x140] sm:$0xff]
    %v3941 = vld [vmem:[#allocation3 + $0x148] sm:$0xff]
    %v3942 = vld [vmem:[#allocation3 + $0x160] sm:$0xff]
    %v3943 = vld [vmem:[#allocation3 + $0x168] sm:$0xff]
    %v3944 = vld [vmem:[#allocation3 + $0x180] sm:$0xff]
    %v3945 = vld [vmem:[#allocation3 + $0x188] sm:$0xff]
    %v3946 = vld [vmem:[#allocation3 + $0x1a0] sm:$0xff]
    %v3947 = vld [vmem:[#allocation3 + $0x1a8] sm:$0xff]
    %v3948 = vld [vmem:[#allocation3 + $0x1c0] sm:$0xff]
    %v3949 = vld [vmem:[#allocation3 + $0x1c8] sm:$0xff]
    %v3950 = vld [vmem:[#allocation3 + $0x1e0] sm:$0xff]
    %v3951 = vld [vmem:[#allocation3 + $0x1e8] sm:$0xff]
    %v3952 = vld [vmem:[#allocation3 + $0x200] sm:$0xff]
    %v3953 = vld [vmem:[#allocation3 + $0x208] sm:$0xff]
    %v3954 = vld [vmem:[#allocation3 + $0x220] sm:$0xff]
    %v3955 = vld [vmem:[#allocation3 + $0x228] sm:$0xff]
    %v3956 = vld [vmem:[#allocation3 + $0x240] sm:$0xff]
    %v3957 = vld [vmem:[#allocation3 + $0x248] sm:$0xff]
    %v3958 = vld [vmem:[#allocation3 + $0x260] sm:$0xff]
    %v3959 = vld [vmem:[#allocation3 + $0x268] sm:$0xff]
    %v3960 = vld [vmem:[#allocation3 + $0x280] sm:$0xff]
    %v3961 = vld [vmem:[#allocation3 + $0x288] sm:$0xff]
    %v3962 = vld [vmem:[#allocation3 + $0x2a0] sm:$0xff]
    %v3963 = vld [vmem:[#allocation3 + $0x2a8] sm:$0xff]
    %v3964 = vpack.c.bf16 %v3922, %v3920
    %v3965 = vpack.c.bf16 %v3923, %v3921
    %v3966 = vpack.c.bf16 %v3926, %v3924
    %v3967 = vpack.c.bf16 %v3927, %v3925
    %v3968 = vpack.c.bf16 %v3930, %v3928
    %v3969 = vpack.c.bf16 %v3931, %v3929
    %v3970 = vpack.c.bf16 %v3934, %v3932
    %v3971 = vpack.c.bf16 %v3935, %v3933
    %v3972 = vpack.c.bf16 %v3938, %v3936
    %v3973 = vpack.c.bf16 %v3939, %v3937
    %v3974 = vpack.c.bf16 %v3942, %v3940
    %v3975 = vpack.c.bf16 %v3943, %v3941
    %v3976 = vpack.c.bf16 %v3946, %v3944
    %v3977 = vpack.c.bf16 %v3947, %v3945
    %v3978 = vpack.c.bf16 %v3950, %v3948
    %v3979 = vpack.c.bf16 %v3951, %v3949
    %v3980 = vpack.c.bf16 %v3954, %v3952
    %v3981 = vpack.c.bf16 %v3955, %v3953
    %v3982 = vpack.c.bf16 %v3958, %v3956
    %v3983 = vpack.c.bf16 %v3959, %v3957
    %v3984 = vpack.c.bf16 %v3962, %v3960
    %v3985 = vpack.c.bf16 %v3963, %v3961
    %v3986 = vld [vmem:[%s4] sm:$0xf]
    %v3987 = vld [vmem:[%s4 + $0x4] sm:$0xf]
    %v3988 = vld [vmem:[%s4 + $0x8] sm:$0xf]
    %v3989 = vld [vmem:[%s4 + $0xc] sm:$0xf]
    %v3990 = vld [vmem:[%s4 + $0x10] sm:$0xf]
    %v3991 = vld [vmem:[%s4 + $0x14] sm:$0xf]
    %v3992 = vld [vmem:[%s4 + $0x18] sm:$0xf]
    %v3993 = vld [vmem:[%s4 + $0x1c] sm:$0xf]
    %v3994 = vld [vmem:[%s4 + $0x20] sm:$0xf]
    %v3995 = vld [vmem:[%s4 + $0x24] sm:$0xf]
    %v3996 = vld [vmem:[%s4 + $0x28] sm:$0xf]
    %v3997 = vld [vmem:[%s4 + $0x2c] sm:$0xf]
    %v3998 = vld [vmem:[%s4 + $0x30] sm:$0xf]
    %v3999 = vld [vmem:[%s4 + $0x34] sm:$0xf]
    %v4000 = vld [vmem:[%s4 + $0x38] sm:$0xf]
    %v4001 = vld [vmem:[%s4 + $0x3c] sm:$0xf]
    %v4002 = vld [vmem:[%s4 + $0x40] sm:$0xf]
    %v4003 = vld [vmem:[%s4 + $0x44] sm:$0xf]
    %v4004 = vld [vmem:[%s5] sm:$0x1]
    %v4005 = vlaneseq
    %v4006 = vshrl.u32 %v4005, 7
    %v4007 = vsub.s32 0, %v4006
    %v4008 = vrot.slane %v4004, %v4007
    %v4027 = vunpack.c.l.b16 %v3986
    %v4028 = vunpack.c.l.b16 %v3987
    %v4029 = vunpack.c.l.b16 %v3988
    %v4030 = vunpack.c.l.b16 %v3989
    %v4031 = vunpack.c.l.b16 %v3990
    %v4032 = vunpack.c.l.b16 %v3991
    %v4033 = vunpack.c.l.b16 %v3992
    %v4034 = vunpack.c.l.b16 %v3993
    %v4035 = vunpack.c.l.b16 %v3994
    %v4036 = vunpack.c.l.b16 %v3995
    %v4037 = vunpack.c.l.b16 %v3996
    %v4038 = vunpack.c.l.b16 %v3997
    %v4039 = vunpack.c.l.b16 %v3998
    %v4040 = vunpack.c.l.b16 %v3999
    %v4041 = vunpack.c.l.b16 %v4000
    %v4042 = vunpack.c.l.b16 %v4001
    %v4043 = vunpack.c.l.b16 %v4002
    %v4044 = vunpack.c.l.b16 %v4003
    %v4045 = vpack.c.b16 %v4028, %v4027
    %v4046 = vpack.c.b16 %v4030, %v4029
    %v4047 = vpack.c.b16 %v4032, %v4031
    %v4048 = vpack.c.b16 %v4034, %v4033
    %v4049 = vpack.c.b16 %v4036, %v4035
    %v4050 = vpack.c.b16 %v4038, %v4037
    %v4051 = vpack.c.b16 %v4040, %v4039
    %v4052 = vpack.c.b16 %v4042, %v4041
    %v4053 = vpack.c.b16 %v4044, %v4043
    %v4064 = vsel %vm2496, %v3965, 0
    %v4067 = vsel %vm2496, %v3967, 0
    %v4070 = vsel %vm2496, %v3969, 0
    %v4073 = vsel %vm2496, %v3971, 0
    %v4076 = vsel %vm2496, %v3973, 0
    %v4079 = vsel %vm2496, %v3975, 0
    %v4082 = vsel %vm2496, %v3977, 0
    %v4085 = vsel %vm2496, %v3979, 0
    %v4088 = vsel %vm2496, %v3981, 0
    %v4091 = vsel %vm2496, %v3983, 0
    %v4094 = vsel %vm2496, %v3985, 0
    %4096 = vmatprep.subr.bf16.mxu0 0
    %4097 = vmatpush1.bf16.msra.mxu0 %v4045
    %4098 = vmatprep.subr.bf16.mxu0 0
    %4099 = vmatpush1.bf16.msra.mxu0 %v4046
    %4100 = vmatprep.subr.bf16.mxu0 0
    %4101 = vmatpush1.bf16.msra.mxu0 %v4047
    %4102 = vmatprep.subr.bf16.mxu0 0
    %4103 = vmatpush1.bf16.msra.mxu0 %v4048
    %4104 = vmatprep.subr.bf16.mxu0 0
    %4105 = vmatpush1.bf16.msra.mxu0 %v4049
    %4106 = vmatprep.subr.bf16.mxu0 0
    %4107 = vmatpush1.bf16.msra.mxu0 %v4050
    %4108 = vmatprep.subr.bf16.mxu0 0
    %4109 = vmatpush1.bf16.msra.mxu0 %v4051
    %4110 = vmatprep.subr.bf16.mxu0 0
    %4111 = vmatpush1.bf16.msra.mxu0 %v4052
    %4112 = vmatprep.subr.bf16.mxu0 0
    %4113 = vmatpush1.bf16.msra.mxu0 %v4053
    %4114 = vmatprep.subr.bf16.mxu0 0
    %4115 = vmatpush1.bf16.msra.mxu0 0
    %4116 = vmatprep.subr.bf16.mxu0 0
    %4117 = vmatpush1.bf16.msra.mxu0 0
    %4118 = vmatprep.subr.bf16.mxu0 0
    %4119 = vmatpush1.bf16.msra.mxu0 0
    %4120 = vmatprep.subr.bf16.mxu0 0
    %4121 = vmatpush1.bf16.msra.mxu0 0
    %4122 = vmatprep.subr.bf16.mxu0 0
    %4123 = vmatpush1.bf16.msra.mxu0 0
    %4124 = vmatprep.subr.bf16.mxu0 0
    %4125 = vmatpush1.bf16.msra.mxu0 0
    %4126 = vmatprep.subr.bf16.mxu0 0
    %4127 = vmatpush1.bf16.msra.mxu0 0
    %4128 = vmatprep.mubr.bf16.mxu0 %v4064
    %4129 = vmatmul.mubr.bf16.gmra.mrb[0].mxu0 %v3964
    %v4130 = vpop.f32.mrb[0].mxu0
    %v4131 = vadd.f32 %v4008, %v4130
    %v4132 = vpop.f32.mrb[0].mxu0
    %v4133 = vpop.f32.mrb[0].mxu0
    %v4134 = vadd.f32 %v4008, %v4133
    %v4135 = vpop.f32.mrb[0].mxu0
    %4136 = vmatprep.mubr.bf16.mxu0 %v4067
    %4137 = vmatmul.mubr.bf16.gmra.mrb[0].mxu0 %v3966
    %v4138 = vpop.f32.mrb[0].mxu0
    %v4139 = vadd.f32 %v4008, %v4138
    %v4140 = vpop.f32.mrb[0].mxu0
    %v4141 = vpop.f32.mrb[0].mxu0
    %v4142 = vadd.f32 %v4008, %v4141
    %v4143 = vpop.f32.mrb[0].mxu0
    %4144 = vmatprep.mubr.bf16.mxu0 %v4070
    %4145 = vmatmul.mubr.bf16.gmra.mrb[0].mxu0 %v3968
    %v4146 = vpop.f32.mrb[0].mxu0
    %v4147 = vadd.f32 %v4008, %v4146
    %v4148 = vpop.f32.mrb[0].mxu0
    %v4149 = vpop.f32.mrb[0].mxu0
    %v4150 = vadd.f32 %v4008, %v4149
    %v4151 = vpop.f32.mrb[0].mxu0
    %4152 = vmatprep.mubr.bf16.mxu0 %v4073
    %4153 = vmatmul.mubr.bf16.gmra.mrb[0].mxu0 %v3970
    %v4154 = vpop.f32.mrb[0].mxu0
    %v4155 = vadd.f32 %v4008, %v4154
    %v4156 = vpop.f32.mrb[0].mxu0
    %v4157 = vpop.f32.mrb[0].mxu0
    %v4158 = vadd.f32 %v4008, %v4157
    %v4159 = vpop.f32.mrb[0].mxu0
    %4160 = vmatprep.mubr.bf16.mxu0 %v4076
    %4161 = vmatmul.mubr.bf16.gmra.mrb[0].mxu0 %v3972
    %v4162 = vpop.f32.mrb[0].mxu0
    %v4163 = vadd.f32 %v4008, %v4162
    %v4164 = vpop.f32.mrb[0].mxu0
    %v4165 = vpop.f32.mrb[0].mxu0
    %v4166 = vadd.f32 %v4008, %v4165
    %v4167 = vpop.f32.mrb[0].mxu0
    %4168 = vmatprep.mubr.bf16.mxu0 %v4079
    %4169 = vmatmul.mubr.bf16.gmra.mrb[0].mxu0 %v3974
    %v4170 = vpop.f32.mrb[0].mxu0
    %v4171 = vadd.f32 %v4008, %v4170
    %v4172 = vpop.f32.mrb[0].mxu0
    %v4173 = vpop.f32.mrb[0].mxu0
    %v4174 = vadd.f32 %v4008, %v4173
    %v4175 = vpop.f32.mrb[0].mxu0
    %4176 = vmatprep.mubr.bf16.mxu0 %v4082
    %4177 = vmatmul.mubr.bf16.gmra.mrb[0].mxu0 %v3976
    %v4178 = vpop.f32.mrb[0].mxu0
    %v4179 = vadd.f32 %v4008, %v4178
    %v4180 = vpop.f32.mrb[0].mxu0
    %v4181 = vpop.f32.mrb[0].mxu0
    %v4182 = vadd.f32 %v4008, %v4181
    %v4183 = vpop.f32.mrb[0].mxu0
    %4184 = vmatprep.mubr.bf16.mxu0 %v4085
    %4185 = vmatmul.mubr.bf16.gmra.mrb[0].mxu0 %v3978
    %v4186 = vpop.f32.mrb[0].mxu0
    %v4187 = vadd.f32 %v4008, %v4186
    %v4188 = vpop.f32.mrb[0].mxu0
    %v4189 = vpop.f32.mrb[0].mxu0
    %v4190 = vadd.f32 %v4008, %v4189
    %v4191 = vpop.f32.mrb[0].mxu0
    %4192 = vmatprep.mubr.bf16.mxu0 %v4088
    %4193 = vmatmul.mubr.bf16.gmra.mrb[0].mxu0 %v3980
    %v4194 = vpop.f32.mrb[0].mxu0
    %v4195 = vadd.f32 %v4008, %v4194
    %v4196 = vpop.f32.mrb[0].mxu0
    %v4197 = vpop.f32.mrb[0].mxu0
    %v4198 = vadd.f32 %v4008, %v4197
    %v4199 = vpop.f32.mrb[0].mxu0
    %4200 = vmatprep.mubr.bf16.mxu0 %v4091
    %4201 = vmatmul.mubr.bf16.gmra.mrb[0].mxu0 %v3982
    %v4202 = vpop.f32.mrb[0].mxu0
    %v4203 = vadd.f32 %v4008, %v4202
    %v4204 = vpop.f32.mrb[0].mxu0
    %v4205 = vpop.f32.mrb[0].mxu0
    %v4206 = vadd.f32 %v4008, %v4205
    %v4207 = vpop.f32.mrb[0].mxu0
    %4208 = vmatprep.mubr.bf16.mxu0 %v4094
    %4209 = vmatmul.mubr.bf16.gmra.mrb[0].mxu0 %v3984
    %v4210 = vpop.f32.mrb[0].mxu0
    %v4211 = vadd.f32 %v4008, %v4210
    %v4212 = vpop.f32.mrb[0].mxu0
    %v4213 = vpop.f32.mrb[0].mxu0
    %v4214 = vadd.f32 %v4008, %v4213
    %v4215 = vpop.f32.mrb[0].mxu0
    %4216 = vdwg.mxu0
    %v4217 = vmax.f32 %v4131, 0.0
    %v4218 = vmax.f32 %v4134, 0.0
    %v4219 = vmax.f32 %v4139, 0.0
    %v4220 = vmax.f32 %v4142, 0.0
    %v4221 = vmax.f32 %v4147, 0.0
    %v4222 = vmax.f32 %v4150, 0.0
    %v4223 = vmax.f32 %v4155, 0.0
    %v4224 = vmax.f32 %v4158, 0.0
    %v4225 = vmax.f32 %v4163, 0.0
    %v4226 = vmax.f32 %v4166, 0.0
    %v4227 = vmax.f32 %v4171, 0.0
    %v4228 = vmax.f32 %v4174, 0.0
    %v4229 = vmax.f32 %v4179, 0.0
    %v4230 = vmax.f32 %v4182, 0.0
    %v4231 = vmax.f32 %v4187, 0.0
    %v4232 = vmax.f32 %v4190, 0.0
    %v4233 = vmax.f32 %v4195, 0.0
    %v4234 = vmax.f32 %v4198, 0.0
    %v4235 = vmax.f32 %v4203, 0.0
    %v4236 = vmax.f32 %v4206, 0.0
    %v4237 = vmax.f32 %v4211, 0.0
    %v4238 = vmax.f32 %v4214, 0.0
    %v4239 = vmul.f32 %v4217, %v1044
    %v4240 = vmul.f32 %v4218, %v1048
    %v4241 = vmul.f32 %v4219, %v1052
    %v4242 = vmul.f32 %v4220, %v1056
    %v4243 = vmul.f32 %v4221, %v1060
    %v4244 = vmul.f32 %v4222, %v1064
    %v4245 = vmul.f32 %v4223, %v1068
    %v4246 = vmul.f32 %v4224, %v1072
    %v4247 = vmul.f32 %v4225, %v1076
    %v4248 = vmul.f32 %v4226, %v1080
    %v4249 = vmul.f32 %v4227, %v1084
    %v4250 = vmul.f32 %v4228, %v1088
    %v4251 = vmul.f32 %v4229, %v1092
    %v4252 = vmul.f32 %v4230, %v1096
    %v4253 = vmul.f32 %v4231, %v1100
    %v4254 = vmul.f32 %v4232, %v1104
    %v4255 = vmul.f32 %v4233, %v1108
    %v4256 = vmul.f32 %v4234, %v1112
    %v4257 = vmul.f32 %v4235, %v1116
    %v4258 = vmul.f32 %v4236, %v1120
    %v4259 = vmul.f32 %v4237, %v1124
    %v4260 = vmul.f32 %v4238, %v1128
    %vm4261 = vcmask 261120
    %v4262 = vsel %vm4261, %v4239, 0.0
    %v4263 = vsel %vm4261, %v4240, 0.0
    %v4264 = vadd.f32 %v4262, %v4263
    %v4265 = vsel %vm4261, %v4241, 0.0
    %v4266 = vadd.f32 %v4264, %v4265
    %v4267 = vsel %vm4261, %v4242, 0.0
    %v4268 = vadd.f32 %v4266, %v4267
    %v4269 = vsel %vm4261, %v4243, 0.0
    %v4270 = vadd.f32 %v4268, %v4269
    %v4271 = vsel %vm4261, %v4244, 0.0
    %v4272 = vadd.f32 %v4270, %v4271
    %v4273 = vsel %vm4261, %v4245, 0.0
    %v4274 = vadd.f32 %v4272, %v4273
    %v4275 = vsel %vm4261, %v4246, 0.0
    %v4276 = vadd.f32 %v4274, %v4275
    %v4277 = vsel %vm4261, %v4247, 0.0
    %v4278 = vadd.f32 %v4276, %v4277
    %v4279 = vsel %vm4261, %v4248, 0.0
    %v4280 = vadd.f32 %v4278, %v4279
    %v4281 = vsel %vm4261, %v4249, 0.0
    %v4282 = vadd.f32 %v4280, %v4281
    %v4283 = vsel %vm4261, %v4250, 0.0
    %v4284 = vadd.f32 %v4282, %v4283
    %v4285 = vsel %vm4261, %v4251, 0.0
    %v4286 = vadd.f32 %v4284, %v4285
    %v4287 = vsel %vm4261, %v4252, 0.0
    %v4288 = vadd.f32 %v4286, %v4287
    %v4289 = vsel %vm4261, %v4253, 0.0
    %v4290 = vadd.f32 %v4288, %v4289
    %v4291 = vsel %vm4261, %v4254, 0.0
    %v4292 = vadd.f32 %v4290, %v4291
    %v4293 = vsel %vm4261, %v4255, 0.0
    %v4294 = vadd.f32 %v4292, %v4293
    %v4295 = vsel %vm4261, %v4256, 0.0
    %v4296 = vadd.f32 %v4294, %v4295
    %v4297 = vsel %vm4261, %v4257, 0.0
    %v4298 = vadd.f32 %v4296, %v4297
    %v4299 = vsel %vm4261, %v4258, 0.0
    %v4300 = vadd.f32 %v4298, %v4299
    %v4301 = vsel %vm4261, %v4259, 0.0
    %v4302 = vadd.f32 %v4300, %v4301
    %v4303 = vsel %vm4261, %v4260, 0.0
    %v4304 = vadd.f32 %v4302, %v4303
    %v4305 = vrot.slane %v4304, 4
    %v4306 = vadd.f32 %v4304, %v4305
    %v4307 = vrot.slane %v4306, 2
    %v4308 = vadd.f32 %v4306, %v4307
    %v4309 = vrot.slane %v4308, 1
    %v4310 = vadd.f32 %v4308, %v4309
    %v4311 = vmul.f32 %v4310, 0.0061728396
    %v4312 = vmul.f32 %v4239, %v4239
    %v4313 = vmul.f32 %v4240, %v4240
    %v4314 = vmul.f32 %v4241, %v4241
    %v4315 = vmul.f32 %v4242, %v4242
    %v4316 = vmul.f32 %v4243, %v4243
    %v4317 = vmul.f32 %v4244, %v4244
    %v4318 = vmul.f32 %v4245, %v4245
    %v4319 = vmul.f32 %v4246, %v4246
    %v4320 = vmul.f32 %v4247, %v4247
    %v4321 = vmul.f32 %v4248, %v4248
    %v4322 = vmul.f32 %v4249, %v4249
    %v4323 = vmul.f32 %v4250, %v4250
    %v4324 = vmul.f32 %v4251, %v4251
    %v4325 = vmul.f32 %v4252, %v4252
    %v4326 = vmul.f32 %v4253, %v4253
    %v4327 = vmul.f32 %v4254, %v4254
    %v4328 = vmul.f32 %v4255, %v4255
    %v4329 = vmul.f32 %v4256, %v4256
    %v4330 = vmul.f32 %v4257, %v4257
    %v4331 = vmul.f32 %v4258, %v4258
    %v4332 = vmul.f32 %v4259, %v4259
    %v4333 = vmul.f32 %v4260, %v4260
    %v4334 = vsel %vm4261, %v4312, 0.0
    %v4335 = vsel %vm4261, %v4313, 0.0
    %v4336 = vadd.f32 %v4334, %v4335
    %v4337 = vsel %vm4261, %v4314, 0.0
    %v4338 = vadd.f32 %v4336, %v4337
    %v4339 = vsel %vm4261, %v4315, 0.0
    %v4340 = vadd.f32 %v4338, %v4339
    %v4341 = vsel %vm4261, %v4316, 0.0
    %v4342 = vadd.f32 %v4340, %v4341
    %v4343 = vsel %vm4261, %v4317, 0.0
    %v4344 = vadd.f32 %v4342, %v4343
    %v4345 = vsel %vm4261, %v4318, 0.0
    %v4346 = vadd.f32 %v4344, %v4345
    %v4347 = vsel %vm4261, %v4319, 0.0
    %v4348 = vadd.f32 %v4346, %v4347
    %v4349 = vsel %vm4261, %v4320, 0.0
    %v4350 = vadd.f32 %v4348, %v4349
    %v4351 = vsel %vm4261, %v4321, 0.0
    %v4352 = vadd.f32 %v4350, %v4351
    %v4353 = vsel %vm4261, %v4322, 0.0
    %v4354 = vadd.f32 %v4352, %v4353
    %v4355 = vsel %vm4261, %v4323, 0.0
    %v4356 = vadd.f32 %v4354, %v4355
    %v4357 = vsel %vm4261, %v4324, 0.0
    %v4358 = vadd.f32 %v4356, %v4357
    %v4359 = vsel %vm4261, %v4325, 0.0
    %v4360 = vadd.f32 %v4358, %v4359
    %v4361 = vsel %vm4261, %v4326, 0.0
    %v4362 = vadd.f32 %v4360, %v4361
    %v4363 = vsel %vm4261, %v4327, 0.0
    %v4364 = vadd.f32 %v4362, %v4363
    %v4365 = vsel %vm4261, %v4328, 0.0
    %v4366 = vadd.f32 %v4364, %v4365
    %v4367 = vsel %vm4261, %v4329, 0.0
    %v4368 = vadd.f32 %v4366, %v4367
    %v4369 = vsel %vm4261, %v4330, 0.0
    %v4370 = vadd.f32 %v4368, %v4369
    %v4371 = vsel %vm4261, %v4331, 0.0
    %v4372 = vadd.f32 %v4370, %v4371
    %v4373 = vsel %vm4261, %v4332, 0.0
    %v4374 = vadd.f32 %v4372, %v4373
    %v4375 = vsel %vm4261, %v4333, 0.0
    %v4376 = vadd.f32 %v4374, %v4375
    %v4377 = vrot.slane %v4376, 4
    %v4378 = vadd.f32 %v4376, %v4377
    %v4379 = vrot.slane %v4378, 2
    %v4380 = vadd.f32 %v4378, %v4379
    %v4381 = vrot.slane %v4380, 1
    %v4382 = vadd.f32 %v4380, %v4381
    %v4383 = vmul.f32 %v4382, 0.0061728396
    %v4384 = vmul.f32 %v4311, %v4311
    %v4385 = vsub.f32 %v4383, %v4384
    %v4386 = vmax.f32 %v4385, 0.0
    %v4387 = vld [vmem:[%s5 + $0x1] sm:$0x1]
    %v4388 = vadd.f32 %v4386, 1e-05
    %v4389 = vrsqrt.pop %v4388
    %v4390 = vmul.f32 %v4387, %v4389
    %v4391 = vld [vmem:[%s5 + $0x2] sm:$0x1]
    %v4392 = vmul.f32 %v4311, %v4390
    %v4393 = vsub.f32 %v4391, %v4392
    %v4394 = vlaneseq
    %v4395 = vshrl.u32 %v4394, 7
    %v4396 = vsub.s32 0, %v4395
    %v4397 = vrot.slane %v4390, %v4396
    %v4398 = vmul.f32 %v4217, %v4397
    %v4399 = vmul.f32 %v4218, %v4397
    %v4400 = vmul.f32 %v4219, %v4397
    %v4401 = vmul.f32 %v4220, %v4397
    %v4402 = vmul.f32 %v4221, %v4397
    %v4403 = vmul.f32 %v4222, %v4397
    %v4404 = vmul.f32 %v4223, %v4397
    %v4405 = vmul.f32 %v4224, %v4397
    %v4406 = vmul.f32 %v4225, %v4397
    %v4407 = vmul.f32 %v4226, %v4397
    %v4408 = vmul.f32 %v4227, %v4397
    %v4409 = vmul.f32 %v4228, %v4397
    %v4410 = vmul.f32 %v4229, %v4397
    %v4411 = vmul.f32 %v4230, %v4397
    %v4412 = vmul.f32 %v4231, %v4397
    %v4413 = vmul.f32 %v4232, %v4397
    %v4414 = vmul.f32 %v4233, %v4397
    %v4415 = vmul.f32 %v4234, %v4397
    %v4416 = vmul.f32 %v4235, %v4397
    %v4417 = vmul.f32 %v4236, %v4397
    %v4418 = vmul.f32 %v4237, %v4397
    %v4419 = vmul.f32 %v4238, %v4397
    %v4420 = vlaneseq
    %v4421 = vshrl.u32 %v4420, 7
    %v4422 = vsub.s32 0, %v4421
    %v4423 = vrot.slane %v4393, %v4422
    %v4424 = vadd.f32 %v4398, %v4423
    %v4425 = vadd.f32 %v4399, %v4423
    %v4426 = vadd.f32 %v4400, %v4423
    %v4427 = vadd.f32 %v4401, %v4423
    %v4428 = vadd.f32 %v4402, %v4423
    %v4429 = vadd.f32 %v4403, %v4423
    %v4430 = vadd.f32 %v4404, %v4423
    %v4431 = vadd.f32 %v4405, %v4423
    %v4432 = vadd.f32 %v4406, %v4423
    %v4433 = vadd.f32 %v4407, %v4423
    %v4434 = vadd.f32 %v4408, %v4423
    %v4435 = vadd.f32 %v4409, %v4423
    %v4436 = vadd.f32 %v4410, %v4423
    %v4437 = vadd.f32 %v4411, %v4423
    %v4438 = vadd.f32 %v4412, %v4423
    %v4439 = vadd.f32 %v4413, %v4423
    %v4440 = vadd.f32 %v4414, %v4423
    %v4441 = vadd.f32 %v4415, %v4423
    %v4442 = vadd.f32 %v4416, %v4423
    %v4443 = vadd.f32 %v4417, %v4423
    %v4444 = vadd.f32 %v4418, %v4423
    %v4445 = vadd.f32 %v4419, %v4423
    %4446 = vst.msk [vmem:[#allocation2 + $0x10] sm:$0xff] %vm4261, %v4424
    %4447 = vst.msk [vmem:[#allocation2 + $0x18] sm:$0xff] %vm4261, %v4425
    %4448 = vst.msk [vmem:[#allocation2 + $0x20] sm:$0xff] %vm4261, %v4426
    %4449 = vst.msk [vmem:[#allocation2 + $0x28] sm:$0xff] %vm4261, %v4427
    %4450 = vst.msk [vmem:[#allocation2 + $0x30] sm:$0xff] %vm4261, %v4428
    %4451 = vst.msk [vmem:[#allocation2 + $0x38] sm:$0xff] %vm4261, %v4429
    %4452 = vst.msk [vmem:[#allocation2 + $0x40] sm:$0xff] %vm4261, %v4430
    %4453 = vst.msk [vmem:[#allocation2 + $0x48] sm:$0xff] %vm4261, %v4431
    %4454 = vst.msk [vmem:[#allocation2 + $0x50] sm:$0xff] %vm4261, %v4432
    %4455 = vst.msk [vmem:[#allocation2 + $0x58] sm:$0xff] %vm4261, %v4433
    %4456 = vst.msk [vmem:[#allocation2 + $0x60] sm:$0xff] %vm4261, %v4434
    %4457 = vst.msk [vmem:[#allocation2 + $0x68] sm:$0xff] %vm4261, %v4435
    %4458 = vst.msk [vmem:[#allocation2 + $0x70] sm:$0xff] %vm4261, %v4436
    %4459 = vst.msk [vmem:[#allocation2 + $0x78] sm:$0xff] %vm4261, %v4437
    %4460 = vst.msk [vmem:[#allocation2 + $0x80] sm:$0xff] %vm4261, %v4438
    %4461 = vst.msk [vmem:[#allocation2 + $0x88] sm:$0xff] %vm4261, %v4439
    %4462 = vst.msk [vmem:[#allocation2 + $0x90] sm:$0xff] %vm4261, %v4440
    %4463 = vst.msk [vmem:[#allocation2 + $0x98] sm:$0xff] %vm4261, %v4441
    %4464 = vst.msk [vmem:[#allocation2 + $0xa0] sm:$0xff] %vm4261, %v4442
    %4465 = vst.msk [vmem:[#allocation2 + $0xa8] sm:$0xff] %vm4261, %v4443
    %4466 = vst.msk [vmem:[#allocation2 + $0xb0] sm:$0xff] %vm4261, %v4444
    %4467 = vst.msk [vmem:[#allocation2 + $0xb8] sm:$0xff] %vm4261, %v4445
    %v4468 = vld [vmem:[#allocation2 + $0x6] sm:$0xff]
    %v4469 = vld [vmem:[#allocation2 + $0xe] sm:$0xff]
    %v4470 = vld [vmem:[#allocation2 + $0x16] sm:$0xff]
    %v4471 = vld [vmem:[#allocation2 + $0x1e] sm:$0xff]
    %v4472 = vld [vmem:[#allocation2 + $0x26] sm:$0xff]
    %v4473 = vld [vmem:[#allocation2 + $0x2e] sm:$0xff]
    %v4474 = vld [vmem:[#allocation2 + $0x36] sm:$0xff]
    %v4475 = vld [vmem:[#allocation2 + $0x3e] sm:$0xff]
    %v4476 = vld [vmem:[#allocation2 + $0x46] sm:$0xff]
    %v4477 = vld [vmem:[#allocation2 + $0x4e] sm:$0xff]
    %v4478 = vld [vmem:[#allocation2 + $0x56] sm:$0xff]
    %v4479 = vld [vmem:[#allocation2 + $0x5e] sm:$0xff]
    %v4480 = vld [vmem:[#allocation2 + $0x66] sm:$0xff]
    %v4481 = vld [vmem:[#allocation2 + $0x6e] sm:$0xff]
    %v4482 = vld [vmem:[#allocation2 + $0x76] sm:$0xff]
    %v4483 = vld [vmem:[#allocation2 + $0x7e] sm:$0xff]
    %v4484 = vld [vmem:[#allocation2 + $0x86] sm:$0xff]
    %v4485 = vld [vmem:[#allocation2 + $0x8e] sm:$0xff]
    %v4486 = vld [vmem:[#allocation2 + $0x96] sm:$0xff]
    %v4487 = vld [vmem:[#allocation2 + $0x9e] sm:$0xff]
    %v4488 = vld [vmem:[#allocation2 + $0xa6] sm:$0xff]
    %v4489 = vld [vmem:[#allocation2 + $0xae] sm:$0xff]
    %v4490 = vmul.f32 %v4468, %v140
    %v4491 = vmul.f32 %v4469, %v145
    %v4492 = vmul.f32 %v4470, %v150
    %v4493 = vmul.f32 %v4471, %v155
    %v4494 = vmul.f32 %v4472, %v160
    %v4495 = vmul.f32 %v4473, %v165
    %v4496 = vmul.f32 %v4474, %v170
    %v4497 = vmul.f32 %v4475, %v175
    %v4498 = vmul.f32 %v4476, %v180
    %v4499 = vmul.f32 %v4477, %v185
    %v4500 = vmul.f32 %v4478, %v190
    %v4501 = vmul.f32 %v4479, %v195
    %v4502 = vmul.f32 %v4480, %v200
    %v4503 = vmul.f32 %v4481, %v205
    %v4504 = vmul.f32 %v4482, %v210
    %v4505 = vmul.f32 %v4483, %v215
    %v4506 = vmul.f32 %v4484, %v220
    %v4507 = vmul.f32 %v4485, %v225
    %v4508 = vmul.f32 %v4486, %v230
    %v4509 = vmul.f32 %v4487, %v235
    %v4510 = vmul.f32 %v4488, %v240
    %v4511 = vmul.f32 %v4489, %v245
    %4512 = vst.msk [vmem:[#allocation3] sm:$0xff] %vm4261, %v4490
    %4513 = vst.msk [vmem:[#allocation3 + $0x20] sm:$0xff] %vm4261, %v4491
    %4514 = vst.msk [vmem:[#allocation3 + $0x40] sm:$0xff] %vm4261, %v4492
    %4515 = vst.msk [vmem:[#allocation3 + $0x60] sm:$0xff] %vm4261, %v4493
    %4516 = vst.msk [vmem:[#allocation3 + $0x80] sm:$0xff] %vm4261, %v4494
    %4517 = vst.msk [vmem:[#allocation3 + $0xa0] sm:$0xff] %vm4261, %v4495
    %4518 = vst.msk [vmem:[#allocation3 + $0xc0] sm:$0xff] %vm4261, %v4496
    %4519 = vst.msk [vmem:[#allocation3 + $0xe0] sm:$0xff] %vm4261, %v4497
    %4520 = vst.msk [vmem:[#allocation3 + $0x100] sm:$0xff] %vm4261, %v4498
    %4521 = vst.msk [vmem:[#allocation3 + $0x120] sm:$0xff] %vm4261, %v4499
    %4522 = vst.msk [vmem:[#allocation3 + $0x140] sm:$0xff] %vm4261, %v4500
    %4523 = vst.msk [vmem:[#allocation3 + $0x160] sm:$0xff] %vm4261, %v4501
    %4524 = vst.msk [vmem:[#allocation3 + $0x180] sm:$0xff] %vm4261, %v4502
    %4525 = vst.msk [vmem:[#allocation3 + $0x1a0] sm:$0xff] %vm4261, %v4503
    %4526 = vst.msk [vmem:[#allocation3 + $0x1c0] sm:$0xff] %vm4261, %v4504
    %4527 = vst.msk [vmem:[#allocation3 + $0x1e0] sm:$0xff] %vm4261, %v4505
    %4528 = vst.msk [vmem:[#allocation3 + $0x200] sm:$0xff] %vm4261, %v4506
    %4529 = vst.msk [vmem:[#allocation3 + $0x220] sm:$0xff] %vm4261, %v4507
    %4530 = vst.msk [vmem:[#allocation3 + $0x240] sm:$0xff] %vm4261, %v4508
    %4531 = vst.msk [vmem:[#allocation3 + $0x260] sm:$0xff] %vm4261, %v4509
    %4532 = vst.msk [vmem:[#allocation3 + $0x280] sm:$0xff] %vm4261, %v4510
    %4533 = vst.msk [vmem:[#allocation3 + $0x2a0] sm:$0xff] %vm4261, %v4511
    %v4534 = vld [vmem:[#allocation2 + $0x7] sm:$0xff]
    %v4535 = vld [vmem:[#allocation2 + $0xf] sm:$0xff]
    %v4536 = vld [vmem:[#allocation2 + $0x17] sm:$0xff]
    %v4537 = vld [vmem:[#allocation2 + $0x1f] sm:$0xff]
    %v4538 = vld [vmem:[#allocation2 + $0x27] sm:$0xff]
    %v4539 = vld [vmem:[#allocation2 + $0x2f] sm:$0xff]
    %v4540 = vld [vmem:[#allocation2 + $0x37] sm:$0xff]
    %v4541 = vld [vmem:[#allocation2 + $0x3f] sm:$0xff]
    %v4542 = vld [vmem:[#allocation2 + $0x47] sm:$0xff]
    %v4543 = vld [vmem:[#allocation2 + $0x4f] sm:$0xff]
    %v4544 = vld [vmem:[#allocation2 + $0x57] sm:$0xff]
    %v4545 = vld [vmem:[#allocation2 + $0x5f] sm:$0xff]
    %v4546 = vld [vmem:[#allocation2 + $0x67] sm:$0xff]
    %v4547 = vld [vmem:[#allocation2 + $0x6f] sm:$0xff]
    %v4548 = vld [vmem:[#allocation2 + $0x77] sm:$0xff]
    %v4549 = vld [vmem:[#allocation2 + $0x7f] sm:$0xff]
    %v4550 = vld [vmem:[#allocation2 + $0x87] sm:$0xff]
    %v4551 = vld [vmem:[#allocation2 + $0x8f] sm:$0xff]
    %v4552 = vld [vmem:[#allocation2 + $0x97] sm:$0xff]
    %v4553 = vld [vmem:[#allocation2 + $0x9f] sm:$0xff]
    %v4554 = vld [vmem:[#allocation2 + $0xa7] sm:$0xff]
    %v4555 = vld [vmem:[#allocation2 + $0xaf] sm:$0xff]
    %v4556 = vmul.f32 %v4534, %v315
    %v4557 = vmul.f32 %v4535, %v319
    %v4558 = vmul.f32 %v4536, %v323
    %v4559 = vmul.f32 %v4537, %v327
    %v4560 = vmul.f32 %v4538, %v331
    %v4561 = vmul.f32 %v4539, %v335
    %v4562 = vmul.f32 %v4540, %v339
    %v4563 = vmul.f32 %v4541, %v343
    %v4564 = vmul.f32 %v4542, %v347
    %v4565 = vmul.f32 %v4543, %v351
    %v4566 = vmul.f32 %v4544, %v355
    %v4567 = vmul.f32 %v4545, %v359
    %v4568 = vmul.f32 %v4546, %v363
    %v4569 = vmul.f32 %v4547, %v367
    %v4570 = vmul.f32 %v4548, %v371
    %v4571 = vmul.f32 %v4549, %v375
    %v4572 = vmul.f32 %v4550, %v379
    %v4573 = vmul.f32 %v4551, %v383
    %v4574 = vmul.f32 %v4552, %v387
    %v4575 = vmul.f32 %v4553, %v391
    %v4576 = vmul.f32 %v4554, %v395
    %v4577 = vmul.f32 %v4555, %v399
    %4600 = vrot.lane.b32.xlu0 %v4556, 32
    %v4601 = vpop.permute.xlu0 %4600
    %4602 = vrot.lane.b32.xlu0 %v4557, 32
    %v4603 = vpop.permute.xlu0 %4602
    %4604 = vrot.lane.b32.xlu0 %v4558, 32
    %v4605 = vpop.permute.xlu0 %4604
    %4606 = vrot.lane.b32.xlu0 %v4559, 32
    %v4607 = vpop.permute.xlu0 %4606
    %4608 = vrot.lane.b32.xlu0 %v4560, 32
    %v4609 = vpop.permute.xlu0 %4608
    %4610 = vrot.lane.b32.xlu0 %v4561, 32
    %v4611 = vpop.permute.xlu0 %4610
    %4612 = vrot.lane.b32.xlu0 %v4562, 32
    %v4613 = vpop.permute.xlu0 %4612
    %4614 = vrot.lane.b32.xlu0 %v4563, 32
    %v4615 = vpop.permute.xlu0 %4614
    %4616 = vrot.lane.b32.xlu0 %v4564, 32
    %v4617 = vpop.permute.xlu0 %4616
    %4618 = vrot.lane.b32.xlu0 %v4565, 32
    %v4619 = vpop.permute.xlu0 %4618
    %4620 = vrot.lane.b32.xlu0 %v4566, 32
    %v4621 = vpop.permute.xlu0 %4620
    %4622 = vrot.lane.b32.xlu0 %v4567, 32
    %v4623 = vpop.permute.xlu0 %4622
    %4624 = vrot.lane.b32.xlu0 %v4568, 32
    %v4625 = vpop.permute.xlu0 %4624
    %4626 = vrot.lane.b32.xlu0 %v4569, 32
    %v4627 = vpop.permute.xlu0 %4626
    %4628 = vrot.lane.b32.xlu0 %v4570, 32
    %v4629 = vpop.permute.xlu0 %4628
    %4630 = vrot.lane.b32.xlu0 %v4571, 32
    %v4631 = vpop.permute.xlu0 %4630
    %4632 = vrot.lane.b32.xlu0 %v4572, 32
    %v4633 = vpop.permute.xlu0 %4632
    %4634 = vrot.lane.b32.xlu0 %v4573, 32
    %v4635 = vpop.permute.xlu0 %4634
    %4636 = vrot.lane.b32.xlu0 %v4574, 32
    %v4637 = vpop.permute.xlu0 %4636
    %4638 = vrot.lane.b32.xlu0 %v4575, 32
    %v4639 = vpop.permute.xlu0 %4638
    %4640 = vrot.lane.b32.xlu0 %v4576, 32
    %v4641 = vpop.permute.xlu0 %4640
    %4642 = vrot.lane.b32.xlu0 %v4577, 32
    %v4643 = vpop.permute.xlu0 %4642
    %vm4666 = vcmask 523520
    %4667 = vst.msk [vmem:[#allocation3] sm:$0xff] %vm4666, %v4601
    %4668 = vst.msk [vmem:[#allocation3 + $0x20] sm:$0xff] %vm4666, %v4603
    %4669 = vst.msk [vmem:[#allocation3 + $0x40] sm:$0xff] %vm4666, %v4605
    %4670 = vst.msk [vmem:[#allocation3 + $0x60] sm:$0xff] %vm4666, %v4607
    %4671 = vst.msk [vmem:[#allocation3 + $0x80] sm:$0xff] %vm4666, %v4609
    %4672 = vst.msk [vmem:[#allocation3 + $0xa0] sm:$0xff] %vm4666, %v4611
    %4673 = vst.msk [vmem:[#allocation3 + $0xc0] sm:$0xff] %vm4666, %v4613
    %4674 = vst.msk [vmem:[#allocation3 + $0xe0] sm:$0xff] %vm4666, %v4615
    %4675 = vst.msk [vmem:[#allocation3 + $0x100] sm:$0xff] %vm4666, %v4617
    %4676 = vst.msk [vmem:[#allocation3 + $0x120] sm:$0xff] %vm4666, %v4619
    %4677 = vst.msk [vmem:[#allocation3 + $0x140] sm:$0xff] %vm4666, %v4621
    %4678 = vst.msk [vmem:[#allocation3 + $0x160] sm:$0xff] %vm4666, %v4623
    %4679 = vst.msk [vmem:[#allocation3 + $0x180] sm:$0xff] %vm4666, %v4625
    %4680 = vst.msk [vmem:[#allocation3 + $0x1a0] sm:$0xff] %vm4666, %v4627
    %4681 = vst.msk [vmem:[#allocation3 + $0x1c0] sm:$0xff] %vm4666, %v4629
    %4682 = vst.msk [vmem:[#allocation3 + $0x1e0] sm:$0xff] %vm4666, %v4631
    %4683 = vst.msk [vmem:[#allocation3 + $0x200] sm:$0xff] %vm4666, %v4633
    %4684 = vst.msk [vmem:[#allocation3 + $0x220] sm:$0xff] %vm4666, %v4635
    %4685 = vst.msk [vmem:[#allocation3 + $0x240] sm:$0xff] %vm4666, %v4637
    %4686 = vst.msk [vmem:[#allocation3 + $0x260] sm:$0xff] %vm4666, %v4639
    %4687 = vst.msk [vmem:[#allocation3 + $0x280] sm:$0xff] %vm4666, %v4641
    %4688 = vst.msk [vmem:[#allocation3 + $0x2a0] sm:$0xff] %vm4666, %v4643
    %v4689 = vld [vmem:[#allocation2 + $0x8] sm:$0xff]
    %v4690 = vld [vmem:[#allocation2 + $0x10] sm:$0xff]
    %v4691 = vld [vmem:[#allocation2 + $0x18] sm:$0xff]
    %v4692 = vld [vmem:[#allocation2 + $0x20] sm:$0xff]
    %v4693 = vld [vmem:[#allocation2 + $0x28] sm:$0xff]
    %v4694 = vld [vmem:[#allocation2 + $0x30] sm:$0xff]
    %v4695 = vld [vmem:[#allocation2 + $0x38] sm:$0xff]
    %v4696 = vld [vmem:[#allocation2 + $0x40] sm:$0xff]
    %v4697 = vld [vmem:[#allocation2 + $0x48] sm:$0xff]
    %v4698 = vld [vmem:[#allocation2 + $0x50] sm:$0xff]
    %v4699 = vld [vmem:[#allocation2 + $0x58] sm:$0xff]
    %v4700 = vld [vmem:[#allocation2 + $0x60] sm:$0xff]
    %v4701 = vld [vmem:[#allocation2 + $0x68] sm:$0xff]
    %v4702 = vld [vmem:[#allocation2 + $0x70] sm:$0xff]
    %v4703 = vld [vmem:[#allocation2 + $0x78] sm:$0xff]
    %v4704 = vld [vmem:[#allocation2 + $0x80] sm:$0xff]
    %v4705 = vld [vmem:[#allocation2 + $0x88] sm:$0xff]
    %v4706 = vld [vmem:[#allocation2 + $0x90] sm:$0xff]
    %v4707 = vld [vmem:[#allocation2 + $0x98] sm:$0xff]
    %v4708 = vld [vmem:[#allocation2 + $0xa0] sm:$0xff]
    %v4709 = vld [vmem:[#allocation2 + $0xa8] sm:$0xff]
    %v4710 = vld [vmem:[#allocation2 + $0xb0] sm:$0xff]
    %v4711 = vmul.f32 %v4689, %v558
    %v4712 = vmul.f32 %v4690, %v562
    %v4713 = vmul.f32 %v4691, %v566
    %v4714 = vmul.f32 %v4692, %v570
    %v4715 = vmul.f32 %v4693, %v574
    %v4716 = vmul.f32 %v4694, %v578
    %v4717 = vmul.f32 %v4695, %v582
    %v4718 = vmul.f32 %v4696, %v586
    %v4719 = vmul.f32 %v4697, %v590
    %v4720 = vmul.f32 %v4698, %v594
    %v4721 = vmul.f32 %v4699, %v598
    %v4722 = vmul.f32 %v4700, %v602
    %v4723 = vmul.f32 %v4701, %v606
    %v4724 = vmul.f32 %v4702, %v610
    %v4725 = vmul.f32 %v4703, %v614
    %v4726 = vmul.f32 %v4704, %v618
    %v4727 = vmul.f32 %v4705, %v622
    %v4728 = vmul.f32 %v4706, %v626
    %v4729 = vmul.f32 %v4707, %v630
    %v4730 = vmul.f32 %v4708, %v634
    %v4731 = vmul.f32 %v4709, %v638
    %v4732 = vmul.f32 %v4710, %v642
    %4755 = vrot.lane.b32.xlu0 %v4711, 64
    %v4756 = vpop.permute.xlu0 %4755
    %4757 = vrot.lane.b32.xlu0 %v4712, 64
    %v4758 = vpop.permute.xlu0 %4757
    %4759 = vrot.lane.b32.xlu0 %v4713, 64
    %v4760 = vpop.permute.xlu0 %4759
    %4761 = vrot.lane.b32.xlu0 %v4714, 64
    %v4762 = vpop.permute.xlu0 %4761
    %4763 = vrot.lane.b32.xlu0 %v4715, 64
    %v4764 = vpop.permute.xlu0 %4763
    %4765 = vrot.lane.b32.xlu0 %v4716, 64
    %v4766 = vpop.permute.xlu0 %4765
    %4767 = vrot.lane.b32.xlu0 %v4717, 64
    %v4768 = vpop.permute.xlu0 %4767
    %4769 = vrot.lane.b32.xlu0 %v4718, 64
    %v4770 = vpop.permute.xlu0 %4769
    %4771 = vrot.lane.b32.xlu0 %v4719, 64
    %v4772 = vpop.permute.xlu0 %4771
    %4773 = vrot.lane.b32.xlu0 %v4720, 64
    %v4774 = vpop.permute.xlu0 %4773
    %4775 = vrot.lane.b32.xlu0 %v4721, 64
    %v4776 = vpop.permute.xlu0 %4775
    %4777 = vrot.lane.b32.xlu0 %v4722, 64
    %v4778 = vpop.permute.xlu0 %4777
    %4779 = vrot.lane.b32.xlu0 %v4723, 64
    %v4780 = vpop.permute.xlu0 %4779
    %4781 = vrot.lane.b32.xlu0 %v4724, 64
    %v4782 = vpop.permute.xlu0 %4781
    %4783 = vrot.lane.b32.xlu0 %v4725, 64
    %v4784 = vpop.permute.xlu0 %4783
    %4785 = vrot.lane.b32.xlu0 %v4726, 64
    %v4786 = vpop.permute.xlu0 %4785
    %4787 = vrot.lane.b32.xlu0 %v4727, 64
    %v4788 = vpop.permute.xlu0 %4787
    %4789 = vrot.lane.b32.xlu0 %v4728, 64
    %v4790 = vpop.permute.xlu0 %4789
    %4791 = vrot.lane.b32.xlu0 %v4729, 64
    %v4792 = vpop.permute.xlu0 %4791
    %4793 = vrot.lane.b32.xlu0 %v4730, 64
    %v4794 = vpop.permute.xlu0 %4793
    %4795 = vrot.lane.b32.xlu0 %v4731, 64
    %v4796 = vpop.permute.xlu0 %4795
    %4797 = vrot.lane.b32.xlu0 %v4732, 64
    %v4798 = vpop.permute.xlu0 %4797
    %vm4821 = vcmask 785920
    %4822 = vst.msk [vmem:[#allocation3] sm:$0xff] %vm4821, %v4756
    %4823 = vst.msk [vmem:[#allocation3 + $0x20] sm:$0xff] %vm4821, %v4758
    %4824 = vst.msk [vmem:[#allocation3 + $0x40] sm:$0xff] %vm4821, %v4760
    %4825 = vst.msk [vmem:[#allocation3 + $0x60] sm:$0xff] %vm4821, %v4762
    %4826 = vst.msk [vmem:[#allocation3 + $0x80] sm:$0xff] %vm4821, %v4764
    %4827 = vst.msk [vmem:[#allocation3 + $0xa0] sm:$0xff] %vm4821, %v4766
    %4828 = vst.msk [vmem:[#allocation3 + $0xc0] sm:$0xff] %vm4821, %v4768
    %4829 = vst.msk [vmem:[#allocation3 + $0xe0] sm:$0xff] %vm4821, %v4770
    %4830 = vst.msk [vmem:[#allocation3 + $0x100] sm:$0xff] %vm4821, %v4772
    %4831 = vst.msk [vmem:[#allocation3 + $0x120] sm:$0xff] %vm4821, %v4774
    %4832 = vst.msk [vmem:[#allocation3 + $0x140] sm:$0xff] %vm4821, %v4776
    %4833 = vst.msk [vmem:[#allocation3 + $0x160] sm:$0xff] %vm4821, %v4778
    %4834 = vst.msk [vmem:[#allocation3 + $0x180] sm:$0xff] %vm4821, %v4780
    %4835 = vst.msk [vmem:[#allocation3 + $0x1a0] sm:$0xff] %vm4821, %v4782
    %4836 = vst.msk [vmem:[#allocation3 + $0x1c0] sm:$0xff] %vm4821, %v4784
    %4837 = vst.msk [vmem:[#allocation3 + $0x1e0] sm:$0xff] %vm4821, %v4786
    %4838 = vst.msk [vmem:[#allocation3 + $0x200] sm:$0xff] %vm4821, %v4788
    %4839 = vst.msk [vmem:[#allocation3 + $0x220] sm:$0xff] %vm4821, %v4790
    %4840 = vst.msk [vmem:[#allocation3 + $0x240] sm:$0xff] %vm4821, %v4792
    %4841 = vst.msk [vmem:[#allocation3 + $0x260] sm:$0xff] %vm4821, %v4794
    %4842 = vst.msk [vmem:[#allocation3 + $0x280] sm:$0xff] %vm4821, %v4796
    %4843 = vst.msk [vmem:[#allocation3 + $0x2a0] sm:$0xff] %vm4821, %v4798
    %v4844 = vld [vmem:[#allocation2 + $0xf] sm:$0xff]
    %v4845 = vld [vmem:[#allocation2 + $0x17] sm:$0xff]
    %v4846 = vld [vmem:[#allocation2 + $0x1f] sm:$0xff]
    %v4847 = vld [vmem:[#allocation2 + $0x27] sm:$0xff]
    %v4848 = vld [vmem:[#allocation2 + $0x2f] sm:$0xff]
    %v4849 = vld [vmem:[#allocation2 + $0x37] sm:$0xff]
    %v4850 = vld [vmem:[#allocation2 + $0x3f] sm:$0xff]
    %v4851 = vld [vmem:[#allocation2 + $0x47] sm:$0xff]
    %v4852 = vld [vmem:[#allocation2 + $0x4f] sm:$0xff]
    %v4853 = vld [vmem:[#allocation2 + $0x57] sm:$0xff]
    %v4854 = vld [vmem:[#allocation2 + $0x5f] sm:$0xff]
    %v4855 = vld [vmem:[#allocation2 + $0x67] sm:$0xff]
    %v4856 = vld [vmem:[#allocation2 + $0x6f] sm:$0xff]
    %v4857 = vld [vmem:[#allocation2 + $0x77] sm:$0xff]
    %v4858 = vld [vmem:[#allocation2 + $0x7f] sm:$0xff]
    %v4859 = vld [vmem:[#allocation2 + $0x87] sm:$0xff]
    %v4860 = vld [vmem:[#allocation2 + $0x8f] sm:$0xff]
    %v4861 = vld [vmem:[#allocation2 + $0x97] sm:$0xff]
    %v4862 = vld [vmem:[#allocation2 + $0x9f] sm:$0xff]
    %v4863 = vld [vmem:[#allocation2 + $0xa7] sm:$0xff]
    %v4864 = vld [vmem:[#allocation2 + $0xaf] sm:$0xff]
    %v4865 = vld [vmem:[#allocation2 + $0xb7] sm:$0xff]
    %v4866 = vmul.f32 %v4844, %v801
    %v4867 = vmul.f32 %v4845, %v805
    %v4868 = vmul.f32 %v4846, %v809
    %v4869 = vmul.f32 %v4847, %v813
    %v4870 = vmul.f32 %v4848, %v817
    %v4871 = vmul.f32 %v4849, %v821
    %v4872 = vmul.f32 %v4850, %v825
    %v4873 = vmul.f32 %v4851, %v829
    %v4874 = vmul.f32 %v4852, %v833
    %v4875 = vmul.f32 %v4853, %v837
    %v4876 = vmul.f32 %v4854, %v841
    %v4877 = vmul.f32 %v4855, %v845
    %v4878 = vmul.f32 %v4856, %v849
    %v4879 = vmul.f32 %v4857, %v853
    %v4880 = vmul.f32 %v4858, %v857
    %v4881 = vmul.f32 %v4859, %v861
    %v4882 = vmul.f32 %v4860, %v865
    %v4883 = vmul.f32 %v4861, %v869
    %v4884 = vmul.f32 %v4862, %v873
    %v4885 = vmul.f32 %v4863, %v877
    %v4886 = vmul.f32 %v4864, %v881
    %v4887 = vmul.f32 %v4865, %v885
    %4910 = vrot.lane.b32.xlu0 %v4866, 96
    %v4911 = vpop.permute.xlu0 %4910
    %4912 = vrot.lane.b32.xlu0 %v4867, 96
    %v4913 = vpop.permute.xlu0 %4912
    %4914 = vrot.lane.b32.xlu0 %v4868, 96
    %v4915 = vpop.permute.xlu0 %4914
    %4916 = vrot.lane.b32.xlu0 %v4869, 96
    %v4917 = vpop.permute.xlu0 %4916
    %4918 = vrot.lane.b32.xlu0 %v4870, 96
    %v4919 = vpop.permute.xlu0 %4918
    %4920 = vrot.lane.b32.xlu0 %v4871, 96
    %v4921 = vpop.permute.xlu0 %4920
    %4922 = vrot.lane.b32.xlu0 %v4872, 96
    %v4923 = vpop.permute.xlu0 %4922
    %4924 = vrot.lane.b32.xlu0 %v4873, 96
    %v4925 = vpop.permute.xlu0 %4924
    %4926 = vrot.lane.b32.xlu0 %v4874, 96
    %v4927 = vpop.permute.xlu0 %4926
    %4928 = vrot.lane.b32.xlu0 %v4875, 96
    %v4929 = vpop.permute.xlu0 %4928
    %4930 = vrot.lane.b32.xlu0 %v4876, 96
    %v4931 = vpop.permute.xlu0 %4930
    %4932 = vrot.lane.b32.xlu0 %v4877, 96
    %v4933 = vpop.permute.xlu0 %4932
    %4934 = vrot.lane.b32.xlu0 %v4878, 96
    %v4935 = vpop.permute.xlu0 %4934
    %4936 = vrot.lane.b32.xlu0 %v4879, 96
    %v4937 = vpop.permute.xlu0 %4936
    %4938 = vrot.lane.b32.xlu0 %v4880, 96
    %v4939 = vpop.permute.xlu0 %4938
    %4940 = vrot.lane.b32.xlu0 %v4881, 96
    %v4941 = vpop.permute.xlu0 %4940
    %4942 = vrot.lane.b32.xlu0 %v4882, 96
    %v4943 = vpop.permute.xlu0 %4942
    %4944 = vrot.lane.b32.xlu0 %v4883, 96
    %v4945 = vpop.permute.xlu0 %4944
    %4946 = vrot.lane.b32.xlu0 %v4884, 96
    %v4947 = vpop.permute.xlu0 %4946
    %4948 = vrot.lane.b32.xlu0 %v4885, 96
    %v4949 = vpop.permute.xlu0 %4948
    %4950 = vrot.lane.b32.xlu0 %v4886, 96
    %v4951 = vpop.permute.xlu0 %4950
    %4952 = vrot.lane.b32.xlu0 %v4887, 96
    %v4953 = vpop.permute.xlu0 %4952
    %vm4976 = vcmask 1048320
    %4977 = vst.msk [vmem:[#allocation3] sm:$0xff] %vm4976, %v4911
    %4978 = vst.msk [vmem:[#allocation3 + $0x20] sm:$0xff] %vm4976, %v4913
    %4979 = vst.msk [vmem:[#allocation3 + $0x40] sm:$0xff] %vm4976, %v4915
    %4980 = vst.msk [vmem:[#allocation3 + $0x60] sm:$0xff] %vm4976, %v4917
    %4981 = vst.msk [vmem:[#allocation3 + $0x80] sm:$0xff] %vm4976, %v4919
    %4982 = vst.msk [vmem:[#allocation3 + $0xa0] sm:$0xff] %vm4976, %v4921
    %4983 = vst.msk [vmem:[#allocation3 + $0xc0] sm:$0xff] %vm4976, %v4923
    %4984 = vst.msk [vmem:[#allocation3 + $0xe0] sm:$0xff] %vm4976, %v4925
    %4985 = vst.msk [vmem:[#allocation3 + $0x100] sm:$0xff] %vm4976, %v4927
    %4986 = vst.msk [vmem:[#allocation3 + $0x120] sm:$0xff] %vm4976, %v4929
    %4987 = vst.msk [vmem:[#allocation3 + $0x140] sm:$0xff] %vm4976, %v4931
    %4988 = vst.msk [vmem:[#allocation3 + $0x160] sm:$0xff] %vm4976, %v4933
    %4989 = vst.msk [vmem:[#allocation3 + $0x180] sm:$0xff] %vm4976, %v4935
    %4990 = vst.msk [vmem:[#allocation3 + $0x1a0] sm:$0xff] %vm4976, %v4937
    %4991 = vst.msk [vmem:[#allocation3 + $0x1c0] sm:$0xff] %vm4976, %v4939
    %4992 = vst.msk [vmem:[#allocation3 + $0x1e0] sm:$0xff] %vm4976, %v4941
    %4993 = vst.msk [vmem:[#allocation3 + $0x200] sm:$0xff] %vm4976, %v4943
    %4994 = vst.msk [vmem:[#allocation3 + $0x220] sm:$0xff] %vm4976, %v4945
    %4995 = vst.msk [vmem:[#allocation3 + $0x240] sm:$0xff] %vm4976, %v4947
    %4996 = vst.msk [vmem:[#allocation3 + $0x260] sm:$0xff] %vm4976, %v4949
    %4997 = vst.msk [vmem:[#allocation3 + $0x280] sm:$0xff] %vm4976, %v4951
    %4998 = vst.msk [vmem:[#allocation3 + $0x2a0] sm:$0xff] %vm4976, %v4953
    %v4999 = vld [vmem:[#allocation2 + $0x10] sm:$0xff]
    %v5000 = vld [vmem:[#allocation2 + $0x18] sm:$0xff]
    %v5001 = vld [vmem:[#allocation2 + $0x20] sm:$0xff]
    %v5002 = vld [vmem:[#allocation2 + $0x28] sm:$0xff]
    %v5003 = vld [vmem:[#allocation2 + $0x30] sm:$0xff]
    %v5004 = vld [vmem:[#allocation2 + $0x38] sm:$0xff]
    %v5005 = vld [vmem:[#allocation2 + $0x40] sm:$0xff]
    %v5006 = vld [vmem:[#allocation2 + $0x48] sm:$0xff]
    %v5007 = vld [vmem:[#allocation2 + $0x50] sm:$0xff]
    %v5008 = vld [vmem:[#allocation2 + $0x58] sm:$0xff]
    %v5009 = vld [vmem:[#allocation2 + $0x60] sm:$0xff]
    %v5010 = vld [vmem:[#allocation2 + $0x68] sm:$0xff]
    %v5011 = vld [vmem:[#allocation2 + $0x70] sm:$0xff]
    %v5012 = vld [vmem:[#allocation2 + $0x78] sm:$0xff]
    %v5013 = vld [vmem:[#allocation2 + $0x80] sm:$0xff]
    %v5014 = vld [vmem:[#allocation2 + $0x88] sm:$0xff]
    %v5015 = vld [vmem:[#allocation2 + $0x90] sm:$0xff]
    %v5016 = vld [vmem:[#allocation2 + $0x98] sm:$0xff]
    %v5017 = vld [vmem:[#allocation2 + $0xa0] sm:$0xff]
    %v5018 = vld [vmem:[#allocation2 + $0xa8] sm:$0xff]
    %v5019 = vld [vmem:[#allocation2 + $0xb0] sm:$0xff]
    %v5020 = vld [vmem:[#allocation2 + $0xb8] sm:$0xff]
    %v5021 = vmul.f32 %v4999, %v1044
    %v5022 = vmul.f32 %v5000, %v1048
    %v5023 = vmul.f32 %v5001, %v1052
    %v5024 = vmul.f32 %v5002, %v1056
    %v5025 = vmul.f32 %v5003, %v1060
    %v5026 = vmul.f32 %v5004, %v1064
    %v5027 = vmul.f32 %v5005, %v1068
    %v5028 = vmul.f32 %v5006, %v1072
    %v5029 = vmul.f32 %v5007, %v1076
    %v5030 = vmul.f32 %v5008, %v1080
    %v5031 = vmul.f32 %v5009, %v1084
    %v5032 = vmul.f32 %v5010, %v1088
    %v5033 = vmul.f32 %v5011, %v1092
    %v5034 = vmul.f32 %v5012, %v1096
    %v5035 = vmul.f32 %v5013, %v1100
    %v5036 = vmul.f32 %v5014, %v1104
    %v5037 = vmul.f32 %v5015, %v1108
    %v5038 = vmul.f32 %v5016, %v1112
    %v5039 = vmul.f32 %v5017, %v1116
    %v5040 = vmul.f32 %v5018, %v1120
    %v5041 = vmul.f32 %v5019, %v1124
    %v5042 = vmul.f32 %v5020, %v1128
    %5043 = vst.msk [vmem:[#allocation3 + $0x8] sm:$0xff] %vm4261, %v5021
    %5044 = vst.msk [vmem:[#allocation3 + $0x28] sm:$0xff] %vm4261, %v5022
    %5045 = vst.msk [vmem:[#allocation3 + $0x48] sm:$0xff] %vm4261, %v5023
    %5046 = vst.msk [vmem:[#allocation3 + $0x68] sm:$0xff] %vm4261, %v5024
    %5047 = vst.msk [vmem:[#allocation3 + $0x88] sm:$0xff] %vm4261, %v5025
    %5048 = vst.msk [vmem:[#allocation3 + $0xa8] sm:$0xff] %vm4261, %v5026
    %5049 = vst.msk [vmem:[#allocation3 + $0xc8] sm:$0xff] %vm4261, %v5027
    %5050 = vst.msk [vmem:[#allocation3 + $0xe8] sm:$0xff] %vm4261, %v5028
    %5051 = vst.msk [vmem:[#allocation3 + $0x108] sm:$0xff] %vm4261, %v5029
    %5052 = vst.msk [vmem:[#allocation3 + $0x128] sm:$0xff] %vm4261, %v5030
    %5053 = vst.msk [vmem:[#allocation3 + $0x148] sm:$0xff] %vm4261, %v5031
    %5054 = vst.msk [vmem:[#allocation3 + $0x168] sm:$0xff] %vm4261, %v5032
    %5055 = vst.msk [vmem:[#allocation3 + $0x188] sm:$0xff] %vm4261, %v5033
    %5056 = vst.msk [vmem:[#allocation3 + $0x1a8] sm:$0xff] %vm4261, %v5034
    %5057 = vst.msk [vmem:[#allocation3 + $0x1c8] sm:$0xff] %vm4261, %v5035
    %5058 = vst.msk [vmem:[#allocation3 + $0x1e8] sm:$0xff] %vm4261, %v5036
    %5059 = vst.msk [vmem:[#allocation3 + $0x208] sm:$0xff] %vm4261, %v5037
    %5060 = vst.msk [vmem:[#allocation3 + $0x228] sm:$0xff] %vm4261, %v5038
    %5061 = vst.msk [vmem:[#allocation3 + $0x248] sm:$0xff] %vm4261, %v5039
    %5062 = vst.msk [vmem:[#allocation3 + $0x268] sm:$0xff] %vm4261, %v5040
    %5063 = vst.msk [vmem:[#allocation3 + $0x288] sm:$0xff] %vm4261, %v5041
    %5064 = vst.msk [vmem:[#allocation3 + $0x2a8] sm:$0xff] %vm4261, %v5042
    %v5065 = vld [vmem:[#allocation2 + $0x11] sm:$0xff]
    %v5066 = vld [vmem:[#allocation2 + $0x19] sm:$0xff]
    %v5067 = vld [vmem:[#allocation2 + $0x21] sm:$0xff]
    %v5068 = vld [vmem:[#allocation2 + $0x29] sm:$0xff]
    %v5069 = vld [vmem:[#allocation2 + $0x31] sm:$0xff]
    %v5070 = vld [vmem:[#allocation2 + $0x39] sm:$0xff]
    %v5071 = vld [vmem:[#allocation2 + $0x41] sm:$0xff]
    %v5072 = vld [vmem:[#allocation2 + $0x49] sm:$0xff]
    %v5073 = vld [vmem:[#allocation2 + $0x51] sm:$0xff]
    %v5074 = vld [vmem:[#allocation2 + $0x59] sm:$0xff]
    %v5075 = vld [vmem:[#allocation2 + $0x61] sm:$0xff]
    %v5076 = vld [vmem:[#allocation2 + $0x69] sm:$0xff]
    %v5077 = vld [vmem:[#allocation2 + $0x71] sm:$0xff]
    %v5078 = vld [vmem:[#allocation2 + $0x79] sm:$0xff]
    %v5079 = vld [vmem:[#allocation2 + $0x81] sm:$0xff]
    %v5080 = vld [vmem:[#allocation2 + $0x89] sm:$0xff]
    %v5081 = vld [vmem:[#allocation2 + $0x91] sm:$0xff]
    %v5082 = vld [vmem:[#allocation2 + $0x99] sm:$0xff]
    %v5083 = vld [vmem:[#allocation2 + $0xa1] sm:$0xff]
    %v5084 = vld [vmem:[#allocation2 + $0xa9] sm:$0xff]
    %v5085 = vld [vmem:[#allocation2 + $0xb1] sm:$0xff]
    %v5086 = vld [vmem:[#allocation2 + $0xb9] sm:$0xff]
    %v5087 = vmul.f32 %v5065, %v1287
    %v5088 = vmul.f32 %v5066, %v1291
    %v5089 = vmul.f32 %v5067, %v1295
    %v5090 = vmul.f32 %v5068, %v1299
    %v5091 = vmul.f32 %v5069, %v1303
    %v5092 = vmul.f32 %v5070, %v1307
    %v5093 = vmul.f32 %v5071, %v1311
    %v5094 = vmul.f32 %v5072, %v1315
    %v5095 = vmul.f32 %v5073, %v1319
    %v5096 = vmul.f32 %v5074, %v1323
    %v5097 = vmul.f32 %v5075, %v1327
    %v5098 = vmul.f32 %v5076, %v1331
    %v5099 = vmul.f32 %v5077, %v1335
    %v5100 = vmul.f32 %v5078, %v1339
    %v5101 = vmul.f32 %v5079, %v1343
    %v5102 = vmul.f32 %v5080, %v1347
    %v5103 = vmul.f32 %v5081, %v1351
    %v5104 = vmul.f32 %v5082, %v1355
    %v5105 = vmul.f32 %v5083, %v1359
    %v5106 = vmul.f32 %v5084, %v1363
    %v5107 = vmul.f32 %v5085, %v1367
    %v5108 = vmul.f32 %v5086, %v1371
    %5131 = vrot.lane.b32.xlu0 %v5087, 32
    %v5132 = vpop.permute.xlu0 %5131
    %5133 = vrot.lane.b32.xlu0 %v5088, 32
    %v5134 = vpop.permute.xlu0 %5133
    %5135 = vrot.lane.b32.xlu0 %v5089, 32
    %v5136 = vpop.permute.xlu0 %5135
    %5137 = vrot.lane.b32.xlu0 %v5090, 32
    %v5138 = vpop.permute.xlu0 %5137
    %5139 = vrot.lane.b32.xlu0 %v5091, 32
    %v5140 = vpop.permute.xlu0 %5139
    %5141 = vrot.lane.b32.xlu0 %v5092, 32
    %v5142 = vpop.permute.xlu0 %5141
    %5143 = vrot.lane.b32.xlu0 %v5093, 32
    %v5144 = vpop.permute.xlu0 %5143
    %5145 = vrot.lane.b32.xlu0 %v5094, 32
    %v5146 = vpop.permute.xlu0 %5145
    %5147 = vrot.lane.b32.xlu0 %v5095, 32
    %v5148 = vpop.permute.xlu0 %5147
    %5149 = vrot.lane.b32.xlu0 %v5096, 32
    %v5150 = vpop.permute.xlu0 %5149
    %5151 = vrot.lane.b32.xlu0 %v5097, 32
    %v5152 = vpop.permute.xlu0 %5151
    %5153 = vrot.lane.b32.xlu0 %v5098, 32
    %v5154 = vpop.permute.xlu0 %5153
    %5155 = vrot.lane.b32.xlu0 %v5099, 32
    %v5156 = vpop.permute.xlu0 %5155
    %5157 = vrot.lane.b32.xlu0 %v5100, 32
    %v5158 = vpop.permute.xlu0 %5157
    %5159 = vrot.lane.b32.xlu0 %v5101, 32
    %v5160 = vpop.permute.xlu0 %5159
    %5161 = vrot.lane.b32.xlu0 %v5102, 32
    %v5162 = vpop.permute.xlu0 %5161
    %5163 = vrot.lane.b32.xlu0 %v5103, 32
    %v5164 = vpop.permute.xlu0 %5163
    %5165 = vrot.lane.b32.xlu0 %v5104, 32
    %v5166 = vpop.permute.xlu0 %5165
    %5167 = vrot.lane.b32.xlu0 %v5105, 32
    %v5168 = vpop.permute.xlu0 %5167
    %5169 = vrot.lane.b32.xlu0 %v5106, 32
    %v5170 = vpop.permute.xlu0 %5169
    %5171 = vrot.lane.b32.xlu0 %v5107, 32
    %v5172 = vpop.permute.xlu0 %5171
    %5173 = vrot.lane.b32.xlu0 %v5108, 32
    %v5174 = vpop.permute.xlu0 %5173
    %5197 = vst.msk [vmem:[#allocation3 + $0x8] sm:$0xff] %vm4666, %v5132
    %5198 = vst.msk [vmem:[#allocation3 + $0x28] sm:$0xff] %vm4666, %v5134
    %5199 = vst.msk [vmem:[#allocation3 + $0x48] sm:$0xff] %vm4666, %v5136
    %5200 = vst.msk [vmem:[#allocation3 + $0x68] sm:$0xff] %vm4666, %v5138
    %5201 = vst.msk [vmem:[#allocation3 + $0x88] sm:$0xff] %vm4666, %v5140
    %5202 = vst.msk [vmem:[#allocation3 + $0xa8] sm:$0xff] %vm4666, %v5142
    %5203 = vst.msk [vmem:[#allocation3 + $0xc8] sm:$0xff] %vm4666, %v5144
    %5204 = vst.msk [vmem:[#allocation3 + $0xe8] sm:$0xff] %vm4666, %v5146
    %5205 = vst.msk [vmem:[#allocation3 + $0x108] sm:$0xff] %vm4666, %v5148
    %5206 = vst.msk [vmem:[#allocation3 + $0x128] sm:$0xff] %vm4666, %v5150
    %5207 = vst.msk [vmem:[#allocation3 + $0x148] sm:$0xff] %vm4666, %v5152
    %5208 = vst.msk [vmem:[#allocation3 + $0x168] sm:$0xff] %vm4666, %v5154
    %5209 = vst.msk [vmem:[#allocation3 + $0x188] sm:$0xff] %vm4666, %v5156
    %5210 = vst.msk [vmem:[#allocation3 + $0x1a8] sm:$0xff] %vm4666, %v5158
    %5211 = vst.msk [vmem:[#allocation3 + $0x1c8] sm:$0xff] %vm4666, %v5160
    %5212 = vst.msk [vmem:[#allocation3 + $0x1e8] sm:$0xff] %vm4666, %v5162
    %5213 = vst.msk [vmem:[#allocation3 + $0x208] sm:$0xff] %vm4666, %v5164
    %5214 = vst.msk [vmem:[#allocation3 + $0x228] sm:$0xff] %vm4666, %v5166
    %5215 = vst.msk [vmem:[#allocation3 + $0x248] sm:$0xff] %vm4666, %v5168
    %5216 = vst.msk [vmem:[#allocation3 + $0x268] sm:$0xff] %vm4666, %v5170
    %5217 = vst.msk [vmem:[#allocation3 + $0x288] sm:$0xff] %vm4666, %v5172
    %5218 = vst.msk [vmem:[#allocation3 + $0x2a8] sm:$0xff] %vm4666, %v5174
    %v5219 = vld [vmem:[#allocation2 + $0x18] sm:$0xff]
    %v5220 = vld [vmem:[#allocation2 + $0x20] sm:$0xff]
    %v5221 = vld [vmem:[#allocation2 + $0x28] sm:$0xff]
    %v5222 = vld [vmem:[#allocation2 + $0x30] sm:$0xff]
    %v5223 = vld [vmem:[#allocation2 + $0x38] sm:$0xff]
    %v5224 = vld [vmem:[#allocation2 + $0x40] sm:$0xff]
    %v5225 = vld [vmem:[#allocation2 + $0x48] sm:$0xff]
    %v5226 = vld [vmem:[#allocation2 + $0x50] sm:$0xff]
    %v5227 = vld [vmem:[#allocation2 + $0x58] sm:$0xff]
    %v5228 = vld [vmem:[#allocation2 + $0x60] sm:$0xff]
    %v5229 = vld [vmem:[#allocation2 + $0x68] sm:$0xff]
    %v5230 = vld [vmem:[#allocation2 + $0x70] sm:$0xff]
    %v5231 = vld [vmem:[#allocation2 + $0x78] sm:$0xff]
    %v5232 = vld [vmem:[#allocation2 + $0x80] sm:$0xff]
    %v5233 = vld [vmem:[#allocation2 + $0x88] sm:$0xff]
    %v5234 = vld [vmem:[#allocation2 + $0x90] sm:$0xff]
    %v5235 = vld [vmem:[#allocation2 + $0x98] sm:$0xff]
    %v5236 = vld [vmem:[#allocation2 + $0xa0] sm:$0xff]
    %v5237 = vld [vmem:[#allocation2 + $0xa8] sm:$0xff]
    %v5238 = vld [vmem:[#allocation2 + $0xb0] sm:$0xff]
    %v5239 = vld [vmem:[#allocation2 + $0xb8] sm:$0xff]
    %v5240 = vld [vmem:[#allocation2 + $0xc0] sm:$0xff]
    %v5241 = vmul.f32 %v5219, %v1530
    %v5242 = vmul.f32 %v5220, %v1534
    %v5243 = vmul.f32 %v5221, %v1538
    %v5244 = vmul.f32 %v5222, %v1542
    %v5245 = vmul.f32 %v5223, %v1546
    %v5246 = vmul.f32 %v5224, %v1550
    %v5247 = vmul.f32 %v5225, %v1554
    %v5248 = vmul.f32 %v5226, %v1558
    %v5249 = vmul.f32 %v5227, %v1562
    %v5250 = vmul.f32 %v5228, %v1566
    %v5251 = vmul.f32 %v5229, %v1570
    %v5252 = vmul.f32 %v5230, %v1574
    %v5253 = vmul.f32 %v5231, %v1578
    %v5254 = vmul.f32 %v5232, %v1582
    %v5255 = vmul.f32 %v5233, %v1586
    %v5256 = vmul.f32 %v5234, %v1590
    %v5257 = vmul.f32 %v5235, %v1594
    %v5258 = vmul.f32 %v5236, %v1598
    %v5259 = vmul.f32 %v5237, %v1602
    %v5260 = vmul.f32 %v5238, %v1606
    %v5261 = vmul.f32 %v5239, %v1610
    %v5262 = vmul.f32 %v5240, %v1614
    %5285 = vrot.lane.b32.xlu0 %v5241, 64
    %v5286 = vpop.permute.xlu0 %5285
    %5287 = vrot.lane.b32.xlu0 %v5242, 64
    %v5288 = vpop.permute.xlu0 %5287
    %5289 = vrot.lane.b32.xlu0 %v5243, 64
    %v5290 = vpop.permute.xlu0 %5289
    %5291 = vrot.lane.b32.xlu0 %v5244, 64
    %v5292 = vpop.permute.xlu0 %5291
    %5293 = vrot.lane.b32.xlu0 %v5245, 64
    %v5294 = vpop.permute.xlu0 %5293
    %5295 = vrot.lane.b32.xlu0 %v5246, 64
    %v5296 = vpop.permute.xlu0 %5295
    %5297 = vrot.lane.b32.xlu0 %v5247, 64
    %v5298 = vpop.permute.xlu0 %5297
    %5299 = vrot.lane.b32.xlu0 %v5248, 64
    %v5300 = vpop.permute.xlu0 %5299
    %5301 = vrot.lane.b32.xlu0 %v5249, 64
    %v5302 = vpop.permute.xlu0 %5301
    %5303 = vrot.lane.b32.xlu0 %v5250, 64
    %v5304 = vpop.permute.xlu0 %5303
    %5305 = vrot.lane.b32.xlu0 %v5251, 64
    %v5306 = vpop.permute.xlu0 %5305
    %5307 = vrot.lane.b32.xlu0 %v5252, 64
    %v5308 = vpop.permute.xlu0 %5307
    %5309 = vrot.lane.b32.xlu0 %v5253, 64
    %v5310 = vpop.permute.xlu0 %5309
    %5311 = vrot.lane.b32.xlu0 %v5254, 64
    %v5312 = vpop.permute.xlu0 %5311
    %5313 = vrot.lane.b32.xlu0 %v5255, 64
    %v5314 = vpop.permute.xlu0 %5313
    %5315 = vrot.lane.b32.xlu0 %v5256, 64
    %v5316 = vpop.permute.xlu0 %5315
    %5317 = vrot.lane.b32.xlu0 %v5257, 64
    %v5318 = vpop.permute.xlu0 %5317
    %5319 = vrot.lane.b32.xlu0 %v5258, 64
    %v5320 = vpop.permute.xlu0 %5319
    %5321 = vrot.lane.b32.xlu0 %v5259, 64
    %v5322 = vpop.permute.xlu0 %5321
    %5323 = vrot.lane.b32.xlu0 %v5260, 64
    %v5324 = vpop.permute.xlu0 %5323
    %5325 = vrot.lane.b32.xlu0 %v5261, 64
    %v5326 = vpop.permute.xlu0 %5325
    %5327 = vrot.lane.b32.xlu0 %v5262, 64
    %v5328 = vpop.permute.xlu0 %5327
    %5351 = vst.msk [vmem:[#allocation3 + $0x8] sm:$0xff] %vm4821, %v5286
    %5352 = vst.msk [vmem:[#allocation3 + $0x28] sm:$0xff] %vm4821, %v5288
    %5353 = vst.msk [vmem:[#allocation3 + $0x48] sm:$0xff] %vm4821, %v5290
    %5354 = vst.msk [vmem:[#allocation3 + $0x68] sm:$0xff] %vm4821, %v5292
    %5355 = vst.msk [vmem:[#allocation3 + $0x88] sm:$0xff] %vm4821, %v5294
    %5356 = vst.msk [vmem:[#allocation3 + $0xa8] sm:$0xff] %vm4821, %v5296
    %5357 = vst.msk [vmem:[#allocation3 + $0xc8] sm:$0xff] %vm4821, %v5298
    %5358 = vst.msk [vmem:[#allocation3 + $0xe8] sm:$0xff] %vm4821, %v5300
    %5359 = vst.msk [vmem:[#allocation3 + $0x108] sm:$0xff] %vm4821, %v5302
    %5360 = vst.msk [vmem:[#allocation3 + $0x128] sm:$0xff] %vm4821, %v5304
    %5361 = vst.msk [vmem:[#allocation3 + $0x148] sm:$0xff] %vm4821, %v5306
    %5362 = vst.msk [vmem:[#allocation3 + $0x168] sm:$0xff] %vm4821, %v5308
    %5363 = vst.msk [vmem:[#allocation3 + $0x188] sm:$0xff] %vm4821, %v5310
    %5364 = vst.msk [vmem:[#allocation3 + $0x1a8] sm:$0xff] %vm4821, %v5312
    %5365 = vst.msk [vmem:[#allocation3 + $0x1c8] sm:$0xff] %vm4821, %v5314
    %5366 = vst.msk [vmem:[#allocation3 + $0x1e8] sm:$0xff] %vm4821, %v5316
    %5367 = vst.msk [vmem:[#allocation3 + $0x208] sm:$0xff] %vm4821, %v5318
    %5368 = vst.msk [vmem:[#allocation3 + $0x228] sm:$0xff] %vm4821, %v5320
    %5369 = vst.msk [vmem:[#allocation3 + $0x248] sm:$0xff] %vm4821, %v5322
    %5370 = vst.msk [vmem:[#allocation3 + $0x268] sm:$0xff] %vm4821, %v5324
    %5371 = vst.msk [vmem:[#allocation3 + $0x288] sm:$0xff] %vm4821, %v5326
    %5372 = vst.msk [vmem:[#allocation3 + $0x2a8] sm:$0xff] %vm4821, %v5328
    %v5373 = vld [vmem:[#allocation2 + $0x19] sm:$0xff]
    %v5374 = vld [vmem:[#allocation2 + $0x21] sm:$0xff]
    %v5375 = vld [vmem:[#allocation2 + $0x29] sm:$0xff]
    %v5376 = vld [vmem:[#allocation2 + $0x31] sm:$0xff]
    %v5377 = vld [vmem:[#allocation2 + $0x39] sm:$0xff]
    %v5378 = vld [vmem:[#allocation2 + $0x41] sm:$0xff]
    %v5379 = vld [vmem:[#allocation2 + $0x49] sm:$0xff]
    %v5380 = vld [vmem:[#allocation2 + $0x51] sm:$0xff]
    %v5381 = vld [vmem:[#allocation2 + $0x59] sm:$0xff]
    %v5382 = vld [vmem:[#allocation2 + $0x61] sm:$0xff]
    %v5383 = vld [vmem:[#allocation2 + $0x69] sm:$0xff]
    %v5384 = vld [vmem:[#allocation2 + $0x71] sm:$0xff]
    %v5385 = vld [vmem:[#allocation2 + $0x79] sm:$0xff]
    %v5386 = vld [vmem:[#allocation2 + $0x81] sm:$0xff]
    %v5387 = vld [vmem:[#allocation2 + $0x89] sm:$0xff]
    %v5388 = vld [vmem:[#allocation2 + $0x91] sm:$0xff]
    %v5389 = vld [vmem:[#allocation2 + $0x99] sm:$0xff]
    %v5390 = vld [vmem:[#allocation2 + $0xa1] sm:$0xff]
    %v5391 = vld [vmem:[#allocation2 + $0xa9] sm:$0xff]
    %v5392 = vld [vmem:[#allocation2 + $0xb1] sm:$0xff]
    %v5393 = vld [vmem:[#allocation2 + $0xb9] sm:$0xff]
    %v5394 = vld [vmem:[#allocation2 + $0xc1] sm:$0xff]
    %v5395 = vmul.f32 %v5373, %v1773
    %v5396 = vmul.f32 %v5374, %v1777
    %v5397 = vmul.f32 %v5375, %v1781
    %v5398 = vmul.f32 %v5376, %v1785
    %v5399 = vmul.f32 %v5377, %v1789
    %v5400 = vmul.f32 %v5378, %v1793
    %v5401 = vmul.f32 %v5379, %v1797
    %v5402 = vmul.f32 %v5380, %v1801
    %v5403 = vmul.f32 %v5381, %v1805
    %v5404 = vmul.f32 %v5382, %v1809
    %v5405 = vmul.f32 %v5383, %v1813
    %v5406 = vmul.f32 %v5384, %v1817
    %v5407 = vmul.f32 %v5385, %v1821
    %v5408 = vmul.f32 %v5386, %v1825
    %v5409 = vmul.f32 %v5387, %v1829
    %v5410 = vmul.f32 %v5388, %v1833
    %v5411 = vmul.f32 %v5389, %v1837
    %v5412 = vmul.f32 %v5390, %v1841
    %v5413 = vmul.f32 %v5391, %v1845
    %v5414 = vmul.f32 %v5392, %v1849
    %v5415 = vmul.f32 %v5393, %v1853
    %v5416 = vmul.f32 %v5394, %v1857
    %5439 = vrot.lane.b32.xlu0 %v5395, 96
    %v5440 = vpop.permute.xlu0 %5439
    %5441 = vrot.lane.b32.xlu0 %v5396, 96
    %v5442 = vpop.permute.xlu0 %5441
    %5443 = vrot.lane.b32.xlu0 %v5397, 96
    %v5444 = vpop.permute.xlu0 %5443
    %5445 = vrot.lane.b32.xlu0 %v5398, 96
    %v5446 = vpop.permute.xlu0 %5445
    %5447 = vrot.lane.b32.xlu0 %v5399, 96
    %v5448 = vpop.permute.xlu0 %5447
    %5449 = vrot.lane.b32.xlu0 %v5400, 96
    %v5450 = vpop.permute.xlu0 %5449
    %5451 = vrot.lane.b32.xlu0 %v5401, 96
    %v5452 = vpop.permute.xlu0 %5451
    %5453 = vrot.lane.b32.xlu0 %v5402, 96
    %v5454 = vpop.permute.xlu0 %5453
    %5455 = vrot.lane.b32.xlu0 %v5403, 96
    %v5456 = vpop.permute.xlu0 %5455
    %5457 = vrot.lane.b32.xlu0 %v5404, 96
    %v5458 = vpop.permute.xlu0 %5457
    %5459 = vrot.lane.b32.xlu0 %v5405, 96
    %v5460 = vpop.permute.xlu0 %5459
    %5461 = vrot.lane.b32.xlu0 %v5406, 96
    %v5462 = vpop.permute.xlu0 %5461
    %5463 = vrot.lane.b32.xlu0 %v5407, 96
    %v5464 = vpop.permute.xlu0 %5463
    %5465 = vrot.lane.b32.xlu0 %v5408, 96
    %v5466 = vpop.permute.xlu0 %5465
    %5467 = vrot.lane.b32.xlu0 %v5409, 96
    %v5468 = vpop.permute.xlu0 %5467
    %5469 = vrot.lane.b32.xlu0 %v5410, 96
    %v5470 = vpop.permute.xlu0 %5469
    %5471 = vrot.lane.b32.xlu0 %v5411, 96
    %v5472 = vpop.permute.xlu0 %5471
    %5473 = vrot.lane.b32.xlu0 %v5412, 96
    %v5474 = vpop.permute.xlu0 %5473
    %5475 = vrot.lane.b32.xlu0 %v5413, 96
    %v5476 = vpop.permute.xlu0 %5475
    %5477 = vrot.lane.b32.xlu0 %v5414, 96
    %v5478 = vpop.permute.xlu0 %5477
    %5479 = vrot.lane.b32.xlu0 %v5415, 96
    %v5480 = vpop.permute.xlu0 %5479
    %5481 = vrot.lane.b32.xlu0 %v5416, 96
    %v5482 = vpop.permute.xlu0 %5481
    %5505 = vst.msk [vmem:[#allocation3 + $0x8] sm:$0xff] %vm4976, %v5440
    %5506 = vst.msk [vmem:[#allocation3 + $0x28] sm:$0xff] %vm4976, %v5442
    %5507 = vst.msk [vmem:[#allocation3 + $0x48] sm:$0xff] %vm4976, %v5444
    %5508 = vst.msk [vmem:[#allocation3 + $0x68] sm:$0xff] %vm4976, %v5446
    %5509 = vst.msk [vmem:[#allocation3 + $0x88] sm:$0xff] %vm4976, %v5448
    %5510 = vst.msk [vmem:[#allocation3 + $0xa8] sm:$0xff] %vm4976, %v5450
    %5511 = vst.msk [vmem:[#allocation3 + $0xc8] sm:$0xff] %vm4976, %v5452
    %5512 = vst.msk [vmem:[#allocation3 + $0xe8] sm:$0xff] %vm4976, %v5454
    %5513 = vst.msk [vmem:[#allocation3 + $0x108] sm:$0xff] %vm4976, %v5456
    %5514 = vst.msk [vmem:[#allocation3 + $0x128] sm:$0xff] %vm4976, %v5458
    %5515 = vst.msk [vmem:[#allocation3 + $0x148] sm:$0xff] %vm4976, %v5460
    %5516 = vst.msk [vmem:[#allocation3 + $0x168] sm:$0xff] %vm4976, %v5462
    %5517 = vst.msk [vmem:[#allocation3 + $0x188] sm:$0xff] %vm4976, %v5464
    %5518 = vst.msk [vmem:[#allocation3 + $0x1a8] sm:$0xff] %vm4976, %v5466
    %5519 = vst.msk [vmem:[#allocation3 + $0x1c8] sm:$0xff] %vm4976, %v5468
    %5520 = vst.msk [vmem:[#allocation3 + $0x1e8] sm:$0xff] %vm4976, %v5470
    %5521 = vst.msk [vmem:[#allocation3 + $0x208] sm:$0xff] %vm4976, %v5472
    %5522 = vst.msk [vmem:[#allocation3 + $0x228] sm:$0xff] %vm4976, %v5474
    %5523 = vst.msk [vmem:[#allocation3 + $0x248] sm:$0xff] %vm4976, %v5476
    %5524 = vst.msk [vmem:[#allocation3 + $0x268] sm:$0xff] %vm4976, %v5478
    %5525 = vst.msk [vmem:[#allocation3 + $0x288] sm:$0xff] %vm4976, %v5480
    %5526 = vst.msk [vmem:[#allocation3 + $0x2a8] sm:$0xff] %vm4976, %v5482
    %v5527 = vld [vmem:[#allocation2 + $0x1a] sm:$0xff]
    %v5528 = vld [vmem:[#allocation2 + $0x22] sm:$0xff]
    %v5529 = vld [vmem:[#allocation2 + $0x2a] sm:$0xff]
    %v5530 = vld [vmem:[#allocation2 + $0x32] sm:$0xff]
    %v5531 = vld [vmem:[#allocation2 + $0x3a] sm:$0xff]
    %v5532 = vld [vmem:[#allocation2 + $0x42] sm:$0xff]
    %v5533 = vld [vmem:[#allocation2 + $0x4a] sm:$0xff]
    %v5534 = vld [vmem:[#allocation2 + $0x52] sm:$0xff]
    %v5535 = vld [vmem:[#allocation2 + $0x5a] sm:$0xff]
    %v5536 = vld [vmem:[#allocation2 + $0x62] sm:$0xff]
    %v5537 = vld [vmem:[#allocation2 + $0x6a] sm:$0xff]
    %v5538 = vld [vmem:[#allocation2 + $0x72] sm:$0xff]
    %v5539 = vld [vmem:[#allocation2 + $0x7a] sm:$0xff]
    %v5540 = vld [vmem:[#allocation2 + $0x82] sm:$0xff]
    %v5541 = vld [vmem:[#allocation2 + $0x8a] sm:$0xff]
    %v5542 = vld [vmem:[#allocation2 + $0x92] sm:$0xff]
    %v5543 = vld [vmem:[#allocation2 + $0x9a] sm:$0xff]
    %v5544 = vld [vmem:[#allocation2 + $0xa2] sm:$0xff]
    %v5545 = vld [vmem:[#allocation2 + $0xaa] sm:$0xff]
    %v5546 = vld [vmem:[#allocation2 + $0xb2] sm:$0xff]
    %v5547 = vld [vmem:[#allocation2 + $0xba] sm:$0xff]
    %v5548 = vld [vmem:[#allocation2 + $0xc2] sm:$0xff]
    %v5549 = vmul.f32 %v5527, %v2016
    %v5550 = vmul.f32 %v5528, %v2020
    %v5551 = vmul.f32 %v5529, %v2024
    %v5552 = vmul.f32 %v5530, %v2028
    %v5553 = vmul.f32 %v5531, %v2032
    %v5554 = vmul.f32 %v5532, %v2036
    %v5555 = vmul.f32 %v5533, %v2040
    %v5556 = vmul.f32 %v5534, %v2044
    %v5557 = vmul.f32 %v5535, %v2048
    %v5558 = vmul.f32 %v5536, %v2052
    %v5559 = vmul.f32 %v5537, %v2056
    %v5560 = vmul.f32 %v5538, %v2060
    %v5561 = vmul.f32 %v5539, %v2064
    %v5562 = vmul.f32 %v5540, %v2068
    %v5563 = vmul.f32 %v5541, %v2072
    %v5564 = vmul.f32 %v5542, %v2076
    %v5565 = vmul.f32 %v5543, %v2080
    %v5566 = vmul.f32 %v5544, %v2084
    %v5567 = vmul.f32 %v5545, %v2088
    %v5568 = vmul.f32 %v5546, %v2092
    %v5569 = vmul.f32 %v5547, %v2096
    %v5570 = vmul.f32 %v5548, %v2100
    %5571 = vst.msk [vmem:[#allocation3 + $0x10] sm:$0xff] %vm4261, %v5549
    %5572 = vst.msk [vmem:[#allocation3 + $0x30] sm:$0xff] %vm4261, %v5550
    %5573 = vst.msk [vmem:[#allocation3 + $0x50] sm:$0xff] %vm4261, %v5551
    %5574 = vst.msk [vmem:[#allocation3 + $0x70] sm:$0xff] %vm4261, %v5552
    %5575 = vst.msk [vmem:[#allocation3 + $0x90] sm:$0xff] %vm4261, %v5553
    %5576 = vst.msk [vmem:[#allocation3 + $0xb0] sm:$0xff] %vm4261, %v5554
    %5577 = vst.msk [vmem:[#allocation3 + $0xd0] sm:$0xff] %vm4261, %v5555
    %5578 = vst.msk [vmem:[#allocation3 + $0xf0] sm:$0xff] %vm4261, %v5556
    %5579 = vst.msk [vmem:[#allocation3 + $0x110] sm:$0xff] %vm4261, %v5557
    %5580 = vst.msk [vmem:[#allocation3 + $0x130] sm:$0xff] %vm4261, %v5558
    %5581 = vst.msk [vmem:[#allocation3 + $0x150] sm:$0xff] %vm4261, %v5559
    %5582 = vst.msk [vmem:[#allocation3 + $0x170] sm:$0xff] %vm4261, %v5560
    %5583 = vst.msk [vmem:[#allocation3 + $0x190] sm:$0xff] %vm4261, %v5561
    %5584 = vst.msk [vmem:[#allocation3 + $0x1b0] sm:$0xff] %vm4261, %v5562
    %5585 = vst.msk [vmem:[#allocation3 + $0x1d0] sm:$0xff] %vm4261, %v5563
    %5586 = vst.msk [vmem:[#allocation3 + $0x1f0] sm:$0xff] %vm4261, %v5564
    %5587 = vst.msk [vmem:[#allocation3 + $0x210] sm:$0xff] %vm4261, %v5565
    %5588 = vst.msk [vmem:[#allocation3 + $0x230] sm:$0xff] %vm4261, %v5566
    %5589 = vst.msk [vmem:[#allocation3 + $0x250] sm:$0xff] %vm4261, %v5567
    %5590 = vst.msk [vmem:[#allocation3 + $0x270] sm:$0xff] %vm4261, %v5568
    %5591 = vst.msk [vmem:[#allocation3 + $0x290] sm:$0xff] %vm4261, %v5569
    %5592 = vst.msk [vmem:[#allocation3 + $0x2b0] sm:$0xff] %vm4261, %v5570
    %v5593 = vld [vmem:[#allocation3] sm:$0xff]
    %v5594 = vld [vmem:[#allocation3 + $0x8] sm:$0xff]
    %v5595 = vld [vmem:[#allocation3 + $0x10] sm:$0xff]
    %v5596 = vld [vmem:[#allocation3 + $0x20] sm:$0xff]
    %v5597 = vld [vmem:[#allocation3 + $0x28] sm:$0xff]
    %v5598 = vld [vmem:[#allocation3 + $0x30] sm:$0xff]
    %v5599 = vld [vmem:[#allocation3 + $0x40] sm:$0xff]
    %v5600 = vld [vmem:[#allocation3 + $0x48] sm:$0xff]
    %v5601 = vld [vmem:[#allocation3 + $0x50] sm:$0xff]
    %v5602 = vld [vmem:[#allocation3 + $0x60] sm:$0xff]
    %v5603 = vld [vmem:[#allocation3 + $0x68] sm:$0xff]
    %v5604 = vld [vmem:[#allocation3 + $0x70] sm:$0xff]
    %v5605 = vld [vmem:[#allocation3 + $0x80] sm:$0xff]
    %v5606 = vld [vmem:[#allocation3 + $0x88] sm:$0xff]
    %v5607 = vld [vmem:[#allocation3 + $0x90] sm:$0xff]
    %v5608 = vld [vmem:[#allocation3 + $0xa0] sm:$0xff]
    %v5609 = vld [vmem:[#allocation3 + $0xa8] sm:$0xff]
    %v5610 = vld [vmem:[#allocation3 + $0xb0] sm:$0xff]
    %v5611 = vld [vmem:[#allocation3 + $0xc0] sm:$0xff]
    %v5612 = vld [vmem:[#allocation3 + $0xc8] sm:$0xff]
    %v5613 = vld [vmem:[#allocation3 + $0xd0] sm:$0xff]
    %v5614 = vld [vmem:[#allocation3 + $0xe0] sm:$0xff]
    %v5615 = vld [vmem:[#allocation3 + $0xe8] sm:$0xff]
    %v5616 = vld [vmem:[#allocation3 + $0xf0] sm:$0xff]
    %v5617 = vld [vmem:[#allocation3 + $0x100] sm:$0xff]
    %v5618 = vld [vmem:[#allocation3 + $0x108] sm:$0xff]
    %v5619 = vld [vmem:[#allocation3 + $0x110] sm:$0xff]
    %v5620 = vld [vmem:[#allocation3 + $0x120] sm:$0xff]
    %v5621 = vld [vmem:[#allocation3 + $0x128] sm:$0xff]
    %v5622 = vld [vmem:[#allocation3 + $0x130] sm:$0xff]
    %v5623 = vld [vmem:[#allocation3 + $0x140] sm:$0xff]
    %v5624 = vld [vmem:[#allocation3 + $0x148] sm:$0xff]
    %v5625 = vld [vmem:[#allocation3 + $0x150] sm:$0xff]
    %v5626 = vld [vmem:[#allocation3 + $0x160] sm:$0xff]
    %v5627 = vld [vmem:[#allocation3 + $0x168] sm:$0xff]
    %v5628 = vld [vmem:[#allocation3 + $0x170] sm:$0xff]
    %v5629 = vld [vmem:[#allocation3 + $0x180] sm:$0xff]
    %v5630 = vld [vmem:[#allocation3 + $0x188] sm:$0xff]
    %v5631 = vld [vmem:[#allocation3 + $0x190] sm:$0xff]
    %v5632 = vld [vmem:[#allocation3 + $0x1a0] sm:$0xff]
    %v5633 = vld [vmem:[#allocation3 + $0x1a8] sm:$0xff]
    %v5634 = vld [vmem:[#allocation3 + $0x1b0] sm:$0xff]
    %v5635 = vld [vmem:[#allocation3 + $0x1c0] sm:$0xff]
    %v5636 = vld [vmem:[#allocation3 + $0x1c8] sm:$0xff]
    %v5637 = vld [vmem:[#allocation3 + $0x1d0] sm:$0xff]
    %v5638 = vld [vmem:[#allocation3 + $0x1e0] sm:$0xff]
    %v5639 = vld [vmem:[#allocation3 + $0x1e8] sm:$0xff]
    %v5640 = vld [vmem:[#allocation3 + $0x1f0] sm:$0xff]
    %v5641 = vld [vmem:[#allocation3 + $0x200] sm:$0xff]
    %v5642 = vld [vmem:[#allocation3 + $0x208] sm:$0xff]
    %v5643 = vld [vmem:[#allocation3 + $0x210] sm:$0xff]
    %v5644 = vld [vmem:[#allocation3 + $0x220] sm:$0xff]
    %v5645 = vld [vmem:[#allocation3 + $0x228] sm:$0xff]
    %v5646 = vld [vmem:[#allocation3 + $0x230] sm:$0xff]
    %v5647 = vld [vmem:[#allocation3 + $0x240] sm:$0xff]
    %v5648 = vld [vmem:[#allocation3 + $0x248] sm:$0xff]
    %v5649 = vld [vmem:[#allocation3 + $0x250] sm:$0xff]
    %v5650 = vld [vmem:[#allocation3 + $0x260] sm:$0xff]
    %v5651 = vld [vmem:[#allocation3 + $0x268] sm:$0xff]
    %v5652 = vld [vmem:[#allocation3 + $0x270] sm:$0xff]
    %v5653 = vld [vmem:[#allocation3 + $0x280] sm:$0xff]
    %v5654 = vld [vmem:[#allocation3 + $0x288] sm:$0xff]
    %v5655 = vld [vmem:[#allocation3 + $0x290] sm:$0xff]
    %v5656 = vld [vmem:[#allocation3 + $0x2a0] sm:$0xff]
    %v5657 = vld [vmem:[#allocation3 + $0x2a8] sm:$0xff]
    %v5658 = vld [vmem:[#allocation3 + $0x2b0] sm:$0xff]
    %v5659 = vpack.c.bf16 %v5596, %v5593
    %v5660 = vpack.c.bf16 %v5597, %v5594
    %v5661 = vpack.c.bf16 %v5598, %v5595
    %v5662 = vpack.c.bf16 %v5602, %v5599
    %v5663 = vpack.c.bf16 %v5603, %v5600
    %v5664 = vpack.c.bf16 %v5604, %v5601
    %v5665 = vpack.c.bf16 %v5608, %v5605
    %v5666 = vpack.c.bf16 %v5609, %v5606
    %v5667 = vpack.c.bf16 %v5610, %v5607
    %v5668 = vpack.c.bf16 %v5614, %v5611
    %v5669 = vpack.c.bf16 %v5615, %v5612
    %v5670 = vpack.c.bf16 %v5616, %v5613
    %v5671 = vpack.c.bf16 %v5620, %v5617
    %v5672 = vpack.c.bf16 %v5621, %v5618
    %v5673 = vpack.c.bf16 %v5622, %v5619
    %v5674 = vpack.c.bf16 %v5626, %v5623
    %v5675 = vpack.c.bf16 %v5627, %v5624
    %v5676 = vpack.c.bf16 %v5628, %v5625
    %v5677 = vpack.c.bf16 %v5632, %v5629
    %v5678 = vpack.c.bf16 %v5633, %v5630
    %v5679 = vpack.c.bf16 %v5634, %v5631
    %v5680 = vpack.c.bf16 %v5638, %v5635
    %v5681 = vpack.c.bf16 %v5639, %v5636
    %v5682 = vpack.c.bf16 %v5640, %v5637
    %v5683 = vpack.c.bf16 %v5644, %v5641
    %v5684 = vpack.c.bf16 %v5645, %v5642
    %v5685 = vpack.c.bf16 %v5646, %v5643
    %v5686 = vpack.c.bf16 %v5650, %v5647
    %v5687 = vpack.c.bf16 %v5651, %v5648
    %v5688 = vpack.c.bf16 %v5652, %v5649
    %v5689 = vpack.c.bf16 %v5656, %v5653
    %v5690 = vpack.c.bf16 %v5657, %v5654
    %v5691 = vpack.c.bf16 %v5658, %v5655
    %v5692 = vld [vmem:[%s6] sm:$0xf]
    %v5693 = vld [vmem:[%s6 + $0x4] sm:$0xf]
    %v5694 = vld [vmem:[%s6 + $0x8] sm:$0xf]
    %v5695 = vld [vmem:[%s6 + $0xc] sm:$0xf]
    %v5696 = vld [vmem:[%s6 + $0x10] sm:$0xf]
    %v5697 = vld [vmem:[%s6 + $0x14] sm:$0xf]
    %v5698 = vld [vmem:[%s6 + $0x18] sm:$0xf]
    %v5699 = vld [vmem:[%s6 + $0x1c] sm:$0xf]
    %v5700 = vld [vmem:[%s6 + $0x20] sm:$0xf]
    %v5701 = vld [vmem:[%s6 + $0x24] sm:$0xf]
    %v5702 = vld [vmem:[%s6 + $0x28] sm:$0xf]
    %v5703 = vld [vmem:[%s6 + $0x2c] sm:$0xf]
    %v5704 = vld [vmem:[%s6 + $0x30] sm:$0xf]
    %v5705 = vld [vmem:[%s6 + $0x34] sm:$0xf]
    %v5706 = vld [vmem:[%s6 + $0x38] sm:$0xf]
    %v5707 = vld [vmem:[%s6 + $0x3c] sm:$0xf]
    %v5708 = vld [vmem:[%s6 + $0x40] sm:$0xf]
    %v5709 = vld [vmem:[%s6 + $0x44] sm:$0xf]
    %v5710 = vld [vmem:[%s6 + $0x48] sm:$0xf]
    %v5711 = vld [vmem:[%s6 + $0x4c] sm:$0xf]
    %v5712 = vld [vmem:[%s6 + $0x50] sm:$0xf]
    %v5713 = vld [vmem:[%s6 + $0x54] sm:$0xf]
    %v5714 = vld [vmem:[%s6 + $0x58] sm:$0xf]
    %v5715 = vld [vmem:[%s6 + $0x5c] sm:$0xf]
    %v5716 = vld [vmem:[%s6 + $0x60] sm:$0xf]
    %v5717 = vld [vmem:[%s6 + $0x64] sm:$0xf]
    %v5718 = vld [vmem:[%s6 + $0x68] sm:$0xf]
    %v5719 = vld [vmem:[%s6 + $0x6c] sm:$0xf]
    %v5720 = vld [vmem:[%s6 + $0x70] sm:$0xf]
    %v5721 = vld [vmem:[%s6 + $0x74] sm:$0xf]
    %v5722 = vld [vmem:[%s6 + $0x78] sm:$0xf]
    %v5723 = vld [vmem:[%s6 + $0x7c] sm:$0xf]
    %v5724 = vld [vmem:[%s6 + $0x80] sm:$0xf]
    %v5725 = vld [vmem:[%s6 + $0x84] sm:$0xf]
    %v5726 = vld [vmem:[%s6 + $0x88] sm:$0xf]
    %v5727 = vld [vmem:[%s6 + $0x8c] sm:$0xf]
    %v5728 = vld [vmem:[%s7] sm:$0x1]
    %v5729 = vlaneseq
    %v5730 = vshrl.u32 %v5729, 7
    %v5731 = vsub.s32 0, %v5730
    %v5732 = vrot.slane %v5728, %v5731
    %v5769 = vunpack.c.l.b16 %v5692
    %v5770 = vunpack.c.l.b16 %v5693
    %v5771 = vunpack.c.l.b16 %v5694
    %v5772 = vunpack.c.l.b16 %v5695
    %v5773 = vunpack.c.l.b16 %v5696
    %v5774 = vunpack.c.l.b16 %v5697
    %v5775 = vunpack.c.l.b16 %v5698
    %v5776 = vunpack.c.l.b16 %v5699
    %v5777 = vunpack.c.l.b16 %v5700
    %v5778 = vunpack.c.l.b16 %v5701
    %v5779 = vunpack.c.l.b16 %v5702
    %v5780 = vunpack.c.l.b16 %v5703
    %v5781 = vunpack.c.l.b16 %v5704
    %v5782 = vunpack.c.l.b16 %v5705
    %v5783 = vunpack.c.l.b16 %v5706
    %v5784 = vunpack.c.l.b16 %v5707
    %v5785 = vunpack.c.l.b16 %v5708
    %v5786 = vunpack.c.l.b16 %v5709
    %v5787 = vunpack.c.l.b16 %v5710
    %v5788 = vunpack.c.l.b16 %v5711
    %v5789 = vunpack.c.l.b16 %v5712
    %v5790 = vunpack.c.l.b16 %v5713
    %v5791 = vunpack.c.l.b16 %v5714
    %v5792 = vunpack.c.l.b16 %v5715
    %v5793 = vunpack.c.l.b16 %v5716
    %v5794 = vunpack.c.l.b16 %v5717
    %v5795 = vunpack.c.l.b16 %v5718
    %v5796 = vunpack.c.l.b16 %v5719
    %v5797 = vunpack.c.l.b16 %v5720
    %v5798 = vunpack.c.l.b16 %v5721
    %v5799 = vunpack.c.l.b16 %v5722
    %v5800 = vunpack.c.l.b16 %v5723
    %v5801 = vunpack.c.l.b16 %v5724
    %v5802 = vunpack.c.l.b16 %v5725
    %v5803 = vunpack.c.l.b16 %v5726
    %v5804 = vunpack.c.l.b16 %v5727
    %v5805 = vpack.c.b16 %v5770, %v5769
    %v5806 = vpack.c.b16 %v5772, %v5771
    %v5807 = vpack.c.b16 %v5774, %v5773
    %v5808 = vpack.c.b16 %v5776, %v5775
    %v5809 = vpack.c.b16 %v5778, %v5777
    %v5810 = vpack.c.b16 %v5780, %v5779
    %v5811 = vpack.c.b16 %v5782, %v5781
    %v5812 = vpack.c.b16 %v5784, %v5783
    %v5813 = vpack.c.b16 %v5786, %v5785
    %v5814 = vpack.c.b16 %v5788, %v5787
    %v5815 = vpack.c.b16 %v5790, %v5789
    %v5816 = vpack.c.b16 %v5792, %v5791
    %v5817 = vpack.c.b16 %v5794, %v5793
    %v5818 = vpack.c.b16 %v5796, %v5795
    %v5819 = vpack.c.b16 %v5798, %v5797
    %v5820 = vpack.c.b16 %v5800, %v5799
    %v5821 = vpack.c.b16 %v5802, %v5801
    %v5822 = vpack.c.b16 %v5804, %v5803
    %v5842 = vsel %vm4261, %v5661, 0
    %v5845 = vsel %vm4261, %v5664, 0
    %v5848 = vsel %vm4261, %v5667, 0
    %v5851 = vsel %vm4261, %v5670, 0
    %v5854 = vsel %vm4261, %v5673, 0
    %v5857 = vsel %vm4261, %v5676, 0
    %v5860 = vsel %vm4261, %v5679, 0
    %v5863 = vsel %vm4261, %v5682, 0
    %v5866 = vsel %vm4261, %v5685, 0
    %v5869 = vsel %vm4261, %v5688, 0
    %v5872 = vsel %vm4261, %v5691, 0
    %5874 = vmatprep.subr.bf16.mxu0 0
    %5875 = vmatpush1.bf16.msra.mxu0 %v5805
    %5876 = vmatprep.subr.bf16.mxu0 0
    %5877 = vmatpush1.bf16.msra.mxu0 %v5806
    %5878 = vmatprep.subr.bf16.mxu0 0
    %5879 = vmatpush1.bf16.msra.mxu0 %v5807
    %5880 = vmatprep.subr.bf16.mxu0 0
    %5881 = vmatpush1.bf16.msra.mxu0 %v5808
    %5882 = vmatprep.subr.bf16.mxu0 0
    %5883 = vmatpush1.bf16.msra.mxu0 %v5809
    %5884 = vmatprep.subr.bf16.mxu0 0
    %5885 = vmatpush1.bf16.msra.mxu0 %v5810
    %5886 = vmatprep.subr.bf16.mxu0 0
    %5887 = vmatpush1.bf16.msra.mxu0 %v5811
    %5888 = vmatprep.subr.bf16.mxu0 0
    %5889 = vmatpush1.bf16.msra.mxu0 %v5812
    %5890 = vmatprep.subr.bf16.mxu0 0
    %5891 = vmatpush1.bf16.msra.mxu0 %v5813
    %5892 = vmatprep.subr.bf16.mxu0 0
    %5893 = vmatpush1.bf16.msra.mxu0 %v5814
    %5894 = vmatprep.subr.bf16.mxu0 0
    %5895 = vmatpush1.bf16.msra.mxu0 %v5815
    %5896 = vmatprep.subr.bf16.mxu0 0
    %5897 = vmatpush1.bf16.msra.mxu0 %v5816
    %5898 = vmatprep.subr.bf16.mxu0 0
    %5899 = vmatpush1.bf16.msra.mxu0 %v5817
    %5900 = vmatprep.subr.bf16.mxu0 0
    %5901 = vmatpush1.bf16.msra.mxu0 %v5818
    %5902 = vmatprep.subr.bf16.mxu0 0
    %5903 = vmatpush1.bf16.msra.mxu0 %v5819
    %5904 = vmatprep.subr.bf16.mxu0 0
    %5905 = vmatpush1.bf16.msra.mxu0 %v5820
    %5906 = vmatprep.mubr.bf16.mxu0 %v5660
    %5907 = vmatmul.mubr.bf16.gmra.mrb[0].mxu0 %v5659
    %v5908 = vpop.f32.mrb[0].mxu0
    %v5909 = vadd.f32 %v5732, %v5908
    %v5910 = vpop.f32.mrb[0].mxu0
    %v5911 = vpop.f32.mrb[0].mxu0
    %v5912 = vadd.f32 %v5732, %v5911
    %v5913 = vpop.f32.mrb[0].mxu0
    %5914 = vmatprep.mubr.bf16.mxu0 %v5663
    %5915 = vmatmul.mubr.bf16.gmra.mrb[0].mxu0 %v5662
    %v5916 = vpop.f32.mrb[0].mxu0
    %v5917 = vadd.f32 %v5732, %v5916
    %v5918 = vpop.f32.mrb[0].mxu0
    %v5919 = vpop.f32.mrb[0].mxu0
    %v5920 = vadd.f32 %v5732, %v5919
    %v5921 = vpop.f32.mrb[0].mxu0
    %5922 = vmatprep.mubr.bf16.mxu0 %v5666
    %5923 = vmatmul.mubr.bf16.gmra.mrb[0].mxu0 %v5665
    %v5924 = vpop.f32.mrb[0].mxu0
    %v5925 = vadd.f32 %v5732, %v5924
    %v5926 = vpop.f32.mrb[0].mxu0
    %v5927 = vpop.f32.mrb[0].mxu0
    %v5928 = vadd.f32 %v5732, %v5927
    %v5929 = vpop.f32.mrb[0].mxu0
    %5930 = vmatprep.mubr.bf16.mxu0 %v5669
    %5931 = vmatmul.mubr.bf16.gmra.mrb[0].mxu0 %v5668
    %v5932 = vpop.f32.mrb[0].mxu0
    %v5933 = vadd.f32 %v5732, %v5932
    %v5934 = vpop.f32.mrb[0].mxu0
    %v5935 = vpop.f32.mrb[0].mxu0
    %v5936 = vadd.f32 %v5732, %v5935
    %v5937 = vpop.f32.mrb[0].mxu0
    %5938 = vmatprep.mubr.bf16.mxu0 %v5672
    %5939 = vmatmul.mubr.bf16.gmra.mrb[0].mxu0 %v5671
    %v5940 = vpop.f32.mrb[0].mxu0
    %v5941 = vadd.f32 %v5732, %v5940
    %v5942 = vpop.f32.mrb[0].mxu0
    %v5943 = vpop.f32.mrb[0].mxu0
    %v5944 = vadd.f32 %v5732, %v5943
    %v5945 = vpop.f32.mrb[0].mxu0
    %5946 = vmatprep.mubr.bf16.mxu0 %v5675
    %5947 = vmatmul.mubr.bf16.gmra.mrb[0].mxu0 %v5674
    %v5948 = vpop.f32.mrb[0].mxu0
    %v5949 = vadd.f32 %v5732, %v5948
    %v5950 = vpop.f32.mrb[0].mxu0
    %v5951 = vpop.f32.mrb[0].mxu0
    %v5952 = vadd.f32 %v5732, %v5951
    %v5953 = vpop.f32.mrb[0].mxu0
    %5954 = vmatprep.mubr.bf16.mxu0 %v5678
    %5955 = vmatmul.mubr.bf16.gmra.mrb[0].mxu0 %v5677
    %v5956 = vpop.f32.mrb[0].mxu0
    %v5957 = vadd.f32 %v5732, %v5956
    %v5958 = vpop.f32.mrb[0].mxu0
    %v5959 = vpop.f32.mrb[0].mxu0
    %v5960 = vadd.f32 %v5732, %v5959
    %v5961 = vpop.f32.mrb[0].mxu0
    %5962 = vmatprep.mubr.bf16.mxu0 %v5681
    %5963 = vmatmul.mubr.bf16.gmra.mrb[0].mxu0 %v5680
    %v5964 = vpop.f32.mrb[0].mxu0
    %v5965 = vadd.f32 %v5732, %v5964
    %v5966 = vpop.f32.mrb[0].mxu0
    %v5967 = vpop.f32.mrb[0].mxu0
    %v5968 = vadd.f32 %v5732, %v5967
    %v5969 = vpop.f32.mrb[0].mxu0
    %5970 = vmatprep.mubr.bf16.mxu0 %v5684
    %5971 = vmatmul.mubr.bf16.gmra.mrb[0].mxu0 %v5683
    %v5972 = vpop.f32.mrb[0].mxu0
    %v5973 = vadd.f32 %v5732, %v5972
    %v5974 = vpop.f32.mrb[0].mxu0
    %v5975 = vpop.f32.mrb[0].mxu0
    %v5976 = vadd.f32 %v5732, %v5975
    %v5977 = vpop.f32.mrb[0].mxu0
    %5978 = vmatprep.mubr.bf16.mxu0 %v5687
    %5979 = vmatmul.mubr.bf16.gmra.mrb[0].mxu0 %v5686
    %v5980 = vpop.f32.mrb[0].mxu0
    %v5981 = vadd.f32 %v5732, %v5980
    %v5982 = vpop.f32.mrb[0].mxu0
    %v5983 = vpop.f32.mrb[0].mxu0
    %v5984 = vadd.f32 %v5732, %v5983
    %v5985 = vpop.f32.mrb[0].mxu0
    %5986 = vmatprep.mubr.bf16.mxu0 %v5690
    %5987 = vmatmul.mubr.bf16.gmra.mrb[0].mxu0 %v5689
    %v5988 = vpop.f32.mrb[0].mxu0
    %v5989 = vadd.f32 %v5732, %v5988
    %v5990 = vpop.f32.mrb[0].mxu0
    %v5991 = vpop.f32.mrb[0].mxu0
    %v5992 = vadd.f32 %v5732, %v5991
    %v5993 = vpop.f32.mrb[0].mxu0
    %5994 = vdwg.mxu0
    %5995 = vmatprep.subr.bf16.mxu0 0
    %5996 = vmatpush1.bf16.msra.mxu0 %v5821
    %5997 = vmatprep.subr.bf16.mxu0 0
    %5998 = vmatpush1.bf16.msra.mxu0 %v5822
    %5999 = vmatprep.subr.bf16.mxu0 0
    %6000 = vmatpush1.bf16.msra.mxu0 0
    %6001 = vmatprep.subr.bf16.mxu0 0
    %6002 = vmatpush1.bf16.msra.mxu0 0
    %6003 = vmatprep.subr.bf16.mxu0 0
    %6004 = vmatpush1.bf16.msra.mxu0 0
    %6005 = vmatprep.subr.bf16.mxu0 0
    %6006 = vmatpush1.bf16.msra.mxu0 0
    %6007 = vmatprep.subr.bf16.mxu0 0
    %6008 = vmatpush1.bf16.msra.mxu0 0
    %6009 = vmatprep.subr.bf16.mxu0 0
    %6010 = vmatpush1.bf16.msra.mxu0 0
    %6011 = vmatprep.subr.bf16.mxu0 0
    %6012 = vmatpush1.bf16.msra.mxu0 0
    %6013 = vmatprep.subr.bf16.mxu0 0
    %6014 = vmatpush1.bf16.msra.mxu0 0
    %6015 = vmatprep.subr.bf16.mxu0 0
    %6016 = vmatpush1.bf16.msra.mxu0 0
    %6017 = vmatprep.subr.bf16.mxu0 0
    %6018 = vmatpush1.bf16.msra.mxu0 0
    %6019 = vmatprep.subr.bf16.mxu0 0
    %6020 = vmatpush1.bf16.msra.mxu0 0
    %6021 = vmatprep.subr.bf16.mxu0 0
    %6022 = vmatpush1.bf16.msra.mxu0 0
    %6023 = vmatprep.subr.bf16.mxu0 0
    %6024 = vmatpush1.bf16.msra.mxu0 0
    %6025 = vmatprep.subr.bf16.mxu0 0
    %6026 = vmatpush1.bf16.msra.mxu0 0
    %6027 = vmatprep.mubr.bf16.mxu0 0
    %6028 = vmatmul.mubr.bf16.gmra.mrb[0].mxu0 %v5842
    %v6029 = vpop.f32.mrb[0].mxu0
    %v6030 = vadd.f32 %v5909, %v6029
    %v6031 = vpop.f32.mrb[0].mxu0
    %v6032 = vpop.f32.mrb[0].mxu0
    %v6033 = vadd.f32 %v5912, %v6032
    %v6034 = vpop.f32.mrb[0].mxu0
    %6035 = vmatprep.mubr.bf16.mxu0 0
    %6036 = vmatmul.mubr.bf16.gmra.mrb[0].mxu0 %v5845
    %v6037 = vpop.f32.mrb[0].mxu0
    %v6038 = vadd.f32 %v5917, %v6037
    %v6039 = vpop.f32.mrb[0].mxu0
    %v6040 = vpop.f32.mrb[0].mxu0
    %v6041 = vadd.f32 %v5920, %v6040
    %v6042 = vpop.f32.mrb[0].mxu0
    %6043 = vmatprep.mubr.bf16.mxu0 0
    %6044 = vmatmul.mubr.bf16.gmra.mrb[0].mxu0 %v5848
    %v6045 = vpop.f32.mrb[0].mxu0
    %v6046 = vadd.f32 %v5925, %v6045
    %v6047 = vpop.f32.mrb[0].mxu0
    %v6048 = vpop.f32.mrb[0].mxu0
    %v6049 = vadd.f32 %v5928, %v6048
    %v6050 = vpop.f32.mrb[0].mxu0
    %6051 = vmatprep.mubr.bf16.mxu0 0
    %6052 = vmatmul.mubr.bf16.gmra.mrb[0].mxu0 %v5851
    %v6053 = vpop.f32.mrb[0].mxu0
    %v6054 = vadd.f32 %v5933, %v6053
    %v6055 = vpop.f32.mrb[0].mxu0
    %v6056 = vpop.f32.mrb[0].mxu0
    %v6057 = vadd.f32 %v5936, %v6056
    %v6058 = vpop.f32.mrb[0].mxu0
    %6059 = vmatprep.mubr.bf16.mxu0 0
    %6060 = vmatmul.mubr.bf16.gmra.mrb[0].mxu0 %v5854
    %v6061 = vpop.f32.mrb[0].mxu0
    %v6062 = vadd.f32 %v5941, %v6061
    %v6063 = vpop.f32.mrb[0].mxu0
    %v6064 = vpop.f32.mrb[0].mxu0
    %v6065 = vadd.f32 %v5944, %v6064
    %v6066 = vpop.f32.mrb[0].mxu0
    %6067 = vmatprep.mubr.bf16.mxu0 0
    %6068 = vmatmul.mubr.bf16.gmra.mrb[0].mxu0 %v5857
    %v6069 = vpop.f32.mrb[0].mxu0
    %v6070 = vadd.f32 %v5949, %v6069
    %v6071 = vpop.f32.mrb[0].mxu0
    %v6072 = vpop.f32.mrb[0].mxu0
    %v6073 = vadd.f32 %v5952, %v6072
    %v6074 = vpop.f32.mrb[0].mxu0
    %6075 = vmatprep.mubr.bf16.mxu0 0
    %6076 = vmatmul.mubr.bf16.gmra.mrb[0].mxu0 %v5860
    %v6077 = vpop.f32.mrb[0].mxu0
    %v6078 = vadd.f32 %v5957, %v6077
    %v6079 = vpop.f32.mrb[0].mxu0
    %v6080 = vpop.f32.mrb[0].mxu0
    %v6081 = vadd.f32 %v5960, %v6080
    %v6082 = vpop.f32.mrb[0].mxu0
    %6083 = vmatprep.mubr.bf16.mxu0 0
    %6084 = vmatmul.mubr.bf16.gmra.mrb[0].mxu0 %v5863
    %v6085 = vpop.f32.mrb[0].mxu0
    %v6086 = vadd.f32 %v5965, %v6085
    %v6087 = vpop.f32.mrb[0].mxu0
    %v6088 = vpop.f32.mrb[0].mxu0
    %v6089 = vadd.f32 %v5968, %v6088
    %v6090 = vpop.f32.mrb[0].mxu0
    %6091 = vmatprep.mubr.bf16.mxu0 0
    %6092 = vmatmul.mubr.bf16.gmra.mrb[0].mxu0 %v5866
    %v6093 = vpop.f32.mrb[0].mxu0
    %v6094 = vadd.f32 %v5973, %v6093
    %v6095 = vpop.f32.mrb[0].mxu0
    %v6096 = vpop.f32.mrb[0].mxu0
    %v6097 = vadd.f32 %v5976, %v6096
    %v6098 = vpop.f32.mrb[0].mxu0
    %6099 = vmatprep.mubr.bf16.mxu0 0
    %6100 = vmatmul.mubr.bf16.gmra.mrb[0].mxu0 %v5869
    %v6101 = vpop.f32.mrb[0].mxu0
    %v6102 = vadd.f32 %v5981, %v6101
    %v6103 = vpop.f32.mrb[0].mxu0
    %v6104 = vpop.f32.mrb[0].mxu0
    %v6105 = vadd.f32 %v5984, %v6104
    %v6106 = vpop.f32.mrb[0].mxu0
    %6107 = vmatprep.mubr.bf16.mxu0 0
    %6108 = vmatmul.mubr.bf16.gmra.mrb[0].mxu0 %v5872
    %v6109 = vpop.f32.mrb[0].mxu0
    %v6110 = vadd.f32 %v5989, %v6109
    %v6111 = vpop.f32.mrb[0].mxu0
    %v6112 = vpop.f32.mrb[0].mxu0
    %v6113 = vadd.f32 %v5992, %v6112
    %v6114 = vpop.f32.mrb[0].mxu0
    %6115 = vdwg.mxu0
    %v6116 = vmax.f32 %v6030, 0.0
    %v6117 = vmax.f32 %v6033, 0.0
    %v6118 = vmax.f32 %v6038, 0.0
    %v6119 = vmax.f32 %v6041, 0.0
    %v6120 = vmax.f32 %v6046, 0.0
    %v6121 = vmax.f32 %v6049, 0.0
    %v6122 = vmax.f32 %v6054, 0.0
    %v6123 = vmax.f32 %v6057, 0.0
    %v6124 = vmax.f32 %v6062, 0.0
    %v6125 = vmax.f32 %v6065, 0.0
    %v6126 = vmax.f32 %v6070, 0.0
    %v6127 = vmax.f32 %v6073, 0.0
    %v6128 = vmax.f32 %v6078, 0.0
    %v6129 = vmax.f32 %v6081, 0.0
    %v6130 = vmax.f32 %v6086, 0.0
    %v6131 = vmax.f32 %v6089, 0.0
    %v6132 = vmax.f32 %v6094, 0.0
    %v6133 = vmax.f32 %v6097, 0.0
    %v6134 = vmax.f32 %v6102, 0.0
    %v6135 = vmax.f32 %v6105, 0.0
    %v6136 = vmax.f32 %v6110, 0.0
    %v6137 = vmax.f32 %v6113, 0.0
    %v6138 = vmul.f32 %v6116, %v1044
    %v6139 = vmul.f32 %v6117, %v1048
    %v6140 = vmul.f32 %v6118, %v1052
    %v6141 = vmul.f32 %v6119, %v1056
    %v6142 = vmul.f32 %v6120, %v1060
    %v6143 = vmul.f32 %v6121, %v1064
    %v6144 = vmul.f32 %v6122, %v1068
    %v6145 = vmul.f32 %v6123, %v1072
    %v6146 = vmul.f32 %v6124, %v1076
    %v6147 = vmul.f32 %v6125, %v1080
    %v6148 = vmul.f32 %v6126, %v1084
    %v6149 = vmul.f32 %v6127, %v1088
    %v6150 = vmul.f32 %v6128, %v1092
    %v6151 = vmul.f32 %v6129, %v1096
    %v6152 = vmul.f32 %v6130, %v1100
    %v6153 = vmul.f32 %v6131, %v1104
    %v6154 = vmul.f32 %v6132, %v1108
    %v6155 = vmul.f32 %v6133, %v1112
    %v6156 = vmul.f32 %v6134, %v1116
    %v6157 = vmul.f32 %v6135, %v1120
    %v6158 = vmul.f32 %v6136, %v1124
    %v6159 = vmul.f32 %v6137, %v1128
    %v6160 = vsel %vm65, %v6138, 0.0
    %v6161 = vsel %vm65, %v6139, 0.0
    %v6162 = vadd.f32 %v6160, %v6161
    %v6163 = vsel %vm65, %v6140, 0.0
    %v6164 = vadd.f32 %v6162, %v6163
    %v6165 = vsel %vm65, %v6141, 0.0
    %v6166 = vadd.f32 %v6164, %v6165
    %v6167 = vsel %vm65, %v6142, 0.0
    %v6168 = vadd.f32 %v6166, %v6167
    %v6169 = vsel %vm65, %v6143, 0.0
    %v6170 = vadd.f32 %v6168, %v6169
    %v6171 = vsel %vm65, %v6144, 0.0
    %v6172 = vadd.f32 %v6170, %v6171
    %v6173 = vsel %vm65, %v6145, 0.0
    %v6174 = vadd.f32 %v6172, %v6173
    %v6175 = vsel %vm65, %v6146, 0.0
    %v6176 = vadd.f32 %v6174, %v6175
    %v6177 = vsel %vm65, %v6147, 0.0
    %v6178 = vadd.f32 %v6176, %v6177
    %v6179 = vsel %vm65, %v6148, 0.0
    %v6180 = vadd.f32 %v6178, %v6179
    %v6181 = vsel %vm65, %v6149, 0.0
    %v6182 = vadd.f32 %v6180, %v6181
    %v6183 = vsel %vm65, %v6150, 0.0
    %v6184 = vadd.f32 %v6182, %v6183
    %v6185 = vsel %vm65, %v6151, 0.0
    %v6186 = vadd.f32 %v6184, %v6185
    %v6187 = vsel %vm65, %v6152, 0.0
    %v6188 = vadd.f32 %v6186, %v6187
    %v6189 = vsel %vm65, %v6153, 0.0
    %v6190 = vadd.f32 %v6188, %v6189
    %v6191 = vsel %vm65, %v6154, 0.0
    %v6192 = vadd.f32 %v6190, %v6191
    %v6193 = vsel %vm65, %v6155, 0.0
    %v6194 = vadd.f32 %v6192, %v6193
    %v6195 = vsel %vm65, %v6156, 0.0
    %v6196 = vadd.f32 %v6194, %v6195
    %v6197 = vsel %vm65, %v6157, 0.0
    %v6198 = vadd.f32 %v6196, %v6197
    %v6199 = vsel %vm65, %v6158, 0.0
    %v6200 = vadd.f32 %v6198, %v6199
    %v6201 = vsel %vm65, %v6159, 0.0
    %v6202 = vadd.f32 %v6200, %v6201
    %v6203 = vrot.slane %v6202, 4
    %v6204 = vadd.f32 %v6202, %v6203
    %v6205 = vrot.slane %v6204, 2
    %v6206 = vadd.f32 %v6204, %v6205
    %v6207 = vrot.slane %v6206, 1
    %v6208 = vadd.f32 %v6206, %v6207
    %v6209 = vmul.f32 %v6208, 0.0061728396
    %v6210 = vmul.f32 %v6138, %v6138
    %v6211 = vmul.f32 %v6139, %v6139
    %v6212 = vmul.f32 %v6140, %v6140
    %v6213 = vmul.f32 %v6141, %v6141
    %v6214 = vmul.f32 %v6142, %v6142
    %v6215 = vmul.f32 %v6143, %v6143
    %v6216 = vmul.f32 %v6144, %v6144
    %v6217 = vmul.f32 %v6145, %v6145
    %v6218 = vmul.f32 %v6146, %v6146
    %v6219 = vmul.f32 %v6147, %v6147
    %v6220 = vmul.f32 %v6148, %v6148
    %v6221 = vmul.f32 %v6149, %v6149
    %v6222 = vmul.f32 %v6150, %v6150
    %v6223 = vmul.f32 %v6151, %v6151
    %v6224 = vmul.f32 %v6152, %v6152
    %v6225 = vmul.f32 %v6153, %v6153
    %v6226 = vmul.f32 %v6154, %v6154
    %v6227 = vmul.f32 %v6155, %v6155
    %v6228 = vmul.f32 %v6156, %v6156
    %v6229 = vmul.f32 %v6157, %v6157
    %v6230 = vmul.f32 %v6158, %v6158
    %v6231 = vmul.f32 %v6159, %v6159
    %v6232 = vsel %vm65, %v6210, 0.0
    %v6233 = vsel %vm65, %v6211, 0.0
    %v6234 = vadd.f32 %v6232, %v6233
    %v6235 = vsel %vm65, %v6212, 0.0
    %v6236 = vadd.f32 %v6234, %v6235
    %v6237 = vsel %vm65, %v6213, 0.0
    %v6238 = vadd.f32 %v6236, %v6237
    %v6239 = vsel %vm65, %v6214, 0.0
    %v6240 = vadd.f32 %v6238, %v6239
    %v6241 = vsel %vm65, %v6215, 0.0
    %v6242 = vadd.f32 %v6240, %v6241
    %v6243 = vsel %vm65, %v6216, 0.0
    %v6244 = vadd.f32 %v6242, %v6243
    %v6245 = vsel %vm65, %v6217, 0.0
    %v6246 = vadd.f32 %v6244, %v6245
    %v6247 = vsel %vm65, %v6218, 0.0
    %v6248 = vadd.f32 %v6246, %v6247
    %v6249 = vsel %vm65, %v6219, 0.0
    %v6250 = vadd.f32 %v6248, %v6249
    %v6251 = vsel %vm65, %v6220, 0.0
    %v6252 = vadd.f32 %v6250, %v6251
    %v6253 = vsel %vm65, %v6221, 0.0
    %v6254 = vadd.f32 %v6252, %v6253
    %v6255 = vsel %vm65, %v6222, 0.0
    %v6256 = vadd.f32 %v6254, %v6255
    %v6257 = vsel %vm65, %v6223, 0.0
    %v6258 = vadd.f32 %v6256, %v6257
    %v6259 = vsel %vm65, %v6224, 0.0
    %v6260 = vadd.f32 %v6258, %v6259
    %v6261 = vsel %vm65, %v6225, 0.0
    %v6262 = vadd.f32 %v6260, %v6261
    %v6263 = vsel %vm65, %v6226, 0.0
    %v6264 = vadd.f32 %v6262, %v6263
    %v6265 = vsel %vm65, %v6227, 0.0
    %v6266 = vadd.f32 %v6264, %v6265
    %v6267 = vsel %vm65, %v6228, 0.0
    %v6268 = vadd.f32 %v6266, %v6267
    %v6269 = vsel %vm65, %v6229, 0.0
    %v6270 = vadd.f32 %v6268, %v6269
    %v6271 = vsel %vm65, %v6230, 0.0
    %v6272 = vadd.f32 %v6270, %v6271
    %v6273 = vsel %vm65, %v6231, 0.0
    %v6274 = vadd.f32 %v6272, %v6273
    %v6275 = vrot.slane %v6274, 4
    %v6276 = vadd.f32 %v6274, %v6275
    %v6277 = vrot.slane %v6276, 2
    %v6278 = vadd.f32 %v6276, %v6277
    %v6279 = vrot.slane %v6278, 1
    %v6280 = vadd.f32 %v6278, %v6279
    %v6281 = vmul.f32 %v6280, 0.0061728396
    %v6282 = vmul.f32 %v6209, %v6209
    %v6283 = vsub.f32 %v6281, %v6282
    %v6284 = vmax.f32 %v6283, 0.0
    %v6285 = vld [vmem:[%s7 + $0x1] sm:$0x1]
    %v6286 = vadd.f32 %v6284, 1e-05
    %v6287 = vrsqrt.pop %v6286
    %v6288 = vmul.f32 %v6285, %v6287
    %v6289 = vld [vmem:[%s7 + $0x2] sm:$0x1]
    %v6290 = vmul.f32 %v6209, %v6288
    %v6291 = vsub.f32 %v6289, %v6290
    %v6292 = vlaneseq
    %v6293 = vshrl.u32 %v6292, 7
    %v6294 = vsub.s32 0, %v6293
    %v6295 = vrot.slane %v6288, %v6294
    %v6296 = vmul.f32 %v6116, %v6295
    %v6297 = vmul.f32 %v6117, %v6295
    %v6298 = vmul.f32 %v6118, %v6295
    %v6299 = vmul.f32 %v6119, %v6295
    %v6300 = vmul.f32 %v6120, %v6295
    %v6301 = vmul.f32 %v6121, %v6295
    %v6302 = vmul.f32 %v6122, %v6295
    %v6303 = vmul.f32 %v6123, %v6295
    %v6304 = vmul.f32 %v6124, %v6295
    %v6305 = vmul.f32 %v6125, %v6295
    %v6306 = vmul.f32 %v6126, %v6295
    %v6307 = vmul.f32 %v6127, %v6295
    %v6308 = vmul.f32 %v6128, %v6295
    %v6309 = vmul.f32 %v6129, %v6295
    %v6310 = vmul.f32 %v6130, %v6295
    %v6311 = vmul.f32 %v6131, %v6295
    %v6312 = vmul.f32 %v6132, %v6295
    %v6313 = vmul.f32 %v6133, %v6295
    %v6314 = vmul.f32 %v6134, %v6295
    %v6315 = vmul.f32 %v6135, %v6295
    %v6316 = vmul.f32 %v6136, %v6295
    %v6317 = vmul.f32 %v6137, %v6295
    %v6318 = vlaneseq
    %v6319 = vshrl.u32 %v6318, 7
    %v6320 = vsub.s32 0, %v6319
    %v6321 = vrot.slane %v6291, %v6320
    %v6322 = vadd.f32 %v6296, %v6321
    %v6323 = vadd.f32 %v6297, %v6321
    %v6324 = vadd.f32 %v6298, %v6321
    %v6325 = vadd.f32 %v6299, %v6321
    %v6326 = vadd.f32 %v6300, %v6321
    %v6327 = vadd.f32 %v6301, %v6321
    %v6328 = vadd.f32 %v6302, %v6321
    %v6329 = vadd.f32 %v6303, %v6321
    %v6330 = vadd.f32 %v6304, %v6321
    %v6331 = vadd.f32 %v6305, %v6321
    %v6332 = vadd.f32 %v6306, %v6321
    %v6333 = vadd.f32 %v6307, %v6321
    %v6334 = vadd.f32 %v6308, %v6321
    %v6335 = vadd.f32 %v6309, %v6321
    %v6336 = vadd.f32 %v6310, %v6321
    %v6337 = vadd.f32 %v6311, %v6321
    %v6338 = vadd.f32 %v6312, %v6321
    %v6339 = vadd.f32 %v6313, %v6321
    %v6340 = vadd.f32 %v6314, %v6321
    %v6341 = vadd.f32 %v6315, %v6321
    %v6342 = vadd.f32 %v6316, %v6321
    %v6343 = vadd.f32 %v6317, %v6321
    %v6344 = vld [vmem:[%s8] sm:$0xff]
    %v6345 = vld [vmem:[%s8 + $0x8] sm:$0xff]
    %v6346 = vld [vmem:[%s8 + $0x10] sm:$0xff]
    %v6347 = vld [vmem:[%s8 + $0x18] sm:$0xff]
    %v6348 = vld [vmem:[%s8 + $0x20] sm:$0xff]
    %v6349 = vld [vmem:[%s8 + $0x28] sm:$0xff]
    %v6350 = vld [vmem:[%s8 + $0x30] sm:$0xff]
    %v6351 = vld [vmem:[%s8 + $0x38] sm:$0xff]
    %v6352 = vld [vmem:[%s8 + $0x40] sm:$0xff]
    %v6353 = vld [vmem:[%s8 + $0x48] sm:$0xff]
    %v6354 = vld [vmem:[%s8 + $0x50] sm:$0xff]
    %v6355 = vld [vmem:[%s8 + $0x58] sm:$0xff]
    %v6356 = vld [vmem:[%s8 + $0x60] sm:$0xff]
    %v6357 = vld [vmem:[%s8 + $0x68] sm:$0xff]
    %v6358 = vld [vmem:[%s8 + $0x70] sm:$0xff]
    %v6359 = vld [vmem:[%s8 + $0x78] sm:$0xff]
    %v6360 = vld [vmem:[%s8 + $0x80] sm:$0xff]
    %v6361 = vld [vmem:[%s8 + $0x88] sm:$0xff]
    %v6362 = vld [vmem:[%s8 + $0x90] sm:$0xff]
    %v6363 = vld [vmem:[%s8 + $0x98] sm:$0xff]
    %v6364 = vld [vmem:[%s8 + $0xa0] sm:$0xff]
    %v6365 = vld [vmem:[%s8 + $0xa8] sm:$0xff]
    %v6366 = vld [vmem:[%s8 + $0xb0] sm:$0xff]
    %v6367 = vld [vmem:[%s8 + $0xb8] sm:$0xff]
    %v6368 = vld [vmem:[%s8 + $0xc0] sm:$0xff]
    %v6369 = vld [vmem:[%s8 + $0xc8] sm:$0xff]
    %v6370 = vld [vmem:[%s8 + $0xd0] sm:$0xff]
    %v6371 = vld [vmem:[%s8 + $0xd8] sm:$0xff]
    %v6372 = vld [vmem:[%s8 + $0xe0] sm:$0xff]
    %v6373 = vld [vmem:[%s8 + $0xe8] sm:$0xff]
    %v6374 = vld [vmem:[%s8 + $0xf0] sm:$0xff]
    %v6375 = vld [vmem:[%s8 + $0xf8] sm:$0xff]
    %v6376 = vld [vmem:[%s8 + $0x100] sm:$0xff]
    %v6377 = vld [vmem:[%s8 + $0x108] sm:$0xff]
    %v6378 = vld [vmem:[%s8 + $0x110] sm:$0xff]
    %v6379 = vld [vmem:[%s8 + $0x118] sm:$0xff]
    %v6380 = vld [vmem:[%s8 + $0x120] sm:$0xff]
    %v6381 = vld [vmem:[%s8 + $0x128] sm:$0xff]
    %v6382 = vld [vmem:[%s8 + $0x130] sm:$0xff]
    %v6383 = vld [vmem:[%s8 + $0x138] sm:$0xff]
    %v6384 = vld [vmem:[%s8 + $0x140] sm:$0xff]
    %v6385 = vld [vmem:[%s8 + $0x148] sm:$0xff]
    %v6386 = vld [vmem:[%s8 + $0x150] sm:$0xff]
    %v6387 = vld [vmem:[%s8 + $0x158] sm:$0xff]
    %v6388 = vmul.f32 %v6322, %v6344
    %v6389 = vmul.f32 %v6323, %v6348
    %v6390 = vmul.f32 %v6324, %v6352
    %v6391 = vmul.f32 %v6325, %v6356
    %v6392 = vmul.f32 %v6326, %v6360
    %v6393 = vmul.f32 %v6327, %v6364
    %v6394 = vmul.f32 %v6328, %v6368
    %v6395 = vmul.f32 %v6329, %v6372
    %v6396 = vmul.f32 %v6330, %v6376
    %v6397 = vmul.f32 %v6331, %v6380
    %v6398 = vmul.f32 %v6332, %v6384
    %6399 = vst.msk [vmem:[#allocation3] sm:$0xff] %vm65, %v6388
    %6400 = vst.msk [vmem:[#allocation3 + $0x20] sm:$0xff] %vm65, %v6389
    %6401 = vst.msk [vmem:[#allocation3 + $0x40] sm:$0xff] %vm65, %v6390
    %6402 = vst.msk [vmem:[#allocation3 + $0x60] sm:$0xff] %vm65, %v6391
    %6403 = vst.msk [vmem:[#allocation3 + $0x80] sm:$0xff] %vm65, %v6392
    %6404 = vst.msk [vmem:[#allocation3 + $0xa0] sm:$0xff] %vm65, %v6393
    %6405 = vst.msk [vmem:[#allocation3 + $0xc0] sm:$0xff] %vm65, %v6394
    %6406 = vst.msk [vmem:[#allocation3 + $0xe0] sm:$0xff] %vm65, %v6395
    %6407 = vst.msk [vmem:[#allocation3 + $0x100] sm:$0xff] %vm65, %v6396
    %6408 = vst.msk [vmem:[#allocation3 + $0x120] sm:$0xff] %vm65, %v6397
    %6409 = vst.msk [vmem:[#allocation3 + $0x140] sm:$0xff] %vm65, %v6398
    %6421 = vrot.lane.b32.xlu0 %v6344, 64
    %v6422 = vpop.permute.xlu0 %6421
    %6423 = vrot.lane.b32.xlu0 %v6348, 64
    %v6424 = vpop.permute.xlu0 %6423
    %6425 = vrot.lane.b32.xlu0 %v6352, 64
    %v6426 = vpop.permute.xlu0 %6425
    %6427 = vrot.lane.b32.xlu0 %v6356, 64
    %v6428 = vpop.permute.xlu0 %6427
    %6429 = vrot.lane.b32.xlu0 %v6360, 64
    %v6430 = vpop.permute.xlu0 %6429
    %6431 = vrot.lane.b32.xlu0 %v6364, 64
    %v6432 = vpop.permute.xlu0 %6431
    %6433 = vrot.lane.b32.xlu0 %v6368, 64
    %v6434 = vpop.permute.xlu0 %6433
    %6435 = vrot.lane.b32.xlu0 %v6372, 64
    %v6436 = vpop.permute.xlu0 %6435
    %6437 = vrot.lane.b32.xlu0 %v6376, 64
    %v6438 = vpop.permute.xlu0 %6437
    %6439 = vrot.lane.b32.xlu0 %v6380, 64
    %v6440 = vpop.permute.xlu0 %6439
    %6441 = vrot.lane.b32.xlu0 %v6384, 64
    %v6442 = vpop.permute.xlu0 %6441
    %v6454 = vmul.f32 %v6322, %v6422
    %v6455 = vmul.f32 %v6323, %v6424
    %v6456 = vmul.f32 %v6324, %v6426
    %v6457 = vmul.f32 %v6325, %v6428
    %v6458 = vmul.f32 %v6326, %v6430
    %v6459 = vmul.f32 %v6327, %v6432
    %v6460 = vmul.f32 %v6328, %v6434
    %v6461 = vmul.f32 %v6329, %v6436
    %v6462 = vmul.f32 %v6330, %v6438
    %v6463 = vmul.f32 %v6331, %v6440
    %v6464 = vmul.f32 %v6332, %v6442
    %6476 = vrot.lane.b32.xlu0 %v6454, 64
    %v6477 = vpop.permute.xlu0 %6476
    %6478 = vrot.lane.b32.xlu0 %v6455, 64
    %v6479 = vpop.permute.xlu0 %6478
    %6480 = vrot.lane.b32.xlu0 %v6456, 64
    %v6481 = vpop.permute.xlu0 %6480
    %6482 = vrot.lane.b32.xlu0 %v6457, 64
    %v6483 = vpop.permute.xlu0 %6482
    %6484 = vrot.lane.b32.xlu0 %v6458, 64
    %v6485 = vpop.permute.xlu0 %6484
    %6486 = vrot.lane.b32.xlu0 %v6459, 64
    %v6487 = vpop.permute.xlu0 %6486
    %6488 = vrot.lane.b32.xlu0 %v6460, 64
    %v6489 = vpop.permute.xlu0 %6488
    %6490 = vrot.lane.b32.xlu0 %v6461, 64
    %v6491 = vpop.permute.xlu0 %6490
    %6492 = vrot.lane.b32.xlu0 %v6462, 64
    %v6493 = vpop.permute.xlu0 %6492
    %6494 = vrot.lane.b32.xlu0 %v6463, 64
    %v6495 = vpop.permute.xlu0 %6494
    %6496 = vrot.lane.b32.xlu0 %v6464, 64
    %v6497 = vpop.permute.xlu0 %6496
    %vm6509 = vcmask 1048064
    %6510 = vst.msk [vmem:[#allocation3] sm:$0xff] %vm6509, %v6477
    %6511 = vst.msk [vmem:[#allocation3 + $0x20] sm:$0xff] %vm6509, %v6479
    %6512 = vst.msk [vmem:[#allocation3 + $0x40] sm:$0xff] %vm6509, %v6481
    %6513 = vst.msk [vmem:[#allocation3 + $0x60] sm:$0xff] %vm6509, %v6483
    %6514 = vst.msk [vmem:[#allocation3 + $0x80] sm:$0xff] %vm6509, %v6485
    %6515 = vst.msk [vmem:[#allocation3 + $0xa0] sm:$0xff] %vm6509, %v6487
    %6516 = vst.msk [vmem:[#allocation3 + $0xc0] sm:$0xff] %vm6509, %v6489
    %6517 = vst.msk [vmem:[#allocation3 + $0xe0] sm:$0xff] %vm6509, %v6491
    %6518 = vst.msk [vmem:[#allocation3 + $0x100] sm:$0xff] %vm6509, %v6493
    %6519 = vst.msk [vmem:[#allocation3 + $0x120] sm:$0xff] %vm6509, %v6495
    %6520 = vst.msk [vmem:[#allocation3 + $0x140] sm:$0xff] %vm6509, %v6497
    %v6521 = vmul.f32 %v6322, %v6345
    %v6522 = vmul.f32 %v6323, %v6349
    %v6523 = vmul.f32 %v6324, %v6353
    %v6524 = vmul.f32 %v6325, %v6357
    %v6525 = vmul.f32 %v6326, %v6361
    %v6526 = vmul.f32 %v6327, %v6365
    %v6527 = vmul.f32 %v6328, %v6369
    %v6528 = vmul.f32 %v6329, %v6373
    %v6529 = vmul.f32 %v6330, %v6377
    %v6530 = vmul.f32 %v6331, %v6381
    %v6531 = vmul.f32 %v6332, %v6385
    %6532 = vst.msk [vmem:[#allocation3 + $0x8] sm:$0xff] %vm65, %v6521
    %6533 = vst.msk [vmem:[#allocation3 + $0x28] sm:$0xff] %vm65, %v6522
    %6534 = vst.msk [vmem:[#allocation3 + $0x48] sm:$0xff] %vm65, %v6523
    %6535 = vst.msk [vmem:[#allocation3 + $0x68] sm:$0xff] %vm65, %v6524
    %6536 = vst.msk [vmem:[#allocation3 + $0x88] sm:$0xff] %vm65, %v6525
    %6537 = vst.msk [vmem:[#allocation3 + $0xa8] sm:$0xff] %vm65, %v6526
    %6538 = vst.msk [vmem:[#allocation3 + $0xc8] sm:$0xff] %vm65, %v6527
    %6539 = vst.msk [vmem:[#allocation3 + $0xe8] sm:$0xff] %vm65, %v6528
    %6540 = vst.msk [vmem:[#allocation3 + $0x108] sm:$0xff] %vm65, %v6529
    %6541 = vst.msk [vmem:[#allocation3 + $0x128] sm:$0xff] %vm65, %v6530
    %6542 = vst.msk [vmem:[#allocation3 + $0x148] sm:$0xff] %vm65, %v6531
    %6554 = vrot.lane.b32.xlu0 %v6345, 64
    %v6555 = vpop.permute.xlu0 %6554
    %6556 = vrot.lane.b32.xlu0 %v6349, 64
    %v6557 = vpop.permute.xlu0 %6556
    %6558 = vrot.lane.b32.xlu0 %v6353, 64
    %v6559 = vpop.permute.xlu0 %6558
    %6560 = vrot.lane.b32.xlu0 %v6357, 64
    %v6561 = vpop.permute.xlu0 %6560
    %6562 = vrot.lane.b32.xlu0 %v6361, 64
    %v6563 = vpop.permute.xlu0 %6562
    %6564 = vrot.lane.b32.xlu0 %v6365, 64
    %v6565 = vpop.permute.xlu0 %6564
    %6566 = vrot.lane.b32.xlu0 %v6369, 64
    %v6567 = vpop.permute.xlu0 %6566
    %6568 = vrot.lane.b32.xlu0 %v6373, 64
    %v6569 = vpop.permute.xlu0 %6568
    %6570 = vrot.lane.b32.xlu0 %v6377, 64
    %v6571 = vpop.permute.xlu0 %6570
    %6572 = vrot.lane.b32.xlu0 %v6381, 64
    %v6573 = vpop.permute.xlu0 %6572
    %6574 = vrot.lane.b32.xlu0 %v6385, 64
    %v6575 = vpop.permute.xlu0 %6574
    %v6587 = vmul.f32 %v6322, %v6555
    %v6588 = vmul.f32 %v6323, %v6557
    %v6589 = vmul.f32 %v6324, %v6559
    %v6590 = vmul.f32 %v6325, %v6561
    %v6591 = vmul.f32 %v6326, %v6563
    %v6592 = vmul.f32 %v6327, %v6565
    %v6593 = vmul.f32 %v6328, %v6567
    %v6594 = vmul.f32 %v6329, %v6569
    %v6595 = vmul.f32 %v6330, %v6571
    %v6596 = vmul.f32 %v6331, %v6573
    %v6597 = vmul.f32 %v6332, %v6575
    %6609 = vrot.lane.b32.xlu0 %v6587, 64
    %v6610 = vpop.permute.xlu0 %6609
    %6611 = vrot.lane.b32.xlu0 %v6588, 64
    %v6612 = vpop.permute.xlu0 %6611
    %6613 = vrot.lane.b32.xlu0 %v6589, 64
    %v6614 = vpop.permute.xlu0 %6613
    %6615 = vrot.lane.b32.xlu0 %v6590, 64
    %v6616 = vpop.permute.xlu0 %6615
    %6617 = vrot.lane.b32.xlu0 %v6591, 64
    %v6618 = vpop.permute.xlu0 %6617
    %6619 = vrot.lane.b32.xlu0 %v6592, 64
    %v6620 = vpop.permute.xlu0 %6619
    %6621 = vrot.lane.b32.xlu0 %v6593, 64
    %v6622 = vpop.permute.xlu0 %6621
    %6623 = vrot.lane.b32.xlu0 %v6594, 64
    %v6624 = vpop.permute.xlu0 %6623
    %6625 = vrot.lane.b32.xlu0 %v6595, 64
    %v6626 = vpop.permute.xlu0 %6625
    %6627 = vrot.lane.b32.xlu0 %v6596, 64
    %v6628 = vpop.permute.xlu0 %6627
    %6629 = vrot.lane.b32.xlu0 %v6597, 64
    %v6630 = vpop.permute.xlu0 %6629
    %6642 = vst.msk [vmem:[#allocation3 + $0x8] sm:$0xff] %vm6509, %v6610
    %6643 = vst.msk [vmem:[#allocation3 + $0x28] sm:$0xff] %vm6509, %v6612
    %6644 = vst.msk [vmem:[#allocation3 + $0x48] sm:$0xff] %vm6509, %v6614
    %6645 = vst.msk [vmem:[#allocation3 + $0x68] sm:$0xff] %vm6509, %v6616
    %6646 = vst.msk [vmem:[#allocation3 + $0x88] sm:$0xff] %vm6509, %v6618
    %6647 = vst.msk [vmem:[#allocation3 + $0xa8] sm:$0xff] %vm6509, %v6620
    %6648 = vst.msk [vmem:[#allocation3 + $0xc8] sm:$0xff] %vm6509, %v6622
    %6649 = vst.msk [vmem:[#allocation3 + $0xe8] sm:$0xff] %vm6509, %v6624
    %6650 = vst.msk [vmem:[#allocation3 + $0x108] sm:$0xff] %vm6509, %v6626
    %6651 = vst.msk [vmem:[#allocation3 + $0x128] sm:$0xff] %vm6509, %v6628
    %6652 = vst.msk [vmem:[#allocation3 + $0x148] sm:$0xff] %vm6509, %v6630
    %v6653 = vmul.f32 %v6322, %v6346
    %v6654 = vmul.f32 %v6323, %v6350
    %v6655 = vmul.f32 %v6324, %v6354
    %v6656 = vmul.f32 %v6325, %v6358
    %v6657 = vmul.f32 %v6326, %v6362
    %v6658 = vmul.f32 %v6327, %v6366
    %v6659 = vmul.f32 %v6328, %v6370
    %v6660 = vmul.f32 %v6329, %v6374
    %v6661 = vmul.f32 %v6330, %v6378
    %v6662 = vmul.f32 %v6331, %v6382
    %v6663 = vmul.f32 %v6332, %v6386
    %6664 = vst.msk [vmem:[#allocation3 + $0x10] sm:$0xff] %vm65, %v6653
    %6665 = vst.msk [vmem:[#allocation3 + $0x30] sm:$0xff] %vm65, %v6654
    %6666 = vst.msk [vmem:[#allocation3 + $0x50] sm:$0xff] %vm65, %v6655
    %6667 = vst.msk [vmem:[#allocation3 + $0x70] sm:$0xff] %vm65, %v6656
    %6668 = vst.msk [vmem:[#allocation3 + $0x90] sm:$0xff] %vm65, %v6657
    %6669 = vst.msk [vmem:[#allocation3 + $0xb0] sm:$0xff] %vm65, %v6658
    %6670 = vst.msk [vmem:[#allocation3 + $0xd0] sm:$0xff] %vm65, %v6659
    %6671 = vst.msk [vmem:[#allocation3 + $0xf0] sm:$0xff] %vm65, %v6660
    %6672 = vst.msk [vmem:[#allocation3 + $0x110] sm:$0xff] %vm65, %v6661
    %6673 = vst.msk [vmem:[#allocation3 + $0x130] sm:$0xff] %vm65, %v6662
    %6674 = vst.msk [vmem:[#allocation3 + $0x150] sm:$0xff] %vm65, %v6663
    %6686 = vrot.lane.b32.xlu0 %v6346, 64
    %v6687 = vpop.permute.xlu0 %6686
    %6688 = vrot.lane.b32.xlu0 %v6350, 64
    %v6689 = vpop.permute.xlu0 %6688
    %6690 = vrot.lane.b32.xlu0 %v6354, 64
    %v6691 = vpop.permute.xlu0 %6690
    %6692 = vrot.lane.b32.xlu0 %v6358, 64
    %v6693 = vpop.permute.xlu0 %6692
    %6694 = vrot.lane.b32.xlu0 %v6362, 64
    %v6695 = vpop.permute.xlu0 %6694
    %6696 = vrot.lane.b32.xlu0 %v6366, 64
    %v6697 = vpop.permute.xlu0 %6696
    %6698 = vrot.lane.b32.xlu0 %v6370, 64
    %v6699 = vpop.permute.xlu0 %6698
    %6700 = vrot.lane.b32.xlu0 %v6374, 64
    %v6701 = vpop.permute.xlu0 %6700
    %6702 = vrot.lane.b32.xlu0 %v6378, 64
    %v6703 = vpop.permute.xlu0 %6702
    %6704 = vrot.lane.b32.xlu0 %v6382, 64
    %v6705 = vpop.permute.xlu0 %6704
    %6706 = vrot.lane.b32.xlu0 %v6386, 64
    %v6707 = vpop.permute.xlu0 %6706
    %v6719 = vmul.f32 %v6322, %v6687
    %v6720 = vmul.f32 %v6323, %v6689
    %v6721 = vmul.f32 %v6324, %v6691
    %v6722 = vmul.f32 %v6325, %v6693
    %v6723 = vmul.f32 %v6326, %v6695
    %v6724 = vmul.f32 %v6327, %v6697
    %v6725 = vmul.f32 %v6328, %v6699
    %v6726 = vmul.f32 %v6329, %v6701
    %v6727 = vmul.f32 %v6330, %v6703
    %v6728 = vmul.f32 %v6331, %v6705
    %v6729 = vmul.f32 %v6332, %v6707
    %6741 = vrot.lane.b32.xlu0 %v6719, 64
    %v6742 = vpop.permute.xlu0 %6741
    %6743 = vrot.lane.b32.xlu0 %v6720, 64
    %v6744 = vpop.permute.xlu0 %6743
    %6745 = vrot.lane.b32.xlu0 %v6721, 64
    %v6746 = vpop.permute.xlu0 %6745
    %6747 = vrot.lane.b32.xlu0 %v6722, 64
    %v6748 = vpop.permute.xlu0 %6747
    %6749 = vrot.lane.b32.xlu0 %v6723, 64
    %v6750 = vpop.permute.xlu0 %6749
    %6751 = vrot.lane.b32.xlu0 %v6724, 64
    %v6752 = vpop.permute.xlu0 %6751
    %6753 = vrot.lane.b32.xlu0 %v6725, 64
    %v6754 = vpop.permute.xlu0 %6753
    %6755 = vrot.lane.b32.xlu0 %v6726, 64
    %v6756 = vpop.permute.xlu0 %6755
    %6757 = vrot.lane.b32.xlu0 %v6727, 64
    %v6758 = vpop.permute.xlu0 %6757
    %6759 = vrot.lane.b32.xlu0 %v6728, 64
    %v6760 = vpop.permute.xlu0 %6759
    %6761 = vrot.lane.b32.xlu0 %v6729, 64
    %v6762 = vpop.permute.xlu0 %6761
    %6774 = vst.msk [vmem:[#allocation3 + $0x10] sm:$0xff] %vm6509, %v6742
    %6775 = vst.msk [vmem:[#allocation3 + $0x30] sm:$0xff] %vm6509, %v6744
    %6776 = vst.msk [vmem:[#allocation3 + $0x50] sm:$0xff] %vm6509, %v6746
    %6777 = vst.msk [vmem:[#allocation3 + $0x70] sm:$0xff] %vm6509, %v6748
    %6778 = vst.msk [vmem:[#allocation3 + $0x90] sm:$0xff] %vm6509, %v6750
    %6779 = vst.msk [vmem:[#allocation3 + $0xb0] sm:$0xff] %vm6509, %v6752
    %6780 = vst.msk [vmem:[#allocation3 + $0xd0] sm:$0xff] %vm6509, %v6754
    %6781 = vst.msk [vmem:[#allocation3 + $0xf0] sm:$0xff] %vm6509, %v6756
    %6782 = vst.msk [vmem:[#allocation3 + $0x110] sm:$0xff] %vm6509, %v6758
    %6783 = vst.msk [vmem:[#allocation3 + $0x130] sm:$0xff] %vm6509, %v6760
    %6784 = vst.msk [vmem:[#allocation3 + $0x150] sm:$0xff] %vm6509, %v6762
    %v6785 = vmul.f32 %v6322, %v6347
    %v6786 = vmul.f32 %v6323, %v6351
    %v6787 = vmul.f32 %v6324, %v6355
    %v6788 = vmul.f32 %v6325, %v6359
    %v6789 = vmul.f32 %v6326, %v6363
    %v6790 = vmul.f32 %v6327, %v6367
    %v6791 = vmul.f32 %v6328, %v6371
    %v6792 = vmul.f32 %v6329, %v6375
    %v6793 = vmul.f32 %v6330, %v6379
    %v6794 = vmul.f32 %v6331, %v6383
    %v6795 = vmul.f32 %v6332, %v6387
    %6796 = vst.msk [vmem:[#allocation3 + $0x18] sm:$0xff] %vm65, %v6785
    %6797 = vst.msk [vmem:[#allocation3 + $0x38] sm:$0xff] %vm65, %v6786
    %6798 = vst.msk [vmem:[#allocation3 + $0x58] sm:$0xff] %vm65, %v6787
    %6799 = vst.msk [vmem:[#allocation3 + $0x78] sm:$0xff] %vm65, %v6788
    %6800 = vst.msk [vmem:[#allocation3 + $0x98] sm:$0xff] %vm65, %v6789
    %6801 = vst.msk [vmem:[#allocation3 + $0xb8] sm:$0xff] %vm65, %v6790
    %6802 = vst.msk [vmem:[#allocation3 + $0xd8] sm:$0xff] %vm65, %v6791
    %6803 = vst.msk [vmem:[#allocation3 + $0xf8] sm:$0xff] %vm65, %v6792
    %6804 = vst.msk [vmem:[#allocation3 + $0x118] sm:$0xff] %vm65, %v6793
    %6805 = vst.msk [vmem:[#allocation3 + $0x138] sm:$0xff] %vm65, %v6794
    %6806 = vst.msk [vmem:[#allocation3 + $0x158] sm:$0xff] %vm65, %v6795
    %v6807 = vmul.f32 %v6333, %v6344
    %v6808 = vmul.f32 %v6334, %v6348
    %v6809 = vmul.f32 %v6335, %v6352
    %v6810 = vmul.f32 %v6336, %v6356
    %v6811 = vmul.f32 %v6337, %v6360
    %v6812 = vmul.f32 %v6338, %v6364
    %v6813 = vmul.f32 %v6339, %v6368
    %v6814 = vmul.f32 %v6340, %v6372
    %v6815 = vmul.f32 %v6341, %v6376
    %v6816 = vmul.f32 %v6342, %v6380
    %v6817 = vmul.f32 %v6343, %v6384
    %6818 = vst.msk [vmem:[#allocation3 + $0x160] sm:$0xff] %vm65, %v6807
    %6819 = vst.msk [vmem:[#allocation3 + $0x180] sm:$0xff] %vm65, %v6808
    %6820 = vst.msk [vmem:[#allocation3 + $0x1a0] sm:$0xff] %vm65, %v6809
    %6821 = vst.msk [vmem:[#allocation3 + $0x1c0] sm:$0xff] %vm65, %v6810
    %6822 = vst.msk [vmem:[#allocation3 + $0x1e0] sm:$0xff] %vm65, %v6811
    %6823 = vst.msk [vmem:[#allocation3 + $0x200] sm:$0xff] %vm65, %v6812
    %6824 = vst.msk [vmem:[#allocation3 + $0x220] sm:$0xff] %vm65, %v6813
    %6825 = vst.msk [vmem:[#allocation3 + $0x240] sm:$0xff] %vm65, %v6814
    %6826 = vst.msk [vmem:[#allocation3 + $0x260] sm:$0xff] %vm65, %v6815
    %6827 = vst.msk [vmem:[#allocation3 + $0x280] sm:$0xff] %vm65, %v6816
    %6828 = vst.msk [vmem:[#allocation3 + $0x2a0] sm:$0xff] %vm65, %v6817
    %v6829 = vmul.f32 %v6333, %v6422
    %v6830 = vmul.f32 %v6334, %v6424
    %v6831 = vmul.f32 %v6335, %v6426
    %v6832 = vmul.f32 %v6336, %v6428
    %v6833 = vmul.f32 %v6337, %v6430
    %v6834 = vmul.f32 %v6338, %v6432
    %v6835 = vmul.f32 %v6339, %v6434
    %v6836 = vmul.f32 %v6340, %v6436
    %v6837 = vmul.f32 %v6341, %v6438
    %v6838 = vmul.f32 %v6342, %v6440
    %v6839 = vmul.f32 %v6343, %v6442
    %6851 = vrot.lane.b32.xlu0 %v6829, 64
    %v6852 = vpop.permute.xlu0 %6851
    %6853 = vrot.lane.b32.xlu0 %v6830, 64
    %v6854 = vpop.permute.xlu0 %6853
    %6855 = vrot.lane.b32.xlu0 %v6831, 64
    %v6856 = vpop.permute.xlu0 %6855
    %6857 = vrot.lane.b32.xlu0 %v6832, 64
    %v6858 = vpop.permute.xlu0 %6857
    %6859 = vrot.lane.b32.xlu0 %v6833, 64
    %v6860 = vpop.permute.xlu0 %6859
    %6861 = vrot.lane.b32.xlu0 %v6834, 64
    %v6862 = vpop.permute.xlu0 %6861
    %6863 = vrot.lane.b32.xlu0 %v6835, 64
    %v6864 = vpop.permute.xlu0 %6863
    %6865 = vrot.lane.b32.xlu0 %v6836, 64
    %v6866 = vpop.permute.xlu0 %6865
    %6867 = vrot.lane.b32.xlu0 %v6837, 64
    %v6868 = vpop.permute.xlu0 %6867
    %6869 = vrot.lane.b32.xlu0 %v6838, 64
    %v6870 = vpop.permute.xlu0 %6869
    %6871 = vrot.lane.b32.xlu0 %v6839, 64
    %v6872 = vpop.permute.xlu0 %6871
    %6884 = vst.msk [vmem:[#allocation3 + $0x160] sm:$0xff] %vm6509, %v6852
    %6885 = vst.msk [vmem:[#allocation3 + $0x180] sm:$0xff] %vm6509, %v6854
    %6886 = vst.msk [vmem:[#allocation3 + $0x1a0] sm:$0xff] %vm6509, %v6856
    %6887 = vst.msk [vmem:[#allocation3 + $0x1c0] sm:$0xff] %vm6509, %v6858
    %6888 = vst.msk [vmem:[#allocation3 + $0x1e0] sm:$0xff] %vm6509, %v6860
    %6889 = vst.msk [vmem:[#allocation3 + $0x200] sm:$0xff] %vm6509, %v6862
    %6890 = vst.msk [vmem:[#allocation3 + $0x220] sm:$0xff] %vm6509, %v6864
    %6891 = vst.msk [vmem:[#allocation3 + $0x240] sm:$0xff] %vm6509, %v6866
    %6892 = vst.msk [vmem:[#allocation3 + $0x260] sm:$0xff] %vm6509, %v6868
    %6893 = vst.msk [vmem:[#allocation3 + $0x280] sm:$0xff] %vm6509, %v6870
    %6894 = vst.msk [vmem:[#allocation3 + $0x2a0] sm:$0xff] %vm6509, %v6872
    %v6895 = vmul.f32 %v6333, %v6345
    %v6896 = vmul.f32 %v6334, %v6349
    %v6897 = vmul.f32 %v6335, %v6353
    %v6898 = vmul.f32 %v6336, %v6357
    %v6899 = vmul.f32 %v6337, %v6361
    %v6900 = vmul.f32 %v6338, %v6365
    %v6901 = vmul.f32 %v6339, %v6369
    %v6902 = vmul.f32 %v6340, %v6373
    %v6903 = vmul.f32 %v6341, %v6377
    %v6904 = vmul.f32 %v6342, %v6381
    %v6905 = vmul.f32 %v6343, %v6385
    %6906 = vst.msk [vmem:[#allocation3 + $0x168] sm:$0xff] %vm65, %v6895
    %6907 = vst.msk [vmem:[#allocation3 + $0x188] sm:$0xff] %vm65, %v6896
    %6908 = vst.msk [vmem:[#allocation3 + $0x1a8] sm:$0xff] %vm65, %v6897
    %6909 = vst.msk [vmem:[#allocation3 + $0x1c8] sm:$0xff] %vm65, %v6898
    %6910 = vst.msk [vmem:[#allocation3 + $0x1e8] sm:$0xff] %vm65, %v6899
    %6911 = vst.msk [vmem:[#allocation3 + $0x208] sm:$0xff] %vm65, %v6900
    %6912 = vst.msk [vmem:[#allocation3 + $0x228] sm:$0xff] %vm65, %v6901
    %6913 = vst.msk [vmem:[#allocation3 + $0x248] sm:$0xff] %vm65, %v6902
    %6914 = vst.msk [vmem:[#allocation3 + $0x268] sm:$0xff] %vm65, %v6903
    %6915 = vst.msk [vmem:[#allocation3 + $0x288] sm:$0xff] %vm65, %v6904
    %6916 = vst.msk [vmem:[#allocation3 + $0x2a8] sm:$0xff] %vm65, %v6905
    %v6917 = vmul.f32 %v6333, %v6555
    %v6918 = vmul.f32 %v6334, %v6557
    %v6919 = vmul.f32 %v6335, %v6559
    %v6920 = vmul.f32 %v6336, %v6561
    %v6921 = vmul.f32 %v6337, %v6563
    %v6922 = vmul.f32 %v6338, %v6565
    %v6923 = vmul.f32 %v6339, %v6567
    %v6924 = vmul.f32 %v6340, %v6569
    %v6925 = vmul.f32 %v6341, %v6571
    %v6926 = vmul.f32 %v6342, %v6573
    %v6927 = vmul.f32 %v6343, %v6575
    %6939 = vrot.lane.b32.xlu0 %v6917, 64
    %v6940 = vpop.permute.xlu0 %6939
    %6941 = vrot.lane.b32.xlu0 %v6918, 64
    %v6942 = vpop.permute.xlu0 %6941
    %6943 = vrot.lane.b32.xlu0 %v6919, 64
    %v6944 = vpop.permute.xlu0 %6943
    %6945 = vrot.lane.b32.xlu0 %v6920, 64
    %v6946 = vpop.permute.xlu0 %6945
    %6947 = vrot.lane.b32.xlu0 %v6921, 64
    %v6948 = vpop.permute.xlu0 %6947
    %6949 = vrot.lane.b32.xlu0 %v6922, 64
    %v6950 = vpop.permute.xlu0 %6949
    %6951 = vrot.lane.b32.xlu0 %v6923, 64
    %v6952 = vpop.permute.xlu0 %6951
    %6953 = vrot.lane.b32.xlu0 %v6924, 64
    %v6954 = vpop.permute.xlu0 %6953
    %6955 = vrot.lane.b32.xlu0 %v6925, 64
    %v6956 = vpop.permute.xlu0 %6955
    %6957 = vrot.lane.b32.xlu0 %v6926, 64
    %v6958 = vpop.permute.xlu0 %6957
    %6959 = vrot.lane.b32.xlu0 %v6927, 64
    %v6960 = vpop.permute.xlu0 %6959
    %6972 = vst.msk [vmem:[#allocation3 + $0x168] sm:$0xff] %vm6509, %v6940
    %6973 = vst.msk [vmem:[#allocation3 + $0x188] sm:$0xff] %vm6509, %v6942
    %6974 = vst.msk [vmem:[#allocation3 + $0x1a8] sm:$0xff] %vm6509, %v6944
    %6975 = vst.msk [vmem:[#allocation3 + $0x1c8] sm:$0xff] %vm6509, %v6946
    %6976 = vst.msk [vmem:[#allocation3 + $0x1e8] sm:$0xff] %vm6509, %v6948
    %6977 = vst.msk [vmem:[#allocation3 + $0x208] sm:$0xff] %vm6509, %v6950
    %6978 = vst.msk [vmem:[#allocation3 + $0x228] sm:$0xff] %vm6509, %v6952
    %6979 = vst.msk [vmem:[#allocation3 + $0x248] sm:$0xff] %vm6509, %v6954
    %6980 = vst.msk [vmem:[#allocation3 + $0x268] sm:$0xff] %vm6509, %v6956
    %6981 = vst.msk [vmem:[#allocation3 + $0x288] sm:$0xff] %vm6509, %v6958
    %6982 = vst.msk [vmem:[#allocation3 + $0x2a8] sm:$0xff] %vm6509, %v6960
    %v6983 = vmul.f32 %v6333, %v6346
    %v6984 = vmul.f32 %v6334, %v6350
    %v6985 = vmul.f32 %v6335, %v6354
    %v6986 = vmul.f32 %v6336, %v6358
    %v6987 = vmul.f32 %v6337, %v6362
    %v6988 = vmul.f32 %v6338, %v6366
    %v6989 = vmul.f32 %v6339, %v6370
    %v6990 = vmul.f32 %v6340, %v6374
    %v6991 = vmul.f32 %v6341, %v6378
    %v6992 = vmul.f32 %v6342, %v6382
    %v6993 = vmul.f32 %v6343, %v6386
    %6994 = vst.msk [vmem:[#allocation3 + $0x170] sm:$0xff] %vm65, %v6983
    %6995 = vst.msk [vmem:[#allocation3 + $0x190] sm:$0xff] %vm65, %v6984
    %6996 = vst.msk [vmem:[#allocation3 + $0x1b0] sm:$0xff] %vm65, %v6985
    %6997 = vst.msk [vmem:[#allocation3 + $0x1d0] sm:$0xff] %vm65, %v6986
    %6998 = vst.msk [vmem:[#allocation3 + $0x1f0] sm:$0xff] %vm65, %v6987
    %6999 = vst.msk [vmem:[#allocation3 + $0x210] sm:$0xff] %vm65, %v6988
    %7000 = vst.msk [vmem:[#allocation3 + $0x230] sm:$0xff] %vm65, %v6989
    %7001 = vst.msk [vmem:[#allocation3 + $0x250] sm:$0xff] %vm65, %v6990
    %7002 = vst.msk [vmem:[#allocation3 + $0x270] sm:$0xff] %vm65, %v6991
    %7003 = vst.msk [vmem:[#allocation3 + $0x290] sm:$0xff] %vm65, %v6992
    %7004 = vst.msk [vmem:[#allocation3 + $0x2b0] sm:$0xff] %vm65, %v6993
    %v7005 = vmul.f32 %v6333, %v6687
    %v7006 = vmul.f32 %v6334, %v6689
    %v7007 = vmul.f32 %v6335, %v6691
    %v7008 = vmul.f32 %v6336, %v6693
    %v7009 = vmul.f32 %v6337, %v6695
    %v7010 = vmul.f32 %v6338, %v6697
    %v7011 = vmul.f32 %v6339, %v6699
    %v7012 = vmul.f32 %v6340, %v6701
    %v7013 = vmul.f32 %v6341, %v6703
    %v7014 = vmul.f32 %v6342, %v6705
    %v7015 = vmul.f32 %v6343, %v6707
    %7027 = vrot.lane.b32.xlu0 %v7005, 64
    %v7028 = vpop.permute.xlu0 %7027
    %7029 = vrot.lane.b32.xlu0 %v7006, 64
    %v7030 = vpop.permute.xlu0 %7029
    %7031 = vrot.lane.b32.xlu0 %v7007, 64
    %v7032 = vpop.permute.xlu0 %7031
    %7033 = vrot.lane.b32.xlu0 %v7008, 64
    %v7034 = vpop.permute.xlu0 %7033
    %7035 = vrot.lane.b32.xlu0 %v7009, 64
    %v7036 = vpop.permute.xlu0 %7035
    %7037 = vrot.lane.b32.xlu0 %v7010, 64
    %v7038 = vpop.permute.xlu0 %7037
    %7039 = vrot.lane.b32.xlu0 %v7011, 64
    %v7040 = vpop.permute.xlu0 %7039
    %7041 = vrot.lane.b32.xlu0 %v7012, 64
    %v7042 = vpop.permute.xlu0 %7041
    %7043 = vrot.lane.b32.xlu0 %v7013, 64
    %v7044 = vpop.permute.xlu0 %7043
    %7045 = vrot.lane.b32.xlu0 %v7014, 64
    %v7046 = vpop.permute.xlu0 %7045
    %7047 = vrot.lane.b32.xlu0 %v7015, 64
    %v7048 = vpop.permute.xlu0 %7047
    %7060 = vst.msk [vmem:[#allocation3 + $0x170] sm:$0xff] %vm6509, %v7028
    %7061 = vst.msk [vmem:[#allocation3 + $0x190] sm:$0xff] %vm6509, %v7030
    %7062 = vst.msk [vmem:[#allocation3 + $0x1b0] sm:$0xff] %vm6509, %v7032
    %7063 = vst.msk [vmem:[#allocation3 + $0x1d0] sm:$0xff] %vm6509, %v7034
    %7064 = vst.msk [vmem:[#allocation3 + $0x1f0] sm:$0xff] %vm6509, %v7036
    %7065 = vst.msk [vmem:[#allocation3 + $0x210] sm:$0xff] %vm6509, %v7038
    %7066 = vst.msk [vmem:[#allocation3 + $0x230] sm:$0xff] %vm6509, %v7040
    %7067 = vst.msk [vmem:[#allocation3 + $0x250] sm:$0xff] %vm6509, %v7042
    %7068 = vst.msk [vmem:[#allocation3 + $0x270] sm:$0xff] %vm6509, %v7044
    %7069 = vst.msk [vmem:[#allocation3 + $0x290] sm:$0xff] %vm6509, %v7046
    %7070 = vst.msk [vmem:[#allocation3 + $0x2b0] sm:$0xff] %vm6509, %v7048
    %v7071 = vmul.f32 %v6333, %v6347
    %v7072 = vmul.f32 %v6334, %v6351
    %v7073 = vmul.f32 %v6335, %v6355
    %v7074 = vmul.f32 %v6336, %v6359
    %v7075 = vmul.f32 %v6337, %v6363
    %v7076 = vmul.f32 %v6338, %v6367
    %v7077 = vmul.f32 %v6339, %v6371
    %v7078 = vmul.f32 %v6340, %v6375
    %v7079 = vmul.f32 %v6341, %v6379
    %v7080 = vmul.f32 %v6342, %v6383
    %v7081 = vmul.f32 %v6343, %v6387
    %7082 = vst.msk [vmem:[#allocation3 + $0x178] sm:$0xff] %vm65, %v7071
    %7083 = vst.msk [vmem:[#allocation3 + $0x198] sm:$0xff] %vm65, %v7072
    %7084 = vst.msk [vmem:[#allocation3 + $0x1b8] sm:$0xff] %vm65, %v7073
    %7085 = vst.msk [vmem:[#allocation3 + $0x1d8] sm:$0xff] %vm65, %v7074
    %7086 = vst.msk [vmem:[#allocation3 + $0x1f8] sm:$0xff] %vm65, %v7075
    %7087 = vst.msk [vmem:[#allocation3 + $0x218] sm:$0xff] %vm65, %v7076
    %7088 = vst.msk [vmem:[#allocation3 + $0x238] sm:$0xff] %vm65, %v7077
    %7089 = vst.msk [vmem:[#allocation3 + $0x258] sm:$0xff] %vm65, %v7078
    %7090 = vst.msk [vmem:[#allocation3 + $0x278] sm:$0xff] %vm65, %v7079
    %7091 = vst.msk [vmem:[#allocation3 + $0x298] sm:$0xff] %vm65, %v7080
    %7092 = vst.msk [vmem:[#allocation3 + $0x2b8] sm:$0xff] %vm65, %v7081
    %v7093 = vld [vmem:[#allocation3] sm:$0xff]
    %v7094 = vld [vmem:[#allocation3 + $0x8] sm:$0xff]
    %v7095 = vld [vmem:[#allocation3 + $0x10] sm:$0xff]
    %v7096 = vld [vmem:[#allocation3 + $0x18] sm:$0xff]
    %v7097 = vld [vmem:[#allocation3 + $0x20] sm:$0xff]
    %v7098 = vld [vmem:[#allocation3 + $0x28] sm:$0xff]
    %v7099 = vld [vmem:[#allocation3 + $0x30] sm:$0xff]
    %v7100 = vld [vmem:[#allocation3 + $0x38] sm:$0xff]
    %v7101 = vld [vmem:[#allocation3 + $0x40] sm:$0xff]
    %v7102 = vld [vmem:[#allocation3 + $0x48] sm:$0xff]
    %v7103 = vld [vmem:[#allocation3 + $0x50] sm:$0xff]
    %v7104 = vld [vmem:[#allocation3 + $0x58] sm:$0xff]
    %v7105 = vld [vmem:[#allocation3 + $0x60] sm:$0xff]
    %v7106 = vld [vmem:[#allocation3 + $0x68] sm:$0xff]
    %v7107 = vld [vmem:[#allocation3 + $0x70] sm:$0xff]
    %v7108 = vld [vmem:[#allocation3 + $0x78] sm:$0xff]
    %v7109 = vld [vmem:[#allocation3 + $0x80] sm:$0xff]
    %v7110 = vld [vmem:[#allocation3 + $0x88] sm:$0xff]
    %v7111 = vld [vmem:[#allocation3 + $0x90] sm:$0xff]
    %v7112 = vld [vmem:[#allocation3 + $0x98] sm:$0xff]
    %v7113 = vld [vmem:[#allocation3 + $0xa0] sm:$0xff]
    %v7114 = vld [vmem:[#allocation3 + $0xa8] sm:$0xff]
    %v7115 = vld [vmem:[#allocation3 + $0xb0] sm:$0xff]
    %v7116 = vld [vmem:[#allocation3 + $0xb8] sm:$0xff]
    %v7117 = vld [vmem:[#allocation3 + $0xc0] sm:$0xff]
    %v7118 = vld [vmem:[#allocation3 + $0xc8] sm:$0xff]
    %v7119 = vld [vmem:[#allocation3 + $0xd0] sm:$0xff]
    %v7120 = vld [vmem:[#allocation3 + $0xd8] sm:$0xff]
    %v7121 = vld [vmem:[#allocation3 + $0xe0] sm:$0xff]
    %v7122 = vld [vmem:[#allocation3 + $0xe8] sm:$0xff]
    %v7123 = vld [vmem:[#allocation3 + $0xf0] sm:$0xff]
    %v7124 = vld [vmem:[#allocation3 + $0xf8] sm:$0xff]
    %v7125 = vld [vmem:[#allocation3 + $0x100] sm:$0xff]
    %v7126 = vld [vmem:[#allocation3 + $0x108] sm:$0xff]
    %v7127 = vld [vmem:[#allocation3 + $0x110] sm:$0xff]
    %v7128 = vld [vmem:[#allocation3 + $0x118] sm:$0xff]
    %v7129 = vld [vmem:[#allocation3 + $0x120] sm:$0xff]
    %v7130 = vld [vmem:[#allocation3 + $0x128] sm:$0xff]
    %v7131 = vld [vmem:[#allocation3 + $0x130] sm:$0xff]
    %v7132 = vld [vmem:[#allocation3 + $0x138] sm:$0xff]
    %v7133 = vld [vmem:[#allocation3 + $0x140] sm:$0xff]
    %v7134 = vld [vmem:[#allocation3 + $0x148] sm:$0xff]
    %v7135 = vld [vmem:[#allocation3 + $0x150] sm:$0xff]
    %v7136 = vld [vmem:[#allocation3 + $0x158] sm:$0xff]
    %v7137 = vld [vmem:[#allocation3 + $0x160] sm:$0xff]
    %v7138 = vld [vmem:[#allocation3 + $0x168] sm:$0xff]
    %v7139 = vld [vmem:[#allocation3 + $0x170] sm:$0xff]
    %v7140 = vld [vmem:[#allocation3 + $0x178] sm:$0xff]
    %v7141 = vld [vmem:[#allocation3 + $0x180] sm:$0xff]
    %v7142 = vld [vmem:[#allocation3 + $0x188] sm:$0xff]
    %v7143 = vld [vmem:[#allocation3 + $0x190] sm:$0xff]
    %v7144 = vld [vmem:[#allocation3 + $0x198] sm:$0xff]
    %v7145 = vld [vmem:[#allocation3 + $0x1a0] sm:$0xff]
    %v7146 = vld [vmem:[#allocation3 + $0x1a8] sm:$0xff]
    %v7147 = vld [vmem:[#allocation3 + $0x1b0] sm:$0xff]
    %v7148 = vld [vmem:[#allocation3 + $0x1b8] sm:$0xff]
    %v7149 = vld [vmem:[#allocation3 + $0x1c0] sm:$0xff]
    %v7150 = vld [vmem:[#allocation3 + $0x1c8] sm:$0xff]
    %v7151 = vld [vmem:[#allocation3 + $0x1d0] sm:$0xff]
    %v7152 = vld [vmem:[#allocation3 + $0x1d8] sm:$0xff]
    %v7153 = vld [vmem:[#allocation3 + $0x1e0] sm:$0xff]
    %v7154 = vld [vmem:[#allocation3 + $0x1e8] sm:$0xff]
    %v7155 = vld [vmem:[#allocation3 + $0x1f0] sm:$0xff]
    %v7156 = vld [vmem:[#allocation3 + $0x1f8] sm:$0xff]
    %v7157 = vld [vmem:[#allocation3 + $0x200] sm:$0xff]
    %v7158 = vld [vmem:[#allocation3 + $0x208] sm:$0xff]
    %v7159 = vld [vmem:[#allocation3 + $0x210] sm:$0xff]
    %v7160 = vld [vmem:[#allocation3 + $0x218] sm:$0xff]
    %v7161 = vld [vmem:[#allocation3 + $0x220] sm:$0xff]
    %v7162 = vld [vmem:[#allocation3 + $0x228] sm:$0xff]
    %v7163 = vld [vmem:[#allocation3 + $0x230] sm:$0xff]
    %v7164 = vld [vmem:[#allocation3 + $0x238] sm:$0xff]
    %v7165 = vld [vmem:[#allocation3 + $0x240] sm:$0xff]
    %v7166 = vld [vmem:[#allocation3 + $0x248] sm:$0xff]
    %v7167 = vld [vmem:[#allocation3 + $0x250] sm:$0xff]
    %v7168 = vld [vmem:[#allocation3 + $0x258] sm:$0xff]
    %v7169 = vld [vmem:[#allocation3 + $0x260] sm:$0xff]
    %v7170 = vld [vmem:[#allocation3 + $0x268] sm:$0xff]
    %v7171 = vld [vmem:[#allocation3 + $0x270] sm:$0xff]
    %v7172 = vld [vmem:[#allocation3 + $0x278] sm:$0xff]
    %v7173 = vld [vmem:[#allocation3 + $0x280] sm:$0xff]
    %v7174 = vld [vmem:[#allocation3 + $0x288] sm:$0xff]
    %v7175 = vld [vmem:[#allocation3 + $0x290] sm:$0xff]
    %v7176 = vld [vmem:[#allocation3 + $0x298] sm:$0xff]
    %v7177 = vld [vmem:[#allocation3 + $0x2a0] sm:$0xff]
    %v7178 = vld [vmem:[#allocation3 + $0x2a8] sm:$0xff]
    %v7179 = vld [vmem:[#allocation3 + $0x2b0] sm:$0xff]
    %v7180 = vld [vmem:[#allocation3 + $0x2b8] sm:$0xff]
    %v7181 = vpack.c.bf16 %v7097, %v7093
    %v7182 = vpack.c.bf16 %v7098, %v7094
    %v7183 = vpack.c.bf16 %v7099, %v7095
    %v7184 = vpack.c.bf16 %v7100, %v7096
    %v7185 = vpack.c.bf16 %v7105, %v7101
    %v7186 = vpack.c.bf16 %v7106, %v7102
    %v7187 = vpack.c.bf16 %v7107, %v7103
    %v7188 = vpack.c.bf16 %v7108, %v7104
    %v7189 = vpack.c.bf16 %v7113, %v7109
    %v7190 = vpack.c.bf16 %v7114, %v7110
    %v7191 = vpack.c.bf16 %v7115, %v7111
    %v7192 = vpack.c.bf16 %v7116, %v7112
    %v7193 = vpack.c.bf16 %v7121, %v7117
    %v7194 = vpack.c.bf16 %v7122, %v7118
    %v7195 = vpack.c.bf16 %v7123, %v7119
    %v7196 = vpack.c.bf16 %v7124, %v7120
    %v7197 = vpack.c.bf16 %v7129, %v7125
    %v7198 = vpack.c.bf16 %v7130, %v7126
    %v7199 = vpack.c.bf16 %v7131, %v7127
    %v7200 = vpack.c.bf16 %v7132, %v7128
    %v7201 = vpack.c.bf16 %v7137, %v7133
    %v7202 = vpack.c.bf16 %v7138, %v7134
    %v7203 = vpack.c.bf16 %v7139, %v7135
    %v7204 = vpack.c.bf16 %v7140, %v7136
    %v7205 = vpack.c.bf16 %v7145, %v7141
    %v7206 = vpack.c.bf16 %v7146, %v7142
    %v7207 = vpack.c.bf16 %v7147, %v7143
    %v7208 = vpack.c.bf16 %v7148, %v7144
    %v7209 = vpack.c.bf16 %v7153, %v7149
    %v7210 = vpack.c.bf16 %v7154, %v7150
    %v7211 = vpack.c.bf16 %v7155, %v7151
    %v7212 = vpack.c.bf16 %v7156, %v7152
    %v7213 = vpack.c.bf16 %v7161, %v7157
    %v7214 = vpack.c.bf16 %v7162, %v7158
    %v7215 = vpack.c.bf16 %v7163, %v7159
    %v7216 = vpack.c.bf16 %v7164, %v7160
    %v7217 = vpack.c.bf16 %v7169, %v7165
    %v7218 = vpack.c.bf16 %v7170, %v7166
    %v7219 = vpack.c.bf16 %v7171, %v7167
    %v7220 = vpack.c.bf16 %v7172, %v7168
    %v7221 = vpack.c.bf16 %v7177, %v7173
    %v7222 = vpack.c.bf16 %v7178, %v7174
    %v7223 = vpack.c.bf16 %v7179, %v7175
    %v7224 = vpack.c.bf16 %v7180, %v7176
    %v7225 = vld [vmem:[%s9] sm:$0xf]
    %v7226 = vld [vmem:[%s9 + $0x4] sm:$0xf]
    %v7227 = vld [vmem:[%s9 + $0x8] sm:$0xf]
    %v7228 = vld [vmem:[%s9 + $0xc] sm:$0xf]
    %v7229 = vld [vmem:[%s9 + $0x10] sm:$0xf]
    %v7230 = vld [vmem:[%s9 + $0x14] sm:$0xf]
    %v7231 = vld [vmem:[%s9 + $0x18] sm:$0xf]
    %v7232 = vld [vmem:[%s9 + $0x1c] sm:$0xf]
    %v7233 = vld [vmem:[%s9 + $0x20] sm:$0xf]
    %v7234 = vld [vmem:[%s9 + $0x24] sm:$0xf]
    %v7235 = vld [vmem:[%s9 + $0x28] sm:$0xf]
    %v7236 = vld [vmem:[%s9 + $0x2c] sm:$0xf]
    %v7237 = vld [vmem:[%s9 + $0x30] sm:$0xf]
    %v7238 = vld [vmem:[%s9 + $0x34] sm:$0xf]
    %v7239 = vld [vmem:[%s9 + $0x38] sm:$0xf]
    %v7240 = vld [vmem:[%s9 + $0x3c] sm:$0xf]
    %v7241 = vld [vmem:[%s9 + $0x40] sm:$0xf]
    %v7242 = vld [vmem:[%s9 + $0x44] sm:$0xf]
    %v7243 = vld [vmem:[%s9 + $0x48] sm:$0xf]
    %v7244 = vld [vmem:[%s9 + $0x4c] sm:$0xf]
    %v7245 = vld [vmem:[%s9 + $0x50] sm:$0xf]
    %v7246 = vld [vmem:[%s9 + $0x54] sm:$0xf]
    %v7247 = vld [vmem:[%s9 + $0x58] sm:$0xf]
    %v7248 = vld [vmem:[%s9 + $0x5c] sm:$0xf]
    %v7249 = vld [vmem:[%s9 + $0x60] sm:$0xf]
    %v7250 = vld [vmem:[%s9 + $0x64] sm:$0xf]
    %v7251 = vld [vmem:[%s9 + $0x68] sm:$0xf]
    %v7252 = vld [vmem:[%s9 + $0x6c] sm:$0xf]
    %v7253 = vld [vmem:[%s9 + $0x70] sm:$0xf]
    %v7254 = vld [vmem:[%s9 + $0x74] sm:$0xf]
    %v7255 = vld [vmem:[%s9 + $0x78] sm:$0xf]
    %v7256 = vld [vmem:[%s9 + $0x7c] sm:$0xf]
    %v7257 = vld [vmem:[%s9 + $0x80] sm:$0xf]
    %v7258 = vld [vmem:[%s9 + $0x84] sm:$0xf]
    %v7259 = vld [vmem:[%s9 + $0x88] sm:$0xf]
    %v7260 = vld [vmem:[%s9 + $0x8c] sm:$0xf]
    %v7261 = vld [vmem:[%s9 + $0x90] sm:$0xf]
    %v7262 = vld [vmem:[%s9 + $0x94] sm:$0xf]
    %v7263 = vld [vmem:[%s9 + $0x98] sm:$0xf]
    %v7264 = vld [vmem:[%s9 + $0x9c] sm:$0xf]
    %v7265 = vld [vmem:[%s9 + $0xa0] sm:$0xf]
    %v7266 = vld [vmem:[%s9 + $0xa4] sm:$0xf]
    %v7267 = vld [vmem:[%s9 + $0xa8] sm:$0xf]
    %v7268 = vld [vmem:[%s9 + $0xac] sm:$0xf]
    %v7269 = vld [vmem:[%s9 + $0xb0] sm:$0xf]
    %v7270 = vld [vmem:[%s9 + $0xb4] sm:$0xf]
    %v7271 = vld [vmem:[%s9 + $0xb8] sm:$0xf]
    %v7272 = vld [vmem:[%s9 + $0xbc] sm:$0xf]
    %v7273 = vld [vmem:[%s9 + $0xc0] sm:$0xf]
    %v7274 = vld [vmem:[%s9 + $0xc4] sm:$0xf]
    %v7275 = vld [vmem:[%s9 + $0xc8] sm:$0xf]
    %v7276 = vld [vmem:[%s9 + $0xcc] sm:$0xf]
    %v7277 = vld [vmem:[%s9 + $0xd0] sm:$0xf]
    %v7278 = vld [vmem:[%s9 + $0xd4] sm:$0xf]
    %v7279 = vld [vmem:[%s9 + $0xd8] sm:$0xf]
    %v7280 = vld [vmem:[%s9 + $0xdc] sm:$0xf]
    %v7337 = vunpack.c.l.b16 %v7225
    %v7338 = vunpack.c.l.b16 %v7226
    %v7339 = vunpack.c.l.b16 %v7227
    %v7340 = vunpack.c.l.b16 %v7228
    %v7341 = vunpack.c.l.b16 %v7229
    %v7342 = vunpack.c.l.b16 %v7230
    %v7343 = vunpack.c.l.b16 %v7231
    %v7344 = vunpack.c.l.b16 %v7232
    %v7345 = vunpack.c.l.b16 %v7233
    %v7346 = vunpack.c.l.b16 %v7234
    %v7347 = vunpack.c.l.b16 %v7235
    %v7348 = vunpack.c.l.b16 %v7236
    %v7349 = vunpack.c.l.b16 %v7237
    %v7350 = vunpack.c.l.b16 %v7238
    %v7351 = vunpack.c.l.b16 %v7239
    %v7352 = vunpack.c.l.b16 %v7240
    %v7353 = vunpack.c.l.b16 %v7241
    %v7354 = vunpack.c.l.b16 %v7242
    %v7355 = vunpack.c.l.b16 %v7243
    %v7356 = vunpack.c.l.b16 %v7244
    %v7357 = vunpack.c.l.b16 %v7245
    %v7358 = vunpack.c.l.b16 %v7246
    %v7359 = vunpack.c.l.b16 %v7247
    %v7360 = vunpack.c.l.b16 %v7248
    %v7361 = vunpack.c.l.b16 %v7249
    %v7362 = vunpack.c.l.b16 %v7250
    %v7363 = vunpack.c.l.b16 %v7251
    %v7364 = vunpack.c.l.b16 %v7252
    %v7365 = vunpack.c.l.b16 %v7253
    %v7366 = vunpack.c.l.b16 %v7254
    %v7367 = vunpack.c.l.b16 %v7255
    %v7368 = vunpack.c.l.b16 %v7256
    %v7369 = vunpack.c.l.b16 %v7257
    %v7370 = vunpack.c.l.b16 %v7258
    %v7371 = vunpack.c.l.b16 %v7259
    %v7372 = vunpack.c.l.b16 %v7260
    %v7373 = vunpack.c.l.b16 %v7261
    %v7374 = vunpack.c.l.b16 %v7262
    %v7375 = vunpack.c.l.b16 %v7263
    %v7376 = vunpack.c.l.b16 %v7264
    %v7377 = vunpack.c.l.b16 %v7265
    %v7378 = vunpack.c.l.b16 %v7266
    %v7379 = vunpack.c.l.b16 %v7267
    %v7380 = vunpack.c.l.b16 %v7268
    %v7381 = vunpack.c.l.b16 %v7269
    %v7382 = vunpack.c.l.b16 %v7270
    %v7383 = vunpack.c.l.b16 %v7271
    %v7384 = vunpack.c.l.b16 %v7272
    %v7385 = vunpack.c.l.b16 %v7273
    %v7386 = vunpack.c.l.b16 %v7274
    %v7387 = vunpack.c.l.b16 %v7275
    %v7388 = vunpack.c.l.b16 %v7276
    %v7389 = vunpack.c.l.b16 %v7277
    %v7390 = vunpack.c.l.b16 %v7278
    %v7391 = vunpack.c.l.b16 %v7279
    %v7392 = vunpack.c.l.b16 %v7280
    %v7393 = vpack.c.b16 %v7338, %v7337
    %v7394 = vpack.c.b16 %v7340, %v7339
    %v7395 = vpack.c.b16 %v7342, %v7341
    %v7396 = vpack.c.b16 %v7344, %v7343
    %v7397 = vpack.c.b16 %v7346, %v7345
    %v7398 = vpack.c.b16 %v7348, %v7347
    %v7399 = vpack.c.b16 %v7350, %v7349
    %v7400 = vpack.c.b16 %v7352, %v7351
    %v7401 = vpack.c.b16 %v7354, %v7353
    %v7402 = vpack.c.b16 %v7356, %v7355
    %v7403 = vpack.c.b16 %v7358, %v7357
    %v7404 = vpack.c.b16 %v7360, %v7359
    %v7405 = vpack.c.b16 %v7362, %v7361
    %v7406 = vpack.c.b16 %v7364, %v7363
    %v7407 = vpack.c.b16 %v7366, %v7365
    %v7408 = vpack.c.b16 %v7368, %v7367
    %v7409 = vpack.c.b16 %v7370, %v7369
    %v7410 = vpack.c.b16 %v7372, %v7371
    %v7411 = vpack.c.b16 %v7374, %v7373
    %v7412 = vpack.c.b16 %v7376, %v7375
    %v7413 = vpack.c.b16 %v7378, %v7377
    %v7414 = vpack.c.b16 %v7380, %v7379
    %v7415 = vpack.c.b16 %v7382, %v7381
    %v7416 = vpack.c.b16 %v7384, %v7383
    %v7417 = vpack.c.b16 %v7386, %v7385
    %v7418 = vpack.c.b16 %v7388, %v7387
    %v7419 = vpack.c.b16 %v7390, %v7389
    %v7420 = vpack.c.b16 %v7392, %v7391
    %v7450 = vsel %vm65, %v7184, 0
    %v7453 = vsel %vm65, %v7188, 0
    %v7456 = vsel %vm65, %v7192, 0
    %v7459 = vsel %vm65, %v7196, 0
    %v7462 = vsel %vm65, %v7200, 0
    %v7465 = vsel %vm65, %v7204, 0
    %v7468 = vsel %vm65, %v7208, 0
    %v7471 = vsel %vm65, %v7212, 0
    %v7474 = vsel %vm65, %v7216, 0
    %v7477 = vsel %vm65, %v7220, 0
    %v7480 = vsel %vm65, %v7224, 0
    %7482 = vmatprep.subr.bf16.mxu0 0
    %7483 = vmatpush1.bf16.msra.mxu0 %v7393
    %7484 = vmatprep.subr.bf16.mxu0 0
    %7485 = vmatpush1.bf16.msra.mxu0 %v7394
    %7486 = vmatprep.subr.bf16.mxu0 0
    %7487 = vmatpush1.bf16.msra.mxu0 %v7395
    %7488 = vmatprep.subr.bf16.mxu0 0
    %7489 = vmatpush1.bf16.msra.mxu0 %v7396
    %7490 = vmatprep.subr.bf16.mxu0 0
    %7491 = vmatpush1.bf16.msra.mxu0 %v7397
    %7492 = vmatprep.subr.bf16.mxu0 0
    %7493 = vmatpush1.bf16.msra.mxu0 %v7398
    %7494 = vmatprep.subr.bf16.mxu0 0
    %7495 = vmatpush1.bf16.msra.mxu0 %v7399
    %7496 = vmatprep.subr.bf16.mxu0 0
    %7497 = vmatpush1.bf16.msra.mxu0 %v7400
    %7498 = vmatprep.subr.bf16.mxu0 0
    %7499 = vmatpush1.bf16.msra.mxu0 %v7401
    %7500 = vmatprep.subr.bf16.mxu0 0
    %7501 = vmatpush1.bf16.msra.mxu0 %v7402
    %7502 = vmatprep.subr.bf16.mxu0 0
    %7503 = vmatpush1.bf16.msra.mxu0 %v7403
    %7504 = vmatprep.subr.bf16.mxu0 0
    %7505 = vmatpush1.bf16.msra.mxu0 %v7404
    %7506 = vmatprep.subr.bf16.mxu0 0
    %7507 = vmatpush1.bf16.msra.mxu0 %v7405
    %7508 = vmatprep.subr.bf16.mxu0 0
    %7509 = vmatpush1.bf16.msra.mxu0 %v7406
    %7510 = vmatprep.subr.bf16.mxu0 0
    %7511 = vmatpush1.bf16.msra.mxu0 %v7407
    %7512 = vmatprep.subr.bf16.mxu0 0
    %7513 = vmatpush1.bf16.msra.mxu0 %v7408
    %7514 = vmatprep.mubr.bf16.mxu0 %v7182
    %7515 = vmatmul.mubr.bf16.gmra.mrb[0].mxu0 %v7181
    %v7516 = vpop.f32.mrb[0].mxu0
    %v7517 = vadd.f32 0.0, %v7516
    %v7518 = vpop.f32.mrb[0].mxu0
    %v7519 = vpop.f32.mrb[0].mxu0
    %v7520 = vadd.f32 0.0, %v7519
    %v7521 = vpop.f32.mrb[0].mxu0
    %7522 = vmatprep.mubr.bf16.mxu0 %v7186
    %7523 = vmatmul.mubr.bf16.gmra.mrb[0].mxu0 %v7185
    %v7524 = vpop.f32.mrb[0].mxu0
    %v7525 = vadd.f32 0.0, %v7524
    %v7526 = vpop.f32.mrb[0].mxu0
    %v7527 = vpop.f32.mrb[0].mxu0
    %v7528 = vadd.f32 0.0, %v7527
    %v7529 = vpop.f32.mrb[0].mxu0
    %7530 = vmatprep.mubr.bf16.mxu0 %v7190
    %7531 = vmatmul.mubr.bf16.gmra.mrb[0].mxu0 %v7189
    %v7532 = vpop.f32.mrb[0].mxu0
    %v7533 = vadd.f32 0.0, %v7532
    %v7534 = vpop.f32.mrb[0].mxu0
    %v7535 = vpop.f32.mrb[0].mxu0
    %v7536 = vadd.f32 0.0, %v7535
    %v7537 = vpop.f32.mrb[0].mxu0
    %7538 = vmatprep.mubr.bf16.mxu0 %v7194
    %7539 = vmatmul.mubr.bf16.gmra.mrb[0].mxu0 %v7193
    %v7540 = vpop.f32.mrb[0].mxu0
    %v7541 = vadd.f32 0.0, %v7540
    %v7542 = vpop.f32.mrb[0].mxu0
    %v7543 = vpop.f32.mrb[0].mxu0
    %v7544 = vadd.f32 0.0, %v7543
    %v7545 = vpop.f32.mrb[0].mxu0
    %7546 = vmatprep.mubr.bf16.mxu0 %v7198
    %7547 = vmatmul.mubr.bf16.gmra.mrb[0].mxu0 %v7197
    %v7548 = vpop.f32.mrb[0].mxu0
    %v7549 = vadd.f32 0.0, %v7548
    %v7550 = vpop.f32.mrb[0].mxu0
    %v7551 = vpop.f32.mrb[0].mxu0
    %v7552 = vadd.f32 0.0, %v7551
    %v7553 = vpop.f32.mrb[0].mxu0
    %7554 = vmatprep.mubr.bf16.mxu0 %v7202
    %7555 = vmatmul.mubr.bf16.gmra.mrb[0].mxu0 %v7201
    %v7556 = vpop.f32.mrb[0].mxu0
    %v7557 = vadd.f32 0.0, %v7556
    %v7558 = vpop.f32.mrb[0].mxu0
    %v7559 = vpop.f32.mrb[0].mxu0
    %v7560 = vadd.f32 0.0, %v7559
    %v7561 = vpop.f32.mrb[0].mxu0
    %7562 = vmatprep.mubr.bf16.mxu0 %v7206
    %7563 = vmatmul.mubr.bf16.gmra.mrb[0].mxu0 %v7205
    %v7564 = vpop.f32.mrb[0].mxu0
    %v7565 = vadd.f32 0.0, %v7564
    %v7566 = vpop.f32.mrb[0].mxu0
    %v7567 = vpop.f32.mrb[0].mxu0
    %v7568 = vadd.f32 0.0, %v7567
    %v7569 = vpop.f32.mrb[0].mxu0
    %7570 = vmatprep.mubr.bf16.mxu0 %v7210
    %7571 = vmatmul.mubr.bf16.gmra.mrb[0].mxu0 %v7209
    %v7572 = vpop.f32.mrb[0].mxu0
    %v7573 = vadd.f32 0.0, %v7572
    %v7574 = vpop.f32.mrb[0].mxu0
    %v7575 = vpop.f32.mrb[0].mxu0
    %v7576 = vadd.f32 0.0, %v7575
    %v7577 = vpop.f32.mrb[0].mxu0
    %7578 = vmatprep.mubr.bf16.mxu0 %v7214
    %7579 = vmatmul.mubr.bf16.gmra.mrb[0].mxu0 %v7213
    %v7580 = vpop.f32.mrb[0].mxu0
    %v7581 = vadd.f32 0.0, %v7580
    %v7582 = vpop.f32.mrb[0].mxu0
    %v7583 = vpop.f32.mrb[0].mxu0
    %v7584 = vadd.f32 0.0, %v7583
    %v7585 = vpop.f32.mrb[0].mxu0
    %7586 = vmatprep.mubr.bf16.mxu0 %v7218
    %7587 = vmatmul.mubr.bf16.gmra.mrb[0].mxu0 %v7217
    %v7588 = vpop.f32.mrb[0].mxu0
    %v7589 = vadd.f32 0.0, %v7588
    %v7590 = vpop.f32.mrb[0].mxu0
    %v7591 = vpop.f32.mrb[0].mxu0
    %v7592 = vadd.f32 0.0, %v7591
    %v7593 = vpop.f32.mrb[0].mxu0
    %7594 = vmatprep.mubr.bf16.mxu0 %v7222
    %7595 = vmatmul.mubr.bf16.gmra.mrb[0].mxu0 %v7221
    %v7596 = vpop.f32.mrb[0].mxu0
    %v7597 = vadd.f32 0.0, %v7596
    %v7598 = vpop.f32.mrb[0].mxu0
    %v7599 = vpop.f32.mrb[0].mxu0
    %v7600 = vadd.f32 0.0, %v7599
    %v7601 = vpop.f32.mrb[0].mxu0
    %7602 = vdwg.mxu0
    %7603 = vmatprep.subr.bf16.mxu0 0
    %7604 = vmatpush1.bf16.msra.mxu0 %v7409
    %7605 = vmatprep.subr.bf16.mxu0 0
    %7606 = vmatpush1.bf16.msra.mxu0 %v7410
    %7607 = vmatprep.subr.bf16.mxu0 0
    %7608 = vmatpush1.bf16.msra.mxu0 %v7411
    %7609 = vmatprep.subr.bf16.mxu0 0
    %7610 = vmatpush1.bf16.msra.mxu0 %v7412
    %7611 = vmatprep.subr.bf16.mxu0 0
    %7612 = vmatpush1.bf16.msra.mxu0 %v7413
    %7613 = vmatprep.subr.bf16.mxu0 0
    %7614 = vmatpush1.bf16.msra.mxu0 %v7414
    %7615 = vmatprep.subr.bf16.mxu0 0
    %7616 = vmatpush1.bf16.msra.mxu0 %v7415
    %7617 = vmatprep.subr.bf16.mxu0 0
    %7618 = vmatpush1.bf16.msra.mxu0 %v7416
    %7619 = vmatprep.subr.bf16.mxu0 0
    %7620 = vmatpush1.bf16.msra.mxu0 %v7417
    %7621 = vmatprep.subr.bf16.mxu0 0
    %7622 = vmatpush1.bf16.msra.mxu0 %v7418
    %7623 = vmatprep.subr.bf16.mxu0 0
    %7624 = vmatpush1.bf16.msra.mxu0 %v7419
    %7625 = vmatprep.subr.bf16.mxu0 0
    %7626 = vmatpush1.bf16.msra.mxu0 %v7420
    %7627 = vmatprep.subr.bf16.mxu0 0
    %7628 = vmatpush1.bf16.msra.mxu0 0
    %7629 = vmatprep.subr.bf16.mxu0 0
    %7630 = vmatpush1.bf16.msra.mxu0 0
    %7631 = vmatprep.subr.bf16.mxu0 0
    %7632 = vmatpush1.bf16.msra.mxu0 0
    %7633 = vmatprep.subr.bf16.mxu0 0
    %7634 = vmatpush1.bf16.msra.mxu0 0
    %7635 = vmatprep.mubr.bf16.mxu0 %v7450
    %7636 = vmatmul.mubr.bf16.gmra.mrb[0].mxu0 %v7183
    %v7637 = vpop.f32.mrb[0].mxu0
    %v7638 = vadd.f32 %v7517, %v7637
    %v7639 = vpop.f32.mrb[0].mxu0
    %v7640 = vpop.f32.mrb[0].mxu0
    %v7641 = vadd.f32 %v7520, %v7640
    %v7642 = vpop.f32.mrb[0].mxu0
    %7643 = vmatprep.mubr.bf16.mxu0 %v7453
    %7644 = vmatmul.mubr.bf16.gmra.mrb[0].mxu0 %v7187
    %v7645 = vpop.f32.mrb[0].mxu0
    %v7646 = vadd.f32 %v7525, %v7645
    %v7647 = vpop.f32.mrb[0].mxu0
    %v7648 = vpop.f32.mrb[0].mxu0
    %v7649 = vadd.f32 %v7528, %v7648
    %v7650 = vpop.f32.mrb[0].mxu0
    %7651 = vmatprep.mubr.bf16.mxu0 %v7456
    %7652 = vmatmul.mubr.bf16.gmra.mrb[0].mxu0 %v7191
    %v7653 = vpop.f32.mrb[0].mxu0
    %v7654 = vadd.f32 %v7533, %v7653
    %v7655 = vpop.f32.mrb[0].mxu0
    %v7656 = vpop.f32.mrb[0].mxu0
    %v7657 = vadd.f32 %v7536, %v7656
    %v7658 = vpop.f32.mrb[0].mxu0
    %7659 = vmatprep.mubr.bf16.mxu0 %v7459
    %7660 = vmatmul.mubr.bf16.gmra.mrb[0].mxu0 %v7195
    %v7661 = vpop.f32.mrb[0].mxu0
    %v7662 = vadd.f32 %v7541, %v7661
    %v7663 = vpop.f32.mrb[0].mxu0
    %v7664 = vpop.f32.mrb[0].mxu0
    %v7665 = vadd.f32 %v7544, %v7664
    %v7666 = vpop.f32.mrb[0].mxu0
    %7667 = vmatprep.mubr.bf16.mxu0 %v7462
    %7668 = vmatmul.mubr.bf16.gmra.mrb[0].mxu0 %v7199
    %v7669 = vpop.f32.mrb[0].mxu0
    %v7670 = vadd.f32 %v7549, %v7669
    %v7671 = vpop.f32.mrb[0].mxu0
    %v7672 = vpop.f32.mrb[0].mxu0
    %v7673 = vadd.f32 %v7552, %v7672
    %v7674 = vpop.f32.mrb[0].mxu0
    %7675 = vmatprep.mubr.bf16.mxu0 %v7465
    %7676 = vmatmul.mubr.bf16.gmra.mrb[0].mxu0 %v7203
    %v7677 = vpop.f32.mrb[0].mxu0
    %v7678 = vadd.f32 %v7557, %v7677
    %v7679 = vpop.f32.mrb[0].mxu0
    %v7680 = vpop.f32.mrb[0].mxu0
    %v7681 = vadd.f32 %v7560, %v7680
    %v7682 = vpop.f32.mrb[0].mxu0
    %7683 = vmatprep.mubr.bf16.mxu0 %v7468
    %7684 = vmatmul.mubr.bf16.gmra.mrb[0].mxu0 %v7207
    %v7685 = vpop.f32.mrb[0].mxu0
    %v7686 = vadd.f32 %v7565, %v7685
    %v7687 = vpop.f32.mrb[0].mxu0
    %v7688 = vpop.f32.mrb[0].mxu0
    %v7689 = vadd.f32 %v7568, %v7688
    %v7690 = vpop.f32.mrb[0].mxu0
    %7691 = vmatprep.mubr.bf16.mxu0 %v7471
    %7692 = vmatmul.mubr.bf16.gmra.mrb[0].mxu0 %v7211
    %v7693 = vpop.f32.mrb[0].mxu0
    %v7694 = vadd.f32 %v7573, %v7693
    %v7695 = vpop.f32.mrb[0].mxu0
    %v7696 = vpop.f32.mrb[0].mxu0
    %v7697 = vadd.f32 %v7576, %v7696
    %v7698 = vpop.f32.mrb[0].mxu0
    %7699 = vmatprep.mubr.bf16.mxu0 %v7474
    %7700 = vmatmul.mubr.bf16.gmra.mrb[0].mxu0 %v7215
    %v7701 = vpop.f32.mrb[0].mxu0
    %v7702 = vadd.f32 %v7581, %v7701
    %v7703 = vpop.f32.mrb[0].mxu0
    %v7704 = vpop.f32.mrb[0].mxu0
    %v7705 = vadd.f32 %v7584, %v7704
    %v7706 = vpop.f32.mrb[0].mxu0
    %7707 = vmatprep.mubr.bf16.mxu0 %v7477
    %7708 = vmatmul.mubr.bf16.gmra.mrb[0].mxu0 %v7219
    %v7709 = vpop.f32.mrb[0].mxu0
    %v7710 = vadd.f32 %v7589, %v7709
    %v7711 = vpop.f32.mrb[0].mxu0
    %v7712 = vpop.f32.mrb[0].mxu0
    %v7713 = vadd.f32 %v7592, %v7712
    %v7714 = vpop.f32.mrb[0].mxu0
    %7715 = vmatprep.mubr.bf16.mxu0 %v7480
    %7716 = vmatmul.mubr.bf16.gmra.mrb[0].mxu0 %v7223
    %v7717 = vpop.f32.mrb[0].mxu0
    %v7718 = vadd.f32 %v7597, %v7717
    %v7719 = vpop.f32.mrb[0].mxu0
    %v7720 = vpop.f32.mrb[0].mxu0
    %v7721 = vadd.f32 %v7600, %v7720
    %v7722 = vpop.f32.mrb[0].mxu0
    %7723 = vdwg.mxu0
    %v7724 = vld [vmem:[%s10] sm:$0xf]
    %v7725 = vld [vmem:[%s11] sm:$0x1]
    %v7727 = vlaneseq
    %v7728 = vshrl.u32 %v7727, 7
    %v7729 = vsub.s32 0, %v7728
    %v7730 = vrot.slane %v7725, %v7729
    %v7734 = vunpack.c.l.s4 1983009808
    %v7735 = vunpack.c.0.s8 %v7734
    %v7736 = vlaneseq
    %v7737 = vshrl.u32 %v7736, 7
    %v7738 = vsub.s32 %v7735, %v7737
    %v7739 = vrot.slane %v7724, %v7738
    %v7740 = vcombine.high %v7739, %v7739
    %vm7742 = vcmask 392192
    %v7743 = vsel %vm7742, %v7740, 0
    %7745 = vmatprep.subr.mxu0 0.0
    %7746 = vmatpush1.msra.mxu0 %v7638
    %7747 = vmatprep.subr.mxu0 0.0
    %7748 = vmatpush1.msra.mxu0 %v7641
    %7749 = vmatprep.subr.mxu0 0.0
    %7750 = vmatpush1.msra.mxu0 %v7646
    %7751 = vmatprep.subr.mxu0 0.0
    %7752 = vmatpush1.msra.mxu0 %v7649
    %7753 = vmatprep.subr.mxu0 0.0
    %7754 = vmatpush1.msra.mxu0 %v7654
    %7755 = vmatprep.subr.mxu0 0.0
    %7756 = vmatpush1.msra.mxu0 %v7657
    %7757 = vmatprep.subr.mxu0 0.0
    %7758 = vmatpush1.msra.mxu0 %v7662
    %7759 = vmatprep.subr.mxu0 0.0
    %7760 = vmatpush1.msra.mxu0 %v7665
    %7761 = vmatprep.subr.mxu0 0.0
    %7762 = vmatpush1.msra.mxu0 %v7670
    %7763 = vmatprep.subr.mxu0 0.0
    %7764 = vmatpush1.msra.mxu0 %v7673
    %7765 = vmatprep.subr.mxu0 0.0
    %7766 = vmatpush1.msra.mxu0 %v7678
    %7767 = vmatprep.subr.mxu0 0.0
    %7768 = vmatpush1.msra.mxu0 %v7681
    %7769 = vmatprep.subr.mxu0 0.0
    %7770 = vmatpush1.msra.mxu0 %v7686
    %7771 = vmatprep.subr.mxu0 0.0
    %7772 = vmatpush1.msra.mxu0 %v7689
    %7773 = vmatprep.subr.mxu0 0.0
    %7774 = vmatpush1.msra.mxu0 %v7694
    %7775 = vmatprep.subr.mxu0 0.0
    %7776 = vmatpush1.msra.mxu0 %v7697
    %7777 = vmatprep.subr.mxu0 0.0
    %7778 = vmatpush1.msra.mxu0 %v7702
    %7779 = vmatprep.subr.mxu0 0.0
    %7780 = vmatpush1.msra.mxu0 %v7705
    %7781 = vmatprep.subr.mxu0 0.0
    %7782 = vmatpush1.msra.mxu0 %v7710
    %7783 = vmatprep.subr.mxu0 0.0
    %7784 = vmatpush1.msra.mxu0 %v7713
    %7785 = vmatprep.subr.mxu0 0.0
    %7786 = vmatpush1.msra.mxu0 %v7718
    %7787 = vmatprep.subr.mxu0 0.0
    %7788 = vmatpush1.msra.mxu0 %v7721
    %7789 = vmatprep.subr.mxu0 0.0
    %7790 = vmatpush1.msra.mxu0 0.0
    %7791 = vmatprep.subr.mxu0 0.0
    %7792 = vmatpush1.msra.mxu0 0.0
    %7793 = vmatprep.subr.mxu0 0.0
    %7794 = vmatpush1.msra.mxu0 0.0
    %7795 = vmatprep.subr.mxu0 0.0
    %7796 = vmatpush1.msra.mxu0 0.0
    %7797 = vmatprep.subr.mxu0 0.0
    %7798 = vmatpush1.msra.mxu0 0.0
    %7799 = vmatprep.subr.mxu0 0.0
    %7800 = vmatpush1.msra.mxu0 0.0
    %7801 = vmatprep.subr.mxu0 0.0
    %7802 = vmatpush1.msra.mxu0 0.0
    %7803 = vmatprep.subr.mxu0 0.0
    %7804 = vmatpush1.msra.mxu0 0.0
    %7805 = vmatprep.subr.mxu0 0.0
    %7806 = vmatpush1.msra.mxu0 0.0
    %7807 = vmatprep.subr.mxu0 0.0
    %7808 = vmatpush1.msra.mxu0 0.0
    %7809 = vmatprep.mubr.f32.mxu0 %v7743
    %7810 = vmatmul.mubr.f32.gmra.mrb[0].mxu0 %v7739
    %v7811 = vpop.f32.mrb[0].mxu0
    %v7812 = vadd.f32 %v7730, %v7811
    %v7813 = vpop.f32.mrb[0].mxu0
    %7814 = vdwg.mxu0
    %v7815 = vmax.f32 %v7812, 0.0
    %v7816 = vand.u32 2147483647, %v7812
    %v7817 = vsub.f32 0.0, %v7816
    %v7818 = vmul.f32 %v7817, 1.442695
    %v7819 = vpow.pop %v7818
    %v7820 = vadd.f32 %v7819, 1.0
    %v7821 = vlog2.pop %v7820
    %v7822 = vmul.f32 %v7821, 0.6931472
    %v7823 = vadd.f32 %v7815, %v7822
    %v7824 = vsub.f32 0.0, %v7812
    %v7825 = vmul.f32 %v7824, 1.442695
    %v7826 = vpow.pop %v7825
    %v7827 = vadd.f32 %v7826, 1.0
    %v7828 = vrcp.pop %v7827
    %v7829 = vmul.f32 1.0, %v7828
    %v7830 = vlaneseq
    %v7831 = vand.u32 %v7830, 127
    %vm7832 = vcmp.lt.s32.totalorder %v7831, 3
    %vm7833 = vcmp.lt.s32.totalorder %v7831, 6
    %v7834 = vsel %vm7833, %v7823, %v7829
    %v7835 = vsel %vm7832, %v7812, %v7834
    %vm7836 = vcmask 50176
    %7837 = vst.msk [vmem:[#allocation4] sm:$0x3] %vm7836, %v7835
    // Predicated region
    $region50: #{small_cnn_forward.1} parent=1 // pred_check
      _
    $region51: #{small_cnn_forward.1} parent=1 // pred_check_branch
      %7839 = sbr.rel (0) target = $region53
    $region52: #{small_cnn_forward.1} parent=1 // pred_region
      %s7841 = ssub.s32 32, 32
      %7842 = vsyncadd [#allocation5], %s7841
      %s7844 = sshll.u32 [#allocation4], 4
      %s7845 = int_to_ptr.vmem [resolvable:$true] %s7844
      %7847 = dma.vmem_to_hbm [thread:$0]  %s7845, 32, %s12, [#allocation5]
    $region53: #{small_cnn_forward.1} parent=1 // pred_fallthru
      _
    // Predicated region
    $region54: #{small_cnn_forward.1} parent=1 // pred_check
      _
    $region55: #{small_cnn_forward.1} parent=1 // pred_check_branch
      %7849 = sbr.rel (0) target = $region57
    $region56: #{small_cnn_forward.1} parent=1 // pred_region
      %7850 = dma.done [#allocation5], 32
    $region57: #{small_cnn_forward.1} parent=1 // pred_fallthru
      _
    %7851 = vsyncpa [#allocation5], 1

</llo_original>
